<compile_context>
chip_gen: v7x
topology: tpu7x:2x2x1
jax: 0.10.0
libtpu: 0.0.40
codegen_flags: <defaults>
</compile_context>

<pallas_src>
import math
from functools import partial

import jax
import jax.numpy as jnp
from jax import lax
from jax.experimental import pallas as pl
from jax.experimental.pallas import tpu as pltpu


# ---------------------------------------------------------------------------
# Fused Pallas kernel: per-image conv(ks, stride1) + bias + ReLU + maxpool(2,2,pad1)
# ---------------------------------------------------------------------------
def _fc1_fused_kernel(w_ref, b_ref, x_ref, o_ref, *, C, F, ks, Ho, Wo, Hp, Wp):
    """
    w_ref : SMEM (F*C*ks*ks,) f32  -- PyTorch (F, C, kh, kw) weight, flattened
    b_ref : SMEM (F,) f32
    x_ref : VMEM (C, H+2p, W+2p) f32 -- spatially pre-padded image (one batch elem)
    o_ref : VMEM (F, Hp, Wp) f32     -- pooled output block (NCHW layout)
    """
    # One-hot pool-selection matrices from 2-D iotas.  Row phase a / col phase b
    # pick conv row 2p-1+a and conv col 2q-1+b; out-of-range indices give an
    # all-zero selector row, which reproduces the -inf pool padding exactly
    # because the ReLU output is non-negative.
    p_i = lax.broadcasted_iota(jnp.int32, (Hp, Ho), 0)
    r_i = lax.broadcasted_iota(jnp.int32, (Hp, Ho), 1)
    row_sel = [(r_i == 2 * p_i - 1 + a).astype(jnp.float32) for a in range(2)]
    s_i = lax.broadcasted_iota(jnp.int32, (Wo, Wp), 0)
    q_i = lax.broadcasted_iota(jnp.int32, (Wo, Wp), 1)
    col_sel = [(s_i == 2 * q_i - 1 + b).astype(jnp.float32) for b in range(2)]

    # ks*ks*C shifted views of the padded image: unit-stride static slices of the
    # VMEM tile.  The im2col matrix never exists in HBM.
    planes = [x_ref[c, dy:dy + Ho, dx:dx + Wo]
              for c in range(C) for dy in range(ks) for dx in range(ks)]

    K = C * ks * ks
    for f in range(F):
        # Direct conv on the VPU with SMEM scalar weights (K=16 terms).
        acc = jnp.zeros((Ho, Wo), jnp.float32)
        for k in range(K):
            acc = acc + w_ref[f * K + k] * planes[k]
        conv = jnp.maximum(acc + b_ref[f], 0.0)                    # bias + ReLU

        # MaxPool(2, stride=2, pad=1): max over the 4 (row-phase, col-phase)
        # one-hot gathers (exact MXU matmuls; MXU is otherwise idle).
        rows = [jnp.dot(row_sel[a], conv, preferred_element_type=jnp.float32)
                for a in range(2)]                                  # (Hp, Wo)
        pooled = None
        for a in range(2):
            for b in range(2):
                cand = jnp.dot(rows[a], col_sel[b],
                               preferred_element_type=jnp.float32)  # (Hp, Wp)
                pooled = cand if pooled is None else jnp.maximum(pooled, cand)
        o_ref[f, :, :] = pooled


# ---------------------------------------------------------------------------
# Wrapper: NCHW in -> NCHW out, one fused pallas_call, grid over batch
# ---------------------------------------------------------------------------
@partial(jax.jit, static_argnames=("ks", "conv_pad"))
def fc1_forward(x_nchw, weight, bias, *, ks=2, conv_pad=1):
    """x (N,C,H,W), weight (F,C,ks,ks) [PyTorch layout], bias (F,) -> (N,F,Hp,Wp)."""
    N, C, H, W = x_nchw.shape
    F = weight.shape[0]
    Hpad, Wpad = H + 2 * conv_pad, W + 2 * conv_pad
    Ho, Wo = Hpad - ks + 1, Wpad - ks + 1          # conv output (stride 1)
    Hp, Wp = Ho // 2 + 1, Wo // 2 + 1              # maxpool(2, stride 2, pad 1)

    xpad = jnp.pad(x_nchw.astype(jnp.float32),
                   ((0, 0), (0, 0), (conv_pad, conv_pad), (conv_pad, conv_pad)))
    w_flat = weight.astype(jnp.float32).reshape(-1)
    b = bias.astype(jnp.float32)

    kernel = partial(_fc1_fused_kernel, C=C, F=F, ks=ks,
                     Ho=Ho, Wo=Wo, Hp=Hp, Wp=Wp)

    return pl.pallas_call(
        kernel,
        out_shape=jax.ShapeDtypeStruct((N, F, Hp, Wp), jnp.float32),
        grid_spec=pltpu.PrefetchScalarGridSpec(
            num_scalar_prefetch=0,
            grid=(N,),                                         # 2 steps -> both v7x TCs
            in_specs=[
                pl.BlockSpec(memory_space=pltpu.MemorySpace.SMEM),   # weights (scalars)
                pl.BlockSpec(memory_space=pltpu.MemorySpace.SMEM),   # bias (scalars)
                pl.BlockSpec((None, C, Hpad, Wpad), lambda n: (n, 0, 0, 0)),
            ],
            out_specs=pl.BlockSpec((None, F, Hp, Wp), lambda n: (n, 0, 0, 0)),
        ),
        compiler_params=pltpu.CompilerParams(
            dimension_semantics=("parallel",)),
    )(w_flat, b, xpad)


# ---------------------------------------------------------------------------
# Pure-JAX reference (validation only)
# ---------------------------------------------------------------------------
def fc1_reference(x_nchw, weight, bias, *, ks=2, conv_pad=1):
    conv = lax.conv_general_dilated(
        x_nchw.astype(jnp.float32), weight.astype(jnp.float32),
        window_strides=(1, 1),
        padding=((conv_pad, conv_pad), (conv_pad, conv_pad)),
        dimension_numbers=("NCHW", "OIHW", "NCHW"))
    conv = jnp.maximum(conv + bias.reshape(1, -1, 1, 1), 0.0)
    return lax.reduce_window(
        conv, -jnp.inf, lax.max,
        window_dimensions=(1, 1, 2, 2), window_strides=(1, 1, 2, 2),
        padding=((0, 0), (0, 0), (1, 1), (1, 1)))


# ---------------------------------------------------------------------------
if __name__ == "__main__":
    N, ni, H, W = 2, 4, 16, 16
    nf, ks, pad = 8, 2, 1

    key = jax.random.PRNGKey(0)
    kx, kw, kb = jax.random.split(key, 3)

    x = jax.random.normal(kx, (N, ni, H, W), dtype=jnp.float32)

    # nn.Conv2d-style uniform(-1/sqrt(fan_in), 1/sqrt(fan_in)) init, torch layout.
    fan_in = ni * ks * ks
    bound = 1.0 / math.sqrt(fan_in)
    w = jax.random.uniform(kw, (nf, ni, ks, ks), jnp.float32, -bound, bound)
    b = jax.random.uniform(kb, (nf,), jnp.float32, -bound, bound)

    out = jax.block_until_ready(fc1_forward(x, w, b, ks=ks, conv_pad=pad))
    ref = fc1_reference(x, w, b, ks=ks, conv_pad=pad)

    assert out.shape == ref.shape, (out.shape, ref.shape)
    assert jnp.allclose(out, ref, rtol=1e-5, atol=1e-5), "mismatch vs reference"

    print("KERNEL_OK")
</pallas_src>

<mosaic_0001>
module attributes {stable_mosaic.version = 11 : i64} {
  func.func @_fc1_fused_kernel(%arg0: i32, %arg1: memref<128xf32, #tpu.memory_space<smem>>, %arg2: memref<8xf32, #tpu.memory_space<smem>>, %arg3: memref<1x4x18x18xf32, #tpu.memory_space<vmem>>, %arg4: memref<1x8x9x9xf32, #tpu.memory_space<vmem>>) attributes {dimension_semantics = [#tpu.dimension_semantics<parallel>], iteration_bounds = array<i64: 2>, scalar_prefetch = 0 : i64, scratch_operands = 0 : i64, tpu.core_type = #tpu.core_type<tc>, window_params = [{transform_indices = @transform_0, window_bounds = array<i64: 128>}, {transform_indices = @transform_1, window_bounds = array<i64: 8>}, {transform_indices = @transform_2, window_bounds = array<i64: 1, 4, 18, 18>}, {transform_indices = @transform_3, window_bounds = array<i64: 1, 8, 9, 9>}]} {
    %0 = tpu.iota {dimensions = array<i32: 0>} : vector<9x17xi32>
    %1 = tpu.iota {dimensions = array<i32: 1>} : vector<9x17xi32>
    %c2_i32 = arith.constant 2 : i32
    %2 = vector.broadcast %c2_i32 : i32 to vector<9x17xi32>
    %3 = arith.muli %2, %0 : vector<9x17xi32>
    %c1_i32 = arith.constant 1 : i32
    %4 = vector.broadcast %c1_i32 : i32 to vector<9x17xi32>
    %5 = arith.subi %3, %4 : vector<9x17xi32>
    %c0_i32 = arith.constant 0 : i32
    %6 = vector.broadcast %c0_i32 : i32 to vector<9x17xi32>
    %7 = arith.addi %5, %6 : vector<9x17xi32>
    %8 = arith.cmpi eq, %1, %7 : vector<9x17xi32>
    %9 = arith.extui %8 : vector<9x17xi1> to vector<9x17xi32>
    %10 = arith.sitofp %9 : vector<9x17xi32> to vector<9x17xf32>
    %c2_i32_0 = arith.constant 2 : i32
    %11 = vector.broadcast %c2_i32_0 : i32 to vector<9x17xi32>
    %12 = arith.muli %11, %0 : vector<9x17xi32>
    %c1_i32_1 = arith.constant 1 : i32
    %13 = vector.broadcast %c1_i32_1 : i32 to vector<9x17xi32>
    %14 = arith.subi %12, %13 : vector<9x17xi32>
    %c1_i32_2 = arith.constant 1 : i32
    %15 = vector.broadcast %c1_i32_2 : i32 to vector<9x17xi32>
    %16 = arith.addi %14, %15 : vector<9x17xi32>
    %17 = arith.cmpi eq, %1, %16 : vector<9x17xi32>
    %18 = arith.extui %17 : vector<9x17xi1> to vector<9x17xi32>
    %19 = arith.sitofp %18 : vector<9x17xi32> to vector<9x17xf32>
    %20 = tpu.iota {dimensions = array<i32: 0>} : vector<17x9xi32>
    %21 = tpu.iota {dimensions = array<i32: 1>} : vector<17x9xi32>
    %c2_i32_3 = arith.constant 2 : i32
    %22 = vector.broadcast %c2_i32_3 : i32 to vector<17x9xi32>
    %23 = arith.muli %22, %21 : vector<17x9xi32>
    %c1_i32_4 = arith.constant 1 : i32
    %24 = vector.broadcast %c1_i32_4 : i32 to vector<17x9xi32>
    %25 = arith.subi %23, %24 : vector<17x9xi32>
    %c0_i32_5 = arith.constant 0 : i32
    %26 = vector.broadcast %c0_i32_5 : i32 to vector<17x9xi32>
    %27 = arith.addi %25, %26 : vector<17x9xi32>
    %28 = arith.cmpi eq, %20, %27 : vector<17x9xi32>
    %29 = arith.extui %28 : vector<17x9xi1> to vector<17x9xi32>
    %30 = arith.sitofp %29 : vector<17x9xi32> to vector<17x9xf32>
    %c2_i32_6 = arith.constant 2 : i32
    %31 = vector.broadcast %c2_i32_6 : i32 to vector<17x9xi32>
    %32 = arith.muli %31, %21 : vector<17x9xi32>
    %c1_i32_7 = arith.constant 1 : i32
    %33 = vector.broadcast %c1_i32_7 : i32 to vector<17x9xi32>
    %34 = arith.subi %32, %33 : vector<17x9xi32>
    %c1_i32_8 = arith.constant 1 : i32
    %35 = vector.broadcast %c1_i32_8 : i32 to vector<17x9xi32>
    %36 = arith.addi %34, %35 : vector<17x9xi32>
    %37 = arith.cmpi eq, %20, %36 : vector<17x9xi32>
    %38 = arith.extui %37 : vector<17x9xi1> to vector<17x9xi32>
    %39 = arith.sitofp %38 : vector<17x9xi32> to vector<17x9xf32>
    %c0 = arith.constant 0 : index
    %c0_9 = arith.constant 0 : index
    %c0_10 = arith.constant 0 : index
    %c0_11 = arith.constant 0 : index
    %40 = vector.load %arg3[%c0, %c0_9, %c0_10, %c0_11] : memref<1x4x18x18xf32, #tpu.memory_space<vmem>>, vector<1x1x17x17xf32>
    %41 = vector.shape_cast %40 : vector<1x1x17x17xf32> to vector<17x17xf32>
    %c0_12 = arith.constant 0 : index
    %c0_13 = arith.constant 0 : index
    %c0_14 = arith.constant 0 : index
    %c1 = arith.constant 1 : index
    %42 = vector.load %arg3[%c0_12, %c0_13, %c0_14, %c1] : memref<1x4x18x18xf32, #tpu.memory_space<vmem>>, vector<1x1x17x17xf32>
    %43 = vector.shape_cast %42 : vector<1x1x17x17xf32> to vector<17x17xf32>
    %c0_15 = arith.constant 0 : index
    %c0_16 = arith.constant 0 : index
    %c1_17 = arith.constant 1 : index
    %c0_18 = arith.constant 0 : index
    %44 = vector.load %arg3[%c0_15, %c0_16, %c1_17, %c0_18] : memref<1x4x18x18xf32, #tpu.memory_space<vmem>>, vector<1x1x17x17xf32>
    %45 = vector.shape_cast %44 : vector<1x1x17x17xf32> to vector<17x17xf32>
    %c0_19 = arith.constant 0 : index
    %c0_20 = arith.constant 0 : index
    %c1_21 = arith.constant 1 : index
    %c1_22 = arith.constant 1 : index
    %46 = vector.load %arg3[%c0_19, %c0_20, %c1_21, %c1_22] : memref<1x4x18x18xf32, #tpu.memory_space<vmem>>, vector<1x1x17x17xf32>
    %47 = vector.shape_cast %46 : vector<1x1x17x17xf32> to vector<17x17xf32>
    %c0_23 = arith.constant 0 : index
    %c1_24 = arith.constant 1 : index
    %c0_25 = arith.constant 0 : index
    %c0_26 = arith.constant 0 : index
    %48 = vector.load %arg3[%c0_23, %c1_24, %c0_25, %c0_26] : memref<1x4x18x18xf32, #tpu.memory_space<vmem>>, vector<1x1x17x17xf32>
    %49 = vector.shape_cast %48 : vector<1x1x17x17xf32> to vector<17x17xf32>
    %c0_27 = arith.constant 0 : index
    %c1_28 = arith.constant 1 : index
    %c0_29 = arith.constant 0 : index
    %c1_30 = arith.constant 1 : index
    %50 = vector.load %arg3[%c0_27, %c1_28, %c0_29, %c1_30] : memref<1x4x18x18xf32, #tpu.memory_space<vmem>>, vector<1x1x17x17xf32>
    %51 = vector.shape_cast %50 : vector<1x1x17x17xf32> to vector<17x17xf32>
    %c0_31 = arith.constant 0 : index
    %c1_32 = arith.constant 1 : index
    %c1_33 = arith.constant 1 : index
    %c0_34 = arith.constant 0 : index
    %52 = vector.load %arg3[%c0_31, %c1_32, %c1_33, %c0_34] : memref<1x4x18x18xf32, #tpu.memory_space<vmem>>, vector<1x1x17x17xf32>
    %53 = vector.shape_cast %52 : vector<1x1x17x17xf32> to vector<17x17xf32>
    %c0_35 = arith.constant 0 : index
    %c1_36 = arith.constant 1 : index
    %c1_37 = arith.constant 1 : index
    %c1_38 = arith.constant 1 : index
    %54 = vector.load %arg3[%c0_35, %c1_36, %c1_37, %c1_38] : memref<1x4x18x18xf32, #tpu.memory_space<vmem>>, vector<1x1x17x17xf32>
    %55 = vector.shape_cast %54 : vector<1x1x17x17xf32> to vector<17x17xf32>
    %c0_39 = arith.constant 0 : index
    %c2 = arith.constant 2 : index
    %c0_40 = arith.constant 0 : index
    %c0_41 = arith.constant 0 : index
    %56 = vector.load %arg3[%c0_39, %c2, %c0_40, %c0_41] : memref<1x4x18x18xf32, #tpu.memory_space<vmem>>, vector<1x1x17x17xf32>
    %57 = vector.shape_cast %56 : vector<1x1x17x17xf32> to vector<17x17xf32>
    %c0_42 = arith.constant 0 : index
    %c2_43 = arith.constant 2 : index
    %c0_44 = arith.constant 0 : index
    %c1_45 = arith.constant 1 : index
    %58 = vector.load %arg3[%c0_42, %c2_43, %c0_44, %c1_45] : memref<1x4x18x18xf32, #tpu.memory_space<vmem>>, vector<1x1x17x17xf32>
    %59 = vector.shape_cast %58 : vector<1x1x17x17xf32> to vector<17x17xf32>
    %c0_46 = arith.constant 0 : index
    %c2_47 = arith.constant 2 : index
    %c1_48 = arith.constant 1 : index
    %c0_49 = arith.constant 0 : index
    %60 = vector.load %arg3[%c0_46, %c2_47, %c1_48, %c0_49] : memref<1x4x18x18xf32, #tpu.memory_space<vmem>>, vector<1x1x17x17xf32>
    %61 = vector.shape_cast %60 : vector<1x1x17x17xf32> to vector<17x17xf32>
    %c0_50 = arith.constant 0 : index
    %c2_51 = arith.constant 2 : index
    %c1_52 = arith.constant 1 : index
    %c1_53 = arith.constant 1 : index
    %62 = vector.load %arg3[%c0_50, %c2_51, %c1_52, %c1_53] : memref<1x4x18x18xf32, #tpu.memory_space<vmem>>, vector<1x1x17x17xf32>
    %63 = vector.shape_cast %62 : vector<1x1x17x17xf32> to vector<17x17xf32>
    %c0_54 = arith.constant 0 : index
    %c3 = arith.constant 3 : index
    %c0_55 = arith.constant 0 : index
    %c0_56 = arith.constant 0 : index
    %64 = vector.load %arg3[%c0_54, %c3, %c0_55, %c0_56] : memref<1x4x18x18xf32, #tpu.memory_space<vmem>>, vector<1x1x17x17xf32>
    %65 = vector.shape_cast %64 : vector<1x1x17x17xf32> to vector<17x17xf32>
    %c0_57 = arith.constant 0 : index
    %c3_58 = arith.constant 3 : index
    %c0_59 = arith.constant 0 : index
    %c1_60 = arith.constant 1 : index
    %66 = vector.load %arg3[%c0_57, %c3_58, %c0_59, %c1_60] : memref<1x4x18x18xf32, #tpu.memory_space<vmem>>, vector<1x1x17x17xf32>
    %67 = vector.shape_cast %66 : vector<1x1x17x17xf32> to vector<17x17xf32>
    %c0_61 = arith.constant 0 : index
    %c3_62 = arith.constant 3 : index
    %c1_63 = arith.constant 1 : index
    %c0_64 = arith.constant 0 : index
    %68 = vector.load %arg3[%c0_61, %c3_62, %c1_63, %c0_64] : memref<1x4x18x18xf32, #tpu.memory_space<vmem>>, vector<1x1x17x17xf32>
    %69 = vector.shape_cast %68 : vector<1x1x17x17xf32> to vector<17x17xf32>
    %c0_65 = arith.constant 0 : index
    %c3_66 = arith.constant 3 : index
    %c1_67 = arith.constant 1 : index
    %c1_68 = arith.constant 1 : index
    %70 = vector.load %arg3[%c0_65, %c3_66, %c1_67, %c1_68] : memref<1x4x18x18xf32, #tpu.memory_space<vmem>>, vector<1x1x17x17xf32>
    %71 = vector.shape_cast %70 : vector<1x1x17x17xf32> to vector<17x17xf32>
    %cst = arith.constant 0.000000e+00 : f32
    %72 = vector.broadcast %cst : f32 to vector<17x17xf32>
    %c0_69 = arith.constant 0 : index
    %73 = memref.load %arg1[%c0_69] : memref<128xf32, #tpu.memory_space<smem>>
    %74 = vector.broadcast %73 : f32 to vector<17x17xf32>
    %75 = arith.mulf %74, %41 : vector<17x17xf32>
    %76 = arith.addf %72, %75 : vector<17x17xf32>
    %c1_70 = arith.constant 1 : index
    %77 = memref.load %arg1[%c1_70] : memref<128xf32, #tpu.memory_space<smem>>
    %78 = vector.broadcast %77 : f32 to vector<17x17xf32>
    %79 = arith.mulf %78, %43 : vector<17x17xf32>
    %80 = arith.addf %76, %79 : vector<17x17xf32>
    %c2_71 = arith.constant 2 : index
    %81 = memref.load %arg1[%c2_71] : memref<128xf32, #tpu.memory_space<smem>>
    %82 = vector.broadcast %81 : f32 to vector<17x17xf32>
    %83 = arith.mulf %82, %45 : vector<17x17xf32>
    %84 = arith.addf %80, %83 : vector<17x17xf32>
    %c3_72 = arith.constant 3 : index
    %85 = memref.load %arg1[%c3_72] : memref<128xf32, #tpu.memory_space<smem>>
    %86 = vector.broadcast %85 : f32 to vector<17x17xf32>
    %87 = arith.mulf %86, %47 : vector<17x17xf32>
    %88 = arith.addf %84, %87 : vector<17x17xf32>
    %c4 = arith.constant 4 : index
    %89 = memref.load %arg1[%c4] : memref<128xf32, #tpu.memory_space<smem>>
    %90 = vector.broadcast %89 : f32 to vector<17x17xf32>
    %91 = arith.mulf %90, %49 : vector<17x17xf32>
    %92 = arith.addf %88, %91 : vector<17x17xf32>
    %c5 = arith.constant 5 : index
    %93 = memref.load %arg1[%c5] : memref<128xf32, #tpu.memory_space<smem>>
    %94 = vector.broadcast %93 : f32 to vector<17x17xf32>
    %95 = arith.mulf %94, %51 : vector<17x17xf32>
    %96 = arith.addf %92, %95 : vector<17x17xf32>
    %c6 = arith.constant 6 : index
    %97 = memref.load %arg1[%c6] : memref<128xf32, #tpu.memory_space<smem>>
    %98 = vector.broadcast %97 : f32 to vector<17x17xf32>
    %99 = arith.mulf %98, %53 : vector<17x17xf32>
    %100 = arith.addf %96, %99 : vector<17x17xf32>
    %c7 = arith.constant 7 : index
    %101 = memref.load %arg1[%c7] : memref<128xf32, #tpu.memory_space<smem>>
    %102 = vector.broadcast %101 : f32 to vector<17x17xf32>
    %103 = arith.mulf %102, %55 : vector<17x17xf32>
    %104 = arith.addf %100, %103 : vector<17x17xf32>
    %c8 = arith.constant 8 : index
    %105 = memref.load %arg1[%c8] : memref<128xf32, #tpu.memory_space<smem>>
    %106 = vector.broadcast %105 : f32 to vector<17x17xf32>
    %107 = arith.mulf %106, %57 : vector<17x17xf32>
    %108 = arith.addf %104, %107 : vector<17x17xf32>
    %c9 = arith.constant 9 : index
    %109 = memref.load %arg1[%c9] : memref<128xf32, #tpu.memory_space<smem>>
    %110 = vector.broadcast %109 : f32 to vector<17x17xf32>
    %111 = arith.mulf %110, %59 : vector<17x17xf32>
    %112 = arith.addf %108, %111 : vector<17x17xf32>
    %c10 = arith.constant 10 : index
    %113 = memref.load %arg1[%c10] : memref<128xf32, #tpu.memory_space<smem>>
    %114 = vector.broadcast %113 : f32 to vector<17x17xf32>
    %115 = arith.mulf %114, %61 : vector<17x17xf32>
    %116 = arith.addf %112, %115 : vector<17x17xf32>
    %c11 = arith.constant 11 : index
    %117 = memref.load %arg1[%c11] : memref<128xf32, #tpu.memory_space<smem>>
    %118 = vector.broadcast %117 : f32 to vector<17x17xf32>
    %119 = arith.mulf %118, %63 : vector<17x17xf32>
    %120 = arith.addf %116, %119 : vector<17x17xf32>
    %c12 = arith.constant 12 : index
    %121 = memref.load %arg1[%c12] : memref<128xf32, #tpu.memory_space<smem>>
    %122 = vector.broadcast %121 : f32 to vector<17x17xf32>
    %123 = arith.mulf %122, %65 : vector<17x17xf32>
    %124 = arith.addf %120, %123 : vector<17x17xf32>
    %c13 = arith.constant 13 : index
    %125 = memref.load %arg1[%c13] : memref<128xf32, #tpu.memory_space<smem>>
    %126 = vector.broadcast %125 : f32 to vector<17x17xf32>
    %127 = arith.mulf %126, %67 : vector<17x17xf32>
    %128 = arith.addf %124, %127 : vector<17x17xf32>
    %c14 = arith.constant 14 : index
    %129 = memref.load %arg1[%c14] : memref<128xf32, #tpu.memory_space<smem>>
    %130 = vector.broadcast %129 : f32 to vector<17x17xf32>
    %131 = arith.mulf %130, %69 : vector<17x17xf32>
    %132 = arith.addf %128, %131 : vector<17x17xf32>
    %c15 = arith.constant 15 : index
    %133 = memref.load %arg1[%c15] : memref<128xf32, #tpu.memory_space<smem>>
    %134 = vector.broadcast %133 : f32 to vector<17x17xf32>
    %135 = arith.mulf %134, %71 : vector<17x17xf32>
    %136 = arith.addf %132, %135 : vector<17x17xf32>
    %c0_73 = arith.constant 0 : index
    %137 = memref.load %arg2[%c0_73] : memref<8xf32, #tpu.memory_space<smem>>
    %138 = vector.broadcast %137 : f32 to vector<17x17xf32>
    %139 = arith.addf %136, %138 : vector<17x17xf32>
    %cst_74 = arith.constant 0.000000e+00 : f32
    %140 = vector.broadcast %cst_74 : f32 to vector<17x17xf32>
    %141 = arith.maximumf %139, %140 : vector<17x17xf32>
    %cst_75 = arith.constant dense<0.000000e+00> : vector<9x17xf32>
    %142 = tpu.matmul %10, %141, %cst_75 {dimension_numbers = #tpu.dot_dimension_numbers<[1], [0], [0], [1], [0, 0, 1, 1], [], []>} : vector<9x17xf32>, vector<17x17xf32>, vector<9x17xf32> -> vector<9x17xf32>
    %cst_76 = arith.constant dense<0.000000e+00> : vector<9x17xf32>
    %143 = tpu.matmul %19, %141, %cst_76 {dimension_numbers = #tpu.dot_dimension_numbers<[1], [0], [0], [1], [0, 0, 1, 1], [], []>} : vector<9x17xf32>, vector<17x17xf32>, vector<9x17xf32> -> vector<9x17xf32>
    %cst_77 = arith.constant dense<0.000000e+00> : vector<9x9xf32>
    %144 = tpu.matmul %142, %30, %cst_77 {dimension_numbers = #tpu.dot_dimension_numbers<[1], [0], [0], [1], [0, 0, 1, 1], [], []>} : vector<9x17xf32>, vector<17x9xf32>, vector<9x9xf32> -> vector<9x9xf32>
    %cst_78 = arith.constant dense<0.000000e+00> : vector<9x9xf32>
    %145 = tpu.matmul %142, %39, %cst_78 {dimension_numbers = #tpu.dot_dimension_numbers<[1], [0], [0], [1], [0, 0, 1, 1], [], []>} : vector<9x17xf32>, vector<17x9xf32>, vector<9x9xf32> -> vector<9x9xf32>
    %146 = arith.maximumf %144, %145 : vector<9x9xf32>
    %cst_79 = arith.constant dense<0.000000e+00> : vector<9x9xf32>
    %147 = tpu.matmul %143, %30, %cst_79 {dimension_numbers = #tpu.dot_dimension_numbers<[1], [0], [0], [1], [0, 0, 1, 1], [], []>} : vector<9x17xf32>, vector<17x9xf32>, vector<9x9xf32> -> vector<9x9xf32>
    %148 = arith.maximumf %146, %147 : vector<9x9xf32>
    %cst_80 = arith.constant dense<0.000000e+00> : vector<9x9xf32>
    %149 = tpu.matmul %143, %39, %cst_80 {dimension_numbers = #tpu.dot_dimension_numbers<[1], [0], [0], [1], [0, 0, 1, 1], [], []>} : vector<9x17xf32>, vector<17x9xf32>, vector<9x9xf32> -> vector<9x9xf32>
    %150 = arith.maximumf %148, %149 : vector<9x9xf32>
    %c0_81 = arith.constant 0 : index
    %c0_82 = arith.constant 0 : index
    %c0_83 = arith.constant 0 : index
    %c0_84 = arith.constant 0 : index
    %151 = vector.load %arg4[%c0_81, %c0_82, %c0_83, %c0_84] : memref<1x8x9x9xf32, #tpu.memory_space<vmem>>, vector<1x1x9x9xf32>
    %152 = vector.shape_cast %151 : vector<1x1x9x9xf32> to vector<9x9xf32>
    %153 = vector.shape_cast %150 : vector<9x9xf32> to vector<1x1x9x9xf32>
    tpu.vector_store %arg4[%c0_81, %c0_82, %c0_83, %c0_84], %153 {strides = array<i32>} : memref<1x8x9x9xf32, #tpu.memory_space<vmem>>, vector<1x1x9x9xf32>,
    %cst_85 = arith.constant 0.000000e+00 : f32
    %154 = vector.broadcast %cst_85 : f32 to vector<17x17xf32>
    %c16 = arith.constant 16 : index
    %155 = memref.load %arg1[%c16] : memref<128xf32, #tpu.memory_space<smem>>
    %156 = vector.broadcast %155 : f32 to vector<17x17xf32>
    %157 = arith.mulf %156, %41 : vector<17x17xf32>
    %158 = arith.addf %154, %157 : vector<17x17xf32>
    %c17 = arith.constant 17 : index
    %159 = memref.load %arg1[%c17] : memref<128xf32, #tpu.memory_space<smem>>
    %160 = vector.broadcast %159 : f32 to vector<17x17xf32>
    %161 = arith.mulf %160, %43 : vector<17x17xf32>
    %162 = arith.addf %158, %161 : vector<17x17xf32>
    %c18 = arith.constant 18 : index
    %163 = memref.load %arg1[%c18] : memref<128xf32, #tpu.memory_space<smem>>
    %164 = vector.broadcast %163 : f32 to vector<17x17xf32>
    %165 = arith.mulf %164, %45 : vector<17x17xf32>
    %166 = arith.addf %162, %165 : vector<17x17xf32>
    %c19 = arith.constant 19 : index
    %167 = memref.load %arg1[%c19] : memref<128xf32, #tpu.memory_space<smem>>
    %168 = vector.broadcast %167 : f32 to vector<17x17xf32>
    %169 = arith.mulf %168, %47 : vector<17x17xf32>
    %170 = arith.addf %166, %169 : vector<17x17xf32>
    %c20 = arith.constant 20 : index
    %171 = memref.load %arg1[%c20] : memref<128xf32, #tpu.memory_space<smem>>
    %172 = vector.broadcast %171 : f32 to vector<17x17xf32>
    %173 = arith.mulf %172, %49 : vector<17x17xf32>
    %174 = arith.addf %170, %173 : vector<17x17xf32>
    %c21 = arith.constant 21 : index
    %175 = memref.load %arg1[%c21] : memref<128xf32, #tpu.memory_space<smem>>
    %176 = vector.broadcast %175 : f32 to vector<17x17xf32>
    %177 = arith.mulf %176, %51 : vector<17x17xf32>
    %178 = arith.addf %174, %177 : vector<17x17xf32>
    %c22 = arith.constant 22 : index
    %179 = memref.load %arg1[%c22] : memref<128xf32, #tpu.memory_space<smem>>
    %180 = vector.broadcast %179 : f32 to vector<17x17xf32>
    %181 = arith.mulf %180, %53 : vector<17x17xf32>
    %182 = arith.addf %178, %181 : vector<17x17xf32>
    %c23 = arith.constant 23 : index
    %183 = memref.load %arg1[%c23] : memref<128xf32, #tpu.memory_space<smem>>
    %184 = vector.broadcast %183 : f32 to vector<17x17xf32>
    %185 = arith.mulf %184, %55 : vector<17x17xf32>
    %186 = arith.addf %182, %185 : vector<17x17xf32>
    %c24 = arith.constant 24 : index
    %187 = memref.load %arg1[%c24] : memref<128xf32, #tpu.memory_space<smem>>
    %188 = vector.broadcast %187 : f32 to vector<17x17xf32>
    %189 = arith.mulf %188, %57 : vector<17x17xf32>
    %190 = arith.addf %186, %189 : vector<17x17xf32>
    %c25 = arith.constant 25 : index
    %191 = memref.load %arg1[%c25] : memref<128xf32, #tpu.memory_space<smem>>
    %192 = vector.broadcast %191 : f32 to vector<17x17xf32>
    %193 = arith.mulf %192, %59 : vector<17x17xf32>
    %194 = arith.addf %190, %193 : vector<17x17xf32>
    %c26 = arith.constant 26 : index
    %195 = memref.load %arg1[%c26] : memref<128xf32, #tpu.memory_space<smem>>
    %196 = vector.broadcast %195 : f32 to vector<17x17xf32>
    %197 = arith.mulf %196, %61 : vector<17x17xf32>
    %198 = arith.addf %194, %197 : vector<17x17xf32>
    %c27 = arith.constant 27 : index
    %199 = memref.load %arg1[%c27] : memref<128xf32, #tpu.memory_space<smem>>
    %200 = vector.broadcast %199 : f32 to vector<17x17xf32>
    %201 = arith.mulf %200, %63 : vector<17x17xf32>
    %202 = arith.addf %198, %201 : vector<17x17xf32>
    %c28 = arith.constant 28 : index
    %203 = memref.load %arg1[%c28] : memref<128xf32, #tpu.memory_space<smem>>
    %204 = vector.broadcast %203 : f32 to vector<17x17xf32>
    %205 = arith.mulf %204, %65 : vector<17x17xf32>
    %206 = arith.addf %202, %205 : vector<17x17xf32>
    %c29 = arith.constant 29 : index
    %207 = memref.load %arg1[%c29] : memref<128xf32, #tpu.memory_space<smem>>
    %208 = vector.broadcast %207 : f32 to vector<17x17xf32>
    %209 = arith.mulf %208, %67 : vector<17x17xf32>
    %210 = arith.addf %206, %209 : vector<17x17xf32>
    %c30 = arith.constant 30 : index
    %211 = memref.load %arg1[%c30] : memref<128xf32, #tpu.memory_space<smem>>
    %212 = vector.broadcast %211 : f32 to vector<17x17xf32>
    %213 = arith.mulf %212, %69 : vector<17x17xf32>
    %214 = arith.addf %210, %213 : vector<17x17xf32>
    %c31 = arith.constant 31 : index
    %215 = memref.load %arg1[%c31] : memref<128xf32, #tpu.memory_space<smem>>
    %216 = vector.broadcast %215 : f32 to vector<17x17xf32>
    %217 = arith.mulf %216, %71 : vector<17x17xf32>
    %218 = arith.addf %214, %217 : vector<17x17xf32>
    %c1_86 = arith.constant 1 : index
    %219 = memref.load %arg2[%c1_86] : memref<8xf32, #tpu.memory_space<smem>>
    %220 = vector.broadcast %219 : f32 to vector<17x17xf32>
    %221 = arith.addf %218, %220 : vector<17x17xf32>
    %cst_87 = arith.constant 0.000000e+00 : f32
    %222 = vector.broadcast %cst_87 : f32 to vector<17x17xf32>
    %223 = arith.maximumf %221, %222 : vector<17x17xf32>
    %cst_88 = arith.constant dense<0.000000e+00> : vector<9x17xf32>
    %224 = tpu.matmul %10, %223, %cst_88 {dimension_numbers = #tpu.dot_dimension_numbers<[1], [0], [0], [1], [0, 0, 1, 1], [], []>} : vector<9x17xf32>, vector<17x17xf32>, vector<9x17xf32> -> vector<9x17xf32>
    %cst_89 = arith.constant dense<0.000000e+00> : vector<9x17xf32>
    %225 = tpu.matmul %19, %223, %cst_89 {dimension_numbers = #tpu.dot_dimension_numbers<[1], [0], [0], [1], [0, 0, 1, 1], [], []>} : vector<9x17xf32>, vector<17x17xf32>, vector<9x17xf32> -> vector<9x17xf32>
    %cst_90 = arith.constant dense<0.000000e+00> : vector<9x9xf32>
    %226 = tpu.matmul %224, %30, %cst_90 {dimension_numbers = #tpu.dot_dimension_numbers<[1], [0], [0], [1], [0, 0, 1, 1], [], []>} : vector<9x17xf32>, vector<17x9xf32>, vector<9x9xf32> -> vector<9x9xf32>
    %cst_91 = arith.constant dense<0.000000e+00> : vector<9x9xf32>
    %227 = tpu.matmul %224, %39, %cst_91 {dimension_numbers = #tpu.dot_dimension_numbers<[1], [0], [0], [1], [0, 0, 1, 1], [], []>} : vector<9x17xf32>, vector<17x9xf32>, vector<9x9xf32> -> vector<9x9xf32>
    %228 = arith.maximumf %226, %227 : vector<9x9xf32>
    %cst_92 = arith.constant dense<0.000000e+00> : vector<9x9xf32>
    %229 = tpu.matmul %225, %30, %cst_92 {dimension_numbers = #tpu.dot_dimension_numbers<[1], [0], [0], [1], [0, 0, 1, 1], [], []>} : vector<9x17xf32>, vector<17x9xf32>, vector<9x9xf32> -> vector<9x9xf32>
    %230 = arith.maximumf %228, %229 : vector<9x9xf32>
    %cst_93 = arith.constant dense<0.000000e+00> : vector<9x9xf32>
    %231 = tpu.matmul %225, %39, %cst_93 {dimension_numbers = #tpu.dot_dimension_numbers<[1], [0], [0], [1], [0, 0, 1, 1], [], []>} : vector<9x17xf32>, vector<17x9xf32>, vector<9x9xf32> -> vector<9x9xf32>
    %232 = arith.maximumf %230, %231 : vector<9x9xf32>
    %c0_94 = arith.constant 0 : index
    %c1_95 = arith.constant 1 : index
    %c0_96 = arith.constant 0 : index
    %c0_97 = arith.constant 0 : index
    %233 = vector.load %arg4[%c0_94, %c1_95, %c0_96, %c0_97] : memref<1x8x9x9xf32, #tpu.memory_space<vmem>>, vector<1x1x9x9xf32>
    %234 = vector.shape_cast %233 : vector<1x1x9x9xf32> to vector<9x9xf32>
    %235 = vector.shape_cast %232 : vector<9x9xf32> to vector<1x1x9x9xf32>
    tpu.vector_store %arg4[%c0_94, %c1_95, %c0_96, %c0_97], %235 {strides = array<i32>} : memref<1x8x9x9xf32, #tpu.memory_space<vmem>>, vector<1x1x9x9xf32>,
    %cst_98 = arith.constant 0.000000e+00 : f32
    %236 = vector.broadcast %cst_98 : f32 to vector<17x17xf32>
    %c32 = arith.constant 32 : index
    %237 = memref.load %arg1[%c32] : memref<128xf32, #tpu.memory_space<smem>>
    %238 = vector.broadcast %237 : f32 to vector<17x17xf32>
    %239 = arith.mulf %238, %41 : vector<17x17xf32>
    %240 = arith.addf %236, %239 : vector<17x17xf32>
    %c33 = arith.constant 33 : index
    %241 = memref.load %arg1[%c33] : memref<128xf32, #tpu.memory_space<smem>>
    %242 = vector.broadcast %241 : f32 to vector<17x17xf32>
    %243 = arith.mulf %242, %43 : vector<17x17xf32>
    %244 = arith.addf %240, %243 : vector<17x17xf32>
    %c34 = arith.constant 34 : index
    %245 = memref.load %arg1[%c34] : memref<128xf32, #tpu.memory_space<smem>>
    %246 = vector.broadcast %245 : f32 to vector<17x17xf32>
    %247 = arith.mulf %246, %45 : vector<17x17xf32>
    %248 = arith.addf %244, %247 : vector<17x17xf32>
    %c35 = arith.constant 35 : index
    %249 = memref.load %arg1[%c35] : memref<128xf32, #tpu.memory_space<smem>>
    %250 = vector.broadcast %249 : f32 to vector<17x17xf32>
    %251 = arith.mulf %250, %47 : vector<17x17xf32>
    %252 = arith.addf %248, %251 : vector<17x17xf32>
    %c36 = arith.constant 36 : index
    %253 = memref.load %arg1[%c36] : memref<128xf32, #tpu.memory_space<smem>>
    %254 = vector.broadcast %253 : f32 to vector<17x17xf32>
    %255 = arith.mulf %254, %49 : vector<17x17xf32>
    %256 = arith.addf %252, %255 : vector<17x17xf32>
    %c37 = arith.constant 37 : index
    %257 = memref.load %arg1[%c37] : memref<128xf32, #tpu.memory_space<smem>>
    %258 = vector.broadcast %257 : f32 to vector<17x17xf32>
    %259 = arith.mulf %258, %51 : vector<17x17xf32>
    %260 = arith.addf %256, %259 : vector<17x17xf32>
    %c38 = arith.constant 38 : index
    %261 = memref.load %arg1[%c38] : memref<128xf32, #tpu.memory_space<smem>>
    %262 = vector.broadcast %261 : f32 to vector<17x17xf32>
    %263 = arith.mulf %262, %53 : vector<17x17xf32>
    %264 = arith.addf %260, %263 : vector<17x17xf32>
    %c39 = arith.constant 39 : index
    %265 = memref.load %arg1[%c39] : memref<128xf32, #tpu.memory_space<smem>>
    %266 = vector.broadcast %265 : f32 to vector<17x17xf32>
    %267 = arith.mulf %266, %55 : vector<17x17xf32>
    %268 = arith.addf %264, %267 : vector<17x17xf32>
    %c40 = arith.constant 40 : index
    %269 = memref.load %arg1[%c40] : memref<128xf32, #tpu.memory_space<smem>>
    %270 = vector.broadcast %269 : f32 to vector<17x17xf32>
    %271 = arith.mulf %270, %57 : vector<17x17xf32>
    %272 = arith.addf %268, %271 : vector<17x17xf32>
    %c41 = arith.constant 41 : index
    %273 = memref.load %arg1[%c41] : memref<128xf32, #tpu.memory_space<smem>>
    %274 = vector.broadcast %273 : f32 to vector<17x17xf32>
    %275 = arith.mulf %274, %59 : vector<17x17xf32>
    %276 = arith.addf %272, %275 : vector<17x17xf32>
    %c42 = arith.constant 42 : index
    %277 = memref.load %arg1[%c42] : memref<128xf32, #tpu.memory_space<smem>>
    %278 = vector.broadcast %277 : f32 to vector<17x17xf32>
    %279 = arith.mulf %278, %61 : vector<17x17xf32>
    %280 = arith.addf %276, %279 : vector<17x17xf32>
    %c43 = arith.constant 43 : index
    %281 = memref.load %arg1[%c43] : memref<128xf32, #tpu.memory_space<smem>>
    %282 = vector.broadcast %281 : f32 to vector<17x17xf32>
    %283 = arith.mulf %282, %63 : vector<17x17xf32>
    %284 = arith.addf %280, %283 : vector<17x17xf32>
    %c44 = arith.constant 44 : index
    %285 = memref.load %arg1[%c44] : memref<128xf32, #tpu.memory_space<smem>>
    %286 = vector.broadcast %285 : f32 to vector<17x17xf32>
    %287 = arith.mulf %286, %65 : vector<17x17xf32>
    %288 = arith.addf %284, %287 : vector<17x17xf32>
    %c45 = arith.constant 45 : index
    %289 = memref.load %arg1[%c45] : memref<128xf32, #tpu.memory_space<smem>>
    %290 = vector.broadcast %289 : f32 to vector<17x17xf32>
    %291 = arith.mulf %290, %67 : vector<17x17xf32>
    %292 = arith.addf %288, %291 : vector<17x17xf32>
    %c46 = arith.constant 46 : index
    %293 = memref.load %arg1[%c46] : memref<128xf32, #tpu.memory_space<smem>>
    %294 = vector.broadcast %293 : f32 to vector<17x17xf32>
    %295 = arith.mulf %294, %69 : vector<17x17xf32>
    %296 = arith.addf %292, %295 : vector<17x17xf32>
    %c47 = arith.constant 47 : index
    %297 = memref.load %arg1[%c47] : memref<128xf32, #tpu.memory_space<smem>>
    %298 = vector.broadcast %297 : f32 to vector<17x17xf32>
    %299 = arith.mulf %298, %71 : vector<17x17xf32>
    %300 = arith.addf %296, %299 : vector<17x17xf32>
    %c2_99 = arith.constant 2 : index
    %301 = memref.load %arg2[%c2_99] : memref<8xf32, #tpu.memory_space<smem>>
    %302 = vector.broadcast %301 : f32 to vector<17x17xf32>
    %303 = arith.addf %300, %302 : vector<17x17xf32>
    %cst_100 = arith.constant 0.000000e+00 : f32
    %304 = vector.broadcast %cst_100 : f32 to vector<17x17xf32>
    %305 = arith.maximumf %303, %304 : vector<17x17xf32>
    %cst_101 = arith.constant dense<0.000000e+00> : vector<9x17xf32>
    %306 = tpu.matmul %10, %305, %cst_101 {dimension_numbers = #tpu.dot_dimension_numbers<[1], [0], [0], [1], [0, 0, 1, 1], [], []>} : vector<9x17xf32>, vector<17x17xf32>, vector<9x17xf32> -> vector<9x17xf32>
    %cst_102 = arith.constant dense<0.000000e+00> : vector<9x17xf32>
    %307 = tpu.matmul %19, %305, %cst_102 {dimension_numbers = #tpu.dot_dimension_numbers<[1], [0], [0], [1], [0, 0, 1, 1], [], []>} : vector<9x17xf32>, vector<17x17xf32>, vector<9x17xf32> -> vector<9x17xf32>
    %cst_103 = arith.constant dense<0.000000e+00> : vector<9x9xf32>
    %308 = tpu.matmul %306, %30, %cst_103 {dimension_numbers = #tpu.dot_dimension_numbers<[1], [0], [0], [1], [0, 0, 1, 1], [], []>} : vector<9x17xf32>, vector<17x9xf32>, vector<9x9xf32> -> vector<9x9xf32>
    %cst_104 = arith.constant dense<0.000000e+00> : vector<9x9xf32>
    %309 = tpu.matmul %306, %39, %cst_104 {dimension_numbers = #tpu.dot_dimension_numbers<[1], [0], [0], [1], [0, 0, 1, 1], [], []>} : vector<9x17xf32>, vector<17x9xf32>, vector<9x9xf32> -> vector<9x9xf32>
    %310 = arith.maximumf %308, %309 : vector<9x9xf32>
    %cst_105 = arith.constant dense<0.000000e+00> : vector<9x9xf32>
    %311 = tpu.matmul %307, %30, %cst_105 {dimension_numbers = #tpu.dot_dimension_numbers<[1], [0], [0], [1], [0, 0, 1, 1], [], []>} : vector<9x17xf32>, vector<17x9xf32>, vector<9x9xf32> -> vector<9x9xf32>
    %312 = arith.maximumf %310, %311 : vector<9x9xf32>
    %cst_106 = arith.constant dense<0.000000e+00> : vector<9x9xf32>
    %313 = tpu.matmul %307, %39, %cst_106 {dimension_numbers = #tpu.dot_dimension_numbers<[1], [0], [0], [1], [0, 0, 1, 1], [], []>} : vector<9x17xf32>, vector<17x9xf32>, vector<9x9xf32> -> vector<9x9xf32>
    %314 = arith.maximumf %312, %313 : vector<9x9xf32>
    %c0_107 = arith.constant 0 : index
    %c2_108 = arith.constant 2 : index
    %c0_109 = arith.constant 0 : index
    %c0_110 = arith.constant 0 : index
    %315 = vector.load %arg4[%c0_107, %c2_108, %c0_109, %c0_110] : memref<1x8x9x9xf32, #tpu.memory_space<vmem>>, vector<1x1x9x9xf32>
    %316 = vector.shape_cast %315 : vector<1x1x9x9xf32> to vector<9x9xf32>
    %317 = vector.shape_cast %314 : vector<9x9xf32> to vector<1x1x9x9xf32>
    tpu.vector_store %arg4[%c0_107, %c2_108, %c0_109, %c0_110], %317 {strides = array<i32>} : memref<1x8x9x9xf32, #tpu.memory_space<vmem>>, vector<1x1x9x9xf32>,
    %cst_111 = arith.constant 0.000000e+00 : f32
    %318 = vector.broadcast %cst_111 : f32 to vector<17x17xf32>
    %c48 = arith.constant 48 : index
    %319 = memref.load %arg1[%c48] : memref<128xf32, #tpu.memory_space<smem>>
    %320 = vector.broadcast %319 : f32 to vector<17x17xf32>
    %321 = arith.mulf %320, %41 : vector<17x17xf32>
    %322 = arith.addf %318, %321 : vector<17x17xf32>
    %c49 = arith.constant 49 : index
    %323 = memref.load %arg1[%c49] : memref<128xf32, #tpu.memory_space<smem>>
    %324 = vector.broadcast %323 : f32 to vector<17x17xf32>
    %325 = arith.mulf %324, %43 : vector<17x17xf32>
    %326 = arith.addf %322, %325 : vector<17x17xf32>
    %c50 = arith.constant 50 : index
    %327 = memref.load %arg1[%c50] : memref<128xf32, #tpu.memory_space<smem>>
    %328 = vector.broadcast %327 : f32 to vector<17x17xf32>
    %329 = arith.mulf %328, %45 : vector<17x17xf32>
    %330 = arith.addf %326, %329 : vector<17x17xf32>
    %c51 = arith.constant 51 : index
    %331 = memref.load %arg1[%c51] : memref<128xf32, #tpu.memory_space<smem>>
    %332 = vector.broadcast %331 : f32 to vector<17x17xf32>
    %333 = arith.mulf %332, %47 : vector<17x17xf32>
    %334 = arith.addf %330, %333 : vector<17x17xf32>
    %c52 = arith.constant 52 : index
    %335 = memref.load %arg1[%c52] : memref<128xf32, #tpu.memory_space<smem>>
    %336 = vector.broadcast %335 : f32 to vector<17x17xf32>
    %337 = arith.mulf %336, %49 : vector<17x17xf32>
    %338 = arith.addf %334, %337 : vector<17x17xf32>
    %c53 = arith.constant 53 : index
    %339 = memref.load %arg1[%c53] : memref<128xf32, #tpu.memory_space<smem>>
    %340 = vector.broadcast %339 : f32 to vector<17x17xf32>
    %341 = arith.mulf %340, %51 : vector<17x17xf32>
    %342 = arith.addf %338, %341 : vector<17x17xf32>
    %c54 = arith.constant 54 : index
    %343 = memref.load %arg1[%c54] : memref<128xf32, #tpu.memory_space<smem>>
    %344 = vector.broadcast %343 : f32 to vector<17x17xf32>
    %345 = arith.mulf %344, %53 : vector<17x17xf32>
    %346 = arith.addf %342, %345 : vector<17x17xf32>
    %c55 = arith.constant 55 : index
    %347 = memref.load %arg1[%c55] : memref<128xf32, #tpu.memory_space<smem>>
    %348 = vector.broadcast %347 : f32 to vector<17x17xf32>
    %349 = arith.mulf %348, %55 : vector<17x17xf32>
    %350 = arith.addf %346, %349 : vector<17x17xf32>
    %c56 = arith.constant 56 : index
    %351 = memref.load %arg1[%c56] : memref<128xf32, #tpu.memory_space<smem>>
    %352 = vector.broadcast %351 : f32 to vector<17x17xf32>
    %353 = arith.mulf %352, %57 : vector<17x17xf32>
    %354 = arith.addf %350, %353 : vector<17x17xf32>
    %c57 = arith.constant 57 : index
    %355 = memref.load %arg1[%c57] : memref<128xf32, #tpu.memory_space<smem>>
    %356 = vector.broadcast %355 : f32 to vector<17x17xf32>
    %357 = arith.mulf %356, %59 : vector<17x17xf32>
    %358 = arith.addf %354, %357 : vector<17x17xf32>
    %c58 = arith.constant 58 : index
    %359 = memref.load %arg1[%c58] : memref<128xf32, #tpu.memory_space<smem>>
    %360 = vector.broadcast %359 : f32 to vector<17x17xf32>
    %361 = arith.mulf %360, %61 : vector<17x17xf32>
    %362 = arith.addf %358, %361 : vector<17x17xf32>
    %c59 = arith.constant 59 : index
    %363 = memref.load %arg1[%c59] : memref<128xf32, #tpu.memory_space<smem>>
    %364 = vector.broadcast %363 : f32 to vector<17x17xf32>
    %365 = arith.mulf %364, %63 : vector<17x17xf32>
    %366 = arith.addf %362, %365 : vector<17x17xf32>
    %c60 = arith.constant 60 : index
    %367 = memref.load %arg1[%c60] : memref<128xf32, #tpu.memory_space<smem>>
    %368 = vector.broadcast %367 : f32 to vector<17x17xf32>
    %369 = arith.mulf %368, %65 : vector<17x17xf32>
    %370 = arith.addf %366, %369 : vector<17x17xf32>
    %c61 = arith.constant 61 : index
    %371 = memref.load %arg1[%c61] : memref<128xf32, #tpu.memory_space<smem>>
    %372 = vector.broadcast %371 : f32 to vector<17x17xf32>
    %373 = arith.mulf %372, %67 : vector<17x17xf32>
    %374 = arith.addf %370, %373 : vector<17x17xf32>
    %c62 = arith.constant 62 : index
    %375 = memref.load %arg1[%c62] : memref<128xf32, #tpu.memory_space<smem>>
    %376 = vector.broadcast %375 : f32 to vector<17x17xf32>
    %377 = arith.mulf %376, %69 : vector<17x17xf32>
    %378 = arith.addf %374, %377 : vector<17x17xf32>
    %c63 = arith.constant 63 : index
    %379 = memref.load %arg1[%c63] : memref<128xf32, #tpu.memory_space<smem>>
    %380 = vector.broadcast %379 : f32 to vector<17x17xf32>
    %381 = arith.mulf %380, %71 : vector<17x17xf32>
    %382 = arith.addf %378, %381 : vector<17x17xf32>
    %c3_112 = arith.constant 3 : index
    %383 = memref.load %arg2[%c3_112] : memref<8xf32, #tpu.memory_space<smem>>
    %384 = vector.broadcast %383 : f32 to vector<17x17xf32>
    %385 = arith.addf %382, %384 : vector<17x17xf32>
    %cst_113 = arith.constant 0.000000e+00 : f32
    %386 = vector.broadcast %cst_113 : f32 to vector<17x17xf32>
    %387 = arith.maximumf %385, %386 : vector<17x17xf32>
    %cst_114 = arith.constant dense<0.000000e+00> : vector<9x17xf32>
    %388 = tpu.matmul %10, %387, %cst_114 {dimension_numbers = #tpu.dot_dimension_numbers<[1], [0], [0], [1], [0, 0, 1, 1], [], []>} : vector<9x17xf32>, vector<17x17xf32>, vector<9x17xf32> -> vector<9x17xf32>
    %cst_115 = arith.constant dense<0.000000e+00> : vector<9x17xf32>
    %389 = tpu.matmul %19, %387, %cst_115 {dimension_numbers = #tpu.dot_dimension_numbers<[1], [0], [0], [1], [0, 0, 1, 1], [], []>} : vector<9x17xf32>, vector<17x17xf32>, vector<9x17xf32> -> vector<9x17xf32>
    %cst_116 = arith.constant dense<0.000000e+00> : vector<9x9xf32>
    %390 = tpu.matmul %388, %30, %cst_116 {dimension_numbers = #tpu.dot_dimension_numbers<[1], [0], [0], [1], [0, 0, 1, 1], [], []>} : vector<9x17xf32>, vector<17x9xf32>, vector<9x9xf32> -> vector<9x9xf32>
    %cst_117 = arith.constant dense<0.000000e+00> : vector<9x9xf32>
    %391 = tpu.matmul %388, %39, %cst_117 {dimension_numbers = #tpu.dot_dimension_numbers<[1], [0], [0], [1], [0, 0, 1, 1], [], []>} : vector<9x17xf32>, vector<17x9xf32>, vector<9x9xf32> -> vector<9x9xf32>
    %392 = arith.maximumf %390, %391 : vector<9x9xf32>
    %cst_118 = arith.constant dense<0.000000e+00> : vector<9x9xf32>
    %393 = tpu.matmul %389, %30, %cst_118 {dimension_numbers = #tpu.dot_dimension_numbers<[1], [0], [0], [1], [0, 0, 1, 1], [], []>} : vector<9x17xf32>, vector<17x9xf32>, vector<9x9xf32> -> vector<9x9xf32>
    %394 = arith.maximumf %392, %393 : vector<9x9xf32>
    %cst_119 = arith.constant dense<0.000000e+00> : vector<9x9xf32>
    %395 = tpu.matmul %389, %39, %cst_119 {dimension_numbers = #tpu.dot_dimension_numbers<[1], [0], [0], [1], [0, 0, 1, 1], [], []>} : vector<9x17xf32>, vector<17x9xf32>, vector<9x9xf32> -> vector<9x9xf32>
    %396 = arith.maximumf %394, %395 : vector<9x9xf32>
    %c0_120 = arith.constant 0 : index
    %c3_121 = arith.constant 3 : index
    %c0_122 = arith.constant 0 : index
    %c0_123 = arith.constant 0 : index
    %397 = vector.load %arg4[%c0_120, %c3_121, %c0_122, %c0_123] : memref<1x8x9x9xf32, #tpu.memory_space<vmem>>, vector<1x1x9x9xf32>
    %398 = vector.shape_cast %397 : vector<1x1x9x9xf32> to vector<9x9xf32>
    %399 = vector.shape_cast %396 : vector<9x9xf32> to vector<1x1x9x9xf32>
    tpu.vector_store %arg4[%c0_120, %c3_121, %c0_122, %c0_123], %399 {strides = array<i32>} : memref<1x8x9x9xf32, #tpu.memory_space<vmem>>, vector<1x1x9x9xf32>,
    %cst_124 = arith.constant 0.000000e+00 : f32
    %400 = vector.broadcast %cst_124 : f32 to vector<17x17xf32>
    %c64 = arith.constant 64 : index
    %401 = memref.load %arg1[%c64] : memref<128xf32, #tpu.memory_space<smem>>
    %402 = vector.broadcast %401 : f32 to vector<17x17xf32>
    %403 = arith.mulf %402, %41 : vector<17x17xf32>
    %404 = arith.addf %400, %403 : vector<17x17xf32>
    %c65 = arith.constant 65 : index
    %405 = memref.load %arg1[%c65] : memref<128xf32, #tpu.memory_space<smem>>
    %406 = vector.broadcast %405 : f32 to vector<17x17xf32>
    %407 = arith.mulf %406, %43 : vector<17x17xf32>
    %408 = arith.addf %404, %407 : vector<17x17xf32>
    %c66 = arith.constant 66 : index
    %409 = memref.load %arg1[%c66] : memref<128xf32, #tpu.memory_space<smem>>
    %410 = vector.broadcast %409 : f32 to vector<17x17xf32>
    %411 = arith.mulf %410, %45 : vector<17x17xf32>
    %412 = arith.addf %408, %411 : vector<17x17xf32>
    %c67 = arith.constant 67 : index
    %413 = memref.load %arg1[%c67] : memref<128xf32, #tpu.memory_space<smem>>
    %414 = vector.broadcast %413 : f32 to vector<17x17xf32>
    %415 = arith.mulf %414, %47 : vector<17x17xf32>
    %416 = arith.addf %412, %415 : vector<17x17xf32>
    %c68 = arith.constant 68 : index
    %417 = memref.load %arg1[%c68] : memref<128xf32, #tpu.memory_space<smem>>
    %418 = vector.broadcast %417 : f32 to vector<17x17xf32>
    %419 = arith.mulf %418, %49 : vector<17x17xf32>
    %420 = arith.addf %416, %419 : vector<17x17xf32>
    %c69 = arith.constant 69 : index
    %421 = memref.load %arg1[%c69] : memref<128xf32, #tpu.memory_space<smem>>
    %422 = vector.broadcast %421 : f32 to vector<17x17xf32>
    %423 = arith.mulf %422, %51 : vector<17x17xf32>
    %424 = arith.addf %420, %423 : vector<17x17xf32>
    %c70 = arith.constant 70 : index
    %425 = memref.load %arg1[%c70] : memref<128xf32, #tpu.memory_space<smem>>
    %426 = vector.broadcast %425 : f32 to vector<17x17xf32>
    %427 = arith.mulf %426, %53 : vector<17x17xf32>
    %428 = arith.addf %424, %427 : vector<17x17xf32>
    %c71 = arith.constant 71 : index
    %429 = memref.load %arg1[%c71] : memref<128xf32, #tpu.memory_space<smem>>
    %430 = vector.broadcast %429 : f32 to vector<17x17xf32>
    %431 = arith.mulf %430, %55 : vector<17x17xf32>
    %432 = arith.addf %428, %431 : vector<17x17xf32>
    %c72 = arith.constant 72 : index
    %433 = memref.load %arg1[%c72] : memref<128xf32, #tpu.memory_space<smem>>
    %434 = vector.broadcast %433 : f32 to vector<17x17xf32>
    %435 = arith.mulf %434, %57 : vector<17x17xf32>
    %436 = arith.addf %432, %435 : vector<17x17xf32>
    %c73 = arith.constant 73 : index
    %437 = memref.load %arg1[%c73] : memref<128xf32, #tpu.memory_space<smem>>
    %438 = vector.broadcast %437 : f32 to vector<17x17xf32>
    %439 = arith.mulf %438, %59 : vector<17x17xf32>
    %440 = arith.addf %436, %439 : vector<17x17xf32>
    %c74 = arith.constant 74 : index
    %441 = memref.load %arg1[%c74] : memref<128xf32, #tpu.memory_space<smem>>
    %442 = vector.broadcast %441 : f32 to vector<17x17xf32>
    %443 = arith.mulf %442, %61 : vector<17x17xf32>
    %444 = arith.addf %440, %443 : vector<17x17xf32>
    %c75 = arith.constant 75 : index
    %445 = memref.load %arg1[%c75] : memref<128xf32, #tpu.memory_space<smem>>
    %446 = vector.broadcast %445 : f32 to vector<17x17xf32>
    %447 = arith.mulf %446, %63 : vector<17x17xf32>
    %448 = arith.addf %444, %447 : vector<17x17xf32>
    %c76 = arith.constant 76 : index
    %449 = memref.load %arg1[%c76] : memref<128xf32, #tpu.memory_space<smem>>
    %450 = vector.broadcast %449 : f32 to vector<17x17xf32>
    %451 = arith.mulf %450, %65 : vector<17x17xf32>
    %452 = arith.addf %448, %451 : vector<17x17xf32>
    %c77 = arith.constant 77 : index
    %453 = memref.load %arg1[%c77] : memref<128xf32, #tpu.memory_space<smem>>
    %454 = vector.broadcast %453 : f32 to vector<17x17xf32>
    %455 = arith.mulf %454, %67 : vector<17x17xf32>
    %456 = arith.addf %452, %455 : vector<17x17xf32>
    %c78 = arith.constant 78 : index
    %457 = memref.load %arg1[%c78] : memref<128xf32, #tpu.memory_space<smem>>
    %458 = vector.broadcast %457 : f32 to vector<17x17xf32>
    %459 = arith.mulf %458, %69 : vector<17x17xf32>
    %460 = arith.addf %456, %459 : vector<17x17xf32>
    %c79 = arith.constant 79 : index
    %461 = memref.load %arg1[%c79] : memref<128xf32, #tpu.memory_space<smem>>
    %462 = vector.broadcast %461 : f32 to vector<17x17xf32>
    %463 = arith.mulf %462, %71 : vector<17x17xf32>
    %464 = arith.addf %460, %463 : vector<17x17xf32>
    %c4_125 = arith.constant 4 : index
    %465 = memref.load %arg2[%c4_125] : memref<8xf32, #tpu.memory_space<smem>>
    %466 = vector.broadcast %465 : f32 to vector<17x17xf32>
    %467 = arith.addf %464, %466 : vector<17x17xf32>
    %cst_126 = arith.constant 0.000000e+00 : f32
    %468 = vector.broadcast %cst_126 : f32 to vector<17x17xf32>
    %469 = arith.maximumf %467, %468 : vector<17x17xf32>
    %cst_127 = arith.constant dense<0.000000e+00> : vector<9x17xf32>
    %470 = tpu.matmul %10, %469, %cst_127 {dimension_numbers = #tpu.dot_dimension_numbers<[1], [0], [0], [1], [0, 0, 1, 1], [], []>} : vector<9x17xf32>, vector<17x17xf32>, vector<9x17xf32> -> vector<9x17xf32>
    %cst_128 = arith.constant dense<0.000000e+00> : vector<9x17xf32>
    %471 = tpu.matmul %19, %469, %cst_128 {dimension_numbers = #tpu.dot_dimension_numbers<[1], [0], [0], [1], [0, 0, 1, 1], [], []>} : vector<9x17xf32>, vector<17x17xf32>, vector<9x17xf32> -> vector<9x17xf32>
    %cst_129 = arith.constant dense<0.000000e+00> : vector<9x9xf32>
    %472 = tpu.matmul %470, %30, %cst_129 {dimension_numbers = #tpu.dot_dimension_numbers<[1], [0], [0], [1], [0, 0, 1, 1], [], []>} : vector<9x17xf32>, vector<17x9xf32>, vector<9x9xf32> -> vector<9x9xf32>
    %cst_130 = arith.constant dense<0.000000e+00> : vector<9x9xf32>
    %473 = tpu.matmul %470, %39, %cst_130 {dimension_numbers = #tpu.dot_dimension_numbers<[1], [0], [0], [1], [0, 0, 1, 1], [], []>} : vector<9x17xf32>, vector<17x9xf32>, vector<9x9xf32> -> vector<9x9xf32>
    %474 = arith.maximumf %472, %473 : vector<9x9xf32>
    %cst_131 = arith.constant dense<0.000000e+00> : vector<9x9xf32>
    %475 = tpu.matmul %471, %30, %cst_131 {dimension_numbers = #tpu.dot_dimension_numbers<[1], [0], [0], [1], [0, 0, 1, 1], [], []>} : vector<9x17xf32>, vector<17x9xf32>, vector<9x9xf32> -> vector<9x9xf32>
    %476 = arith.maximumf %474, %475 : vector<9x9xf32>
    %cst_132 = arith.constant dense<0.000000e+00> : vector<9x9xf32>
    %477 = tpu.matmul %471, %39, %cst_132 {dimension_numbers = #tpu.dot_dimension_numbers<[1], [0], [0], [1], [0, 0, 1, 1], [], []>} : vector<9x17xf32>, vector<17x9xf32>, vector<9x9xf32> -> vector<9x9xf32>
    %478 = arith.maximumf %476, %477 : vector<9x9xf32>
    %c0_133 = arith.constant 0 : index
    %c4_134 = arith.constant 4 : index
    %c0_135 = arith.constant 0 : index
    %c0_136 = arith.constant 0 : index
    %479 = vector.load %arg4[%c0_133, %c4_134, %c0_135, %c0_136] : memref<1x8x9x9xf32, #tpu.memory_space<vmem>>, vector<1x1x9x9xf32>
    %480 = vector.shape_cast %479 : vector<1x1x9x9xf32> to vector<9x9xf32>
    %481 = vector.shape_cast %478 : vector<9x9xf32> to vector<1x1x9x9xf32>
    tpu.vector_store %arg4[%c0_133, %c4_134, %c0_135, %c0_136], %481 {strides = array<i32>} : memref<1x8x9x9xf32, #tpu.memory_space<vmem>>, vector<1x1x9x9xf32>,
    %cst_137 = arith.constant 0.000000e+00 : f32
    %482 = vector.broadcast %cst_137 : f32 to vector<17x17xf32>
    %c80 = arith.constant 80 : index
    %483 = memref.load %arg1[%c80] : memref<128xf32, #tpu.memory_space<smem>>
    %484 = vector.broadcast %483 : f32 to vector<17x17xf32>
    %485 = arith.mulf %484, %41 : vector<17x17xf32>
    %486 = arith.addf %482, %485 : vector<17x17xf32>
    %c81 = arith.constant 81 : index
    %487 = memref.load %arg1[%c81] : memref<128xf32, #tpu.memory_space<smem>>
    %488 = vector.broadcast %487 : f32 to vector<17x17xf32>
    %489 = arith.mulf %488, %43 : vector<17x17xf32>
    %490 = arith.addf %486, %489 : vector<17x17xf32>
    %c82 = arith.constant 82 : index
    %491 = memref.load %arg1[%c82] : memref<128xf32, #tpu.memory_space<smem>>
    %492 = vector.broadcast %491 : f32 to vector<17x17xf32>
    %493 = arith.mulf %492, %45 : vector<17x17xf32>
    %494 = arith.addf %490, %493 : vector<17x17xf32>
    %c83 = arith.constant 83 : index
    %495 = memref.load %arg1[%c83] : memref<128xf32, #tpu.memory_space<smem>>
    %496 = vector.broadcast %495 : f32 to vector<17x17xf32>
    %497 = arith.mulf %496, %47 : vector<17x17xf32>
    %498 = arith.addf %494, %497 : vector<17x17xf32>
    %c84 = arith.constant 84 : index
    %499 = memref.load %arg1[%c84] : memref<128xf32, #tpu.memory_space<smem>>
    %500 = vector.broadcast %499 : f32 to vector<17x17xf32>
    %501 = arith.mulf %500, %49 : vector<17x17xf32>
    %502 = arith.addf %498, %501 : vector<17x17xf32>
    %c85 = arith.constant 85 : index
    %503 = memref.load %arg1[%c85] : memref<128xf32, #tpu.memory_space<smem>>
    %504 = vector.broadcast %503 : f32 to vector<17x17xf32>
    %505 = arith.mulf %504, %51 : vector<17x17xf32>
    %506 = arith.addf %502, %505 : vector<17x17xf32>
    %c86 = arith.constant 86 : index
    %507 = memref.load %arg1[%c86] : memref<128xf32, #tpu.memory_space<smem>>
    %508 = vector.broadcast %507 : f32 to vector<17x17xf32>
    %509 = arith.mulf %508, %53 : vector<17x17xf32>
    %510 = arith.addf %506, %509 : vector<17x17xf32>
    %c87 = arith.constant 87 : index
    %511 = memref.load %arg1[%c87] : memref<128xf32, #tpu.memory_space<smem>>
    %512 = vector.broadcast %511 : f32 to vector<17x17xf32>
    %513 = arith.mulf %512, %55 : vector<17x17xf32>
    %514 = arith.addf %510, %513 : vector<17x17xf32>
    %c88 = arith.constant 88 : index
    %515 = memref.load %arg1[%c88] : memref<128xf32, #tpu.memory_space<smem>>
    %516 = vector.broadcast %515 : f32 to vector<17x17xf32>
    %517 = arith.mulf %516, %57 : vector<17x17xf32>
    %518 = arith.addf %514, %517 : vector<17x17xf32>
    %c89 = arith.constant 89 : index
    %519 = memref.load %arg1[%c89] : memref<128xf32, #tpu.memory_space<smem>>
    %520 = vector.broadcast %519 : f32 to vector<17x17xf32>
    %521 = arith.mulf %520, %59 : vector<17x17xf32>
    %522 = arith.addf %518, %521 : vector<17x17xf32>
    %c90 = arith.constant 90 : index
    %523 = memref.load %arg1[%c90] : memref<128xf32, #tpu.memory_space<smem>>
    %524 = vector.broadcast %523 : f32 to vector<17x17xf32>
    %525 = arith.mulf %524, %61 : vector<17x17xf32>
    %526 = arith.addf %522, %525 : vector<17x17xf32>
    %c91 = arith.constant 91 : index
    %527 = memref.load %arg1[%c91] : memref<128xf32, #tpu.memory_space<smem>>
    %528 = vector.broadcast %527 : f32 to vector<17x17xf32>
    %529 = arith.mulf %528, %63 : vector<17x17xf32>
    %530 = arith.addf %526, %529 : vector<17x17xf32>
    %c92 = arith.constant 92 : index
    %531 = memref.load %arg1[%c92] : memref<128xf32, #tpu.memory_space<smem>>
    %532 = vector.broadcast %531 : f32 to vector<17x17xf32>
    %533 = arith.mulf %532, %65 : vector<17x17xf32>
    %534 = arith.addf %530, %533 : vector<17x17xf32>
    %c93 = arith.constant 93 : index
    %535 = memref.load %arg1[%c93] : memref<128xf32, #tpu.memory_space<smem>>
    %536 = vector.broadcast %535 : f32 to vector<17x17xf32>
    %537 = arith.mulf %536, %67 : vector<17x17xf32>
    %538 = arith.addf %534, %537 : vector<17x17xf32>
    %c94 = arith.constant 94 : index
    %539 = memref.load %arg1[%c94] : memref<128xf32, #tpu.memory_space<smem>>
    %540 = vector.broadcast %539 : f32 to vector<17x17xf32>
    %541 = arith.mulf %540, %69 : vector<17x17xf32>
    %542 = arith.addf %538, %541 : vector<17x17xf32>
    %c95 = arith.constant 95 : index
    %543 = memref.load %arg1[%c95] : memref<128xf32, #tpu.memory_space<smem>>
    %544 = vector.broadcast %543 : f32 to vector<17x17xf32>
    %545 = arith.mulf %544, %71 : vector<17x17xf32>
    %546 = arith.addf %542, %545 : vector<17x17xf32>
    %c5_138 = arith.constant 5 : index
    %547 = memref.load %arg2[%c5_138] : memref<8xf32, #tpu.memory_space<smem>>
    %548 = vector.broadcast %547 : f32 to vector<17x17xf32>
    %549 = arith.addf %546, %548 : vector<17x17xf32>
    %cst_139 = arith.constant 0.000000e+00 : f32
    %550 = vector.broadcast %cst_139 : f32 to vector<17x17xf32>
    %551 = arith.maximumf %549, %550 : vector<17x17xf32>
    %cst_140 = arith.constant dense<0.000000e+00> : vector<9x17xf32>
    %552 = tpu.matmul %10, %551, %cst_140 {dimension_numbers = #tpu.dot_dimension_numbers<[1], [0], [0], [1], [0, 0, 1, 1], [], []>} : vector<9x17xf32>, vector<17x17xf32>, vector<9x17xf32> -> vector<9x17xf32>
    %cst_141 = arith.constant dense<0.000000e+00> : vector<9x17xf32>
    %553 = tpu.matmul %19, %551, %cst_141 {dimension_numbers = #tpu.dot_dimension_numbers<[1], [0], [0], [1], [0, 0, 1, 1], [], []>} : vector<9x17xf32>, vector<17x17xf32>, vector<9x17xf32> -> vector<9x17xf32>
    %cst_142 = arith.constant dense<0.000000e+00> : vector<9x9xf32>
    %554 = tpu.matmul %552, %30, %cst_142 {dimension_numbers = #tpu.dot_dimension_numbers<[1], [0], [0], [1], [0, 0, 1, 1], [], []>} : vector<9x17xf32>, vector<17x9xf32>, vector<9x9xf32> -> vector<9x9xf32>
    %cst_143 = arith.constant dense<0.000000e+00> : vector<9x9xf32>
    %555 = tpu.matmul %552, %39, %cst_143 {dimension_numbers = #tpu.dot_dimension_numbers<[1], [0], [0], [1], [0, 0, 1, 1], [], []>} : vector<9x17xf32>, vector<17x9xf32>, vector<9x9xf32> -> vector<9x9xf32>
    %556 = arith.maximumf %554, %555 : vector<9x9xf32>
    %cst_144 = arith.constant dense<0.000000e+00> : vector<9x9xf32>
    %557 = tpu.matmul %553, %30, %cst_144 {dimension_numbers = #tpu.dot_dimension_numbers<[1], [0], [0], [1], [0, 0, 1, 1], [], []>} : vector<9x17xf32>, vector<17x9xf32>, vector<9x9xf32> -> vector<9x9xf32>
    %558 = arith.maximumf %556, %557 : vector<9x9xf32>
    %cst_145 = arith.constant dense<0.000000e+00> : vector<9x9xf32>
    %559 = tpu.matmul %553, %39, %cst_145 {dimension_numbers = #tpu.dot_dimension_numbers<[1], [0], [0], [1], [0, 0, 1, 1], [], []>} : vector<9x17xf32>, vector<17x9xf32>, vector<9x9xf32> -> vector<9x9xf32>
    %560 = arith.maximumf %558, %559 : vector<9x9xf32>
    %c0_146 = arith.constant 0 : index
    %c5_147 = arith.constant 5 : index
    %c0_148 = arith.constant 0 : index
    %c0_149 = arith.constant 0 : index
    %561 = vector.load %arg4[%c0_146, %c5_147, %c0_148, %c0_149] : memref<1x8x9x9xf32, #tpu.memory_space<vmem>>, vector<1x1x9x9xf32>
    %562 = vector.shape_cast %561 : vector<1x1x9x9xf32> to vector<9x9xf32>
    %563 = vector.shape_cast %560 : vector<9x9xf32> to vector<1x1x9x9xf32>
    tpu.vector_store %arg4[%c0_146, %c5_147, %c0_148, %c0_149], %563 {strides = array<i32>} : memref<1x8x9x9xf32, #tpu.memory_space<vmem>>, vector<1x1x9x9xf32>,
    %cst_150 = arith.constant 0.000000e+00 : f32
    %564 = vector.broadcast %cst_150 : f32 to vector<17x17xf32>
    %c96 = arith.constant 96 : index
    %565 = memref.load %arg1[%c96] : memref<128xf32, #tpu.memory_space<smem>>
    %566 = vector.broadcast %565 : f32 to vector<17x17xf32>
    %567 = arith.mulf %566, %41 : vector<17x17xf32>
    %568 = arith.addf %564, %567 : vector<17x17xf32>
    %c97 = arith.constant 97 : index
    %569 = memref.load %arg1[%c97] : memref<128xf32, #tpu.memory_space<smem>>
    %570 = vector.broadcast %569 : f32 to vector<17x17xf32>
    %571 = arith.mulf %570, %43 : vector<17x17xf32>
    %572 = arith.addf %568, %571 : vector<17x17xf32>
    %c98 = arith.constant 98 : index
    %573 = memref.load %arg1[%c98] : memref<128xf32, #tpu.memory_space<smem>>
    %574 = vector.broadcast %573 : f32 to vector<17x17xf32>
    %575 = arith.mulf %574, %45 : vector<17x17xf32>
    %576 = arith.addf %572, %575 : vector<17x17xf32>
    %c99 = arith.constant 99 : index
    %577 = memref.load %arg1[%c99] : memref<128xf32, #tpu.memory_space<smem>>
    %578 = vector.broadcast %577 : f32 to vector<17x17xf32>
    %579 = arith.mulf %578, %47 : vector<17x17xf32>
    %580 = arith.addf %576, %579 : vector<17x17xf32>
    %c100 = arith.constant 100 : index
    %581 = memref.load %arg1[%c100] : memref<128xf32, #tpu.memory_space<smem>>
    %582 = vector.broadcast %581 : f32 to vector<17x17xf32>
    %583 = arith.mulf %582, %49 : vector<17x17xf32>
    %584 = arith.addf %580, %583 : vector<17x17xf32>
    %c101 = arith.constant 101 : index
    %585 = memref.load %arg1[%c101] : memref<128xf32, #tpu.memory_space<smem>>
    %586 = vector.broadcast %585 : f32 to vector<17x17xf32>
    %587 = arith.mulf %586, %51 : vector<17x17xf32>
    %588 = arith.addf %584, %587 : vector<17x17xf32>
    %c102 = arith.constant 102 : index
    %589 = memref.load %arg1[%c102] : memref<128xf32, #tpu.memory_space<smem>>
    %590 = vector.broadcast %589 : f32 to vector<17x17xf32>
    %591 = arith.mulf %590, %53 : vector<17x17xf32>
    %592 = arith.addf %588, %591 : vector<17x17xf32>
    %c103 = arith.constant 103 : index
    %593 = memref.load %arg1[%c103] : memref<128xf32, #tpu.memory_space<smem>>
    %594 = vector.broadcast %593 : f32 to vector<17x17xf32>
    %595 = arith.mulf %594, %55 : vector<17x17xf32>
    %596 = arith.addf %592, %595 : vector<17x17xf32>
    %c104 = arith.constant 104 : index
    %597 = memref.load %arg1[%c104] : memref<128xf32, #tpu.memory_space<smem>>
    %598 = vector.broadcast %597 : f32 to vector<17x17xf32>
    %599 = arith.mulf %598, %57 : vector<17x17xf32>
    %600 = arith.addf %596, %599 : vector<17x17xf32>
    %c105 = arith.constant 105 : index
    %601 = memref.load %arg1[%c105] : memref<128xf32, #tpu.memory_space<smem>>
    %602 = vector.broadcast %601 : f32 to vector<17x17xf32>
    %603 = arith.mulf %602, %59 : vector<17x17xf32>
    %604 = arith.addf %600, %603 : vector<17x17xf32>
    %c106 = arith.constant 106 : index
    %605 = memref.load %arg1[%c106] : memref<128xf32, #tpu.memory_space<smem>>
    %606 = vector.broadcast %605 : f32 to vector<17x17xf32>
    %607 = arith.mulf %606, %61 : vector<17x17xf32>
    %608 = arith.addf %604, %607 : vector<17x17xf32>
    %c107 = arith.constant 107 : index
    %609 = memref.load %arg1[%c107] : memref<128xf32, #tpu.memory_space<smem>>
    %610 = vector.broadcast %609 : f32 to vector<17x17xf32>
    %611 = arith.mulf %610, %63 : vector<17x17xf32>
    %612 = arith.addf %608, %611 : vector<17x17xf32>
    %c108 = arith.constant 108 : index
    %613 = memref.load %arg1[%c108] : memref<128xf32, #tpu.memory_space<smem>>
    %614 = vector.broadcast %613 : f32 to vector<17x17xf32>
    %615 = arith.mulf %614, %65 : vector<17x17xf32>
    %616 = arith.addf %612, %615 : vector<17x17xf32>
    %c109 = arith.constant 109 : index
    %617 = memref.load %arg1[%c109] : memref<128xf32, #tpu.memory_space<smem>>
    %618 = vector.broadcast %617 : f32 to vector<17x17xf32>
    %619 = arith.mulf %618, %67 : vector<17x17xf32>
    %620 = arith.addf %616, %619 : vector<17x17xf32>
    %c110 = arith.constant 110 : index
    %621 = memref.load %arg1[%c110] : memref<128xf32, #tpu.memory_space<smem>>
    %622 = vector.broadcast %621 : f32 to vector<17x17xf32>
    %623 = arith.mulf %622, %69 : vector<17x17xf32>
    %624 = arith.addf %620, %623 : vector<17x17xf32>
    %c111 = arith.constant 111 : index
    %625 = memref.load %arg1[%c111] : memref<128xf32, #tpu.memory_space<smem>>
    %626 = vector.broadcast %625 : f32 to vector<17x17xf32>
    %627 = arith.mulf %626, %71 : vector<17x17xf32>
    %628 = arith.addf %624, %627 : vector<17x17xf32>
    %c6_151 = arith.constant 6 : index
    %629 = memref.load %arg2[%c6_151] : memref<8xf32, #tpu.memory_space<smem>>
    %630 = vector.broadcast %629 : f32 to vector<17x17xf32>
    %631 = arith.addf %628, %630 : vector<17x17xf32>
    %cst_152 = arith.constant 0.000000e+00 : f32
    %632 = vector.broadcast %cst_152 : f32 to vector<17x17xf32>
    %633 = arith.maximumf %631, %632 : vector<17x17xf32>
    %cst_153 = arith.constant dense<0.000000e+00> : vector<9x17xf32>
    %634 = tpu.matmul %10, %633, %cst_153 {dimension_numbers = #tpu.dot_dimension_numbers<[1], [0], [0], [1], [0, 0, 1, 1], [], []>} : vector<9x17xf32>, vector<17x17xf32>, vector<9x17xf32> -> vector<9x17xf32>
    %cst_154 = arith.constant dense<0.000000e+00> : vector<9x17xf32>
    %635 = tpu.matmul %19, %633, %cst_154 {dimension_numbers = #tpu.dot_dimension_numbers<[1], [0], [0], [1], [0, 0, 1, 1], [], []>} : vector<9x17xf32>, vector<17x17xf32>, vector<9x17xf32> -> vector<9x17xf32>
    %cst_155 = arith.constant dense<0.000000e+00> : vector<9x9xf32>
    %636 = tpu.matmul %634, %30, %cst_155 {dimension_numbers = #tpu.dot_dimension_numbers<[1], [0], [0], [1], [0, 0, 1, 1], [], []>} : vector<9x17xf32>, vector<17x9xf32>, vector<9x9xf32> -> vector<9x9xf32>
    %cst_156 = arith.constant dense<0.000000e+00> : vector<9x9xf32>
    %637 = tpu.matmul %634, %39, %cst_156 {dimension_numbers = #tpu.dot_dimension_numbers<[1], [0], [0], [1], [0, 0, 1, 1], [], []>} : vector<9x17xf32>, vector<17x9xf32>, vector<9x9xf32> -> vector<9x9xf32>
    %638 = arith.maximumf %636, %637 : vector<9x9xf32>
    %cst_157 = arith.constant dense<0.000000e+00> : vector<9x9xf32>
    %639 = tpu.matmul %635, %30, %cst_157 {dimension_numbers = #tpu.dot_dimension_numbers<[1], [0], [0], [1], [0, 0, 1, 1], [], []>} : vector<9x17xf32>, vector<17x9xf32>, vector<9x9xf32> -> vector<9x9xf32>
    %640 = arith.maximumf %638, %639 : vector<9x9xf32>
    %cst_158 = arith.constant dense<0.000000e+00> : vector<9x9xf32>
    %641 = tpu.matmul %635, %39, %cst_158 {dimension_numbers = #tpu.dot_dimension_numbers<[1], [0], [0], [1], [0, 0, 1, 1], [], []>} : vector<9x17xf32>, vector<17x9xf32>, vector<9x9xf32> -> vector<9x9xf32>
    %642 = arith.maximumf %640, %641 : vector<9x9xf32>
    %c0_159 = arith.constant 0 : index
    %c6_160 = arith.constant 6 : index
    %c0_161 = arith.constant 0 : index
    %c0_162 = arith.constant 0 : index
    %643 = vector.load %arg4[%c0_159, %c6_160, %c0_161, %c0_162] : memref<1x8x9x9xf32, #tpu.memory_space<vmem>>, vector<1x1x9x9xf32>
    %644 = vector.shape_cast %643 : vector<1x1x9x9xf32> to vector<9x9xf32>
    %645 = vector.shape_cast %642 : vector<9x9xf32> to vector<1x1x9x9xf32>
    tpu.vector_store %arg4[%c0_159, %c6_160, %c0_161, %c0_162], %645 {strides = array<i32>} : memref<1x8x9x9xf32, #tpu.memory_space<vmem>>, vector<1x1x9x9xf32>,
    %cst_163 = arith.constant 0.000000e+00 : f32
    %646 = vector.broadcast %cst_163 : f32 to vector<17x17xf32>
    %c112 = arith.constant 112 : index
    %647 = memref.load %arg1[%c112] : memref<128xf32, #tpu.memory_space<smem>>
    %648 = vector.broadcast %647 : f32 to vector<17x17xf32>
    %649 = arith.mulf %648, %41 : vector<17x17xf32>
    %650 = arith.addf %646, %649 : vector<17x17xf32>
    %c113 = arith.constant 113 : index
    %651 = memref.load %arg1[%c113] : memref<128xf32, #tpu.memory_space<smem>>
    %652 = vector.broadcast %651 : f32 to vector<17x17xf32>
    %653 = arith.mulf %652, %43 : vector<17x17xf32>
    %654 = arith.addf %650, %653 : vector<17x17xf32>
    %c114 = arith.constant 114 : index
    %655 = memref.load %arg1[%c114] : memref<128xf32, #tpu.memory_space<smem>>
    %656 = vector.broadcast %655 : f32 to vector<17x17xf32>
    %657 = arith.mulf %656, %45 : vector<17x17xf32>
    %658 = arith.addf %654, %657 : vector<17x17xf32>
    %c115 = arith.constant 115 : index
    %659 = memref.load %arg1[%c115] : memref<128xf32, #tpu.memory_space<smem>>
    %660 = vector.broadcast %659 : f32 to vector<17x17xf32>
    %661 = arith.mulf %660, %47 : vector<17x17xf32>
    %662 = arith.addf %658, %661 : vector<17x17xf32>
    %c116 = arith.constant 116 : index
    %663 = memref.load %arg1[%c116] : memref<128xf32, #tpu.memory_space<smem>>
    %664 = vector.broadcast %663 : f32 to vector<17x17xf32>
    %665 = arith.mulf %664, %49 : vector<17x17xf32>
    %666 = arith.addf %662, %665 : vector<17x17xf32>
    %c117 = arith.constant 117 : index
    %667 = memref.load %arg1[%c117] : memref<128xf32, #tpu.memory_space<smem>>
    %668 = vector.broadcast %667 : f32 to vector<17x17xf32>
    %669 = arith.mulf %668, %51 : vector<17x17xf32>
    %670 = arith.addf %666, %669 : vector<17x17xf32>
    %c118 = arith.constant 118 : index
    %671 = memref.load %arg1[%c118] : memref<128xf32, #tpu.memory_space<smem>>
    %672 = vector.broadcast %671 : f32 to vector<17x17xf32>
    %673 = arith.mulf %672, %53 : vector<17x17xf32>
    %674 = arith.addf %670, %673 : vector<17x17xf32>
    %c119 = arith.constant 119 : index
    %675 = memref.load %arg1[%c119] : memref<128xf32, #tpu.memory_space<smem>>
    %676 = vector.broadcast %675 : f32 to vector<17x17xf32>
    %677 = arith.mulf %676, %55 : vector<17x17xf32>
    %678 = arith.addf %674, %677 : vector<17x17xf32>
    %c120 = arith.constant 120 : index
    %679 = memref.load %arg1[%c120] : memref<128xf32, #tpu.memory_space<smem>>
    %680 = vector.broadcast %679 : f32 to vector<17x17xf32>
    %681 = arith.mulf %680, %57 : vector<17x17xf32>
    %682 = arith.addf %678, %681 : vector<17x17xf32>
    %c121 = arith.constant 121 : index
    %683 = memref.load %arg1[%c121] : memref<128xf32, #tpu.memory_space<smem>>
    %684 = vector.broadcast %683 : f32 to vector<17x17xf32>
    %685 = arith.mulf %684, %59 : vector<17x17xf32>
    %686 = arith.addf %682, %685 : vector<17x17xf32>
    %c122 = arith.constant 122 : index
    %687 = memref.load %arg1[%c122] : memref<128xf32, #tpu.memory_space<smem>>
    %688 = vector.broadcast %687 : f32 to vector<17x17xf32>
    %689 = arith.mulf %688, %61 : vector<17x17xf32>
    %690 = arith.addf %686, %689 : vector<17x17xf32>
    %c123 = arith.constant 123 : index
    %691 = memref.load %arg1[%c123] : memref<128xf32, #tpu.memory_space<smem>>
    %692 = vector.broadcast %691 : f32 to vector<17x17xf32>
    %693 = arith.mulf %692, %63 : vector<17x17xf32>
    %694 = arith.addf %690, %693 : vector<17x17xf32>
    %c124 = arith.constant 124 : index
    %695 = memref.load %arg1[%c124] : memref<128xf32, #tpu.memory_space<smem>>
    %696 = vector.broadcast %695 : f32 to vector<17x17xf32>
    %697 = arith.mulf %696, %65 : vector<17x17xf32>
    %698 = arith.addf %694, %697 : vector<17x17xf32>
    %c125 = arith.constant 125 : index
    %699 = memref.load %arg1[%c125] : memref<128xf32, #tpu.memory_space<smem>>
    %700 = vector.broadcast %699 : f32 to vector<17x17xf32>
    %701 = arith.mulf %700, %67 : vector<17x17xf32>
    %702 = arith.addf %698, %701 : vector<17x17xf32>
    %c126 = arith.constant 126 : index
    %703 = memref.load %arg1[%c126] : memref<128xf32, #tpu.memory_space<smem>>
    %704 = vector.broadcast %703 : f32 to vector<17x17xf32>
    %705 = arith.mulf %704, %69 : vector<17x17xf32>
    %706 = arith.addf %702, %705 : vector<17x17xf32>
    %c127 = arith.constant 127 : index
    %707 = memref.load %arg1[%c127] : memref<128xf32, #tpu.memory_space<smem>>
    %708 = vector.broadcast %707 : f32 to vector<17x17xf32>
    %709 = arith.mulf %708, %71 : vector<17x17xf32>
    %710 = arith.addf %706, %709 : vector<17x17xf32>
    %c7_164 = arith.constant 7 : index
    %711 = memref.load %arg2[%c7_164] : memref<8xf32, #tpu.memory_space<smem>>
    %712 = vector.broadcast %711 : f32 to vector<17x17xf32>
    %713 = arith.addf %710, %712 : vector<17x17xf32>
    %cst_165 = arith.constant 0.000000e+00 : f32
    %714 = vector.broadcast %cst_165 : f32 to vector<17x17xf32>
    %715 = arith.maximumf %713, %714 : vector<17x17xf32>
    %cst_166 = arith.constant dense<0.000000e+00> : vector<9x17xf32>
    %716 = tpu.matmul %10, %715, %cst_166 {dimension_numbers = #tpu.dot_dimension_numbers<[1], [0], [0], [1], [0, 0, 1, 1], [], []>} : vector<9x17xf32>, vector<17x17xf32>, vector<9x17xf32> -> vector<9x17xf32>
    %cst_167 = arith.constant dense<0.000000e+00> : vector<9x17xf32>
    %717 = tpu.matmul %19, %715, %cst_167 {dimension_numbers = #tpu.dot_dimension_numbers<[1], [0], [0], [1], [0, 0, 1, 1], [], []>} : vector<9x17xf32>, vector<17x17xf32>, vector<9x17xf32> -> vector<9x17xf32>
    %cst_168 = arith.constant dense<0.000000e+00> : vector<9x9xf32>
    %718 = tpu.matmul %716, %30, %cst_168 {dimension_numbers = #tpu.dot_dimension_numbers<[1], [0], [0], [1], [0, 0, 1, 1], [], []>} : vector<9x17xf32>, vector<17x9xf32>, vector<9x9xf32> -> vector<9x9xf32>
    %cst_169 = arith.constant dense<0.000000e+00> : vector<9x9xf32>
    %719 = tpu.matmul %716, %39, %cst_169 {dimension_numbers = #tpu.dot_dimension_numbers<[1], [0], [0], [1], [0, 0, 1, 1], [], []>} : vector<9x17xf32>, vector<17x9xf32>, vector<9x9xf32> -> vector<9x9xf32>
    %720 = arith.maximumf %718, %719 : vector<9x9xf32>
    %cst_170 = arith.constant dense<0.000000e+00> : vector<9x9xf32>
    %721 = tpu.matmul %717, %30, %cst_170 {dimension_numbers = #tpu.dot_dimension_numbers<[1], [0], [0], [1], [0, 0, 1, 1], [], []>} : vector<9x17xf32>, vector<17x9xf32>, vector<9x9xf32> -> vector<9x9xf32>
    %722 = arith.maximumf %720, %721 : vector<9x9xf32>
    %cst_171 = arith.constant dense<0.000000e+00> : vector<9x9xf32>
    %723 = tpu.matmul %717, %39, %cst_171 {dimension_numbers = #tpu.dot_dimension_numbers<[1], [0], [0], [1], [0, 0, 1, 1], [], []>} : vector<9x17xf32>, vector<17x9xf32>, vector<9x9xf32> -> vector<9x9xf32>
    %724 = arith.maximumf %722, %723 : vector<9x9xf32>
    %c0_172 = arith.constant 0 : index
    %c7_173 = arith.constant 7 : index
    %c0_174 = arith.constant 0 : index
    %c0_175 = arith.constant 0 : index
    %725 = vector.load %arg4[%c0_172, %c7_173, %c0_174, %c0_175] : memref<1x8x9x9xf32, #tpu.memory_space<vmem>>, vector<1x1x9x9xf32>
    %726 = vector.shape_cast %725 : vector<1x1x9x9xf32> to vector<9x9xf32>
    %727 = vector.shape_cast %724 : vector<9x9xf32> to vector<1x1x9x9xf32>
    tpu.vector_store %arg4[%c0_172, %c7_173, %c0_174, %c0_175], %727 {strides = array<i32>} : memref<1x8x9x9xf32, #tpu.memory_space<vmem>>, vector<1x1x9x9xf32>,
    return
  }
  func.func @transform_0(%arg0: i32) -> i32 {
    %c0_i32 = arith.constant 0 : i32
    %c0_i32_0 = arith.constant 0 : i32
    return %c0_i32 : i32
  }
  func.func @transform_1(%arg0: i32) -> i32 {
    %c0_i32 = arith.constant 0 : i32
    %c0_i32_0 = arith.constant 0 : i32
    return %c0_i32 : i32
  }
  func.func @transform_2(%arg0: i32) -> (i32, i32, i32, i32) {
    %c0_i32 = arith.constant 0 : i32
    %c0_i32_0 = arith.constant 0 : i32
    %c0_i32_1 = arith.constant 0 : i32
    %c0_i32_2 = arith.constant 0 : i32
    return %arg0, %c0_i32, %c0_i32_0, %c0_i32_1 : i32, i32, i32, i32
  }
  func.func @transform_3(%arg0: i32) -> (i32, i32, i32, i32) {
    %c0_i32 = arith.constant 0 : i32
    %c0_i32_0 = arith.constant 0 : i32
    %c0_i32_1 = arith.constant 0 : i32
    %c0_i32_2 = arith.constant 0 : i32
    return %arg0, %c0_i32, %c0_i32_0, %c0_i32_1 : i32, i32, i32, i32
  }
}

</mosaic_0001>

<llo_original>
// kernel: fc1_forward.1
$region0: #{fc1_forward.1}
  #allocation0 [shape = 'u32[]', space=smem, size = 0x4, offset = 0x4, fixed_abs, tag = 'smem constant byte address 0x4 - core index']
  #allocation1 [shape = 'u32[144,128]{1,0:T(1,128)}', space=vmem, size = 0x12000, scoped, tag = 'internal scratch']
  %s0 = inlined_call_operand.vmem [shape: f32[128], index: 0, kind: input, shape index: {}]
  %s1 = inlined_call_operand.vmem [shape: f32[8], index: 1, kind: input, shape index: {}]
  %s2 = inlined_call_operand.vmem [shape: f32[2,4,18,18], index: 2, kind: input, shape index: {}]
  %s3 = inlined_call_operand.vmem [shape: f32[2,8,9,9], index: 3, kind: output, shape index: {}]
  %s4 = sld [smem:[#allocation0]]
  $region53: #{fc1_forward.1} parent=0
    _
  %s6 = ssub.s32 1, %s4
  %s7 = scalar_select 0, %s6, %s4
  $region1: #{fc1_forward.1} parent=0
    #allocation2 [shape = 'u8[512]{0}', space=smem, size = 0x200, scoped, tag = 'input window, operand 0, single buffered']
    #allocation3 [shape = 's32[2]{0}', space=sflag, size = 0x8, scoped, tag = 'scoped memory for fc1_forward.1']
    #allocation4 [shape = 'u8[512]{0}', space=smem, size = 0x200, scoped, tag = 'input window, operand 1, single buffered']
    #allocation5 [shape = 's32[1]{0}', space=sflag, size = 0x4, scoped, tag = 'scoped memory for fc1_forward.1']
    %8 = vsyncpa [#allocation3], 0
    %9 = vsyncpa [#allocation5], 0
    loop: start=0, step=1, limit=4
    $region2: #{fc1_forward.1} parent=1 // loop_pre_header
      _
    $region3: #{fc1_forward.1} parent=1 // loop_header
      %s11 = sphi 0, %s15
      %p12 = scmp.ge.s32.totalorder %s11, 4
      %s19 = sphi 0, %s19
      %s21 = sphi 0, %s19
      %s22 = sphi 0, %s21
      %s36 = sphi 0, %s22
      %s40 = sphi 0, %s40
      %s42 = sphi 0, %s40
      %s43 = sphi 0, %s42
      %s57 = sphi 0, %s43
      %s63 = sphi 0, %s65
      %s66 = sphi 0, %s63
      %s67 = sphi 0, %s66
      %s83 = sphi 0, %s67
      %s89 = sphi 0, %s91
      %s92 = sphi 0, %s89
      %s93 = sphi 0, %s92
      %s109 = sphi 0, %s93
    $region4: #{fc1_forward.1} parent=1 // loop_header_branch
      %14 = sbr.rel (%p12) target = $region8
    $region5: #{fc1_forward.1} parent=1 // loop_body
      %s16 = ssub.s32 %s11, 1
      %s17 = ssub.s32 %s11, 2
      %s18 = sadd.s32 %s11, 1
      %s20 = sadd.s32 %s19, 1
      %p23 = scmp.eq.s32.totalorder %s11, 1
      %p24 = scmp.ne.s32.totalorder %s19, %s21
      %p25 = scmp.eq.s32.totalorder %s11, 0
      %p26 = por %p24, %p25
      %p27 = scmp.ne.s32.totalorder %s19, %s21
      %p28 = scmp.eq.s32.totalorder %s16, 1
      %p29 = por %p27, %p28
      %p30 = scmp.ne.s32.totalorder %s21, %s22
      %p31 = scmp.eq.s32.totalorder %s16, 0
      %p32 = por %p30, %p31
      %p33 = scmp.ne.s32.totalorder %s21, %s22
      %p34 = scmp.eq.s32.totalorder %s17, 1
      %p35 = por %p33, %p34
      %p37 = scmp.ne.s32.totalorder %s22, %s36
      %p38 = scmp.eq.s32.totalorder %s17, 0
      %p39 = por %p37, %p38
      %s41 = sadd.s32 %s40, 1
      %p44 = scmp.eq.s32.totalorder %s11, 1
      %p45 = scmp.ne.s32.totalorder %s40, %s42
      %p46 = scmp.eq.s32.totalorder %s11, 0
      %p47 = por %p45, %p46
      %p48 = scmp.ne.s32.totalorder %s40, %s42
      %p49 = scmp.eq.s32.totalorder %s16, 1
      %p50 = por %p48, %p49
      %p51 = scmp.ne.s32.totalorder %s42, %s43
      %p52 = scmp.eq.s32.totalorder %s16, 0
      %p53 = por %p51, %p52
      %p54 = scmp.ne.s32.totalorder %s42, %s43
      %p55 = scmp.eq.s32.totalorder %s17, 1
      %p56 = por %p54, %p55
      %p58 = scmp.ne.s32.totalorder %s43, %s57
      %p59 = scmp.eq.s32.totalorder %s17, 0
      %p60 = por %p58, %p59
      %s61 = ssub.s32 %s11, %s18
      %p62 = scmp.eq.s32.totalorder %s61, 0
      %s64 = sadd.s32 %s63, 1
      %s65 = scalar_select %p62, %s63, %s64
      %p68 = pneg %p62
      %p69 = scmp.eq.s32.totalorder %s11, 1
      %p70 = por %p68, %p69
      %p71 = scmp.ne.s32.totalorder %s63, %s66
      %p72 = scmp.eq.s32.totalorder %s11, 0
      %p73 = por %p71, %p72
      %p74 = scmp.ne.s32.totalorder %s63, %s66
      %p75 = scmp.eq.s32.totalorder %s16, 1
      %p76 = por %p74, %p75
      %p77 = scmp.ne.s32.totalorder %s66, %s67
      %p78 = scmp.eq.s32.totalorder %s16, 0
      %p79 = por %p77, %p78
      %p80 = scmp.ne.s32.totalorder %s66, %s67
      %p81 = scmp.eq.s32.totalorder %s17, 1
      %p82 = por %p80, %p81
      %p84 = scmp.ne.s32.totalorder %s67, %s83
      %p85 = scmp.eq.s32.totalorder %s17, 0
      %p86 = por %p84, %p85
      %s87 = ssub.s32 %s11, %s18
      %p88 = scmp.eq.s32.totalorder %s87, 0
      %s90 = sadd.s32 %s89, 1
      %s91 = scalar_select %p88, %s89, %s90
      %p94 = pneg %p88
      %p95 = scmp.eq.s32.totalorder %s11, 1
      %p96 = por %p94, %p95
      %p97 = scmp.ne.s32.totalorder %s89, %s92
      %p98 = scmp.eq.s32.totalorder %s11, 0
      %p99 = por %p97, %p98
      %p100 = scmp.ne.s32.totalorder %s89, %s92
      %p101 = scmp.eq.s32.totalorder %s16, 1
      %p102 = por %p100, %p101
      %p103 = scmp.ne.s32.totalorder %s92, %s93
      %p104 = scmp.eq.s32.totalorder %s16, 0
      %p105 = por %p103, %p104
      %p106 = scmp.ne.s32.totalorder %s92, %s93
      %p107 = scmp.eq.s32.totalorder %s17, 1
      %p108 = por %p106, %p107
      %p110 = scmp.ne.s32.totalorder %s93, %s109
      %p111 = scmp.eq.s32.totalorder %s17, 0
      %p112 = por %p110, %p111
      %p113 = scmp.le.s32.totalorder 1, %s11
      %p114 = scmp.lt.s32.totalorder %s11, 3
      %p115 = pnand %p113, %p114
      %p116 = pneg %p115
      // Predicated region
      $region9: #{fc1_forward.1} parent=5 // pred_check
        _
      $region10: #{fc1_forward.1} parent=5 // pred_check_branch
        %118 = sbr.rel (%p115) target = $region12
      $region11: #{fc1_forward.1} parent=5 // pred_region
        %s119 = ssub.s32 %s11, 1
        // Predicated region
        $region13: #{fc1_forward.1} parent=11 // pred_check
          %p120 = pneg %p32
        $region14: #{fc1_forward.1} parent=11 // pred_check_branch
          %122 = sbr.rel (%p120) target = $region16
        $region15: #{fc1_forward.1} parent=11 // pred_region
          %s124 = ssub.s32 16, 16
          %125 = vsyncadd [#allocation3], %s124
          %s127 = sshll.u32 %s0, 4
          %s128 = int_to_ptr.vmem [resolvable:$true] %s127
          %130 = dma.vmem_to_smem %s128, 16, [#allocation2], [#allocation3]
        $region16: #{fc1_forward.1} parent=11 // pred_fallthru
          _
        // Predicated region
        $region17: #{fc1_forward.1} parent=11 // pred_check
          %p131 = pneg %p53
        $region18: #{fc1_forward.1} parent=11 // pred_check_branch
          %133 = sbr.rel (%p131) target = $region20
        $region19: #{fc1_forward.1} parent=11 // pred_region
          %s135 = ssub.s32 16, 16
          %136 = vsyncadd [#allocation5], %s135
          %s138 = sshll.u32 %s1, 4
          %s139 = int_to_ptr.vmem [resolvable:$true] %s138
          %141 = dma.vmem_to_smem %s139, 16, [#allocation4], [#allocation5]
        $region20: #{fc1_forward.1} parent=11 // pred_fallthru
          _
      $region12: #{fc1_forward.1} parent=5 // pred_fallthru
        _
      %p142 = scmp.lt.s32.totalorder %s11, 2
      // Predicated region
      $region21: #{fc1_forward.1} parent=5 // pred_check
        %p143 = pneg %p142
      $region22: #{fc1_forward.1} parent=5 // pred_check_branch
        %145 = sbr.rel (%p143) target = $region24
      $region23: #{fc1_forward.1} parent=5 // pred_region
        // Predicated region
        $region25: #{fc1_forward.1} parent=23 // pred_check
          %p146 = pneg %p73
        $region26: #{fc1_forward.1} parent=23 // pred_check_branch
          %148 = sbr.rel (%p146) target = $region28
        $region27: #{fc1_forward.1} parent=23 // pred_region
          %p149 = scmp.lt.s32.totalorder %s11, 1
          %s150 = scalar_select %p149, %s11, 1
          %s151 = smul.addr %s150, 12
          %s152 = smul.addr %s151, 8
          %s153 = scalar_lea.vmem %s2, %s152
        $region28: #{fc1_forward.1} parent=23 // pred_fallthru
          _
      $region24: #{fc1_forward.1} parent=5 // pred_fallthru
        _
      %p154 = scmp.le.s32.totalorder 1, %s11
      %p155 = scmp.lt.s32.totalorder %s11, 3
      %p156 = pnand %p154, %p155
      %p157 = pneg %p156
      // Predicated region
      $region29: #{fc1_forward.1} parent=5 // pred_check
        _
      $region30: #{fc1_forward.1} parent=5 // pred_check_branch
        %159 = sbr.rel (%p156) target = $region32
      $region31: #{fc1_forward.1} parent=5 // pred_region
        %s160 = ssub.s32 %s11, 1
        // Predicated region
        $region33: #{fc1_forward.1} parent=31 // pred_check
          %p161 = pneg %p32
        $region34: #{fc1_forward.1} parent=31 // pred_check_branch
          %163 = sbr.rel (%p161) target = $region36
        $region35: #{fc1_forward.1} parent=31 // pred_region
          %164 = dma.done [#allocation3], 16
        $region36: #{fc1_forward.1} parent=31 // pred_fallthru
          _
        // Predicated region
        $region37: #{fc1_forward.1} parent=31 // pred_check
          %p165 = pneg %p53
        $region38: #{fc1_forward.1} parent=31 // pred_check_branch
          %167 = sbr.rel (%p165) target = $region40
        $region39: #{fc1_forward.1} parent=31 // pred_region
          %168 = dma.done [#allocation5], 16
        $region40: #{fc1_forward.1} parent=31 // pred_fallthru
          _
        %169 = sfence
        %p170 = pneg %p32
        %p171 = pneg %p29
        %p172 = pneg %p53
        %p173 = pneg %p50
        %p174 = scmp.lt.s32.totalorder %s16, 1
        %s175 = scalar_select %p174, %s16, 1
        %s176 = smul.addr %s175, 12
        %s177 = smul.addr %s176, 8
        %s178 = scalar_lea.vmem %s2, %s177
        %p179 = pneg %p79
        %p180 = pneg %p76
        %p181 = pneg %p105
        %p182 = pneg %p102
        %p183 = scmp.lt.s32.totalorder %s16, 1
        %s184 = scalar_select %p183, %s16, 1
        %s185 = smul.addr %s184, 16
        %s186 = smul.addr %s185, 8
        %s187 = scalar_lea.vmem %s3, %s186
        %p188 = scmp.lt.s32.totalorder %s16, 1
        %s189 = scalar_select %p188, %s16, 1
        %s190 = smul.addr %s189, 12
        %s191 = smul.addr %s190, 8
        %s192 = scalar_lea.vmem %s2, %s191
        %p193 = scmp.lt.s32.totalorder %s16, 1
        %s194 = scalar_select %p193, %s16, 1
        %s195 = smul.addr %s194, 16
        %s196 = smul.addr %s195, 8
        %s197 = scalar_lea.vmem %s3, %s196
        %v198 = vlaneseq
        %v199 = vshrl.u32 %v198, 7
        %v200 = vadd.s32 %v199, 8
        %v201 = vlaneseq
        %v202 = vand.u32 %v201, 127
        %v203 = vmul.u32 %v199, 2
        %v204 = vmul.u32 %v200, 2
        %v205 = vsub.s32 %v203, 1
        %v206 = vsub.s32 %v204, 1
        %vm207 = vcmp.eq.s32.totalorder %v202, %v205
        %vm208 = vcmp.eq.s32.totalorder %v202, %v206
        %v209 = vsel %vm207, 1, 0
        %v210 = vsel %vm208, 1, 0
        %v211 = vcvt.s32.f32 %v209
        %v212 = vcvt.s32.f32 %v210
        %vm213 = vcmp.eq.s32.totalorder %v202, %v203
        %vm214 = vcmp.eq.s32.totalorder %v202, %v204
        %v215 = vsel %vm213, 1, 0
        %v216 = vsel %vm214, 1, 0
        %v217 = vcvt.s32.f32 %v215
        %v218 = vcvt.s32.f32 %v216
        %v219 = vadd.s32 %v199, 16
        %v220 = vmul.u32 %v202, 2
        %v221 = vsub.s32 %v220, 1
        %vm222 = vcmp.eq.s32.totalorder %v199, %v221
        %vm223 = vcmp.eq.s32.totalorder %v200, %v221
        %vm224 = vcmp.eq.s32.totalorder %v219, %v221
        %v225 = vsel %vm222, 1, 0
        %v226 = vsel %vm223, 1, 0
        %v227 = vsel %vm224, 1, 0
        %v228 = vcvt.s32.f32 %v225
        %v229 = vcvt.s32.f32 %v226
        %v230 = vcvt.s32.f32 %v227
        %vm231 = vcmp.eq.s32.totalorder %v199, %v220
        %vm232 = vcmp.eq.s32.totalorder %v200, %v220
        %vm233 = vcmp.eq.s32.totalorder %v219, %v220
        %v234 = vsel %vm231, 1, 0
        %v235 = vsel %vm232, 1, 0
        %v236 = vsel %vm233, 1, 0
        %v237 = vcvt.s32.f32 %v234
        %v238 = vcvt.s32.f32 %v235
        %v239 = vcvt.s32.f32 %v236
        %v240 = vld [vmem:[%s192] sm:$0xff]
        %v241 = vld [vmem:[%s192 + $0x8] sm:$0xff]
        %v242 = vld [vmem:[%s192 + $0x10] sm:$0x1]
        %v243 = vld [vmem:[%s192 + $0x1] sm:$0xff]
        %v244 = vld [vmem:[%s192 + $0x9] sm:$0xff]
        %v245 = vld [vmem:[%s192 + $0x11] sm:$0x1]
        %s246 = scalar_lea.vmem %s192, 24
        %v247 = vld [vmem:[%s246] sm:$0xff]
        %v248 = vld [vmem:[%s246 + $0x8] sm:$0xff]
        %v249 = vld [vmem:[%s246 + $0x10] sm:$0x1]
        %v250 = vld [vmem:[%s246 + $0x1] sm:$0xff]
        %v251 = vld [vmem:[%s246 + $0x9] sm:$0xff]
        %v252 = vld [vmem:[%s246 + $0x11] sm:$0x1]
        %s253 = scalar_lea.vmem %s192, 48
        %v254 = vld [vmem:[%s253] sm:$0xff]
        %v255 = vld [vmem:[%s253 + $0x8] sm:$0xff]
        %v256 = vld [vmem:[%s253 + $0x10] sm:$0x1]
        %v257 = vld [vmem:[%s253 + $0x1] sm:$0xff]
        %v258 = vld [vmem:[%s253 + $0x9] sm:$0xff]
        %v259 = vld [vmem:[%s253 + $0x11] sm:$0x1]
        %s260 = scalar_lea.vmem %s192, 72
        %v261 = vld [vmem:[%s260] sm:$0xff]
        %v262 = vld [vmem:[%s260 + $0x8] sm:$0xff]
        %v263 = vld [vmem:[%s260 + $0x10] sm:$0x1]
        %v264 = vld [vmem:[%s260 + $0x1] sm:$0xff]
        %v265 = vld [vmem:[%s260 + $0x9] sm:$0xff]
        %v266 = vld [vmem:[%s260 + $0x11] sm:$0x1]
        %s267 = sld [smem:[#allocation2]]
        %v268 = vstv %s267
        %v269 = vmul.f32 %v268, %v240
        %v270 = vmul.f32 %v268, %v241
        %v271 = vmul.f32 %v268, %v242
        %v272 = vadd.f32 %v269, 0.0
        %v273 = vadd.f32 %v270, 0.0
        %v274 = vadd.f32 %v271, 0.0
        %s275 = sld [smem:[#allocation2 + $0x1]]
        %v276 = vstv %s275
        %v277 = vmul.f32 %v276, %v240
        %v278 = vmul.f32 %v276, %v241
        %v279 = vmul.f32 %v276, %v242
        %283 = vrot.lane.b32.xlu0 %v277, 127
        %v284 = vpop.permute.xlu0 %283
        %285 = vrot.lane.b32.xlu0 %v278, 127
        %v286 = vpop.permute.xlu0 %285
        %287 = vrot.lane.b32.xlu0 %v279, 127
        %v288 = vpop.permute.xlu0 %287
        %v292 = vadd.f32 %v272, %v284
        %v293 = vadd.f32 %v273, %v286
        %v294 = vadd.f32 %v274, %v288
        %s295 = sld [smem:[#allocation2 + $0x2]]
        %v296 = vstv %s295
        %v297 = vmul.f32 %v296, %v243
        %v298 = vmul.f32 %v296, %v244
        %v299 = vmul.f32 %v296, %v245
        %v300 = vadd.f32 %v292, %v297
        %v301 = vadd.f32 %v293, %v298
        %v302 = vadd.f32 %v294, %v299
        %s303 = sld [smem:[#allocation2 + $0x3]]
        %v304 = vstv %s303
        %v305 = vmul.f32 %v304, %v243
        %v306 = vmul.f32 %v304, %v244
        %v307 = vmul.f32 %v304, %v245
        %311 = vrot.lane.b32.xlu0 %v305, 127
        %v312 = vpop.permute.xlu0 %311
        %313 = vrot.lane.b32.xlu0 %v306, 127
        %v314 = vpop.permute.xlu0 %313
        %315 = vrot.lane.b32.xlu0 %v307, 127
        %v316 = vpop.permute.xlu0 %315
        %v320 = vadd.f32 %v300, %v312
        %v321 = vadd.f32 %v301, %v314
        %v322 = vadd.f32 %v302, %v316
        %s323 = sld [smem:[#allocation2 + $0x4]]
        %v324 = vstv %s323
        %v325 = vmul.f32 %v324, %v247
        %v326 = vmul.f32 %v324, %v248
        %v327 = vmul.f32 %v324, %v249
        %v328 = vadd.f32 %v320, %v325
        %v329 = vadd.f32 %v321, %v326
        %v330 = vadd.f32 %v322, %v327
        %s331 = sld [smem:[#allocation2 + $0x5]]
        %v332 = vstv %s331
        %v333 = vmul.f32 %v332, %v247
        %v334 = vmul.f32 %v332, %v248
        %v335 = vmul.f32 %v332, %v249
        %339 = vrot.lane.b32.xlu0 %v333, 127
        %v340 = vpop.permute.xlu0 %339
        %341 = vrot.lane.b32.xlu0 %v334, 127
        %v342 = vpop.permute.xlu0 %341
        %343 = vrot.lane.b32.xlu0 %v335, 127
        %v344 = vpop.permute.xlu0 %343
        %v348 = vadd.f32 %v328, %v340
        %v349 = vadd.f32 %v329, %v342
        %v350 = vadd.f32 %v330, %v344
        %s351 = sld [smem:[#allocation2 + $0x6]]
        %v352 = vstv %s351
        %v353 = vmul.f32 %v352, %v250
        %v354 = vmul.f32 %v352, %v251
        %v355 = vmul.f32 %v352, %v252
        %v356 = vadd.f32 %v348, %v353
        %v357 = vadd.f32 %v349, %v354
        %v358 = vadd.f32 %v350, %v355
        %s359 = sld [smem:[#allocation2 + $0x7]]
        %v360 = vstv %s359
        %v361 = vmul.f32 %v360, %v250
        %v362 = vmul.f32 %v360, %v251
        %v363 = vmul.f32 %v360, %v252
        %367 = vrot.lane.b32.xlu0 %v361, 127
        %v368 = vpop.permute.xlu0 %367
        %369 = vrot.lane.b32.xlu0 %v362, 127
        %v370 = vpop.permute.xlu0 %369
        %371 = vrot.lane.b32.xlu0 %v363, 127
        %v372 = vpop.permute.xlu0 %371
        %v376 = vadd.f32 %v356, %v368
        %v377 = vadd.f32 %v357, %v370
        %v378 = vadd.f32 %v358, %v372
        %s379 = sld [smem:[#allocation2 + $0x8]]
        %v380 = vstv %s379
        %v381 = vmul.f32 %v380, %v254
        %v382 = vmul.f32 %v380, %v255
        %v383 = vmul.f32 %v380, %v256
        %v384 = vadd.f32 %v376, %v381
        %v385 = vadd.f32 %v377, %v382
        %v386 = vadd.f32 %v378, %v383
        %s387 = sld [smem:[#allocation2 + $0x9]]
        %v388 = vstv %s387
        %v389 = vmul.f32 %v388, %v254
        %v390 = vmul.f32 %v388, %v255
        %v391 = vmul.f32 %v388, %v256
        %395 = vrot.lane.b32.xlu0 %v389, 127
        %v396 = vpop.permute.xlu0 %395
        %397 = vrot.lane.b32.xlu0 %v390, 127
        %v398 = vpop.permute.xlu0 %397
        %399 = vrot.lane.b32.xlu0 %v391, 127
        %v400 = vpop.permute.xlu0 %399
        %v404 = vadd.f32 %v384, %v396
        %v405 = vadd.f32 %v385, %v398
        %v406 = vadd.f32 %v386, %v400
        %s407 = sld [smem:[#allocation2 + $0xa]]
        %v408 = vstv %s407
        %v409 = vmul.f32 %v408, %v257
        %v410 = vmul.f32 %v408, %v258
        %v411 = vmul.f32 %v408, %v259
        %v412 = vadd.f32 %v404, %v409
        %v413 = vadd.f32 %v405, %v410
        %v414 = vadd.f32 %v406, %v411
        %s415 = sld [smem:[#allocation2 + $0xb]]
        %v416 = vstv %s415
        %v417 = vmul.f32 %v416, %v257
        %v418 = vmul.f32 %v416, %v258
        %v419 = vmul.f32 %v416, %v259
        %423 = vrot.lane.b32.xlu0 %v417, 127
        %v424 = vpop.permute.xlu0 %423
        %425 = vrot.lane.b32.xlu0 %v418, 127
        %v426 = vpop.permute.xlu0 %425
        %427 = vrot.lane.b32.xlu0 %v419, 127
        %v428 = vpop.permute.xlu0 %427
        %v432 = vadd.f32 %v412, %v424
        %v433 = vadd.f32 %v413, %v426
        %v434 = vadd.f32 %v414, %v428
        %s435 = sld [smem:[#allocation2 + $0xc]]
        %v436 = vstv %s435
        %v437 = vmul.f32 %v436, %v261
        %v438 = vmul.f32 %v436, %v262
        %v439 = vmul.f32 %v436, %v263
        %v440 = vadd.f32 %v432, %v437
        %v441 = vadd.f32 %v433, %v438
        %v442 = vadd.f32 %v434, %v439
        %s443 = sld [smem:[#allocation2 + $0xd]]
        %v444 = vstv %s443
        %v445 = vmul.f32 %v444, %v261
        %v446 = vmul.f32 %v444, %v262
        %v447 = vmul.f32 %v444, %v263
        %451 = vrot.lane.b32.xlu0 %v445, 127
        %v452 = vpop.permute.xlu0 %451
        %453 = vrot.lane.b32.xlu0 %v446, 127
        %v454 = vpop.permute.xlu0 %453
        %455 = vrot.lane.b32.xlu0 %v447, 127
        %v456 = vpop.permute.xlu0 %455
        %v460 = vadd.f32 %v440, %v452
        %v461 = vadd.f32 %v441, %v454
        %v462 = vadd.f32 %v442, %v456
        %s463 = sld [smem:[#allocation2 + $0xe]]
        %v464 = vstv %s463
        %v465 = vmul.f32 %v464, %v264
        %v466 = vmul.f32 %v464, %v265
        %v467 = vmul.f32 %v464, %v266
        %v468 = vadd.f32 %v460, %v465
        %v469 = vadd.f32 %v461, %v466
        %v470 = vadd.f32 %v462, %v467
        %s471 = sld [smem:[#allocation2 + $0xf]]
        %v472 = vstv %s471
        %v473 = vmul.f32 %v472, %v264
        %v474 = vmul.f32 %v472, %v265
        %v475 = vmul.f32 %v472, %v266
        %479 = vrot.lane.b32.xlu0 %v473, 127
        %v480 = vpop.permute.xlu0 %479
        %481 = vrot.lane.b32.xlu0 %v474, 127
        %v482 = vpop.permute.xlu0 %481
        %483 = vrot.lane.b32.xlu0 %v475, 127
        %v484 = vpop.permute.xlu0 %483
        %v488 = vadd.f32 %v468, %v480
        %v489 = vadd.f32 %v469, %v482
        %v490 = vadd.f32 %v470, %v484
        %s491 = sld [smem:[#allocation4]]
        %v492 = vstv %s491
        %v493 = vadd.f32 %v488, %v492
        %v494 = vadd.f32 %v489, %v492
        %v495 = vadd.f32 %v490, %v492
        %v496 = vmax.f32 %v493, 0.0
        %v497 = vmax.f32 %v494, 0.0
        %v498 = vmax.f32 %v495, 0.0
        %vm499 = vcmask 138240
        %v501 = vsel %vm499, %v211, 0
        %v504 = vsel %vm499, %v212, 0
        %vm506 = vcmask 1040384
        %v508 = vsel %vm506, %v498, 0
        %510 = vmatprep.subr.mxu0 0.0
        %511 = vmatpush1.msra.mxu0 %v496
        %512 = vmatprep.subr.mxu0 0.0
        %513 = vmatpush1.msra.mxu0 %v497
        %514 = vmatprep.subr.mxu0 0.0
        %515 = vmatpush1.msra.mxu0 %v508
        %516 = vmatprep.subr.mxu0 0.0
        %517 = vmatpush1.msra.mxu0 0.0
        %518 = vmatprep.subr.mxu0 0.0
        %519 = vmatpush1.msra.mxu0 0.0
        %520 = vmatprep.subr.mxu0 0.0
        %521 = vmatpush1.msra.mxu0 0.0
        %522 = vmatprep.subr.mxu0 0.0
        %523 = vmatpush1.msra.mxu0 0.0
        %524 = vmatprep.subr.mxu0 0.0
        %525 = vmatpush1.msra.mxu0 0.0
        %526 = vmatprep.subr.mxu0 0.0
        %527 = vmatpush1.msra.mxu0 0.0
        %528 = vmatprep.subr.mxu0 0.0
        %529 = vmatpush1.msra.mxu0 0.0
        %530 = vmatprep.subr.mxu0 0.0
        %531 = vmatpush1.msra.mxu0 0.0
        %532 = vmatprep.subr.mxu0 0.0
        %533 = vmatpush1.msra.mxu0 0.0
        %534 = vmatprep.subr.mxu0 0.0
        %535 = vmatpush1.msra.mxu0 0.0
        %536 = vmatprep.subr.mxu0 0.0
        %537 = vmatpush1.msra.mxu0 0.0
        %538 = vmatprep.subr.mxu0 0.0
        %539 = vmatpush1.msra.mxu0 0.0
        %540 = vmatprep.subr.mxu0 0.0
        %541 = vmatpush1.msra.mxu0 0.0
        %542 = vmatprep.subr.mxu0 0.0
        %543 = vmatpush1.msra.mxu0 0.0
        %544 = vmatprep.subr.mxu0 0.0
        %545 = vmatpush1.msra.mxu0 0.0
        %546 = vmatprep.subr.mxu0 0.0
        %547 = vmatpush1.msra.mxu0 0.0
        %548 = vmatprep.subr.mxu0 0.0
        %549 = vmatpush1.msra.mxu0 0.0
        %550 = vmatprep.subr.mxu0 0.0
        %551 = vmatpush1.msra.mxu0 0.0
        %552 = vmatprep.subr.mxu0 0.0
        %553 = vmatpush1.msra.mxu0 0.0
        %554 = vmatprep.subr.mxu0 0.0
        %555 = vmatpush1.msra.mxu0 0.0
        %556 = vmatprep.subr.mxu0 0.0
        %557 = vmatpush1.msra.mxu0 0.0
        %558 = vmatprep.subr.mxu0 0.0
        %559 = vmatpush1.msra.mxu0 0.0
        %560 = vmatprep.subr.mxu0 0.0
        %561 = vmatpush1.msra.mxu0 0.0
        %562 = vmatprep.subr.mxu0 0.0
        %563 = vmatpush1.msra.mxu0 0.0
        %564 = vmatprep.subr.mxu0 0.0
        %565 = vmatpush1.msra.mxu0 0.0
        %566 = vmatprep.subr.mxu0 0.0
        %567 = vmatpush1.msra.mxu0 0.0
        %568 = vmatprep.subr.mxu0 0.0
        %569 = vmatpush1.msra.mxu0 0.0
        %570 = vmatprep.subr.mxu0 0.0
        %571 = vmatpush1.msra.mxu0 0.0
        %572 = vmatprep.subr.mxu0 0.0
        %573 = vmatpush1.msra.mxu0 0.0
        %574 = vmatprep.mubr.f32.mxu0 0.0
        %575 = vmatmul.mubr.f32.gmra.mrb[0].mxu0 %v501
        %v576 = vpop.f32.mrb[0].mxu0
        %v577 = vadd.f32 0.0, %v576
        %v578 = vpop.f32.mrb[0].mxu0
        %579 = vmatprep.mubr.f32.mxu0 0.0
        %580 = vmatmul.mubr.f32.gmra.mrb[0].mxu0 %v504
        %v581 = vpop.f32.mrb[0].mxu0
        %v582 = vadd.f32 0.0, %v581
        %v583 = vpop.f32.mrb[0].mxu0
        %584 = vdwg.mxu0
        %v586 = vsel %vm499, %v217, 0
        %v589 = vsel %vm499, %v218, 0
        %591 = vmatprep.subr.mxu0 0.0
        %592 = vmatpush1.msra.mxu0 %v496
        %593 = vmatprep.subr.mxu0 0.0
        %594 = vmatpush1.msra.mxu0 %v497
        %595 = vmatprep.subr.mxu0 0.0
        %596 = vmatpush1.msra.mxu0 %v508
        %597 = vmatprep.subr.mxu0 0.0
        %598 = vmatpush1.msra.mxu0 0.0
        %599 = vmatprep.subr.mxu0 0.0
        %600 = vmatpush1.msra.mxu0 0.0
        %601 = vmatprep.subr.mxu0 0.0
        %602 = vmatpush1.msra.mxu0 0.0
        %603 = vmatprep.subr.mxu0 0.0
        %604 = vmatpush1.msra.mxu0 0.0
        %605 = vmatprep.subr.mxu0 0.0
        %606 = vmatpush1.msra.mxu0 0.0
        %607 = vmatprep.subr.mxu0 0.0
        %608 = vmatpush1.msra.mxu0 0.0
        %609 = vmatprep.subr.mxu0 0.0
        %610 = vmatpush1.msra.mxu0 0.0
        %611 = vmatprep.subr.mxu0 0.0
        %612 = vmatpush1.msra.mxu0 0.0
        %613 = vmatprep.subr.mxu0 0.0
        %614 = vmatpush1.msra.mxu0 0.0
        %615 = vmatprep.subr.mxu0 0.0
        %616 = vmatpush1.msra.mxu0 0.0
        %617 = vmatprep.subr.mxu0 0.0
        %618 = vmatpush1.msra.mxu0 0.0
        %619 = vmatprep.subr.mxu0 0.0
        %620 = vmatpush1.msra.mxu0 0.0
        %621 = vmatprep.subr.mxu0 0.0
        %622 = vmatpush1.msra.mxu0 0.0
        %623 = vmatprep.subr.mxu0 0.0
        %624 = vmatpush1.msra.mxu0 0.0
        %625 = vmatprep.subr.mxu0 0.0
        %626 = vmatpush1.msra.mxu0 0.0
        %627 = vmatprep.subr.mxu0 0.0
        %628 = vmatpush1.msra.mxu0 0.0
        %629 = vmatprep.subr.mxu0 0.0
        %630 = vmatpush1.msra.mxu0 0.0
        %631 = vmatprep.subr.mxu0 0.0
        %632 = vmatpush1.msra.mxu0 0.0
        %633 = vmatprep.subr.mxu0 0.0
        %634 = vmatpush1.msra.mxu0 0.0
        %635 = vmatprep.subr.mxu0 0.0
        %636 = vmatpush1.msra.mxu0 0.0
        %637 = vmatprep.subr.mxu0 0.0
        %638 = vmatpush1.msra.mxu0 0.0
        %639 = vmatprep.subr.mxu0 0.0
        %640 = vmatpush1.msra.mxu0 0.0
        %641 = vmatprep.subr.mxu0 0.0
        %642 = vmatpush1.msra.mxu0 0.0
        %643 = vmatprep.subr.mxu0 0.0
        %644 = vmatpush1.msra.mxu0 0.0
        %645 = vmatprep.subr.mxu0 0.0
        %646 = vmatpush1.msra.mxu0 0.0
        %647 = vmatprep.subr.mxu0 0.0
        %648 = vmatpush1.msra.mxu0 0.0
        %649 = vmatprep.subr.mxu0 0.0
        %650 = vmatpush1.msra.mxu0 0.0
        %651 = vmatprep.subr.mxu0 0.0
        %652 = vmatpush1.msra.mxu0 0.0
        %653 = vmatprep.subr.mxu0 0.0
        %654 = vmatpush1.msra.mxu0 0.0
        %655 = vmatprep.mubr.f32.mxu0 0.0
        %656 = vmatmul.mubr.f32.gmra.mrb[0].mxu0 %v586
        %v657 = vpop.f32.mrb[0].mxu0
        %v658 = vadd.f32 0.0, %v657
        %v659 = vpop.f32.mrb[0].mxu0
        %660 = vmatprep.mubr.f32.mxu0 0.0
        %661 = vmatmul.mubr.f32.gmra.mrb[0].mxu0 %v589
        %v662 = vpop.f32.mrb[0].mxu0
        %v663 = vadd.f32 0.0, %v662
        %v664 = vpop.f32.mrb[0].mxu0
        %665 = vdwg.mxu0
        %v667 = vsel %vm499, %v577, 0
        %v670 = vsel %vm499, %v582, 0
        %v673 = vsel %vm506, %v230, 0
        %675 = vmatprep.subr.mxu0 0.0
        %676 = vmatpush1.msra.mxu0 %v228
        %677 = vmatprep.subr.mxu0 0.0
        %678 = vmatpush1.msra.mxu0 %v229
        %679 = vmatprep.subr.mxu0 0.0
        %680 = vmatpush1.msra.mxu0 %v673
        %681 = vmatprep.subr.mxu0 0.0
        %682 = vmatpush1.msra.mxu0 0.0
        %683 = vmatprep.subr.mxu0 0.0
        %684 = vmatpush1.msra.mxu0 0.0
        %685 = vmatprep.subr.mxu0 0.0
        %686 = vmatpush1.msra.mxu0 0.0
        %687 = vmatprep.subr.mxu0 0.0
        %688 = vmatpush1.msra.mxu0 0.0
        %689 = vmatprep.subr.mxu0 0.0
        %690 = vmatpush1.msra.mxu0 0.0
        %691 = vmatprep.subr.mxu0 0.0
        %692 = vmatpush1.msra.mxu0 0.0
        %693 = vmatprep.subr.mxu0 0.0
        %694 = vmatpush1.msra.mxu0 0.0
        %695 = vmatprep.subr.mxu0 0.0
        %696 = vmatpush1.msra.mxu0 0.0
        %697 = vmatprep.subr.mxu0 0.0
        %698 = vmatpush1.msra.mxu0 0.0
        %699 = vmatprep.subr.mxu0 0.0
        %700 = vmatpush1.msra.mxu0 0.0
        %701 = vmatprep.subr.mxu0 0.0
        %702 = vmatpush1.msra.mxu0 0.0
        %703 = vmatprep.subr.mxu0 0.0
        %704 = vmatpush1.msra.mxu0 0.0
        %705 = vmatprep.subr.mxu0 0.0
        %706 = vmatpush1.msra.mxu0 0.0
        %707 = vmatprep.subr.mxu0 0.0
        %708 = vmatpush1.msra.mxu0 0.0
        %709 = vmatprep.subr.mxu0 0.0
        %710 = vmatpush1.msra.mxu0 0.0
        %711 = vmatprep.subr.mxu0 0.0
        %712 = vmatpush1.msra.mxu0 0.0
        %713 = vmatprep.subr.mxu0 0.0
        %714 = vmatpush1.msra.mxu0 0.0
        %715 = vmatprep.subr.mxu0 0.0
        %716 = vmatpush1.msra.mxu0 0.0
        %717 = vmatprep.subr.mxu0 0.0
        %718 = vmatpush1.msra.mxu0 0.0
        %719 = vmatprep.subr.mxu0 0.0
        %720 = vmatpush1.msra.mxu0 0.0
        %721 = vmatprep.subr.mxu0 0.0
        %722 = vmatpush1.msra.mxu0 0.0
        %723 = vmatprep.subr.mxu0 0.0
        %724 = vmatpush1.msra.mxu0 0.0
        %725 = vmatprep.subr.mxu0 0.0
        %726 = vmatpush1.msra.mxu0 0.0
        %727 = vmatprep.subr.mxu0 0.0
        %728 = vmatpush1.msra.mxu0 0.0
        %729 = vmatprep.subr.mxu0 0.0
        %730 = vmatpush1.msra.mxu0 0.0
        %731 = vmatprep.subr.mxu0 0.0
        %732 = vmatpush1.msra.mxu0 0.0
        %733 = vmatprep.subr.mxu0 0.0
        %734 = vmatpush1.msra.mxu0 0.0
        %735 = vmatprep.subr.mxu0 0.0
        %736 = vmatpush1.msra.mxu0 0.0
        %737 = vmatprep.subr.mxu0 0.0
        %738 = vmatpush1.msra.mxu0 0.0
        %739 = vmatprep.mubr.f32.mxu0 0.0
        %740 = vmatmul.mubr.f32.gmra.mrb[0].mxu0 %v667
        %v741 = vpop.f32.mrb[0].mxu0
        %v742 = vadd.f32 0.0, %v741
        %v743 = vpop.f32.mrb[0].mxu0
        %744 = vmatprep.mubr.f32.mxu0 0.0
        %745 = vmatmul.mubr.f32.gmra.mrb[0].mxu0 %v670
        %v746 = vpop.f32.mrb[0].mxu0
        %v747 = vadd.f32 0.0, %v746
        %v748 = vpop.f32.mrb[0].mxu0
        %749 = vdwg.mxu0
        %v751 = vsel %vm506, %v239, 0
        %753 = vmatprep.subr.mxu0 0.0
        %754 = vmatpush1.msra.mxu0 %v237
        %755 = vmatprep.subr.mxu0 0.0
        %756 = vmatpush1.msra.mxu0 %v238
        %757 = vmatprep.subr.mxu0 0.0
        %758 = vmatpush1.msra.mxu0 %v751
        %759 = vmatprep.subr.mxu0 0.0
        %760 = vmatpush1.msra.mxu0 0.0
        %761 = vmatprep.subr.mxu0 0.0
        %762 = vmatpush1.msra.mxu0 0.0
        %763 = vmatprep.subr.mxu0 0.0
        %764 = vmatpush1.msra.mxu0 0.0
        %765 = vmatprep.subr.mxu0 0.0
        %766 = vmatpush1.msra.mxu0 0.0
        %767 = vmatprep.subr.mxu0 0.0
        %768 = vmatpush1.msra.mxu0 0.0
        %769 = vmatprep.subr.mxu0 0.0
        %770 = vmatpush1.msra.mxu0 0.0
        %771 = vmatprep.subr.mxu0 0.0
        %772 = vmatpush1.msra.mxu0 0.0
        %773 = vmatprep.subr.mxu0 0.0
        %774 = vmatpush1.msra.mxu0 0.0
        %775 = vmatprep.subr.mxu0 0.0
        %776 = vmatpush1.msra.mxu0 0.0
        %777 = vmatprep.subr.mxu0 0.0
        %778 = vmatpush1.msra.mxu0 0.0
        %779 = vmatprep.subr.mxu0 0.0
        %780 = vmatpush1.msra.mxu0 0.0
        %781 = vmatprep.subr.mxu0 0.0
        %782 = vmatpush1.msra.mxu0 0.0
        %783 = vmatprep.subr.mxu0 0.0
        %784 = vmatpush1.msra.mxu0 0.0
        %785 = vmatprep.subr.mxu0 0.0
        %786 = vmatpush1.msra.mxu0 0.0
        %787 = vmatprep.subr.mxu0 0.0
        %788 = vmatpush1.msra.mxu0 0.0
        %789 = vmatprep.subr.mxu0 0.0
        %790 = vmatpush1.msra.mxu0 0.0
        %791 = vmatprep.subr.mxu0 0.0
        %792 = vmatpush1.msra.mxu0 0.0
        %793 = vmatprep.subr.mxu0 0.0
        %794 = vmatpush1.msra.mxu0 0.0
        %795 = vmatprep.subr.mxu0 0.0
        %796 = vmatpush1.msra.mxu0 0.0
        %797 = vmatprep.subr.mxu0 0.0
        %798 = vmatpush1.msra.mxu0 0.0
        %799 = vmatprep.subr.mxu0 0.0
        %800 = vmatpush1.msra.mxu0 0.0
        %801 = vmatprep.subr.mxu0 0.0
        %802 = vmatpush1.msra.mxu0 0.0
        %803 = vmatprep.subr.mxu0 0.0
        %804 = vmatpush1.msra.mxu0 0.0
        %805 = vmatprep.subr.mxu0 0.0
        %806 = vmatpush1.msra.mxu0 0.0
        %807 = vmatprep.subr.mxu0 0.0
        %808 = vmatpush1.msra.mxu0 0.0
        %809 = vmatprep.subr.mxu0 0.0
        %810 = vmatpush1.msra.mxu0 0.0
        %811 = vmatprep.subr.mxu0 0.0
        %812 = vmatpush1.msra.mxu0 0.0
        %813 = vmatprep.subr.mxu0 0.0
        %814 = vmatpush1.msra.mxu0 0.0
        %815 = vmatprep.subr.mxu0 0.0
        %816 = vmatpush1.msra.mxu0 0.0
        %817 = vmatprep.mubr.f32.mxu0 0.0
        %818 = vmatmul.mubr.f32.gmra.mrb[0].mxu0 %v667
        %v819 = vpop.f32.mrb[0].mxu0
        %v820 = vadd.f32 0.0, %v819
        %v821 = vpop.f32.mrb[0].mxu0
        %822 = vmatprep.mubr.f32.mxu0 0.0
        %823 = vmatmul.mubr.f32.gmra.mrb[0].mxu0 %v670
        %v824 = vpop.f32.mrb[0].mxu0
        %v825 = vadd.f32 0.0, %v824
        %v826 = vpop.f32.mrb[0].mxu0
        %827 = vdwg.mxu0
        %v828 = vmax.f32 %v742, %v820
        %v829 = vmax.f32 %v747, %v825
        %v831 = vsel %vm499, %v658, 0
        %v834 = vsel %vm499, %v663, 0
        %836 = vmatprep.subr.mxu0 0.0
        %837 = vmatpush1.msra.mxu0 %v228
        %838 = vmatprep.subr.mxu0 0.0
        %839 = vmatpush1.msra.mxu0 %v229
        %840 = vmatprep.subr.mxu0 0.0
        %841 = vmatpush1.msra.mxu0 %v673
        %842 = vmatprep.subr.mxu0 0.0
        %843 = vmatpush1.msra.mxu0 0.0
        %844 = vmatprep.subr.mxu0 0.0
        %845 = vmatpush1.msra.mxu0 0.0
        %846 = vmatprep.subr.mxu0 0.0
        %847 = vmatpush1.msra.mxu0 0.0
        %848 = vmatprep.subr.mxu0 0.0
        %849 = vmatpush1.msra.mxu0 0.0
        %850 = vmatprep.subr.mxu0 0.0
        %851 = vmatpush1.msra.mxu0 0.0
        %852 = vmatprep.subr.mxu0 0.0
        %853 = vmatpush1.msra.mxu0 0.0
        %854 = vmatprep.subr.mxu0 0.0
        %855 = vmatpush1.msra.mxu0 0.0
        %856 = vmatprep.subr.mxu0 0.0
        %857 = vmatpush1.msra.mxu0 0.0
        %858 = vmatprep.subr.mxu0 0.0
        %859 = vmatpush1.msra.mxu0 0.0
        %860 = vmatprep.subr.mxu0 0.0
        %861 = vmatpush1.msra.mxu0 0.0
        %862 = vmatprep.subr.mxu0 0.0
        %863 = vmatpush1.msra.mxu0 0.0
        %864 = vmatprep.subr.mxu0 0.0
        %865 = vmatpush1.msra.mxu0 0.0
        %866 = vmatprep.subr.mxu0 0.0
        %867 = vmatpush1.msra.mxu0 0.0
        %868 = vmatprep.subr.mxu0 0.0
        %869 = vmatpush1.msra.mxu0 0.0
        %870 = vmatprep.subr.mxu0 0.0
        %871 = vmatpush1.msra.mxu0 0.0
        %872 = vmatprep.subr.mxu0 0.0
        %873 = vmatpush1.msra.mxu0 0.0
        %874 = vmatprep.subr.mxu0 0.0
        %875 = vmatpush1.msra.mxu0 0.0
        %876 = vmatprep.subr.mxu0 0.0
        %877 = vmatpush1.msra.mxu0 0.0
        %878 = vmatprep.subr.mxu0 0.0
        %879 = vmatpush1.msra.mxu0 0.0
        %880 = vmatprep.subr.mxu0 0.0
        %881 = vmatpush1.msra.mxu0 0.0
        %882 = vmatprep.subr.mxu0 0.0
        %883 = vmatpush1.msra.mxu0 0.0
        %884 = vmatprep.subr.mxu0 0.0
        %885 = vmatpush1.msra.mxu0 0.0
        %886 = vmatprep.subr.mxu0 0.0
        %887 = vmatpush1.msra.mxu0 0.0
        %888 = vmatprep.subr.mxu0 0.0
        %889 = vmatpush1.msra.mxu0 0.0
        %890 = vmatprep.subr.mxu0 0.0
        %891 = vmatpush1.msra.mxu0 0.0
        %892 = vmatprep.subr.mxu0 0.0
        %893 = vmatpush1.msra.mxu0 0.0
        %894 = vmatprep.subr.mxu0 0.0
        %895 = vmatpush1.msra.mxu0 0.0
        %896 = vmatprep.subr.mxu0 0.0
        %897 = vmatpush1.msra.mxu0 0.0
        %898 = vmatprep.subr.mxu0 0.0
        %899 = vmatpush1.msra.mxu0 0.0
        %900 = vmatprep.mubr.f32.mxu0 0.0
        %901 = vmatmul.mubr.f32.gmra.mrb[0].mxu0 %v831
        %v902 = vpop.f32.mrb[0].mxu0
        %v903 = vadd.f32 0.0, %v902
        %v904 = vpop.f32.mrb[0].mxu0
        %905 = vmatprep.mubr.f32.mxu0 0.0
        %906 = vmatmul.mubr.f32.gmra.mrb[0].mxu0 %v834
        %v907 = vpop.f32.mrb[0].mxu0
        %v908 = vadd.f32 0.0, %v907
        %v909 = vpop.f32.mrb[0].mxu0
        %910 = vdwg.mxu0
        %v911 = vmax.f32 %v828, %v903
        %v912 = vmax.f32 %v829, %v908
        %913 = vmatprep.subr.mxu0 0.0
        %914 = vmatpush1.msra.mxu0 %v237
        %915 = vmatprep.subr.mxu0 0.0
        %916 = vmatpush1.msra.mxu0 %v238
        %917 = vmatprep.subr.mxu0 0.0
        %918 = vmatpush1.msra.mxu0 %v751
        %919 = vmatprep.subr.mxu0 0.0
        %920 = vmatpush1.msra.mxu0 0.0
        %921 = vmatprep.subr.mxu0 0.0
        %922 = vmatpush1.msra.mxu0 0.0
        %923 = vmatprep.subr.mxu0 0.0
        %924 = vmatpush1.msra.mxu0 0.0
        %925 = vmatprep.subr.mxu0 0.0
        %926 = vmatpush1.msra.mxu0 0.0
        %927 = vmatprep.subr.mxu0 0.0
        %928 = vmatpush1.msra.mxu0 0.0
        %929 = vmatprep.subr.mxu0 0.0
        %930 = vmatpush1.msra.mxu0 0.0
        %931 = vmatprep.subr.mxu0 0.0
        %932 = vmatpush1.msra.mxu0 0.0
        %933 = vmatprep.subr.mxu0 0.0
        %934 = vmatpush1.msra.mxu0 0.0
        %935 = vmatprep.subr.mxu0 0.0
        %936 = vmatpush1.msra.mxu0 0.0
        %937 = vmatprep.subr.mxu0 0.0
        %938 = vmatpush1.msra.mxu0 0.0
        %939 = vmatprep.subr.mxu0 0.0
        %940 = vmatpush1.msra.mxu0 0.0
        %941 = vmatprep.subr.mxu0 0.0
        %942 = vmatpush1.msra.mxu0 0.0
        %943 = vmatprep.subr.mxu0 0.0
        %944 = vmatpush1.msra.mxu0 0.0
        %945 = vmatprep.subr.mxu0 0.0
        %946 = vmatpush1.msra.mxu0 0.0
        %947 = vmatprep.subr.mxu0 0.0
        %948 = vmatpush1.msra.mxu0 0.0
        %949 = vmatprep.subr.mxu0 0.0
        %950 = vmatpush1.msra.mxu0 0.0
        %951 = vmatprep.subr.mxu0 0.0
        %952 = vmatpush1.msra.mxu0 0.0
        %953 = vmatprep.subr.mxu0 0.0
        %954 = vmatpush1.msra.mxu0 0.0
        %955 = vmatprep.subr.mxu0 0.0
        %956 = vmatpush1.msra.mxu0 0.0
        %957 = vmatprep.subr.mxu0 0.0
        %958 = vmatpush1.msra.mxu0 0.0
        %959 = vmatprep.subr.mxu0 0.0
        %960 = vmatpush1.msra.mxu0 0.0
        %961 = vmatprep.subr.mxu0 0.0
        %962 = vmatpush1.msra.mxu0 0.0
        %963 = vmatprep.subr.mxu0 0.0
        %964 = vmatpush1.msra.mxu0 0.0
        %965 = vmatprep.subr.mxu0 0.0
        %966 = vmatpush1.msra.mxu0 0.0
        %967 = vmatprep.subr.mxu0 0.0
        %968 = vmatpush1.msra.mxu0 0.0
        %969 = vmatprep.subr.mxu0 0.0
        %970 = vmatpush1.msra.mxu0 0.0
        %971 = vmatprep.subr.mxu0 0.0
        %972 = vmatpush1.msra.mxu0 0.0
        %973 = vmatprep.subr.mxu0 0.0
        %974 = vmatpush1.msra.mxu0 0.0
        %975 = vmatprep.subr.mxu0 0.0
        %976 = vmatpush1.msra.mxu0 0.0
        %977 = vmatprep.mubr.f32.mxu0 0.0
        %978 = vmatmul.mubr.f32.gmra.mrb[0].mxu0 %v831
        %v979 = vpop.f32.mrb[0].mxu0
        %v980 = vadd.f32 0.0, %v979
        %v981 = vpop.f32.mrb[0].mxu0
        %982 = vmatprep.mubr.f32.mxu0 0.0
        %983 = vmatmul.mubr.f32.gmra.mrb[0].mxu0 %v834
        %v984 = vpop.f32.mrb[0].mxu0
        %v985 = vadd.f32 0.0, %v984
        %v986 = vpop.f32.mrb[0].mxu0
        %987 = vdwg.mxu0
        %v988 = vmax.f32 %v911, %v980
        %v989 = vmax.f32 %v912, %v985
        %vm990 = vcmask 72704
        %991 = vst.msk [vmem:[%s197] sm:$0xff] %vm990, %v988
        %vm992 = vcmask 65536
        %993 = vst.msk [vmem:[%s197 + $0x8] sm:$0x1] %vm992, %v989
        %s994 = sld [smem:[#allocation2 + $0x10]]
        %v995 = vstv %s994
        %v996 = vmul.f32 %v995, %v240
        %v997 = vmul.f32 %v995, %v241
        %v998 = vmul.f32 %v995, %v242
        %v999 = vadd.f32 %v996, 0.0
        %v1000 = vadd.f32 %v997, 0.0
        %v1001 = vadd.f32 %v998, 0.0
        %s1002 = sld [smem:[#allocation2 + $0x11]]
        %v1003 = vstv %s1002
        %v1004 = vmul.f32 %v1003, %v240
        %v1005 = vmul.f32 %v1003, %v241
        %v1006 = vmul.f32 %v1003, %v242
        %1010 = vrot.lane.b32.xlu0 %v1004, 127
        %v1011 = vpop.permute.xlu0 %1010
        %1012 = vrot.lane.b32.xlu0 %v1005, 127
        %v1013 = vpop.permute.xlu0 %1012
        %1014 = vrot.lane.b32.xlu0 %v1006, 127
        %v1015 = vpop.permute.xlu0 %1014
        %v1019 = vadd.f32 %v999, %v1011
        %v1020 = vadd.f32 %v1000, %v1013
        %v1021 = vadd.f32 %v1001, %v1015
        %s1022 = sld [smem:[#allocation2 + $0x12]]
        %v1023 = vstv %s1022
        %v1024 = vmul.f32 %v1023, %v243
        %v1025 = vmul.f32 %v1023, %v244
        %v1026 = vmul.f32 %v1023, %v245
        %v1027 = vadd.f32 %v1019, %v1024
        %v1028 = vadd.f32 %v1020, %v1025
        %v1029 = vadd.f32 %v1021, %v1026
        %s1030 = sld [smem:[#allocation2 + $0x13]]
        %v1031 = vstv %s1030
        %v1032 = vmul.f32 %v1031, %v243
        %v1033 = vmul.f32 %v1031, %v244
        %v1034 = vmul.f32 %v1031, %v245
        %1038 = vrot.lane.b32.xlu0 %v1032, 127
        %v1039 = vpop.permute.xlu0 %1038
        %1040 = vrot.lane.b32.xlu0 %v1033, 127
        %v1041 = vpop.permute.xlu0 %1040
        %1042 = vrot.lane.b32.xlu0 %v1034, 127
        %v1043 = vpop.permute.xlu0 %1042
        %v1047 = vadd.f32 %v1027, %v1039
        %v1048 = vadd.f32 %v1028, %v1041
        %v1049 = vadd.f32 %v1029, %v1043
        %s1050 = sld [smem:[#allocation2 + $0x14]]
        %v1051 = vstv %s1050
        %v1052 = vmul.f32 %v1051, %v247
        %v1053 = vmul.f32 %v1051, %v248
        %v1054 = vmul.f32 %v1051, %v249
        %v1055 = vadd.f32 %v1047, %v1052
        %v1056 = vadd.f32 %v1048, %v1053
        %v1057 = vadd.f32 %v1049, %v1054
        %s1058 = sld [smem:[#allocation2 + $0x15]]
        %v1059 = vstv %s1058
        %v1060 = vmul.f32 %v1059, %v247
        %v1061 = vmul.f32 %v1059, %v248
        %v1062 = vmul.f32 %v1059, %v249
        %1066 = vrot.lane.b32.xlu0 %v1060, 127
        %v1067 = vpop.permute.xlu0 %1066
        %1068 = vrot.lane.b32.xlu0 %v1061, 127
        %v1069 = vpop.permute.xlu0 %1068
        %1070 = vrot.lane.b32.xlu0 %v1062, 127
        %v1071 = vpop.permute.xlu0 %1070
        %v1075 = vadd.f32 %v1055, %v1067
        %v1076 = vadd.f32 %v1056, %v1069
        %v1077 = vadd.f32 %v1057, %v1071
        %s1078 = sld [smem:[#allocation2 + $0x16]]
        %v1079 = vstv %s1078
        %v1080 = vmul.f32 %v1079, %v250
        %v1081 = vmul.f32 %v1079, %v251
        %v1082 = vmul.f32 %v1079, %v252
        %v1083 = vadd.f32 %v1075, %v1080
        %v1084 = vadd.f32 %v1076, %v1081
        %v1085 = vadd.f32 %v1077, %v1082
        %s1086 = sld [smem:[#allocation2 + $0x17]]
        %v1087 = vstv %s1086
        %v1088 = vmul.f32 %v1087, %v250
        %v1089 = vmul.f32 %v1087, %v251
        %v1090 = vmul.f32 %v1087, %v252
        %1094 = vrot.lane.b32.xlu0 %v1088, 127
        %v1095 = vpop.permute.xlu0 %1094
        %1096 = vrot.lane.b32.xlu0 %v1089, 127
        %v1097 = vpop.permute.xlu0 %1096
        %1098 = vrot.lane.b32.xlu0 %v1090, 127
        %v1099 = vpop.permute.xlu0 %1098
        %v1103 = vadd.f32 %v1083, %v1095
        %v1104 = vadd.f32 %v1084, %v1097
        %v1105 = vadd.f32 %v1085, %v1099
        %s1106 = sld [smem:[#allocation2 + $0x18]]
        %v1107 = vstv %s1106
        %v1108 = vmul.f32 %v1107, %v254
        %v1109 = vmul.f32 %v1107, %v255
        %v1110 = vmul.f32 %v1107, %v256
        %v1111 = vadd.f32 %v1103, %v1108
        %v1112 = vadd.f32 %v1104, %v1109
        %v1113 = vadd.f32 %v1105, %v1110
        %s1114 = sld [smem:[#allocation2 + $0x19]]
        %v1115 = vstv %s1114
        %v1116 = vmul.f32 %v1115, %v254
        %v1117 = vmul.f32 %v1115, %v255
        %v1118 = vmul.f32 %v1115, %v256
        %1122 = vrot.lane.b32.xlu0 %v1116, 127
        %v1123 = vpop.permute.xlu0 %1122
        %1124 = vrot.lane.b32.xlu0 %v1117, 127
        %v1125 = vpop.permute.xlu0 %1124
        %1126 = vrot.lane.b32.xlu0 %v1118, 127
        %v1127 = vpop.permute.xlu0 %1126
        %v1131 = vadd.f32 %v1111, %v1123
        %v1132 = vadd.f32 %v1112, %v1125
        %v1133 = vadd.f32 %v1113, %v1127
        %s1134 = sld [smem:[#allocation2 + $0x1a]]
        %v1135 = vstv %s1134
        %v1136 = vmul.f32 %v1135, %v257
        %v1137 = vmul.f32 %v1135, %v258
        %v1138 = vmul.f32 %v1135, %v259
        %v1139 = vadd.f32 %v1131, %v1136
        %v1140 = vadd.f32 %v1132, %v1137
        %v1141 = vadd.f32 %v1133, %v1138
        %s1142 = sld [smem:[#allocation2 + $0x1b]]
        %v1143 = vstv %s1142
        %v1144 = vmul.f32 %v1143, %v257
        %v1145 = vmul.f32 %v1143, %v258
        %v1146 = vmul.f32 %v1143, %v259
        %1150 = vrot.lane.b32.xlu0 %v1144, 127
        %v1151 = vpop.permute.xlu0 %1150
        %1152 = vrot.lane.b32.xlu0 %v1145, 127
        %v1153 = vpop.permute.xlu0 %1152
        %1154 = vrot.lane.b32.xlu0 %v1146, 127
        %v1155 = vpop.permute.xlu0 %1154
        %v1159 = vadd.f32 %v1139, %v1151
        %v1160 = vadd.f32 %v1140, %v1153
        %v1161 = vadd.f32 %v1141, %v1155
        %s1162 = sld [smem:[#allocation2 + $0x1c]]
        %v1163 = vstv %s1162
        %v1164 = vmul.f32 %v1163, %v261
        %v1165 = vmul.f32 %v1163, %v262
        %v1166 = vmul.f32 %v1163, %v263
        %v1167 = vadd.f32 %v1159, %v1164
        %v1168 = vadd.f32 %v1160, %v1165
        %v1169 = vadd.f32 %v1161, %v1166
        %s1170 = sld [smem:[#allocation2 + $0x1d]]
        %v1171 = vstv %s1170
        %v1172 = vmul.f32 %v1171, %v261
        %v1173 = vmul.f32 %v1171, %v262
        %v1174 = vmul.f32 %v1171, %v263
        %1178 = vrot.lane.b32.xlu0 %v1172, 127
        %v1179 = vpop.permute.xlu0 %1178
        %1180 = vrot.lane.b32.xlu0 %v1173, 127
        %v1181 = vpop.permute.xlu0 %1180
        %1182 = vrot.lane.b32.xlu0 %v1174, 127
        %v1183 = vpop.permute.xlu0 %1182
        %v1187 = vadd.f32 %v1167, %v1179
        %v1188 = vadd.f32 %v1168, %v1181
        %v1189 = vadd.f32 %v1169, %v1183
        %s1190 = sld [smem:[#allocation2 + $0x1e]]
        %v1191 = vstv %s1190
        %v1192 = vmul.f32 %v1191, %v264
        %v1193 = vmul.f32 %v1191, %v265
        %v1194 = vmul.f32 %v1191, %v266
        %v1195 = vadd.f32 %v1187, %v1192
        %v1196 = vadd.f32 %v1188, %v1193
        %v1197 = vadd.f32 %v1189, %v1194
        %s1198 = sld [smem:[#allocation2 + $0x1f]]
        %v1199 = vstv %s1198
        %v1200 = vmul.f32 %v1199, %v264
        %v1201 = vmul.f32 %v1199, %v265
        %v1202 = vmul.f32 %v1199, %v266
        %1206 = vrot.lane.b32.xlu0 %v1200, 127
        %v1207 = vpop.permute.xlu0 %1206
        %1208 = vrot.lane.b32.xlu0 %v1201, 127
        %v1209 = vpop.permute.xlu0 %1208
        %1210 = vrot.lane.b32.xlu0 %v1202, 127
        %v1211 = vpop.permute.xlu0 %1210
        %v1215 = vadd.f32 %v1195, %v1207
        %v1216 = vadd.f32 %v1196, %v1209
        %v1217 = vadd.f32 %v1197, %v1211
        %s1218 = sld [smem:[#allocation4 + $0x1]]
        %v1219 = vstv %s1218
        %v1220 = vadd.f32 %v1215, %v1219
        %v1221 = vadd.f32 %v1216, %v1219
        %v1222 = vadd.f32 %v1217, %v1219
        %v1223 = vmax.f32 %v1220, 0.0
        %v1224 = vmax.f32 %v1221, 0.0
        %v1225 = vmax.f32 %v1222, 0.0
        %v1227 = vsel %vm506, %v1225, 0
        %1229 = vmatprep.subr.mxu0 0.0
        %1230 = vmatpush1.msra.mxu0 %v1223
        %1231 = vmatprep.subr.mxu0 0.0
        %1232 = vmatpush1.msra.mxu0 %v1224
        %1233 = vmatprep.subr.mxu0 0.0
        %1234 = vmatpush1.msra.mxu0 %v1227
        %1235 = vmatprep.subr.mxu0 0.0
        %1236 = vmatpush1.msra.mxu0 0.0
        %1237 = vmatprep.subr.mxu0 0.0
        %1238 = vmatpush1.msra.mxu0 0.0
        %1239 = vmatprep.subr.mxu0 0.0
        %1240 = vmatpush1.msra.mxu0 0.0
        %1241 = vmatprep.subr.mxu0 0.0
        %1242 = vmatpush1.msra.mxu0 0.0
        %1243 = vmatprep.subr.mxu0 0.0
        %1244 = vmatpush1.msra.mxu0 0.0
        %1245 = vmatprep.subr.mxu0 0.0
        %1246 = vmatpush1.msra.mxu0 0.0
        %1247 = vmatprep.subr.mxu0 0.0
        %1248 = vmatpush1.msra.mxu0 0.0
        %1249 = vmatprep.subr.mxu0 0.0
        %1250 = vmatpush1.msra.mxu0 0.0
        %1251 = vmatprep.subr.mxu0 0.0
        %1252 = vmatpush1.msra.mxu0 0.0
        %1253 = vmatprep.subr.mxu0 0.0
        %1254 = vmatpush1.msra.mxu0 0.0
        %1255 = vmatprep.subr.mxu0 0.0
        %1256 = vmatpush1.msra.mxu0 0.0
        %1257 = vmatprep.subr.mxu0 0.0
        %1258 = vmatpush1.msra.mxu0 0.0
        %1259 = vmatprep.subr.mxu0 0.0
        %1260 = vmatpush1.msra.mxu0 0.0
        %1261 = vmatprep.subr.mxu0 0.0
        %1262 = vmatpush1.msra.mxu0 0.0
        %1263 = vmatprep.subr.mxu0 0.0
        %1264 = vmatpush1.msra.mxu0 0.0
        %1265 = vmatprep.subr.mxu0 0.0
        %1266 = vmatpush1.msra.mxu0 0.0
        %1267 = vmatprep.subr.mxu0 0.0
        %1268 = vmatpush1.msra.mxu0 0.0
        %1269 = vmatprep.subr.mxu0 0.0
        %1270 = vmatpush1.msra.mxu0 0.0
        %1271 = vmatprep.subr.mxu0 0.0
        %1272 = vmatpush1.msra.mxu0 0.0
        %1273 = vmatprep.subr.mxu0 0.0
        %1274 = vmatpush1.msra.mxu0 0.0
        %1275 = vmatprep.subr.mxu0 0.0
        %1276 = vmatpush1.msra.mxu0 0.0
        %1277 = vmatprep.subr.mxu0 0.0
        %1278 = vmatpush1.msra.mxu0 0.0
        %1279 = vmatprep.subr.mxu0 0.0
        %1280 = vmatpush1.msra.mxu0 0.0
        %1281 = vmatprep.subr.mxu0 0.0
        %1282 = vmatpush1.msra.mxu0 0.0
        %1283 = vmatprep.subr.mxu0 0.0
        %1284 = vmatpush1.msra.mxu0 0.0
        %1285 = vmatprep.subr.mxu0 0.0
        %1286 = vmatpush1.msra.mxu0 0.0
        %1287 = vmatprep.subr.mxu0 0.0
        %1288 = vmatpush1.msra.mxu0 0.0
        %1289 = vmatprep.subr.mxu0 0.0
        %1290 = vmatpush1.msra.mxu0 0.0
        %1291 = vmatprep.subr.mxu0 0.0
        %1292 = vmatpush1.msra.mxu0 0.0
        %1293 = vmatprep.mubr.f32.mxu0 0.0
        %1294 = vmatmul.mubr.f32.gmra.mrb[0].mxu0 %v501
        %v1295 = vpop.f32.mrb[0].mxu0
        %v1296 = vadd.f32 0.0, %v1295
        %v1297 = vpop.f32.mrb[0].mxu0
        %1298 = vmatprep.mubr.f32.mxu0 0.0
        %1299 = vmatmul.mubr.f32.gmra.mrb[0].mxu0 %v504
        %v1300 = vpop.f32.mrb[0].mxu0
        %v1301 = vadd.f32 0.0, %v1300
        %v1302 = vpop.f32.mrb[0].mxu0
        %1303 = vdwg.mxu0
        %1304 = vmatprep.subr.mxu0 0.0
        %1305 = vmatpush1.msra.mxu0 %v1223
        %1306 = vmatprep.subr.mxu0 0.0
        %1307 = vmatpush1.msra.mxu0 %v1224
        %1308 = vmatprep.subr.mxu0 0.0
        %1309 = vmatpush1.msra.mxu0 %v1227
        %1310 = vmatprep.subr.mxu0 0.0
        %1311 = vmatpush1.msra.mxu0 0.0
        %1312 = vmatprep.subr.mxu0 0.0
        %1313 = vmatpush1.msra.mxu0 0.0
        %1314 = vmatprep.subr.mxu0 0.0
        %1315 = vmatpush1.msra.mxu0 0.0
        %1316 = vmatprep.subr.mxu0 0.0
        %1317 = vmatpush1.msra.mxu0 0.0
        %1318 = vmatprep.subr.mxu0 0.0
        %1319 = vmatpush1.msra.mxu0 0.0
        %1320 = vmatprep.subr.mxu0 0.0
        %1321 = vmatpush1.msra.mxu0 0.0
        %1322 = vmatprep.subr.mxu0 0.0
        %1323 = vmatpush1.msra.mxu0 0.0
        %1324 = vmatprep.subr.mxu0 0.0
        %1325 = vmatpush1.msra.mxu0 0.0
        %1326 = vmatprep.subr.mxu0 0.0
        %1327 = vmatpush1.msra.mxu0 0.0
        %1328 = vmatprep.subr.mxu0 0.0
        %1329 = vmatpush1.msra.mxu0 0.0
        %1330 = vmatprep.subr.mxu0 0.0
        %1331 = vmatpush1.msra.mxu0 0.0
        %1332 = vmatprep.subr.mxu0 0.0
        %1333 = vmatpush1.msra.mxu0 0.0
        %1334 = vmatprep.subr.mxu0 0.0
        %1335 = vmatpush1.msra.mxu0 0.0
        %1336 = vmatprep.subr.mxu0 0.0
        %1337 = vmatpush1.msra.mxu0 0.0
        %1338 = vmatprep.subr.mxu0 0.0
        %1339 = vmatpush1.msra.mxu0 0.0
        %1340 = vmatprep.subr.mxu0 0.0
        %1341 = vmatpush1.msra.mxu0 0.0
        %1342 = vmatprep.subr.mxu0 0.0
        %1343 = vmatpush1.msra.mxu0 0.0
        %1344 = vmatprep.subr.mxu0 0.0
        %1345 = vmatpush1.msra.mxu0 0.0
        %1346 = vmatprep.subr.mxu0 0.0
        %1347 = vmatpush1.msra.mxu0 0.0
        %1348 = vmatprep.subr.mxu0 0.0
        %1349 = vmatpush1.msra.mxu0 0.0
        %1350 = vmatprep.subr.mxu0 0.0
        %1351 = vmatpush1.msra.mxu0 0.0
        %1352 = vmatprep.subr.mxu0 0.0
        %1353 = vmatpush1.msra.mxu0 0.0
        %1354 = vmatprep.subr.mxu0 0.0
        %1355 = vmatpush1.msra.mxu0 0.0
        %1356 = vmatprep.subr.mxu0 0.0
        %1357 = vmatpush1.msra.mxu0 0.0
        %1358 = vmatprep.subr.mxu0 0.0
        %1359 = vmatpush1.msra.mxu0 0.0
        %1360 = vmatprep.subr.mxu0 0.0
        %1361 = vmatpush1.msra.mxu0 0.0
        %1362 = vmatprep.subr.mxu0 0.0
        %1363 = vmatpush1.msra.mxu0 0.0
        %1364 = vmatprep.subr.mxu0 0.0
        %1365 = vmatpush1.msra.mxu0 0.0
        %1366 = vmatprep.subr.mxu0 0.0
        %1367 = vmatpush1.msra.mxu0 0.0
        %1368 = vmatprep.mubr.f32.mxu0 0.0
        %1369 = vmatmul.mubr.f32.gmra.mrb[0].mxu0 %v586
        %v1370 = vpop.f32.mrb[0].mxu0
        %v1371 = vadd.f32 0.0, %v1370
        %v1372 = vpop.f32.mrb[0].mxu0
        %1373 = vmatprep.mubr.f32.mxu0 0.0
        %1374 = vmatmul.mubr.f32.gmra.mrb[0].mxu0 %v589
        %v1375 = vpop.f32.mrb[0].mxu0
        %v1376 = vadd.f32 0.0, %v1375
        %v1377 = vpop.f32.mrb[0].mxu0
        %1378 = vdwg.mxu0
        %v1380 = vsel %vm499, %v1296, 0
        %v1383 = vsel %vm499, %v1301, 0
        %1385 = vmatprep.subr.mxu0 0.0
        %1386 = vmatpush1.msra.mxu0 %v228
        %1387 = vmatprep.subr.mxu0 0.0
        %1388 = vmatpush1.msra.mxu0 %v229
        %1389 = vmatprep.subr.mxu0 0.0
        %1390 = vmatpush1.msra.mxu0 %v673
        %1391 = vmatprep.subr.mxu0 0.0
        %1392 = vmatpush1.msra.mxu0 0.0
        %1393 = vmatprep.subr.mxu0 0.0
        %1394 = vmatpush1.msra.mxu0 0.0
        %1395 = vmatprep.subr.mxu0 0.0
        %1396 = vmatpush1.msra.mxu0 0.0
        %1397 = vmatprep.subr.mxu0 0.0
        %1398 = vmatpush1.msra.mxu0 0.0
        %1399 = vmatprep.subr.mxu0 0.0
        %1400 = vmatpush1.msra.mxu0 0.0
        %1401 = vmatprep.subr.mxu0 0.0
        %1402 = vmatpush1.msra.mxu0 0.0
        %1403 = vmatprep.subr.mxu0 0.0
        %1404 = vmatpush1.msra.mxu0 0.0
        %1405 = vmatprep.subr.mxu0 0.0
        %1406 = vmatpush1.msra.mxu0 0.0
        %1407 = vmatprep.subr.mxu0 0.0
        %1408 = vmatpush1.msra.mxu0 0.0
        %1409 = vmatprep.subr.mxu0 0.0
        %1410 = vmatpush1.msra.mxu0 0.0
        %1411 = vmatprep.subr.mxu0 0.0
        %1412 = vmatpush1.msra.mxu0 0.0
        %1413 = vmatprep.subr.mxu0 0.0
        %1414 = vmatpush1.msra.mxu0 0.0
        %1415 = vmatprep.subr.mxu0 0.0
        %1416 = vmatpush1.msra.mxu0 0.0
        %1417 = vmatprep.subr.mxu0 0.0
        %1418 = vmatpush1.msra.mxu0 0.0
        %1419 = vmatprep.subr.mxu0 0.0
        %1420 = vmatpush1.msra.mxu0 0.0
        %1421 = vmatprep.subr.mxu0 0.0
        %1422 = vmatpush1.msra.mxu0 0.0
        %1423 = vmatprep.subr.mxu0 0.0
        %1424 = vmatpush1.msra.mxu0 0.0
        %1425 = vmatprep.subr.mxu0 0.0
        %1426 = vmatpush1.msra.mxu0 0.0
        %1427 = vmatprep.subr.mxu0 0.0
        %1428 = vmatpush1.msra.mxu0 0.0
        %1429 = vmatprep.subr.mxu0 0.0
        %1430 = vmatpush1.msra.mxu0 0.0
        %1431 = vmatprep.subr.mxu0 0.0
        %1432 = vmatpush1.msra.mxu0 0.0
        %1433 = vmatprep.subr.mxu0 0.0
        %1434 = vmatpush1.msra.mxu0 0.0
        %1435 = vmatprep.subr.mxu0 0.0
        %1436 = vmatpush1.msra.mxu0 0.0
        %1437 = vmatprep.subr.mxu0 0.0
        %1438 = vmatpush1.msra.mxu0 0.0
        %1439 = vmatprep.subr.mxu0 0.0
        %1440 = vmatpush1.msra.mxu0 0.0
        %1441 = vmatprep.subr.mxu0 0.0
        %1442 = vmatpush1.msra.mxu0 0.0
        %1443 = vmatprep.subr.mxu0 0.0
        %1444 = vmatpush1.msra.mxu0 0.0
        %1445 = vmatprep.subr.mxu0 0.0
        %1446 = vmatpush1.msra.mxu0 0.0
        %1447 = vmatprep.subr.mxu0 0.0
        %1448 = vmatpush1.msra.mxu0 0.0
        %1449 = vmatprep.mubr.f32.mxu0 0.0
        %1450 = vmatmul.mubr.f32.gmra.mrb[0].mxu0 %v1380
        %v1451 = vpop.f32.mrb[0].mxu0
        %v1452 = vadd.f32 0.0, %v1451
        %v1453 = vpop.f32.mrb[0].mxu0
        %1454 = vmatprep.mubr.f32.mxu0 0.0
        %1455 = vmatmul.mubr.f32.gmra.mrb[0].mxu0 %v1383
        %v1456 = vpop.f32.mrb[0].mxu0
        %v1457 = vadd.f32 0.0, %v1456
        %v1458 = vpop.f32.mrb[0].mxu0
        %1459 = vdwg.mxu0
        %1460 = vmatprep.subr.mxu0 0.0
        %1461 = vmatpush1.msra.mxu0 %v237
        %1462 = vmatprep.subr.mxu0 0.0
        %1463 = vmatpush1.msra.mxu0 %v238
        %1464 = vmatprep.subr.mxu0 0.0
        %1465 = vmatpush1.msra.mxu0 %v751
        %1466 = vmatprep.subr.mxu0 0.0
        %1467 = vmatpush1.msra.mxu0 0.0
        %1468 = vmatprep.subr.mxu0 0.0
        %1469 = vmatpush1.msra.mxu0 0.0
        %1470 = vmatprep.subr.mxu0 0.0
        %1471 = vmatpush1.msra.mxu0 0.0
        %1472 = vmatprep.subr.mxu0 0.0
        %1473 = vmatpush1.msra.mxu0 0.0
        %1474 = vmatprep.subr.mxu0 0.0
        %1475 = vmatpush1.msra.mxu0 0.0
        %1476 = vmatprep.subr.mxu0 0.0
        %1477 = vmatpush1.msra.mxu0 0.0
        %1478 = vmatprep.subr.mxu0 0.0
        %1479 = vmatpush1.msra.mxu0 0.0
        %1480 = vmatprep.subr.mxu0 0.0
        %1481 = vmatpush1.msra.mxu0 0.0
        %1482 = vmatprep.subr.mxu0 0.0
        %1483 = vmatpush1.msra.mxu0 0.0
        %1484 = vmatprep.subr.mxu0 0.0
        %1485 = vmatpush1.msra.mxu0 0.0
        %1486 = vmatprep.subr.mxu0 0.0
        %1487 = vmatpush1.msra.mxu0 0.0
        %1488 = vmatprep.subr.mxu0 0.0
        %1489 = vmatpush1.msra.mxu0 0.0
        %1490 = vmatprep.subr.mxu0 0.0
        %1491 = vmatpush1.msra.mxu0 0.0
        %1492 = vmatprep.subr.mxu0 0.0
        %1493 = vmatpush1.msra.mxu0 0.0
        %1494 = vmatprep.subr.mxu0 0.0
        %1495 = vmatpush1.msra.mxu0 0.0
        %1496 = vmatprep.subr.mxu0 0.0
        %1497 = vmatpush1.msra.mxu0 0.0
        %1498 = vmatprep.subr.mxu0 0.0
        %1499 = vmatpush1.msra.mxu0 0.0
        %1500 = vmatprep.subr.mxu0 0.0
        %1501 = vmatpush1.msra.mxu0 0.0
        %1502 = vmatprep.subr.mxu0 0.0
        %1503 = vmatpush1.msra.mxu0 0.0
        %1504 = vmatprep.subr.mxu0 0.0
        %1505 = vmatpush1.msra.mxu0 0.0
        %1506 = vmatprep.subr.mxu0 0.0
        %1507 = vmatpush1.msra.mxu0 0.0
        %1508 = vmatprep.subr.mxu0 0.0
        %1509 = vmatpush1.msra.mxu0 0.0
        %1510 = vmatprep.subr.mxu0 0.0
        %1511 = vmatpush1.msra.mxu0 0.0
        %1512 = vmatprep.subr.mxu0 0.0
        %1513 = vmatpush1.msra.mxu0 0.0
        %1514 = vmatprep.subr.mxu0 0.0
        %1515 = vmatpush1.msra.mxu0 0.0
        %1516 = vmatprep.subr.mxu0 0.0
        %1517 = vmatpush1.msra.mxu0 0.0
        %1518 = vmatprep.subr.mxu0 0.0
        %1519 = vmatpush1.msra.mxu0 0.0
        %1520 = vmatprep.subr.mxu0 0.0
        %1521 = vmatpush1.msra.mxu0 0.0
        %1522 = vmatprep.subr.mxu0 0.0
        %1523 = vmatpush1.msra.mxu0 0.0
        %1524 = vmatprep.mubr.f32.mxu0 0.0
        %1525 = vmatmul.mubr.f32.gmra.mrb[0].mxu0 %v1380
        %v1526 = vpop.f32.mrb[0].mxu0
        %v1527 = vadd.f32 0.0, %v1526
        %v1528 = vpop.f32.mrb[0].mxu0
        %1529 = vmatprep.mubr.f32.mxu0 0.0
        %1530 = vmatmul.mubr.f32.gmra.mrb[0].mxu0 %v1383
        %v1531 = vpop.f32.mrb[0].mxu0
        %v1532 = vadd.f32 0.0, %v1531
        %v1533 = vpop.f32.mrb[0].mxu0
        %1534 = vdwg.mxu0
        %v1535 = vmax.f32 %v1452, %v1527
        %v1536 = vmax.f32 %v1457, %v1532
        %v1538 = vsel %vm499, %v1371, 0
        %v1541 = vsel %vm499, %v1376, 0
        %1543 = vmatprep.subr.mxu0 0.0
        %1544 = vmatpush1.msra.mxu0 %v228
        %1545 = vmatprep.subr.mxu0 0.0
        %1546 = vmatpush1.msra.mxu0 %v229
        %1547 = vmatprep.subr.mxu0 0.0
        %1548 = vmatpush1.msra.mxu0 %v673
        %1549 = vmatprep.subr.mxu0 0.0
        %1550 = vmatpush1.msra.mxu0 0.0
        %1551 = vmatprep.subr.mxu0 0.0
        %1552 = vmatpush1.msra.mxu0 0.0
        %1553 = vmatprep.subr.mxu0 0.0
        %1554 = vmatpush1.msra.mxu0 0.0
        %1555 = vmatprep.subr.mxu0 0.0
        %1556 = vmatpush1.msra.mxu0 0.0
        %1557 = vmatprep.subr.mxu0 0.0
        %1558 = vmatpush1.msra.mxu0 0.0
        %1559 = vmatprep.subr.mxu0 0.0
        %1560 = vmatpush1.msra.mxu0 0.0
        %1561 = vmatprep.subr.mxu0 0.0
        %1562 = vmatpush1.msra.mxu0 0.0
        %1563 = vmatprep.subr.mxu0 0.0
        %1564 = vmatpush1.msra.mxu0 0.0
        %1565 = vmatprep.subr.mxu0 0.0
        %1566 = vmatpush1.msra.mxu0 0.0
        %1567 = vmatprep.subr.mxu0 0.0
        %1568 = vmatpush1.msra.mxu0 0.0
        %1569 = vmatprep.subr.mxu0 0.0
        %1570 = vmatpush1.msra.mxu0 0.0
        %1571 = vmatprep.subr.mxu0 0.0
        %1572 = vmatpush1.msra.mxu0 0.0
        %1573 = vmatprep.subr.mxu0 0.0
        %1574 = vmatpush1.msra.mxu0 0.0
        %1575 = vmatprep.subr.mxu0 0.0
        %1576 = vmatpush1.msra.mxu0 0.0
        %1577 = vmatprep.subr.mxu0 0.0
        %1578 = vmatpush1.msra.mxu0 0.0
        %1579 = vmatprep.subr.mxu0 0.0
        %1580 = vmatpush1.msra.mxu0 0.0
        %1581 = vmatprep.subr.mxu0 0.0
        %1582 = vmatpush1.msra.mxu0 0.0
        %1583 = vmatprep.subr.mxu0 0.0
        %1584 = vmatpush1.msra.mxu0 0.0
        %1585 = vmatprep.subr.mxu0 0.0
        %1586 = vmatpush1.msra.mxu0 0.0
        %1587 = vmatprep.subr.mxu0 0.0
        %1588 = vmatpush1.msra.mxu0 0.0
        %1589 = vmatprep.subr.mxu0 0.0
        %1590 = vmatpush1.msra.mxu0 0.0
        %1591 = vmatprep.subr.mxu0 0.0
        %1592 = vmatpush1.msra.mxu0 0.0
        %1593 = vmatprep.subr.mxu0 0.0
        %1594 = vmatpush1.msra.mxu0 0.0
        %1595 = vmatprep.subr.mxu0 0.0
        %1596 = vmatpush1.msra.mxu0 0.0
        %1597 = vmatprep.subr.mxu0 0.0
        %1598 = vmatpush1.msra.mxu0 0.0
        %1599 = vmatprep.subr.mxu0 0.0
        %1600 = vmatpush1.msra.mxu0 0.0
        %1601 = vmatprep.subr.mxu0 0.0
        %1602 = vmatpush1.msra.mxu0 0.0
        %1603 = vmatprep.subr.mxu0 0.0
        %1604 = vmatpush1.msra.mxu0 0.0
        %1605 = vmatprep.subr.mxu0 0.0
        %1606 = vmatpush1.msra.mxu0 0.0
        %1607 = vmatprep.mubr.f32.mxu0 0.0
        %1608 = vmatmul.mubr.f32.gmra.mrb[0].mxu0 %v1538
        %v1609 = vpop.f32.mrb[0].mxu0
        %v1610 = vadd.f32 0.0, %v1609
        %v1611 = vpop.f32.mrb[0].mxu0
        %1612 = vmatprep.mubr.f32.mxu0 0.0
        %1613 = vmatmul.mubr.f32.gmra.mrb[0].mxu0 %v1541
        %v1614 = vpop.f32.mrb[0].mxu0
        %v1615 = vadd.f32 0.0, %v1614
        %v1616 = vpop.f32.mrb[0].mxu0
        %1617 = vdwg.mxu0
        %v1618 = vmax.f32 %v1535, %v1610
        %v1619 = vmax.f32 %v1536, %v1615
        %1620 = vmatprep.subr.mxu0 0.0
        %1621 = vmatpush1.msra.mxu0 %v237
        %1622 = vmatprep.subr.mxu0 0.0
        %1623 = vmatpush1.msra.mxu0 %v238
        %1624 = vmatprep.subr.mxu0 0.0
        %1625 = vmatpush1.msra.mxu0 %v751
        %1626 = vmatprep.subr.mxu0 0.0
        %1627 = vmatpush1.msra.mxu0 0.0
        %1628 = vmatprep.subr.mxu0 0.0
        %1629 = vmatpush1.msra.mxu0 0.0
        %1630 = vmatprep.subr.mxu0 0.0
        %1631 = vmatpush1.msra.mxu0 0.0
        %1632 = vmatprep.subr.mxu0 0.0
        %1633 = vmatpush1.msra.mxu0 0.0
        %1634 = vmatprep.subr.mxu0 0.0
        %1635 = vmatpush1.msra.mxu0 0.0
        %1636 = vmatprep.subr.mxu0 0.0
        %1637 = vmatpush1.msra.mxu0 0.0
        %1638 = vmatprep.subr.mxu0 0.0
        %1639 = vmatpush1.msra.mxu0 0.0
        %1640 = vmatprep.subr.mxu0 0.0
        %1641 = vmatpush1.msra.mxu0 0.0
        %1642 = vmatprep.subr.mxu0 0.0
        %1643 = vmatpush1.msra.mxu0 0.0
        %1644 = vmatprep.subr.mxu0 0.0
        %1645 = vmatpush1.msra.mxu0 0.0
        %1646 = vmatprep.subr.mxu0 0.0
        %1647 = vmatpush1.msra.mxu0 0.0
        %1648 = vmatprep.subr.mxu0 0.0
        %1649 = vmatpush1.msra.mxu0 0.0
        %1650 = vmatprep.subr.mxu0 0.0
        %1651 = vmatpush1.msra.mxu0 0.0
        %1652 = vmatprep.subr.mxu0 0.0
        %1653 = vmatpush1.msra.mxu0 0.0
        %1654 = vmatprep.subr.mxu0 0.0
        %1655 = vmatpush1.msra.mxu0 0.0
        %1656 = vmatprep.subr.mxu0 0.0
        %1657 = vmatpush1.msra.mxu0 0.0
        %1658 = vmatprep.subr.mxu0 0.0
        %1659 = vmatpush1.msra.mxu0 0.0
        %1660 = vmatprep.subr.mxu0 0.0
        %1661 = vmatpush1.msra.mxu0 0.0
        %1662 = vmatprep.subr.mxu0 0.0
        %1663 = vmatpush1.msra.mxu0 0.0
        %1664 = vmatprep.subr.mxu0 0.0
        %1665 = vmatpush1.msra.mxu0 0.0
        %1666 = vmatprep.subr.mxu0 0.0
        %1667 = vmatpush1.msra.mxu0 0.0
        %1668 = vmatprep.subr.mxu0 0.0
        %1669 = vmatpush1.msra.mxu0 0.0
        %1670 = vmatprep.subr.mxu0 0.0
        %1671 = vmatpush1.msra.mxu0 0.0
        %1672 = vmatprep.subr.mxu0 0.0
        %1673 = vmatpush1.msra.mxu0 0.0
        %1674 = vmatprep.subr.mxu0 0.0
        %1675 = vmatpush1.msra.mxu0 0.0
        %1676 = vmatprep.subr.mxu0 0.0
        %1677 = vmatpush1.msra.mxu0 0.0
        %1678 = vmatprep.subr.mxu0 0.0
        %1679 = vmatpush1.msra.mxu0 0.0
        %1680 = vmatprep.subr.mxu0 0.0
        %1681 = vmatpush1.msra.mxu0 0.0
        %1682 = vmatprep.subr.mxu0 0.0
        %1683 = vmatpush1.msra.mxu0 0.0
        %1684 = vmatprep.mubr.f32.mxu0 0.0
        %1685 = vmatmul.mubr.f32.gmra.mrb[0].mxu0 %v1538
        %v1686 = vpop.f32.mrb[0].mxu0
        %v1687 = vadd.f32 0.0, %v1686
        %v1688 = vpop.f32.mrb[0].mxu0
        %1689 = vmatprep.mubr.f32.mxu0 0.0
        %1690 = vmatmul.mubr.f32.gmra.mrb[0].mxu0 %v1541
        %v1691 = vpop.f32.mrb[0].mxu0
        %v1692 = vadd.f32 0.0, %v1691
        %v1693 = vpop.f32.mrb[0].mxu0
        %1694 = vdwg.mxu0
        %v1695 = vmax.f32 %v1618, %v1687
        %v1696 = vmax.f32 %v1619, %v1692
        %s1697 = scalar_lea.vmem %s197, 16
        %1698 = vst.msk [vmem:[%s1697] sm:$0xff] %vm990, %v1695
        %1699 = vst.msk [vmem:[%s1697 + $0x8] sm:$0x1] %vm992, %v1696
        %s1700 = sld [smem:[#allocation2 + $0x20]]
        %v1701 = vstv %s1700
        %v1702 = vmul.f32 %v1701, %v240
        %v1703 = vmul.f32 %v1701, %v241
        %v1704 = vmul.f32 %v1701, %v242
        %v1705 = vadd.f32 %v1702, 0.0
        %v1706 = vadd.f32 %v1703, 0.0
        %v1707 = vadd.f32 %v1704, 0.0
        %s1708 = sld [smem:[#allocation2 + $0x21]]
        %v1709 = vstv %s1708
        %v1710 = vmul.f32 %v1709, %v240
        %v1711 = vmul.f32 %v1709, %v241
        %v1712 = vmul.f32 %v1709, %v242
        %1716 = vrot.lane.b32.xlu0 %v1710, 127
        %v1717 = vpop.permute.xlu0 %1716
        %1718 = vrot.lane.b32.xlu0 %v1711, 127
        %v1719 = vpop.permute.xlu0 %1718
        %1720 = vrot.lane.b32.xlu0 %v1712, 127
        %v1721 = vpop.permute.xlu0 %1720
        %v1725 = vadd.f32 %v1705, %v1717
        %v1726 = vadd.f32 %v1706, %v1719
        %v1727 = vadd.f32 %v1707, %v1721
        %s1728 = sld [smem:[#allocation2 + $0x22]]
        %v1729 = vstv %s1728
        %v1730 = vmul.f32 %v1729, %v243
        %v1731 = vmul.f32 %v1729, %v244
        %v1732 = vmul.f32 %v1729, %v245
        %v1733 = vadd.f32 %v1725, %v1730
        %v1734 = vadd.f32 %v1726, %v1731
        %v1735 = vadd.f32 %v1727, %v1732
        %s1736 = sld [smem:[#allocation2 + $0x23]]
        %v1737 = vstv %s1736
        %v1738 = vmul.f32 %v1737, %v243
        %v1739 = vmul.f32 %v1737, %v244
        %v1740 = vmul.f32 %v1737, %v245
        %1744 = vrot.lane.b32.xlu0 %v1738, 127
        %v1745 = vpop.permute.xlu0 %1744
        %1746 = vrot.lane.b32.xlu0 %v1739, 127
        %v1747 = vpop.permute.xlu0 %1746
        %1748 = vrot.lane.b32.xlu0 %v1740, 127
        %v1749 = vpop.permute.xlu0 %1748
        %v1753 = vadd.f32 %v1733, %v1745
        %v1754 = vadd.f32 %v1734, %v1747
        %v1755 = vadd.f32 %v1735, %v1749
        %s1756 = sld [smem:[#allocation2 + $0x24]]
        %v1757 = vstv %s1756
        %v1758 = vmul.f32 %v1757, %v247
        %v1759 = vmul.f32 %v1757, %v248
        %v1760 = vmul.f32 %v1757, %v249
        %v1761 = vadd.f32 %v1753, %v1758
        %v1762 = vadd.f32 %v1754, %v1759
        %v1763 = vadd.f32 %v1755, %v1760
        %s1764 = sld [smem:[#allocation2 + $0x25]]
        %v1765 = vstv %s1764
        %v1766 = vmul.f32 %v1765, %v247
        %v1767 = vmul.f32 %v1765, %v248
        %v1768 = vmul.f32 %v1765, %v249
        %1772 = vrot.lane.b32.xlu0 %v1766, 127
        %v1773 = vpop.permute.xlu0 %1772
        %1774 = vrot.lane.b32.xlu0 %v1767, 127
        %v1775 = vpop.permute.xlu0 %1774
        %1776 = vrot.lane.b32.xlu0 %v1768, 127
        %v1777 = vpop.permute.xlu0 %1776
        %v1781 = vadd.f32 %v1761, %v1773
        %v1782 = vadd.f32 %v1762, %v1775
        %v1783 = vadd.f32 %v1763, %v1777
        %s1784 = sld [smem:[#allocation2 + $0x26]]
        %v1785 = vstv %s1784
        %v1786 = vmul.f32 %v1785, %v250
        %v1787 = vmul.f32 %v1785, %v251
        %v1788 = vmul.f32 %v1785, %v252
        %v1789 = vadd.f32 %v1781, %v1786
        %v1790 = vadd.f32 %v1782, %v1787
        %v1791 = vadd.f32 %v1783, %v1788
        %s1792 = sld [smem:[#allocation2 + $0x27]]
        %v1793 = vstv %s1792
        %v1794 = vmul.f32 %v1793, %v250
        %v1795 = vmul.f32 %v1793, %v251
        %v1796 = vmul.f32 %v1793, %v252
        %1800 = vrot.lane.b32.xlu0 %v1794, 127
        %v1801 = vpop.permute.xlu0 %1800
        %1802 = vrot.lane.b32.xlu0 %v1795, 127
        %v1803 = vpop.permute.xlu0 %1802
        %1804 = vrot.lane.b32.xlu0 %v1796, 127
        %v1805 = vpop.permute.xlu0 %1804
        %v1809 = vadd.f32 %v1789, %v1801
        %v1810 = vadd.f32 %v1790, %v1803
        %v1811 = vadd.f32 %v1791, %v1805
        %s1812 = sld [smem:[#allocation2 + $0x28]]
        %v1813 = vstv %s1812
        %v1814 = vmul.f32 %v1813, %v254
        %v1815 = vmul.f32 %v1813, %v255
        %v1816 = vmul.f32 %v1813, %v256
        %v1817 = vadd.f32 %v1809, %v1814
        %v1818 = vadd.f32 %v1810, %v1815
        %v1819 = vadd.f32 %v1811, %v1816
        %s1820 = sld [smem:[#allocation2 + $0x29]]
        %v1821 = vstv %s1820
        %v1822 = vmul.f32 %v1821, %v254
        %v1823 = vmul.f32 %v1821, %v255
        %v1824 = vmul.f32 %v1821, %v256
        %1828 = vrot.lane.b32.xlu0 %v1822, 127
        %v1829 = vpop.permute.xlu0 %1828
        %1830 = vrot.lane.b32.xlu0 %v1823, 127
        %v1831 = vpop.permute.xlu0 %1830
        %1832 = vrot.lane.b32.xlu0 %v1824, 127
        %v1833 = vpop.permute.xlu0 %1832
        %v1837 = vadd.f32 %v1817, %v1829
        %v1838 = vadd.f32 %v1818, %v1831
        %v1839 = vadd.f32 %v1819, %v1833
        %s1840 = sld [smem:[#allocation2 + $0x2a]]
        %v1841 = vstv %s1840
        %v1842 = vmul.f32 %v1841, %v257
        %v1843 = vmul.f32 %v1841, %v258
        %v1844 = vmul.f32 %v1841, %v259
        %v1845 = vadd.f32 %v1837, %v1842
        %v1846 = vadd.f32 %v1838, %v1843
        %v1847 = vadd.f32 %v1839, %v1844
        %s1848 = sld [smem:[#allocation2 + $0x2b]]
        %v1849 = vstv %s1848
        %v1850 = vmul.f32 %v1849, %v257
        %v1851 = vmul.f32 %v1849, %v258
        %v1852 = vmul.f32 %v1849, %v259
        %1856 = vrot.lane.b32.xlu0 %v1850, 127
        %v1857 = vpop.permute.xlu0 %1856
        %1858 = vrot.lane.b32.xlu0 %v1851, 127
        %v1859 = vpop.permute.xlu0 %1858
        %1860 = vrot.lane.b32.xlu0 %v1852, 127
        %v1861 = vpop.permute.xlu0 %1860
        %v1865 = vadd.f32 %v1845, %v1857
        %v1866 = vadd.f32 %v1846, %v1859
        %v1867 = vadd.f32 %v1847, %v1861
        %s1868 = sld [smem:[#allocation2 + $0x2c]]
        %v1869 = vstv %s1868
        %v1870 = vmul.f32 %v1869, %v261
        %v1871 = vmul.f32 %v1869, %v262
        %v1872 = vmul.f32 %v1869, %v263
        %v1873 = vadd.f32 %v1865, %v1870
        %v1874 = vadd.f32 %v1866, %v1871
        %v1875 = vadd.f32 %v1867, %v1872
        %s1876 = sld [smem:[#allocation2 + $0x2d]]
        %v1877 = vstv %s1876
        %v1878 = vmul.f32 %v1877, %v261
        %v1879 = vmul.f32 %v1877, %v262
        %v1880 = vmul.f32 %v1877, %v263
        %1884 = vrot.lane.b32.xlu0 %v1878, 127
        %v1885 = vpop.permute.xlu0 %1884
        %1886 = vrot.lane.b32.xlu0 %v1879, 127
        %v1887 = vpop.permute.xlu0 %1886
        %1888 = vrot.lane.b32.xlu0 %v1880, 127
        %v1889 = vpop.permute.xlu0 %1888
        %v1893 = vadd.f32 %v1873, %v1885
        %v1894 = vadd.f32 %v1874, %v1887
        %v1895 = vadd.f32 %v1875, %v1889
        %s1896 = sld [smem:[#allocation2 + $0x2e]]
        %v1897 = vstv %s1896
        %v1898 = vmul.f32 %v1897, %v264
        %v1899 = vmul.f32 %v1897, %v265
        %v1900 = vmul.f32 %v1897, %v266
        %v1901 = vadd.f32 %v1893, %v1898
        %v1902 = vadd.f32 %v1894, %v1899
        %v1903 = vadd.f32 %v1895, %v1900
        %s1904 = sld [smem:[#allocation2 + $0x2f]]
        %v1905 = vstv %s1904
        %v1906 = vmul.f32 %v1905, %v264
        %v1907 = vmul.f32 %v1905, %v265
        %v1908 = vmul.f32 %v1905, %v266
        %1912 = vrot.lane.b32.xlu0 %v1906, 127
        %v1913 = vpop.permute.xlu0 %1912
        %1914 = vrot.lane.b32.xlu0 %v1907, 127
        %v1915 = vpop.permute.xlu0 %1914
        %1916 = vrot.lane.b32.xlu0 %v1908, 127
        %v1917 = vpop.permute.xlu0 %1916
        %v1921 = vadd.f32 %v1901, %v1913
        %v1922 = vadd.f32 %v1902, %v1915
        %v1923 = vadd.f32 %v1903, %v1917
        %s1924 = sld [smem:[#allocation4 + $0x2]]
        %v1925 = vstv %s1924
        %v1926 = vadd.f32 %v1921, %v1925
        %v1927 = vadd.f32 %v1922, %v1925
        %v1928 = vadd.f32 %v1923, %v1925
        %v1929 = vmax.f32 %v1926, 0.0
        %v1930 = vmax.f32 %v1927, 0.0
        %v1931 = vmax.f32 %v1928, 0.0
        %v1933 = vsel %vm506, %v1931, 0
        %1935 = vmatprep.subr.mxu0 0.0
        %1936 = vmatpush1.msra.mxu0 %v1929
        %1937 = vmatprep.subr.mxu0 0.0
        %1938 = vmatpush1.msra.mxu0 %v1930
        %1939 = vmatprep.subr.mxu0 0.0
        %1940 = vmatpush1.msra.mxu0 %v1933
        %1941 = vmatprep.subr.mxu0 0.0
        %1942 = vmatpush1.msra.mxu0 0.0
        %1943 = vmatprep.subr.mxu0 0.0
        %1944 = vmatpush1.msra.mxu0 0.0
        %1945 = vmatprep.subr.mxu0 0.0
        %1946 = vmatpush1.msra.mxu0 0.0
        %1947 = vmatprep.subr.mxu0 0.0
        %1948 = vmatpush1.msra.mxu0 0.0
        %1949 = vmatprep.subr.mxu0 0.0
        %1950 = vmatpush1.msra.mxu0 0.0
        %1951 = vmatprep.subr.mxu0 0.0
        %1952 = vmatpush1.msra.mxu0 0.0
        %1953 = vmatprep.subr.mxu0 0.0
        %1954 = vmatpush1.msra.mxu0 0.0
        %1955 = vmatprep.subr.mxu0 0.0
        %1956 = vmatpush1.msra.mxu0 0.0
        %1957 = vmatprep.subr.mxu0 0.0
        %1958 = vmatpush1.msra.mxu0 0.0
        %1959 = vmatprep.subr.mxu0 0.0
        %1960 = vmatpush1.msra.mxu0 0.0
        %1961 = vmatprep.subr.mxu0 0.0
        %1962 = vmatpush1.msra.mxu0 0.0
        %1963 = vmatprep.subr.mxu0 0.0
        %1964 = vmatpush1.msra.mxu0 0.0
        %1965 = vmatprep.subr.mxu0 0.0
        %1966 = vmatpush1.msra.mxu0 0.0
        %1967 = vmatprep.subr.mxu0 0.0
        %1968 = vmatpush1.msra.mxu0 0.0
        %1969 = vmatprep.subr.mxu0 0.0
        %1970 = vmatpush1.msra.mxu0 0.0
        %1971 = vmatprep.subr.mxu0 0.0
        %1972 = vmatpush1.msra.mxu0 0.0
        %1973 = vmatprep.subr.mxu0 0.0
        %1974 = vmatpush1.msra.mxu0 0.0
        %1975 = vmatprep.subr.mxu0 0.0
        %1976 = vmatpush1.msra.mxu0 0.0
        %1977 = vmatprep.subr.mxu0 0.0
        %1978 = vmatpush1.msra.mxu0 0.0
        %1979 = vmatprep.subr.mxu0 0.0
        %1980 = vmatpush1.msra.mxu0 0.0
        %1981 = vmatprep.subr.mxu0 0.0
        %1982 = vmatpush1.msra.mxu0 0.0
        %1983 = vmatprep.subr.mxu0 0.0
        %1984 = vmatpush1.msra.mxu0 0.0
        %1985 = vmatprep.subr.mxu0 0.0
        %1986 = vmatpush1.msra.mxu0 0.0
        %1987 = vmatprep.subr.mxu0 0.0
        %1988 = vmatpush1.msra.mxu0 0.0
        %1989 = vmatprep.subr.mxu0 0.0
        %1990 = vmatpush1.msra.mxu0 0.0
        %1991 = vmatprep.subr.mxu0 0.0
        %1992 = vmatpush1.msra.mxu0 0.0
        %1993 = vmatprep.subr.mxu0 0.0
        %1994 = vmatpush1.msra.mxu0 0.0
        %1995 = vmatprep.subr.mxu0 0.0
        %1996 = vmatpush1.msra.mxu0 0.0
        %1997 = vmatprep.subr.mxu0 0.0
        %1998 = vmatpush1.msra.mxu0 0.0
        %1999 = vmatprep.mubr.f32.mxu0 0.0
        %2000 = vmatmul.mubr.f32.gmra.mrb[0].mxu0 %v501
        %v2001 = vpop.f32.mrb[0].mxu0
        %v2002 = vadd.f32 0.0, %v2001
        %v2003 = vpop.f32.mrb[0].mxu0
        %2004 = vmatprep.mubr.f32.mxu0 0.0
        %2005 = vmatmul.mubr.f32.gmra.mrb[0].mxu0 %v504
        %v2006 = vpop.f32.mrb[0].mxu0
        %v2007 = vadd.f32 0.0, %v2006
        %v2008 = vpop.f32.mrb[0].mxu0
        %2009 = vdwg.mxu0
        %2010 = vmatprep.subr.mxu0 0.0
        %2011 = vmatpush1.msra.mxu0 %v1929
        %2012 = vmatprep.subr.mxu0 0.0
        %2013 = vmatpush1.msra.mxu0 %v1930
        %2014 = vmatprep.subr.mxu0 0.0
        %2015 = vmatpush1.msra.mxu0 %v1933
        %2016 = vmatprep.subr.mxu0 0.0
        %2017 = vmatpush1.msra.mxu0 0.0
        %2018 = vmatprep.subr.mxu0 0.0
        %2019 = vmatpush1.msra.mxu0 0.0
        %2020 = vmatprep.subr.mxu0 0.0
        %2021 = vmatpush1.msra.mxu0 0.0
        %2022 = vmatprep.subr.mxu0 0.0
        %2023 = vmatpush1.msra.mxu0 0.0
        %2024 = vmatprep.subr.mxu0 0.0
        %2025 = vmatpush1.msra.mxu0 0.0
        %2026 = vmatprep.subr.mxu0 0.0
        %2027 = vmatpush1.msra.mxu0 0.0
        %2028 = vmatprep.subr.mxu0 0.0
        %2029 = vmatpush1.msra.mxu0 0.0
        %2030 = vmatprep.subr.mxu0 0.0
        %2031 = vmatpush1.msra.mxu0 0.0
        %2032 = vmatprep.subr.mxu0 0.0
        %2033 = vmatpush1.msra.mxu0 0.0
        %2034 = vmatprep.subr.mxu0 0.0
        %2035 = vmatpush1.msra.mxu0 0.0
        %2036 = vmatprep.subr.mxu0 0.0
        %2037 = vmatpush1.msra.mxu0 0.0
        %2038 = vmatprep.subr.mxu0 0.0
        %2039 = vmatpush1.msra.mxu0 0.0
        %2040 = vmatprep.subr.mxu0 0.0
        %2041 = vmatpush1.msra.mxu0 0.0
        %2042 = vmatprep.subr.mxu0 0.0
        %2043 = vmatpush1.msra.mxu0 0.0
        %2044 = vmatprep.subr.mxu0 0.0
        %2045 = vmatpush1.msra.mxu0 0.0
        %2046 = vmatprep.subr.mxu0 0.0
        %2047 = vmatpush1.msra.mxu0 0.0
        %2048 = vmatprep.subr.mxu0 0.0
        %2049 = vmatpush1.msra.mxu0 0.0
        %2050 = vmatprep.subr.mxu0 0.0
        %2051 = vmatpush1.msra.mxu0 0.0
        %2052 = vmatprep.subr.mxu0 0.0
        %2053 = vmatpush1.msra.mxu0 0.0
        %2054 = vmatprep.subr.mxu0 0.0
        %2055 = vmatpush1.msra.mxu0 0.0
        %2056 = vmatprep.subr.mxu0 0.0
        %2057 = vmatpush1.msra.mxu0 0.0
        %2058 = vmatprep.subr.mxu0 0.0
        %2059 = vmatpush1.msra.mxu0 0.0
        %2060 = vmatprep.subr.mxu0 0.0
        %2061 = vmatpush1.msra.mxu0 0.0
        %2062 = vmatprep.subr.mxu0 0.0
        %2063 = vmatpush1.msra.mxu0 0.0
        %2064 = vmatprep.subr.mxu0 0.0
        %2065 = vmatpush1.msra.mxu0 0.0
        %2066 = vmatprep.subr.mxu0 0.0
        %2067 = vmatpush1.msra.mxu0 0.0
        %2068 = vmatprep.subr.mxu0 0.0
        %2069 = vmatpush1.msra.mxu0 0.0
        %2070 = vmatprep.subr.mxu0 0.0
        %2071 = vmatpush1.msra.mxu0 0.0
        %2072 = vmatprep.subr.mxu0 0.0
        %2073 = vmatpush1.msra.mxu0 0.0
        %2074 = vmatprep.mubr.f32.mxu0 0.0
        %2075 = vmatmul.mubr.f32.gmra.mrb[0].mxu0 %v586
        %v2076 = vpop.f32.mrb[0].mxu0
        %v2077 = vadd.f32 0.0, %v2076
        %v2078 = vpop.f32.mrb[0].mxu0
        %2079 = vmatprep.mubr.f32.mxu0 0.0
        %2080 = vmatmul.mubr.f32.gmra.mrb[0].mxu0 %v589
        %v2081 = vpop.f32.mrb[0].mxu0
        %v2082 = vadd.f32 0.0, %v2081
        %v2083 = vpop.f32.mrb[0].mxu0
        %2084 = vdwg.mxu0
        %v2086 = vsel %vm499, %v2002, 0
        %v2089 = vsel %vm499, %v2007, 0
        %2091 = vmatprep.subr.mxu0 0.0
        %2092 = vmatpush1.msra.mxu0 %v228
        %2093 = vmatprep.subr.mxu0 0.0
        %2094 = vmatpush1.msra.mxu0 %v229
        %2095 = vmatprep.subr.mxu0 0.0
        %2096 = vmatpush1.msra.mxu0 %v673
        %2097 = vmatprep.subr.mxu0 0.0
        %2098 = vmatpush1.msra.mxu0 0.0
        %2099 = vmatprep.subr.mxu0 0.0
        %2100 = vmatpush1.msra.mxu0 0.0
        %2101 = vmatprep.subr.mxu0 0.0
        %2102 = vmatpush1.msra.mxu0 0.0
        %2103 = vmatprep.subr.mxu0 0.0
        %2104 = vmatpush1.msra.mxu0 0.0
        %2105 = vmatprep.subr.mxu0 0.0
        %2106 = vmatpush1.msra.mxu0 0.0
        %2107 = vmatprep.subr.mxu0 0.0
        %2108 = vmatpush1.msra.mxu0 0.0
        %2109 = vmatprep.subr.mxu0 0.0
        %2110 = vmatpush1.msra.mxu0 0.0
        %2111 = vmatprep.subr.mxu0 0.0
        %2112 = vmatpush1.msra.mxu0 0.0
        %2113 = vmatprep.subr.mxu0 0.0
        %2114 = vmatpush1.msra.mxu0 0.0
        %2115 = vmatprep.subr.mxu0 0.0
        %2116 = vmatpush1.msra.mxu0 0.0
        %2117 = vmatprep.subr.mxu0 0.0
        %2118 = vmatpush1.msra.mxu0 0.0
        %2119 = vmatprep.subr.mxu0 0.0
        %2120 = vmatpush1.msra.mxu0 0.0
        %2121 = vmatprep.subr.mxu0 0.0
        %2122 = vmatpush1.msra.mxu0 0.0
        %2123 = vmatprep.subr.mxu0 0.0
        %2124 = vmatpush1.msra.mxu0 0.0
        %2125 = vmatprep.subr.mxu0 0.0
        %2126 = vmatpush1.msra.mxu0 0.0
        %2127 = vmatprep.subr.mxu0 0.0
        %2128 = vmatpush1.msra.mxu0 0.0
        %2129 = vmatprep.subr.mxu0 0.0
        %2130 = vmatpush1.msra.mxu0 0.0
        %2131 = vmatprep.subr.mxu0 0.0
        %2132 = vmatpush1.msra.mxu0 0.0
        %2133 = vmatprep.subr.mxu0 0.0
        %2134 = vmatpush1.msra.mxu0 0.0
        %2135 = vmatprep.subr.mxu0 0.0
        %2136 = vmatpush1.msra.mxu0 0.0
        %2137 = vmatprep.subr.mxu0 0.0
        %2138 = vmatpush1.msra.mxu0 0.0
        %2139 = vmatprep.subr.mxu0 0.0
        %2140 = vmatpush1.msra.mxu0 0.0
        %2141 = vmatprep.subr.mxu0 0.0
        %2142 = vmatpush1.msra.mxu0 0.0
        %2143 = vmatprep.subr.mxu0 0.0
        %2144 = vmatpush1.msra.mxu0 0.0
        %2145 = vmatprep.subr.mxu0 0.0
        %2146 = vmatpush1.msra.mxu0 0.0
        %2147 = vmatprep.subr.mxu0 0.0
        %2148 = vmatpush1.msra.mxu0 0.0
        %2149 = vmatprep.subr.mxu0 0.0
        %2150 = vmatpush1.msra.mxu0 0.0
        %2151 = vmatprep.subr.mxu0 0.0
        %2152 = vmatpush1.msra.mxu0 0.0
        %2153 = vmatprep.subr.mxu0 0.0
        %2154 = vmatpush1.msra.mxu0 0.0
        %2155 = vmatprep.mubr.f32.mxu0 0.0
        %2156 = vmatmul.mubr.f32.gmra.mrb[0].mxu0 %v2086
        %v2157 = vpop.f32.mrb[0].mxu0
        %v2158 = vadd.f32 0.0, %v2157
        %v2159 = vpop.f32.mrb[0].mxu0
        %2160 = vmatprep.mubr.f32.mxu0 0.0
        %2161 = vmatmul.mubr.f32.gmra.mrb[0].mxu0 %v2089
        %v2162 = vpop.f32.mrb[0].mxu0
        %v2163 = vadd.f32 0.0, %v2162
        %v2164 = vpop.f32.mrb[0].mxu0
        %2165 = vdwg.mxu0
        %2166 = vmatprep.subr.mxu0 0.0
        %2167 = vmatpush1.msra.mxu0 %v237
        %2168 = vmatprep.subr.mxu0 0.0
        %2169 = vmatpush1.msra.mxu0 %v238
        %2170 = vmatprep.subr.mxu0 0.0
        %2171 = vmatpush1.msra.mxu0 %v751
        %2172 = vmatprep.subr.mxu0 0.0
        %2173 = vmatpush1.msra.mxu0 0.0
        %2174 = vmatprep.subr.mxu0 0.0
        %2175 = vmatpush1.msra.mxu0 0.0
        %2176 = vmatprep.subr.mxu0 0.0
        %2177 = vmatpush1.msra.mxu0 0.0
        %2178 = vmatprep.subr.mxu0 0.0
        %2179 = vmatpush1.msra.mxu0 0.0
        %2180 = vmatprep.subr.mxu0 0.0
        %2181 = vmatpush1.msra.mxu0 0.0
        %2182 = vmatprep.subr.mxu0 0.0
        %2183 = vmatpush1.msra.mxu0 0.0
        %2184 = vmatprep.subr.mxu0 0.0
        %2185 = vmatpush1.msra.mxu0 0.0
        %2186 = vmatprep.subr.mxu0 0.0
        %2187 = vmatpush1.msra.mxu0 0.0
        %2188 = vmatprep.subr.mxu0 0.0
        %2189 = vmatpush1.msra.mxu0 0.0
        %2190 = vmatprep.subr.mxu0 0.0
        %2191 = vmatpush1.msra.mxu0 0.0
        %2192 = vmatprep.subr.mxu0 0.0
        %2193 = vmatpush1.msra.mxu0 0.0
        %2194 = vmatprep.subr.mxu0 0.0
        %2195 = vmatpush1.msra.mxu0 0.0
        %2196 = vmatprep.subr.mxu0 0.0
        %2197 = vmatpush1.msra.mxu0 0.0
        %2198 = vmatprep.subr.mxu0 0.0
        %2199 = vmatpush1.msra.mxu0 0.0
        %2200 = vmatprep.subr.mxu0 0.0
        %2201 = vmatpush1.msra.mxu0 0.0
        %2202 = vmatprep.subr.mxu0 0.0
        %2203 = vmatpush1.msra.mxu0 0.0
        %2204 = vmatprep.subr.mxu0 0.0
        %2205 = vmatpush1.msra.mxu0 0.0
        %2206 = vmatprep.subr.mxu0 0.0
        %2207 = vmatpush1.msra.mxu0 0.0
        %2208 = vmatprep.subr.mxu0 0.0
        %2209 = vmatpush1.msra.mxu0 0.0
        %2210 = vmatprep.subr.mxu0 0.0
        %2211 = vmatpush1.msra.mxu0 0.0
        %2212 = vmatprep.subr.mxu0 0.0
        %2213 = vmatpush1.msra.mxu0 0.0
        %2214 = vmatprep.subr.mxu0 0.0
        %2215 = vmatpush1.msra.mxu0 0.0
        %2216 = vmatprep.subr.mxu0 0.0
        %2217 = vmatpush1.msra.mxu0 0.0
        %2218 = vmatprep.subr.mxu0 0.0
        %2219 = vmatpush1.msra.mxu0 0.0
        %2220 = vmatprep.subr.mxu0 0.0
        %2221 = vmatpush1.msra.mxu0 0.0
        %2222 = vmatprep.subr.mxu0 0.0
        %2223 = vmatpush1.msra.mxu0 0.0
        %2224 = vmatprep.subr.mxu0 0.0
        %2225 = vmatpush1.msra.mxu0 0.0
        %2226 = vmatprep.subr.mxu0 0.0
        %2227 = vmatpush1.msra.mxu0 0.0
        %2228 = vmatprep.subr.mxu0 0.0
        %2229 = vmatpush1.msra.mxu0 0.0
        %2230 = vmatprep.mubr.f32.mxu0 0.0
        %2231 = vmatmul.mubr.f32.gmra.mrb[0].mxu0 %v2086
        %v2232 = vpop.f32.mrb[0].mxu0
        %v2233 = vadd.f32 0.0, %v2232
        %v2234 = vpop.f32.mrb[0].mxu0
        %2235 = vmatprep.mubr.f32.mxu0 0.0
        %2236 = vmatmul.mubr.f32.gmra.mrb[0].mxu0 %v2089
        %v2237 = vpop.f32.mrb[0].mxu0
        %v2238 = vadd.f32 0.0, %v2237
        %v2239 = vpop.f32.mrb[0].mxu0
        %2240 = vdwg.mxu0
        %v2241 = vmax.f32 %v2158, %v2233
        %v2242 = vmax.f32 %v2163, %v2238
        %v2244 = vsel %vm499, %v2077, 0
        %v2247 = vsel %vm499, %v2082, 0
        %2249 = vmatprep.subr.mxu0 0.0
        %2250 = vmatpush1.msra.mxu0 %v228
        %2251 = vmatprep.subr.mxu0 0.0
        %2252 = vmatpush1.msra.mxu0 %v229
        %2253 = vmatprep.subr.mxu0 0.0
        %2254 = vmatpush1.msra.mxu0 %v673
        %2255 = vmatprep.subr.mxu0 0.0
        %2256 = vmatpush1.msra.mxu0 0.0
        %2257 = vmatprep.subr.mxu0 0.0
        %2258 = vmatpush1.msra.mxu0 0.0
        %2259 = vmatprep.subr.mxu0 0.0
        %2260 = vmatpush1.msra.mxu0 0.0
        %2261 = vmatprep.subr.mxu0 0.0
        %2262 = vmatpush1.msra.mxu0 0.0
        %2263 = vmatprep.subr.mxu0 0.0
        %2264 = vmatpush1.msra.mxu0 0.0
        %2265 = vmatprep.subr.mxu0 0.0
        %2266 = vmatpush1.msra.mxu0 0.0
        %2267 = vmatprep.subr.mxu0 0.0
        %2268 = vmatpush1.msra.mxu0 0.0
        %2269 = vmatprep.subr.mxu0 0.0
        %2270 = vmatpush1.msra.mxu0 0.0
        %2271 = vmatprep.subr.mxu0 0.0
        %2272 = vmatpush1.msra.mxu0 0.0
        %2273 = vmatprep.subr.mxu0 0.0
        %2274 = vmatpush1.msra.mxu0 0.0
        %2275 = vmatprep.subr.mxu0 0.0
        %2276 = vmatpush1.msra.mxu0 0.0
        %2277 = vmatprep.subr.mxu0 0.0
        %2278 = vmatpush1.msra.mxu0 0.0
        %2279 = vmatprep.subr.mxu0 0.0
        %2280 = vmatpush1.msra.mxu0 0.0
        %2281 = vmatprep.subr.mxu0 0.0
        %2282 = vmatpush1.msra.mxu0 0.0
        %2283 = vmatprep.subr.mxu0 0.0
        %2284 = vmatpush1.msra.mxu0 0.0
        %2285 = vmatprep.subr.mxu0 0.0
        %2286 = vmatpush1.msra.mxu0 0.0
        %2287 = vmatprep.subr.mxu0 0.0
        %2288 = vmatpush1.msra.mxu0 0.0
        %2289 = vmatprep.subr.mxu0 0.0
        %2290 = vmatpush1.msra.mxu0 0.0
        %2291 = vmatprep.subr.mxu0 0.0
        %2292 = vmatpush1.msra.mxu0 0.0
        %2293 = vmatprep.subr.mxu0 0.0
        %2294 = vmatpush1.msra.mxu0 0.0
        %2295 = vmatprep.subr.mxu0 0.0
        %2296 = vmatpush1.msra.mxu0 0.0
        %2297 = vmatprep.subr.mxu0 0.0
        %2298 = vmatpush1.msra.mxu0 0.0
        %2299 = vmatprep.subr.mxu0 0.0
        %2300 = vmatpush1.msra.mxu0 0.0
        %2301 = vmatprep.subr.mxu0 0.0
        %2302 = vmatpush1.msra.mxu0 0.0
        %2303 = vmatprep.subr.mxu0 0.0
        %2304 = vmatpush1.msra.mxu0 0.0
        %2305 = vmatprep.subr.mxu0 0.0
        %2306 = vmatpush1.msra.mxu0 0.0
        %2307 = vmatprep.subr.mxu0 0.0
        %2308 = vmatpush1.msra.mxu0 0.0
        %2309 = vmatprep.subr.mxu0 0.0
        %2310 = vmatpush1.msra.mxu0 0.0
        %2311 = vmatprep.subr.mxu0 0.0
        %2312 = vmatpush1.msra.mxu0 0.0
        %2313 = vmatprep.mubr.f32.mxu0 0.0
        %2314 = vmatmul.mubr.f32.gmra.mrb[0].mxu0 %v2244
        %v2315 = vpop.f32.mrb[0].mxu0
        %v2316 = vadd.f32 0.0, %v2315
        %v2317 = vpop.f32.mrb[0].mxu0
        %2318 = vmatprep.mubr.f32.mxu0 0.0
        %2319 = vmatmul.mubr.f32.gmra.mrb[0].mxu0 %v2247
        %v2320 = vpop.f32.mrb[0].mxu0
        %v2321 = vadd.f32 0.0, %v2320
        %v2322 = vpop.f32.mrb[0].mxu0
        %2323 = vdwg.mxu0
        %v2324 = vmax.f32 %v2241, %v2316
        %v2325 = vmax.f32 %v2242, %v2321
        %2326 = vmatprep.subr.mxu0 0.0
        %2327 = vmatpush1.msra.mxu0 %v237
        %2328 = vmatprep.subr.mxu0 0.0
        %2329 = vmatpush1.msra.mxu0 %v238
        %2330 = vmatprep.subr.mxu0 0.0
        %2331 = vmatpush1.msra.mxu0 %v751
        %2332 = vmatprep.subr.mxu0 0.0
        %2333 = vmatpush1.msra.mxu0 0.0
        %2334 = vmatprep.subr.mxu0 0.0
        %2335 = vmatpush1.msra.mxu0 0.0
        %2336 = vmatprep.subr.mxu0 0.0
        %2337 = vmatpush1.msra.mxu0 0.0
        %2338 = vmatprep.subr.mxu0 0.0
        %2339 = vmatpush1.msra.mxu0 0.0
        %2340 = vmatprep.subr.mxu0 0.0
        %2341 = vmatpush1.msra.mxu0 0.0
        %2342 = vmatprep.subr.mxu0 0.0
        %2343 = vmatpush1.msra.mxu0 0.0
        %2344 = vmatprep.subr.mxu0 0.0
        %2345 = vmatpush1.msra.mxu0 0.0
        %2346 = vmatprep.subr.mxu0 0.0
        %2347 = vmatpush1.msra.mxu0 0.0
        %2348 = vmatprep.subr.mxu0 0.0
        %2349 = vmatpush1.msra.mxu0 0.0
        %2350 = vmatprep.subr.mxu0 0.0
        %2351 = vmatpush1.msra.mxu0 0.0
        %2352 = vmatprep.subr.mxu0 0.0
        %2353 = vmatpush1.msra.mxu0 0.0
        %2354 = vmatprep.subr.mxu0 0.0
        %2355 = vmatpush1.msra.mxu0 0.0
        %2356 = vmatprep.subr.mxu0 0.0
        %2357 = vmatpush1.msra.mxu0 0.0
        %2358 = vmatprep.subr.mxu0 0.0
        %2359 = vmatpush1.msra.mxu0 0.0
        %2360 = vmatprep.subr.mxu0 0.0
        %2361 = vmatpush1.msra.mxu0 0.0
        %2362 = vmatprep.subr.mxu0 0.0
        %2363 = vmatpush1.msra.mxu0 0.0
        %2364 = vmatprep.subr.mxu0 0.0
        %2365 = vmatpush1.msra.mxu0 0.0
        %2366 = vmatprep.subr.mxu0 0.0
        %2367 = vmatpush1.msra.mxu0 0.0
        %2368 = vmatprep.subr.mxu0 0.0
        %2369 = vmatpush1.msra.mxu0 0.0
        %2370 = vmatprep.subr.mxu0 0.0
        %2371 = vmatpush1.msra.mxu0 0.0
        %2372 = vmatprep.subr.mxu0 0.0
        %2373 = vmatpush1.msra.mxu0 0.0
        %2374 = vmatprep.subr.mxu0 0.0
        %2375 = vmatpush1.msra.mxu0 0.0
        %2376 = vmatprep.subr.mxu0 0.0
        %2377 = vmatpush1.msra.mxu0 0.0
        %2378 = vmatprep.subr.mxu0 0.0
        %2379 = vmatpush1.msra.mxu0 0.0
        %2380 = vmatprep.subr.mxu0 0.0
        %2381 = vmatpush1.msra.mxu0 0.0
        %2382 = vmatprep.subr.mxu0 0.0
        %2383 = vmatpush1.msra.mxu0 0.0
        %2384 = vmatprep.subr.mxu0 0.0
        %2385 = vmatpush1.msra.mxu0 0.0
        %2386 = vmatprep.subr.mxu0 0.0
        %2387 = vmatpush1.msra.mxu0 0.0
        %2388 = vmatprep.subr.mxu0 0.0
        %2389 = vmatpush1.msra.mxu0 0.0
        %2390 = vmatprep.mubr.f32.mxu0 0.0
        %2391 = vmatmul.mubr.f32.gmra.mrb[0].mxu0 %v2244
        %v2392 = vpop.f32.mrb[0].mxu0
        %v2393 = vadd.f32 0.0, %v2392
        %v2394 = vpop.f32.mrb[0].mxu0
        %2395 = vmatprep.mubr.f32.mxu0 0.0
        %2396 = vmatmul.mubr.f32.gmra.mrb[0].mxu0 %v2247
        %v2397 = vpop.f32.mrb[0].mxu0
        %v2398 = vadd.f32 0.0, %v2397
        %v2399 = vpop.f32.mrb[0].mxu0
        %2400 = vdwg.mxu0
        %v2401 = vmax.f32 %v2324, %v2393
        %v2402 = vmax.f32 %v2325, %v2398
        %s2403 = scalar_lea.vmem %s197, 32
        %2404 = vst.msk [vmem:[%s2403] sm:$0xff] %vm990, %v2401
        %2405 = vst.msk [vmem:[%s2403 + $0x8] sm:$0x1] %vm992, %v2402
        %s2406 = sld [smem:[#allocation2 + $0x30]]
        %v2407 = vstv %s2406
        %v2408 = vmul.f32 %v2407, %v240
        %v2409 = vmul.f32 %v2407, %v241
        %v2410 = vmul.f32 %v2407, %v242
        %v2411 = vadd.f32 %v2408, 0.0
        %v2412 = vadd.f32 %v2409, 0.0
        %v2413 = vadd.f32 %v2410, 0.0
        %s2414 = sld [smem:[#allocation2 + $0x31]]
        %v2415 = vstv %s2414
        %v2416 = vmul.f32 %v2415, %v240
        %v2417 = vmul.f32 %v2415, %v241
        %v2418 = vmul.f32 %v2415, %v242
        %2422 = vrot.lane.b32.xlu0 %v2416, 127
        %v2423 = vpop.permute.xlu0 %2422
        %2424 = vrot.lane.b32.xlu0 %v2417, 127
        %v2425 = vpop.permute.xlu0 %2424
        %2426 = vrot.lane.b32.xlu0 %v2418, 127
        %v2427 = vpop.permute.xlu0 %2426
        %v2431 = vadd.f32 %v2411, %v2423
        %v2432 = vadd.f32 %v2412, %v2425
        %v2433 = vadd.f32 %v2413, %v2427
        %s2434 = sld [smem:[#allocation2 + $0x32]]
        %v2435 = vstv %s2434
        %v2436 = vmul.f32 %v2435, %v243
        %v2437 = vmul.f32 %v2435, %v244
        %v2438 = vmul.f32 %v2435, %v245
        %v2439 = vadd.f32 %v2431, %v2436
        %v2440 = vadd.f32 %v2432, %v2437
        %v2441 = vadd.f32 %v2433, %v2438
        %s2442 = sld [smem:[#allocation2 + $0x33]]
        %v2443 = vstv %s2442
        %v2444 = vmul.f32 %v2443, %v243
        %v2445 = vmul.f32 %v2443, %v244
        %v2446 = vmul.f32 %v2443, %v245
        %2450 = vrot.lane.b32.xlu0 %v2444, 127
        %v2451 = vpop.permute.xlu0 %2450
        %2452 = vrot.lane.b32.xlu0 %v2445, 127
        %v2453 = vpop.permute.xlu0 %2452
        %2454 = vrot.lane.b32.xlu0 %v2446, 127
        %v2455 = vpop.permute.xlu0 %2454
        %v2459 = vadd.f32 %v2439, %v2451
        %v2460 = vadd.f32 %v2440, %v2453
        %v2461 = vadd.f32 %v2441, %v2455
        %s2462 = sld [smem:[#allocation2 + $0x34]]
        %v2463 = vstv %s2462
        %v2464 = vmul.f32 %v2463, %v247
        %v2465 = vmul.f32 %v2463, %v248
        %v2466 = vmul.f32 %v2463, %v249
        %v2467 = vadd.f32 %v2459, %v2464
        %v2468 = vadd.f32 %v2460, %v2465
        %v2469 = vadd.f32 %v2461, %v2466
        %s2470 = sld [smem:[#allocation2 + $0x35]]
        %v2471 = vstv %s2470
        %v2472 = vmul.f32 %v2471, %v247
        %v2473 = vmul.f32 %v2471, %v248
        %v2474 = vmul.f32 %v2471, %v249
        %2478 = vrot.lane.b32.xlu0 %v2472, 127
        %v2479 = vpop.permute.xlu0 %2478
        %2480 = vrot.lane.b32.xlu0 %v2473, 127
        %v2481 = vpop.permute.xlu0 %2480
        %2482 = vrot.lane.b32.xlu0 %v2474, 127
        %v2483 = vpop.permute.xlu0 %2482
        %v2487 = vadd.f32 %v2467, %v2479
        %v2488 = vadd.f32 %v2468, %v2481
        %v2489 = vadd.f32 %v2469, %v2483
        %s2490 = sld [smem:[#allocation2 + $0x36]]
        %v2491 = vstv %s2490
        %v2492 = vmul.f32 %v2491, %v250
        %v2493 = vmul.f32 %v2491, %v251
        %v2494 = vmul.f32 %v2491, %v252
        %v2495 = vadd.f32 %v2487, %v2492
        %v2496 = vadd.f32 %v2488, %v2493
        %v2497 = vadd.f32 %v2489, %v2494
        %s2498 = sld [smem:[#allocation2 + $0x37]]
        %v2499 = vstv %s2498
        %v2500 = vmul.f32 %v2499, %v250
        %v2501 = vmul.f32 %v2499, %v251
        %v2502 = vmul.f32 %v2499, %v252
        %2506 = vrot.lane.b32.xlu0 %v2500, 127
        %v2507 = vpop.permute.xlu0 %2506
        %2508 = vrot.lane.b32.xlu0 %v2501, 127
        %v2509 = vpop.permute.xlu0 %2508
        %2510 = vrot.lane.b32.xlu0 %v2502, 127
        %v2511 = vpop.permute.xlu0 %2510
        %v2515 = vadd.f32 %v2495, %v2507
        %v2516 = vadd.f32 %v2496, %v2509
        %v2517 = vadd.f32 %v2497, %v2511
        %s2518 = sld [smem:[#allocation2 + $0x38]]
        %v2519 = vstv %s2518
        %v2520 = vmul.f32 %v2519, %v254
        %v2521 = vmul.f32 %v2519, %v255
        %v2522 = vmul.f32 %v2519, %v256
        %v2523 = vadd.f32 %v2515, %v2520
        %v2524 = vadd.f32 %v2516, %v2521
        %v2525 = vadd.f32 %v2517, %v2522
        %s2526 = sld [smem:[#allocation2 + $0x39]]
        %v2527 = vstv %s2526
        %v2528 = vmul.f32 %v2527, %v254
        %v2529 = vmul.f32 %v2527, %v255
        %v2530 = vmul.f32 %v2527, %v256
        %2534 = vrot.lane.b32.xlu0 %v2528, 127
        %v2535 = vpop.permute.xlu0 %2534
        %2536 = vrot.lane.b32.xlu0 %v2529, 127
        %v2537 = vpop.permute.xlu0 %2536
        %2538 = vrot.lane.b32.xlu0 %v2530, 127
        %v2539 = vpop.permute.xlu0 %2538
        %v2543 = vadd.f32 %v2523, %v2535
        %v2544 = vadd.f32 %v2524, %v2537
        %v2545 = vadd.f32 %v2525, %v2539
        %s2546 = sld [smem:[#allocation2 + $0x3a]]
        %v2547 = vstv %s2546
        %v2548 = vmul.f32 %v2547, %v257
        %v2549 = vmul.f32 %v2547, %v258
        %v2550 = vmul.f32 %v2547, %v259
        %v2551 = vadd.f32 %v2543, %v2548
        %v2552 = vadd.f32 %v2544, %v2549
        %v2553 = vadd.f32 %v2545, %v2550
        %s2554 = sld [smem:[#allocation2 + $0x3b]]
        %v2555 = vstv %s2554
        %v2556 = vmul.f32 %v2555, %v257
        %v2557 = vmul.f32 %v2555, %v258
        %v2558 = vmul.f32 %v2555, %v259
        %2562 = vrot.lane.b32.xlu0 %v2556, 127
        %v2563 = vpop.permute.xlu0 %2562
        %2564 = vrot.lane.b32.xlu0 %v2557, 127
        %v2565 = vpop.permute.xlu0 %2564
        %2566 = vrot.lane.b32.xlu0 %v2558, 127
        %v2567 = vpop.permute.xlu0 %2566
        %v2571 = vadd.f32 %v2551, %v2563
        %v2572 = vadd.f32 %v2552, %v2565
        %v2573 = vadd.f32 %v2553, %v2567
        %s2574 = sld [smem:[#allocation2 + $0x3c]]
        %v2575 = vstv %s2574
        %v2576 = vmul.f32 %v2575, %v261
        %v2577 = vmul.f32 %v2575, %v262
        %v2578 = vmul.f32 %v2575, %v263
        %v2579 = vadd.f32 %v2571, %v2576
        %v2580 = vadd.f32 %v2572, %v2577
        %v2581 = vadd.f32 %v2573, %v2578
        %s2582 = sld [smem:[#allocation2 + $0x3d]]
        %v2583 = vstv %s2582
        %v2584 = vmul.f32 %v2583, %v261
        %v2585 = vmul.f32 %v2583, %v262
        %v2586 = vmul.f32 %v2583, %v263
        %2590 = vrot.lane.b32.xlu0 %v2584, 127
        %v2591 = vpop.permute.xlu0 %2590
        %2592 = vrot.lane.b32.xlu0 %v2585, 127
        %v2593 = vpop.permute.xlu0 %2592
        %2594 = vrot.lane.b32.xlu0 %v2586, 127
        %v2595 = vpop.permute.xlu0 %2594
        %v2599 = vadd.f32 %v2579, %v2591
        %v2600 = vadd.f32 %v2580, %v2593
        %v2601 = vadd.f32 %v2581, %v2595
        %s2602 = sld [smem:[#allocation2 + $0x3e]]
        %v2603 = vstv %s2602
        %v2604 = vmul.f32 %v2603, %v264
        %v2605 = vmul.f32 %v2603, %v265
        %v2606 = vmul.f32 %v2603, %v266
        %v2607 = vadd.f32 %v2599, %v2604
        %v2608 = vadd.f32 %v2600, %v2605
        %v2609 = vadd.f32 %v2601, %v2606
        %s2610 = sld [smem:[#allocation2 + $0x3f]]
        %v2611 = vstv %s2610
        %v2612 = vmul.f32 %v2611, %v264
        %v2613 = vmul.f32 %v2611, %v265
        %v2614 = vmul.f32 %v2611, %v266
        %2618 = vrot.lane.b32.xlu0 %v2612, 127
        %v2619 = vpop.permute.xlu0 %2618
        %2620 = vrot.lane.b32.xlu0 %v2613, 127
        %v2621 = vpop.permute.xlu0 %2620
        %2622 = vrot.lane.b32.xlu0 %v2614, 127
        %v2623 = vpop.permute.xlu0 %2622
        %v2627 = vadd.f32 %v2607, %v2619
        %v2628 = vadd.f32 %v2608, %v2621
        %v2629 = vadd.f32 %v2609, %v2623
        %s2630 = sld [smem:[#allocation4 + $0x3]]
        %v2631 = vstv %s2630
        %v2632 = vadd.f32 %v2627, %v2631
        %v2633 = vadd.f32 %v2628, %v2631
        %v2634 = vadd.f32 %v2629, %v2631
        %v2635 = vmax.f32 %v2632, 0.0
        %v2636 = vmax.f32 %v2633, 0.0
        %v2637 = vmax.f32 %v2634, 0.0
        %v2639 = vsel %vm506, %v2637, 0
        %2641 = vmatprep.subr.mxu0 0.0
        %2642 = vmatpush1.msra.mxu0 %v2635
        %2643 = vmatprep.subr.mxu0 0.0
        %2644 = vmatpush1.msra.mxu0 %v2636
        %2645 = vmatprep.subr.mxu0 0.0
        %2646 = vmatpush1.msra.mxu0 %v2639
        %2647 = vmatprep.subr.mxu0 0.0
        %2648 = vmatpush1.msra.mxu0 0.0
        %2649 = vmatprep.subr.mxu0 0.0
        %2650 = vmatpush1.msra.mxu0 0.0
        %2651 = vmatprep.subr.mxu0 0.0
        %2652 = vmatpush1.msra.mxu0 0.0
        %2653 = vmatprep.subr.mxu0 0.0
        %2654 = vmatpush1.msra.mxu0 0.0
        %2655 = vmatprep.subr.mxu0 0.0
        %2656 = vmatpush1.msra.mxu0 0.0
        %2657 = vmatprep.subr.mxu0 0.0
        %2658 = vmatpush1.msra.mxu0 0.0
        %2659 = vmatprep.subr.mxu0 0.0
        %2660 = vmatpush1.msra.mxu0 0.0
        %2661 = vmatprep.subr.mxu0 0.0
        %2662 = vmatpush1.msra.mxu0 0.0
        %2663 = vmatprep.subr.mxu0 0.0
        %2664 = vmatpush1.msra.mxu0 0.0
        %2665 = vmatprep.subr.mxu0 0.0
        %2666 = vmatpush1.msra.mxu0 0.0
        %2667 = vmatprep.subr.mxu0 0.0
        %2668 = vmatpush1.msra.mxu0 0.0
        %2669 = vmatprep.subr.mxu0 0.0
        %2670 = vmatpush1.msra.mxu0 0.0
        %2671 = vmatprep.subr.mxu0 0.0
        %2672 = vmatpush1.msra.mxu0 0.0
        %2673 = vmatprep.subr.mxu0 0.0
        %2674 = vmatpush1.msra.mxu0 0.0
        %2675 = vmatprep.subr.mxu0 0.0
        %2676 = vmatpush1.msra.mxu0 0.0
        %2677 = vmatprep.subr.mxu0 0.0
        %2678 = vmatpush1.msra.mxu0 0.0
        %2679 = vmatprep.subr.mxu0 0.0
        %2680 = vmatpush1.msra.mxu0 0.0
        %2681 = vmatprep.subr.mxu0 0.0
        %2682 = vmatpush1.msra.mxu0 0.0
        %2683 = vmatprep.subr.mxu0 0.0
        %2684 = vmatpush1.msra.mxu0 0.0
        %2685 = vmatprep.subr.mxu0 0.0
        %2686 = vmatpush1.msra.mxu0 0.0
        %2687 = vmatprep.subr.mxu0 0.0
        %2688 = vmatpush1.msra.mxu0 0.0
        %2689 = vmatprep.subr.mxu0 0.0
        %2690 = vmatpush1.msra.mxu0 0.0
        %2691 = vmatprep.subr.mxu0 0.0
        %2692 = vmatpush1.msra.mxu0 0.0
        %2693 = vmatprep.subr.mxu0 0.0
        %2694 = vmatpush1.msra.mxu0 0.0
        %2695 = vmatprep.subr.mxu0 0.0
        %2696 = vmatpush1.msra.mxu0 0.0
        %2697 = vmatprep.subr.mxu0 0.0
        %2698 = vmatpush1.msra.mxu0 0.0
        %2699 = vmatprep.subr.mxu0 0.0
        %2700 = vmatpush1.msra.mxu0 0.0
        %2701 = vmatprep.subr.mxu0 0.0
        %2702 = vmatpush1.msra.mxu0 0.0
        %2703 = vmatprep.subr.mxu0 0.0
        %2704 = vmatpush1.msra.mxu0 0.0
        %2705 = vmatprep.mubr.f32.mxu0 0.0
        %2706 = vmatmul.mubr.f32.gmra.mrb[0].mxu0 %v501
        %v2707 = vpop.f32.mrb[0].mxu0
        %v2708 = vadd.f32 0.0, %v2707
        %v2709 = vpop.f32.mrb[0].mxu0
        %2710 = vmatprep.mubr.f32.mxu0 0.0
        %2711 = vmatmul.mubr.f32.gmra.mrb[0].mxu0 %v504
        %v2712 = vpop.f32.mrb[0].mxu0
        %v2713 = vadd.f32 0.0, %v2712
        %v2714 = vpop.f32.mrb[0].mxu0
        %2715 = vdwg.mxu0
        %2716 = vmatprep.subr.mxu0 0.0
        %2717 = vmatpush1.msra.mxu0 %v2635
        %2718 = vmatprep.subr.mxu0 0.0
        %2719 = vmatpush1.msra.mxu0 %v2636
        %2720 = vmatprep.subr.mxu0 0.0
        %2721 = vmatpush1.msra.mxu0 %v2639
        %2722 = vmatprep.subr.mxu0 0.0
        %2723 = vmatpush1.msra.mxu0 0.0
        %2724 = vmatprep.subr.mxu0 0.0
        %2725 = vmatpush1.msra.mxu0 0.0
        %2726 = vmatprep.subr.mxu0 0.0
        %2727 = vmatpush1.msra.mxu0 0.0
        %2728 = vmatprep.subr.mxu0 0.0
        %2729 = vmatpush1.msra.mxu0 0.0
        %2730 = vmatprep.subr.mxu0 0.0
        %2731 = vmatpush1.msra.mxu0 0.0
        %2732 = vmatprep.subr.mxu0 0.0
        %2733 = vmatpush1.msra.mxu0 0.0
        %2734 = vmatprep.subr.mxu0 0.0
        %2735 = vmatpush1.msra.mxu0 0.0
        %2736 = vmatprep.subr.mxu0 0.0
        %2737 = vmatpush1.msra.mxu0 0.0
        %2738 = vmatprep.subr.mxu0 0.0
        %2739 = vmatpush1.msra.mxu0 0.0
        %2740 = vmatprep.subr.mxu0 0.0
        %2741 = vmatpush1.msra.mxu0 0.0
        %2742 = vmatprep.subr.mxu0 0.0
        %2743 = vmatpush1.msra.mxu0 0.0
        %2744 = vmatprep.subr.mxu0 0.0
        %2745 = vmatpush1.msra.mxu0 0.0
        %2746 = vmatprep.subr.mxu0 0.0
        %2747 = vmatpush1.msra.mxu0 0.0
        %2748 = vmatprep.subr.mxu0 0.0
        %2749 = vmatpush1.msra.mxu0 0.0
        %2750 = vmatprep.subr.mxu0 0.0
        %2751 = vmatpush1.msra.mxu0 0.0
        %2752 = vmatprep.subr.mxu0 0.0
        %2753 = vmatpush1.msra.mxu0 0.0
        %2754 = vmatprep.subr.mxu0 0.0
        %2755 = vmatpush1.msra.mxu0 0.0
        %2756 = vmatprep.subr.mxu0 0.0
        %2757 = vmatpush1.msra.mxu0 0.0
        %2758 = vmatprep.subr.mxu0 0.0
        %2759 = vmatpush1.msra.mxu0 0.0
        %2760 = vmatprep.subr.mxu0 0.0
        %2761 = vmatpush1.msra.mxu0 0.0
        %2762 = vmatprep.subr.mxu0 0.0
        %2763 = vmatpush1.msra.mxu0 0.0
        %2764 = vmatprep.subr.mxu0 0.0
        %2765 = vmatpush1.msra.mxu0 0.0
        %2766 = vmatprep.subr.mxu0 0.0
        %2767 = vmatpush1.msra.mxu0 0.0
        %2768 = vmatprep.subr.mxu0 0.0
        %2769 = vmatpush1.msra.mxu0 0.0
        %2770 = vmatprep.subr.mxu0 0.0
        %2771 = vmatpush1.msra.mxu0 0.0
        %2772 = vmatprep.subr.mxu0 0.0
        %2773 = vmatpush1.msra.mxu0 0.0
        %2774 = vmatprep.subr.mxu0 0.0
        %2775 = vmatpush1.msra.mxu0 0.0
        %2776 = vmatprep.subr.mxu0 0.0
        %2777 = vmatpush1.msra.mxu0 0.0
        %2778 = vmatprep.subr.mxu0 0.0
        %2779 = vmatpush1.msra.mxu0 0.0
        %2780 = vmatprep.mubr.f32.mxu0 0.0
        %2781 = vmatmul.mubr.f32.gmra.mrb[0].mxu0 %v586
        %v2782 = vpop.f32.mrb[0].mxu0
        %v2783 = vadd.f32 0.0, %v2782
        %v2784 = vpop.f32.mrb[0].mxu0
        %2785 = vmatprep.mubr.f32.mxu0 0.0
        %2786 = vmatmul.mubr.f32.gmra.mrb[0].mxu0 %v589
        %v2787 = vpop.f32.mrb[0].mxu0
        %v2788 = vadd.f32 0.0, %v2787
        %v2789 = vpop.f32.mrb[0].mxu0
        %2790 = vdwg.mxu0
        %v2792 = vsel %vm499, %v2708, 0
        %v2795 = vsel %vm499, %v2713, 0
        %2797 = vmatprep.subr.mxu0 0.0
        %2798 = vmatpush1.msra.mxu0 %v228
        %2799 = vmatprep.subr.mxu0 0.0
        %2800 = vmatpush1.msra.mxu0 %v229
        %2801 = vmatprep.subr.mxu0 0.0
        %2802 = vmatpush1.msra.mxu0 %v673
        %2803 = vmatprep.subr.mxu0 0.0
        %2804 = vmatpush1.msra.mxu0 0.0
        %2805 = vmatprep.subr.mxu0 0.0
        %2806 = vmatpush1.msra.mxu0 0.0
        %2807 = vmatprep.subr.mxu0 0.0
        %2808 = vmatpush1.msra.mxu0 0.0
        %2809 = vmatprep.subr.mxu0 0.0
        %2810 = vmatpush1.msra.mxu0 0.0
        %2811 = vmatprep.subr.mxu0 0.0
        %2812 = vmatpush1.msra.mxu0 0.0
        %2813 = vmatprep.subr.mxu0 0.0
        %2814 = vmatpush1.msra.mxu0 0.0
        %2815 = vmatprep.subr.mxu0 0.0
        %2816 = vmatpush1.msra.mxu0 0.0
        %2817 = vmatprep.subr.mxu0 0.0
        %2818 = vmatpush1.msra.mxu0 0.0
        %2819 = vmatprep.subr.mxu0 0.0
        %2820 = vmatpush1.msra.mxu0 0.0
        %2821 = vmatprep.subr.mxu0 0.0
        %2822 = vmatpush1.msra.mxu0 0.0
        %2823 = vmatprep.subr.mxu0 0.0
        %2824 = vmatpush1.msra.mxu0 0.0
        %2825 = vmatprep.subr.mxu0 0.0
        %2826 = vmatpush1.msra.mxu0 0.0
        %2827 = vmatprep.subr.mxu0 0.0
        %2828 = vmatpush1.msra.mxu0 0.0
        %2829 = vmatprep.subr.mxu0 0.0
        %2830 = vmatpush1.msra.mxu0 0.0
        %2831 = vmatprep.subr.mxu0 0.0
        %2832 = vmatpush1.msra.mxu0 0.0
        %2833 = vmatprep.subr.mxu0 0.0
        %2834 = vmatpush1.msra.mxu0 0.0
        %2835 = vmatprep.subr.mxu0 0.0
        %2836 = vmatpush1.msra.mxu0 0.0
        %2837 = vmatprep.subr.mxu0 0.0
        %2838 = vmatpush1.msra.mxu0 0.0
        %2839 = vmatprep.subr.mxu0 0.0
        %2840 = vmatpush1.msra.mxu0 0.0
        %2841 = vmatprep.subr.mxu0 0.0
        %2842 = vmatpush1.msra.mxu0 0.0
        %2843 = vmatprep.subr.mxu0 0.0
        %2844 = vmatpush1.msra.mxu0 0.0
        %2845 = vmatprep.subr.mxu0 0.0
        %2846 = vmatpush1.msra.mxu0 0.0
        %2847 = vmatprep.subr.mxu0 0.0
        %2848 = vmatpush1.msra.mxu0 0.0
        %2849 = vmatprep.subr.mxu0 0.0
        %2850 = vmatpush1.msra.mxu0 0.0
        %2851 = vmatprep.subr.mxu0 0.0
        %2852 = vmatpush1.msra.mxu0 0.0
        %2853 = vmatprep.subr.mxu0 0.0
        %2854 = vmatpush1.msra.mxu0 0.0
        %2855 = vmatprep.subr.mxu0 0.0
        %2856 = vmatpush1.msra.mxu0 0.0
        %2857 = vmatprep.subr.mxu0 0.0
        %2858 = vmatpush1.msra.mxu0 0.0
        %2859 = vmatprep.subr.mxu0 0.0
        %2860 = vmatpush1.msra.mxu0 0.0
        %2861 = vmatprep.mubr.f32.mxu0 0.0
        %2862 = vmatmul.mubr.f32.gmra.mrb[0].mxu0 %v2792
        %v2863 = vpop.f32.mrb[0].mxu0
        %v2864 = vadd.f32 0.0, %v2863
        %v2865 = vpop.f32.mrb[0].mxu0
        %2866 = vmatprep.mubr.f32.mxu0 0.0
        %2867 = vmatmul.mubr.f32.gmra.mrb[0].mxu0 %v2795
        %v2868 = vpop.f32.mrb[0].mxu0
        %v2869 = vadd.f32 0.0, %v2868
        %v2870 = vpop.f32.mrb[0].mxu0
        %2871 = vdwg.mxu0
        %2872 = vmatprep.subr.mxu0 0.0
        %2873 = vmatpush1.msra.mxu0 %v237
        %2874 = vmatprep.subr.mxu0 0.0
        %2875 = vmatpush1.msra.mxu0 %v238
        %2876 = vmatprep.subr.mxu0 0.0
        %2877 = vmatpush1.msra.mxu0 %v751
        %2878 = vmatprep.subr.mxu0 0.0
        %2879 = vmatpush1.msra.mxu0 0.0
        %2880 = vmatprep.subr.mxu0 0.0
        %2881 = vmatpush1.msra.mxu0 0.0
        %2882 = vmatprep.subr.mxu0 0.0
        %2883 = vmatpush1.msra.mxu0 0.0
        %2884 = vmatprep.subr.mxu0 0.0
        %2885 = vmatpush1.msra.mxu0 0.0
        %2886 = vmatprep.subr.mxu0 0.0
        %2887 = vmatpush1.msra.mxu0 0.0
        %2888 = vmatprep.subr.mxu0 0.0
        %2889 = vmatpush1.msra.mxu0 0.0
        %2890 = vmatprep.subr.mxu0 0.0
        %2891 = vmatpush1.msra.mxu0 0.0
        %2892 = vmatprep.subr.mxu0 0.0
        %2893 = vmatpush1.msra.mxu0 0.0
        %2894 = vmatprep.subr.mxu0 0.0
        %2895 = vmatpush1.msra.mxu0 0.0
        %2896 = vmatprep.subr.mxu0 0.0
        %2897 = vmatpush1.msra.mxu0 0.0
        %2898 = vmatprep.subr.mxu0 0.0
        %2899 = vmatpush1.msra.mxu0 0.0
        %2900 = vmatprep.subr.mxu0 0.0
        %2901 = vmatpush1.msra.mxu0 0.0
        %2902 = vmatprep.subr.mxu0 0.0
        %2903 = vmatpush1.msra.mxu0 0.0
        %2904 = vmatprep.subr.mxu0 0.0
        %2905 = vmatpush1.msra.mxu0 0.0
        %2906 = vmatprep.subr.mxu0 0.0
        %2907 = vmatpush1.msra.mxu0 0.0
        %2908 = vmatprep.subr.mxu0 0.0
        %2909 = vmatpush1.msra.mxu0 0.0
        %2910 = vmatprep.subr.mxu0 0.0
        %2911 = vmatpush1.msra.mxu0 0.0
        %2912 = vmatprep.subr.mxu0 0.0
        %2913 = vmatpush1.msra.mxu0 0.0
        %2914 = vmatprep.subr.mxu0 0.0
        %2915 = vmatpush1.msra.mxu0 0.0
        %2916 = vmatprep.subr.mxu0 0.0
        %2917 = vmatpush1.msra.mxu0 0.0
        %2918 = vmatprep.subr.mxu0 0.0
        %2919 = vmatpush1.msra.mxu0 0.0
        %2920 = vmatprep.subr.mxu0 0.0
        %2921 = vmatpush1.msra.mxu0 0.0
        %2922 = vmatprep.subr.mxu0 0.0
        %2923 = vmatpush1.msra.mxu0 0.0
        %2924 = vmatprep.subr.mxu0 0.0
        %2925 = vmatpush1.msra.mxu0 0.0
        %2926 = vmatprep.subr.mxu0 0.0
        %2927 = vmatpush1.msra.mxu0 0.0
        %2928 = vmatprep.subr.mxu0 0.0
        %2929 = vmatpush1.msra.mxu0 0.0
        %2930 = vmatprep.subr.mxu0 0.0
        %2931 = vmatpush1.msra.mxu0 0.0
        %2932 = vmatprep.subr.mxu0 0.0
        %2933 = vmatpush1.msra.mxu0 0.0
        %2934 = vmatprep.subr.mxu0 0.0
        %2935 = vmatpush1.msra.mxu0 0.0
        %2936 = vmatprep.mubr.f32.mxu0 0.0
        %2937 = vmatmul.mubr.f32.gmra.mrb[0].mxu0 %v2792
        %v2938 = vpop.f32.mrb[0].mxu0
        %v2939 = vadd.f32 0.0, %v2938
        %v2940 = vpop.f32.mrb[0].mxu0
        %2941 = vmatprep.mubr.f32.mxu0 0.0
        %2942 = vmatmul.mubr.f32.gmra.mrb[0].mxu0 %v2795
        %v2943 = vpop.f32.mrb[0].mxu0
        %v2944 = vadd.f32 0.0, %v2943
        %v2945 = vpop.f32.mrb[0].mxu0
        %2946 = vdwg.mxu0
        %v2947 = vmax.f32 %v2864, %v2939
        %v2948 = vmax.f32 %v2869, %v2944
        %v2950 = vsel %vm499, %v2783, 0
        %v2953 = vsel %vm499, %v2788, 0
        %2955 = vmatprep.subr.mxu0 0.0
        %2956 = vmatpush1.msra.mxu0 %v228
        %2957 = vmatprep.subr.mxu0 0.0
        %2958 = vmatpush1.msra.mxu0 %v229
        %2959 = vmatprep.subr.mxu0 0.0
        %2960 = vmatpush1.msra.mxu0 %v673
        %2961 = vmatprep.subr.mxu0 0.0
        %2962 = vmatpush1.msra.mxu0 0.0
        %2963 = vmatprep.subr.mxu0 0.0
        %2964 = vmatpush1.msra.mxu0 0.0
        %2965 = vmatprep.subr.mxu0 0.0
        %2966 = vmatpush1.msra.mxu0 0.0
        %2967 = vmatprep.subr.mxu0 0.0
        %2968 = vmatpush1.msra.mxu0 0.0
        %2969 = vmatprep.subr.mxu0 0.0
        %2970 = vmatpush1.msra.mxu0 0.0
        %2971 = vmatprep.subr.mxu0 0.0
        %2972 = vmatpush1.msra.mxu0 0.0
        %2973 = vmatprep.subr.mxu0 0.0
        %2974 = vmatpush1.msra.mxu0 0.0
        %2975 = vmatprep.subr.mxu0 0.0
        %2976 = vmatpush1.msra.mxu0 0.0
        %2977 = vmatprep.subr.mxu0 0.0
        %2978 = vmatpush1.msra.mxu0 0.0
        %2979 = vmatprep.subr.mxu0 0.0
        %2980 = vmatpush1.msra.mxu0 0.0
        %2981 = vmatprep.subr.mxu0 0.0
        %2982 = vmatpush1.msra.mxu0 0.0
        %2983 = vmatprep.subr.mxu0 0.0
        %2984 = vmatpush1.msra.mxu0 0.0
        %2985 = vmatprep.subr.mxu0 0.0
        %2986 = vmatpush1.msra.mxu0 0.0
        %2987 = vmatprep.subr.mxu0 0.0
        %2988 = vmatpush1.msra.mxu0 0.0
        %2989 = vmatprep.subr.mxu0 0.0
        %2990 = vmatpush1.msra.mxu0 0.0
        %2991 = vmatprep.subr.mxu0 0.0
        %2992 = vmatpush1.msra.mxu0 0.0
        %2993 = vmatprep.subr.mxu0 0.0
        %2994 = vmatpush1.msra.mxu0 0.0
        %2995 = vmatprep.subr.mxu0 0.0
        %2996 = vmatpush1.msra.mxu0 0.0
        %2997 = vmatprep.subr.mxu0 0.0
        %2998 = vmatpush1.msra.mxu0 0.0
        %2999 = vmatprep.subr.mxu0 0.0
        %3000 = vmatpush1.msra.mxu0 0.0
        %3001 = vmatprep.subr.mxu0 0.0
        %3002 = vmatpush1.msra.mxu0 0.0
        %3003 = vmatprep.subr.mxu0 0.0
        %3004 = vmatpush1.msra.mxu0 0.0
        %3005 = vmatprep.subr.mxu0 0.0
        %3006 = vmatpush1.msra.mxu0 0.0
        %3007 = vmatprep.subr.mxu0 0.0
        %3008 = vmatpush1.msra.mxu0 0.0
        %3009 = vmatprep.subr.mxu0 0.0
        %3010 = vmatpush1.msra.mxu0 0.0
        %3011 = vmatprep.subr.mxu0 0.0
        %3012 = vmatpush1.msra.mxu0 0.0
        %3013 = vmatprep.subr.mxu0 0.0
        %3014 = vmatpush1.msra.mxu0 0.0
        %3015 = vmatprep.subr.mxu0 0.0
        %3016 = vmatpush1.msra.mxu0 0.0
        %3017 = vmatprep.subr.mxu0 0.0
        %3018 = vmatpush1.msra.mxu0 0.0
        %3019 = vmatprep.mubr.f32.mxu0 0.0
        %3020 = vmatmul.mubr.f32.gmra.mrb[0].mxu0 %v2950
        %v3021 = vpop.f32.mrb[0].mxu0
        %v3022 = vadd.f32 0.0, %v3021
        %v3023 = vpop.f32.mrb[0].mxu0
        %3024 = vmatprep.mubr.f32.mxu0 0.0
        %3025 = vmatmul.mubr.f32.gmra.mrb[0].mxu0 %v2953
        %v3026 = vpop.f32.mrb[0].mxu0
        %v3027 = vadd.f32 0.0, %v3026
        %v3028 = vpop.f32.mrb[0].mxu0
        %3029 = vdwg.mxu0
        %v3030 = vmax.f32 %v2947, %v3022
        %v3031 = vmax.f32 %v2948, %v3027
        %3032 = vmatprep.subr.mxu0 0.0
        %3033 = vmatpush1.msra.mxu0 %v237
        %3034 = vmatprep.subr.mxu0 0.0
        %3035 = vmatpush1.msra.mxu0 %v238
        %3036 = vmatprep.subr.mxu0 0.0
        %3037 = vmatpush1.msra.mxu0 %v751
        %3038 = vmatprep.subr.mxu0 0.0
        %3039 = vmatpush1.msra.mxu0 0.0
        %3040 = vmatprep.subr.mxu0 0.0
        %3041 = vmatpush1.msra.mxu0 0.0
        %3042 = vmatprep.subr.mxu0 0.0
        %3043 = vmatpush1.msra.mxu0 0.0
        %3044 = vmatprep.subr.mxu0 0.0
        %3045 = vmatpush1.msra.mxu0 0.0
        %3046 = vmatprep.subr.mxu0 0.0
        %3047 = vmatpush1.msra.mxu0 0.0
        %3048 = vmatprep.subr.mxu0 0.0
        %3049 = vmatpush1.msra.mxu0 0.0
        %3050 = vmatprep.subr.mxu0 0.0
        %3051 = vmatpush1.msra.mxu0 0.0
        %3052 = vmatprep.subr.mxu0 0.0
        %3053 = vmatpush1.msra.mxu0 0.0
        %3054 = vmatprep.subr.mxu0 0.0
        %3055 = vmatpush1.msra.mxu0 0.0
        %3056 = vmatprep.subr.mxu0 0.0
        %3057 = vmatpush1.msra.mxu0 0.0
        %3058 = vmatprep.subr.mxu0 0.0
        %3059 = vmatpush1.msra.mxu0 0.0
        %3060 = vmatprep.subr.mxu0 0.0
        %3061 = vmatpush1.msra.mxu0 0.0
        %3062 = vmatprep.subr.mxu0 0.0
        %3063 = vmatpush1.msra.mxu0 0.0
        %3064 = vmatprep.subr.mxu0 0.0
        %3065 = vmatpush1.msra.mxu0 0.0
        %3066 = vmatprep.subr.mxu0 0.0
        %3067 = vmatpush1.msra.mxu0 0.0
        %3068 = vmatprep.subr.mxu0 0.0
        %3069 = vmatpush1.msra.mxu0 0.0
        %3070 = vmatprep.subr.mxu0 0.0
        %3071 = vmatpush1.msra.mxu0 0.0
        %3072 = vmatprep.subr.mxu0 0.0
        %3073 = vmatpush1.msra.mxu0 0.0
        %3074 = vmatprep.subr.mxu0 0.0
        %3075 = vmatpush1.msra.mxu0 0.0
        %3076 = vmatprep.subr.mxu0 0.0
        %3077 = vmatpush1.msra.mxu0 0.0
        %3078 = vmatprep.subr.mxu0 0.0
        %3079 = vmatpush1.msra.mxu0 0.0
        %3080 = vmatprep.subr.mxu0 0.0
        %3081 = vmatpush1.msra.mxu0 0.0
        %3082 = vmatprep.subr.mxu0 0.0
        %3083 = vmatpush1.msra.mxu0 0.0
        %3084 = vmatprep.subr.mxu0 0.0
        %3085 = vmatpush1.msra.mxu0 0.0
        %3086 = vmatprep.subr.mxu0 0.0
        %3087 = vmatpush1.msra.mxu0 0.0
        %3088 = vmatprep.subr.mxu0 0.0
        %3089 = vmatpush1.msra.mxu0 0.0
        %3090 = vmatprep.subr.mxu0 0.0
        %3091 = vmatpush1.msra.mxu0 0.0
        %3092 = vmatprep.subr.mxu0 0.0
        %3093 = vmatpush1.msra.mxu0 0.0
        %3094 = vmatprep.subr.mxu0 0.0
        %3095 = vmatpush1.msra.mxu0 0.0
        %3096 = vmatprep.mubr.f32.mxu0 0.0
        %3097 = vmatmul.mubr.f32.gmra.mrb[0].mxu0 %v2950
        %v3098 = vpop.f32.mrb[0].mxu0
        %v3099 = vadd.f32 0.0, %v3098
        %v3100 = vpop.f32.mrb[0].mxu0
        %3101 = vmatprep.mubr.f32.mxu0 0.0
        %3102 = vmatmul.mubr.f32.gmra.mrb[0].mxu0 %v2953
        %v3103 = vpop.f32.mrb[0].mxu0
        %v3104 = vadd.f32 0.0, %v3103
        %v3105 = vpop.f32.mrb[0].mxu0
        %3106 = vdwg.mxu0
        %v3107 = vmax.f32 %v3030, %v3099
        %v3108 = vmax.f32 %v3031, %v3104
        %s3109 = scalar_lea.vmem %s197, 48
        %3110 = vst.msk [vmem:[%s3109] sm:$0xff] %vm990, %v3107
        %3111 = vst.msk [vmem:[%s3109 + $0x8] sm:$0x1] %vm992, %v3108
        %s3112 = sld [smem:[#allocation2 + $0x40]]
        %v3113 = vstv %s3112
        %v3114 = vmul.f32 %v3113, %v240
        %v3115 = vmul.f32 %v3113, %v241
        %v3116 = vmul.f32 %v3113, %v242
        %v3117 = vadd.f32 %v3114, 0.0
        %v3118 = vadd.f32 %v3115, 0.0
        %v3119 = vadd.f32 %v3116, 0.0
        %s3120 = sld [smem:[#allocation2 + $0x41]]
        %v3121 = vstv %s3120
        %v3122 = vmul.f32 %v3121, %v240
        %v3123 = vmul.f32 %v3121, %v241
        %v3124 = vmul.f32 %v3121, %v242
        %3128 = vrot.lane.b32.xlu0 %v3122, 127
        %v3129 = vpop.permute.xlu0 %3128
        %3130 = vrot.lane.b32.xlu0 %v3123, 127
        %v3131 = vpop.permute.xlu0 %3130
        %3132 = vrot.lane.b32.xlu0 %v3124, 127
        %v3133 = vpop.permute.xlu0 %3132
        %v3137 = vadd.f32 %v3117, %v3129
        %v3138 = vadd.f32 %v3118, %v3131
        %v3139 = vadd.f32 %v3119, %v3133
        %s3140 = sld [smem:[#allocation2 + $0x42]]
        %v3141 = vstv %s3140
        %v3142 = vmul.f32 %v3141, %v243
        %v3143 = vmul.f32 %v3141, %v244
        %v3144 = vmul.f32 %v3141, %v245
        %v3145 = vadd.f32 %v3137, %v3142
        %v3146 = vadd.f32 %v3138, %v3143
        %v3147 = vadd.f32 %v3139, %v3144
        %s3148 = sld [smem:[#allocation2 + $0x43]]
        %v3149 = vstv %s3148
        %v3150 = vmul.f32 %v3149, %v243
        %v3151 = vmul.f32 %v3149, %v244
        %v3152 = vmul.f32 %v3149, %v245
        %3156 = vrot.lane.b32.xlu0 %v3150, 127
        %v3157 = vpop.permute.xlu0 %3156
        %3158 = vrot.lane.b32.xlu0 %v3151, 127
        %v3159 = vpop.permute.xlu0 %3158
        %3160 = vrot.lane.b32.xlu0 %v3152, 127
        %v3161 = vpop.permute.xlu0 %3160
        %v3165 = vadd.f32 %v3145, %v3157
        %v3166 = vadd.f32 %v3146, %v3159
        %v3167 = vadd.f32 %v3147, %v3161
        %s3168 = sld [smem:[#allocation2 + $0x44]]
        %v3169 = vstv %s3168
        %v3170 = vmul.f32 %v3169, %v247
        %v3171 = vmul.f32 %v3169, %v248
        %v3172 = vmul.f32 %v3169, %v249
        %v3173 = vadd.f32 %v3165, %v3170
        %v3174 = vadd.f32 %v3166, %v3171
        %v3175 = vadd.f32 %v3167, %v3172
        %s3176 = sld [smem:[#allocation2 + $0x45]]
        %v3177 = vstv %s3176
        %v3178 = vmul.f32 %v3177, %v247
        %v3179 = vmul.f32 %v3177, %v248
        %v3180 = vmul.f32 %v3177, %v249
        %3184 = vrot.lane.b32.xlu0 %v3178, 127
        %v3185 = vpop.permute.xlu0 %3184
        %3186 = vrot.lane.b32.xlu0 %v3179, 127
        %v3187 = vpop.permute.xlu0 %3186
        %3188 = vrot.lane.b32.xlu0 %v3180, 127
        %v3189 = vpop.permute.xlu0 %3188
        %v3193 = vadd.f32 %v3173, %v3185
        %v3194 = vadd.f32 %v3174, %v3187
        %v3195 = vadd.f32 %v3175, %v3189
        %s3196 = sld [smem:[#allocation2 + $0x46]]
        %v3197 = vstv %s3196
        %v3198 = vmul.f32 %v3197, %v250
        %v3199 = vmul.f32 %v3197, %v251
        %v3200 = vmul.f32 %v3197, %v252
        %v3201 = vadd.f32 %v3193, %v3198
        %v3202 = vadd.f32 %v3194, %v3199
        %v3203 = vadd.f32 %v3195, %v3200
        %s3204 = sld [smem:[#allocation2 + $0x47]]
        %v3205 = vstv %s3204
        %v3206 = vmul.f32 %v3205, %v250
        %v3207 = vmul.f32 %v3205, %v251
        %v3208 = vmul.f32 %v3205, %v252
        %3212 = vrot.lane.b32.xlu0 %v3206, 127
        %v3213 = vpop.permute.xlu0 %3212
        %3214 = vrot.lane.b32.xlu0 %v3207, 127
        %v3215 = vpop.permute.xlu0 %3214
        %3216 = vrot.lane.b32.xlu0 %v3208, 127
        %v3217 = vpop.permute.xlu0 %3216
        %v3221 = vadd.f32 %v3201, %v3213
        %v3222 = vadd.f32 %v3202, %v3215
        %v3223 = vadd.f32 %v3203, %v3217
        %s3224 = sld [smem:[#allocation2 + $0x48]]
        %v3225 = vstv %s3224
        %v3226 = vmul.f32 %v3225, %v254
        %v3227 = vmul.f32 %v3225, %v255
        %v3228 = vmul.f32 %v3225, %v256
        %v3229 = vadd.f32 %v3221, %v3226
        %v3230 = vadd.f32 %v3222, %v3227
        %v3231 = vadd.f32 %v3223, %v3228
        %s3232 = sld [smem:[#allocation2 + $0x49]]
        %v3233 = vstv %s3232
        %v3234 = vmul.f32 %v3233, %v254
        %v3235 = vmul.f32 %v3233, %v255
        %v3236 = vmul.f32 %v3233, %v256
        %3240 = vrot.lane.b32.xlu0 %v3234, 127
        %v3241 = vpop.permute.xlu0 %3240
        %3242 = vrot.lane.b32.xlu0 %v3235, 127
        %v3243 = vpop.permute.xlu0 %3242
        %3244 = vrot.lane.b32.xlu0 %v3236, 127
        %v3245 = vpop.permute.xlu0 %3244
        %v3249 = vadd.f32 %v3229, %v3241
        %v3250 = vadd.f32 %v3230, %v3243
        %v3251 = vadd.f32 %v3231, %v3245
        %s3252 = sld [smem:[#allocation2 + $0x4a]]
        %v3253 = vstv %s3252
        %v3254 = vmul.f32 %v3253, %v257
        %v3255 = vmul.f32 %v3253, %v258
        %v3256 = vmul.f32 %v3253, %v259
        %v3257 = vadd.f32 %v3249, %v3254
        %v3258 = vadd.f32 %v3250, %v3255
        %v3259 = vadd.f32 %v3251, %v3256
        %s3260 = sld [smem:[#allocation2 + $0x4b]]
        %v3261 = vstv %s3260
        %v3262 = vmul.f32 %v3261, %v257
        %v3263 = vmul.f32 %v3261, %v258
        %v3264 = vmul.f32 %v3261, %v259
        %3268 = vrot.lane.b32.xlu0 %v3262, 127
        %v3269 = vpop.permute.xlu0 %3268
        %3270 = vrot.lane.b32.xlu0 %v3263, 127
        %v3271 = vpop.permute.xlu0 %3270
        %3272 = vrot.lane.b32.xlu0 %v3264, 127
        %v3273 = vpop.permute.xlu0 %3272
        %v3277 = vadd.f32 %v3257, %v3269
        %v3278 = vadd.f32 %v3258, %v3271
        %v3279 = vadd.f32 %v3259, %v3273
        %s3280 = sld [smem:[#allocation2 + $0x4c]]
        %v3281 = vstv %s3280
        %v3282 = vmul.f32 %v3281, %v261
        %v3283 = vmul.f32 %v3281, %v262
        %v3284 = vmul.f32 %v3281, %v263
        %v3285 = vadd.f32 %v3277, %v3282
        %v3286 = vadd.f32 %v3278, %v3283
        %v3287 = vadd.f32 %v3279, %v3284
        %s3288 = sld [smem:[#allocation2 + $0x4d]]
        %v3289 = vstv %s3288
        %v3290 = vmul.f32 %v3289, %v261
        %v3291 = vmul.f32 %v3289, %v262
        %v3292 = vmul.f32 %v3289, %v263
        %3296 = vrot.lane.b32.xlu0 %v3290, 127
        %v3297 = vpop.permute.xlu0 %3296
        %3298 = vrot.lane.b32.xlu0 %v3291, 127
        %v3299 = vpop.permute.xlu0 %3298
        %3300 = vrot.lane.b32.xlu0 %v3292, 127
        %v3301 = vpop.permute.xlu0 %3300
        %v3305 = vadd.f32 %v3285, %v3297
        %v3306 = vadd.f32 %v3286, %v3299
        %v3307 = vadd.f32 %v3287, %v3301
        %s3308 = sld [smem:[#allocation2 + $0x4e]]
        %v3309 = vstv %s3308
        %v3310 = vmul.f32 %v3309, %v264
        %v3311 = vmul.f32 %v3309, %v265
        %v3312 = vmul.f32 %v3309, %v266
        %v3313 = vadd.f32 %v3305, %v3310
        %v3314 = vadd.f32 %v3306, %v3311
        %v3315 = vadd.f32 %v3307, %v3312
        %s3316 = sld [smem:[#allocation2 + $0x4f]]
        %v3317 = vstv %s3316
        %v3318 = vmul.f32 %v3317, %v264
        %v3319 = vmul.f32 %v3317, %v265
        %v3320 = vmul.f32 %v3317, %v266
        %3324 = vrot.lane.b32.xlu0 %v3318, 127
        %v3325 = vpop.permute.xlu0 %3324
        %3326 = vrot.lane.b32.xlu0 %v3319, 127
        %v3327 = vpop.permute.xlu0 %3326
        %3328 = vrot.lane.b32.xlu0 %v3320, 127
        %v3329 = vpop.permute.xlu0 %3328
        %v3333 = vadd.f32 %v3313, %v3325
        %v3334 = vadd.f32 %v3314, %v3327
        %v3335 = vadd.f32 %v3315, %v3329
        %s3336 = sld [smem:[#allocation4 + $0x4]]
        %v3337 = vstv %s3336
        %v3338 = vadd.f32 %v3333, %v3337
        %v3339 = vadd.f32 %v3334, %v3337
        %v3340 = vadd.f32 %v3335, %v3337
        %v3341 = vmax.f32 %v3338, 0.0
        %v3342 = vmax.f32 %v3339, 0.0
        %v3343 = vmax.f32 %v3340, 0.0
        %v3345 = vsel %vm506, %v3343, 0
        %3347 = vmatprep.subr.mxu0 0.0
        %3348 = vmatpush1.msra.mxu0 %v3341
        %3349 = vmatprep.subr.mxu0 0.0
        %3350 = vmatpush1.msra.mxu0 %v3342
        %3351 = vmatprep.subr.mxu0 0.0
        %3352 = vmatpush1.msra.mxu0 %v3345
        %3353 = vmatprep.subr.mxu0 0.0
        %3354 = vmatpush1.msra.mxu0 0.0
        %3355 = vmatprep.subr.mxu0 0.0
        %3356 = vmatpush1.msra.mxu0 0.0
        %3357 = vmatprep.subr.mxu0 0.0
        %3358 = vmatpush1.msra.mxu0 0.0
        %3359 = vmatprep.subr.mxu0 0.0
        %3360 = vmatpush1.msra.mxu0 0.0
        %3361 = vmatprep.subr.mxu0 0.0
        %3362 = vmatpush1.msra.mxu0 0.0
        %3363 = vmatprep.subr.mxu0 0.0
        %3364 = vmatpush1.msra.mxu0 0.0
        %3365 = vmatprep.subr.mxu0 0.0
        %3366 = vmatpush1.msra.mxu0 0.0
        %3367 = vmatprep.subr.mxu0 0.0
        %3368 = vmatpush1.msra.mxu0 0.0
        %3369 = vmatprep.subr.mxu0 0.0
        %3370 = vmatpush1.msra.mxu0 0.0
        %3371 = vmatprep.subr.mxu0 0.0
        %3372 = vmatpush1.msra.mxu0 0.0
        %3373 = vmatprep.subr.mxu0 0.0
        %3374 = vmatpush1.msra.mxu0 0.0
        %3375 = vmatprep.subr.mxu0 0.0
        %3376 = vmatpush1.msra.mxu0 0.0
        %3377 = vmatprep.subr.mxu0 0.0
        %3378 = vmatpush1.msra.mxu0 0.0
        %3379 = vmatprep.subr.mxu0 0.0
        %3380 = vmatpush1.msra.mxu0 0.0
        %3381 = vmatprep.subr.mxu0 0.0
        %3382 = vmatpush1.msra.mxu0 0.0
        %3383 = vmatprep.subr.mxu0 0.0
        %3384 = vmatpush1.msra.mxu0 0.0
        %3385 = vmatprep.subr.mxu0 0.0
        %3386 = vmatpush1.msra.mxu0 0.0
        %3387 = vmatprep.subr.mxu0 0.0
        %3388 = vmatpush1.msra.mxu0 0.0
        %3389 = vmatprep.subr.mxu0 0.0
        %3390 = vmatpush1.msra.mxu0 0.0
        %3391 = vmatprep.subr.mxu0 0.0
        %3392 = vmatpush1.msra.mxu0 0.0
        %3393 = vmatprep.subr.mxu0 0.0
        %3394 = vmatpush1.msra.mxu0 0.0
        %3395 = vmatprep.subr.mxu0 0.0
        %3396 = vmatpush1.msra.mxu0 0.0
        %3397 = vmatprep.subr.mxu0 0.0
        %3398 = vmatpush1.msra.mxu0 0.0
        %3399 = vmatprep.subr.mxu0 0.0
        %3400 = vmatpush1.msra.mxu0 0.0
        %3401 = vmatprep.subr.mxu0 0.0
        %3402 = vmatpush1.msra.mxu0 0.0
        %3403 = vmatprep.subr.mxu0 0.0
        %3404 = vmatpush1.msra.mxu0 0.0
        %3405 = vmatprep.subr.mxu0 0.0
        %3406 = vmatpush1.msra.mxu0 0.0
        %3407 = vmatprep.subr.mxu0 0.0
        %3408 = vmatpush1.msra.mxu0 0.0
        %3409 = vmatprep.subr.mxu0 0.0
        %3410 = vmatpush1.msra.mxu0 0.0
        %3411 = vmatprep.mubr.f32.mxu0 0.0
        %3412 = vmatmul.mubr.f32.gmra.mrb[0].mxu0 %v501
        %v3413 = vpop.f32.mrb[0].mxu0
        %v3414 = vadd.f32 0.0, %v3413
        %v3415 = vpop.f32.mrb[0].mxu0
        %3416 = vmatprep.mubr.f32.mxu0 0.0
        %3417 = vmatmul.mubr.f32.gmra.mrb[0].mxu0 %v504
        %v3418 = vpop.f32.mrb[0].mxu0
        %v3419 = vadd.f32 0.0, %v3418
        %v3420 = vpop.f32.mrb[0].mxu0
        %3421 = vdwg.mxu0
        %3422 = vmatprep.subr.mxu0 0.0
        %3423 = vmatpush1.msra.mxu0 %v3341
        %3424 = vmatprep.subr.mxu0 0.0
        %3425 = vmatpush1.msra.mxu0 %v3342
        %3426 = vmatprep.subr.mxu0 0.0
        %3427 = vmatpush1.msra.mxu0 %v3345
        %3428 = vmatprep.subr.mxu0 0.0
        %3429 = vmatpush1.msra.mxu0 0.0
        %3430 = vmatprep.subr.mxu0 0.0
        %3431 = vmatpush1.msra.mxu0 0.0
        %3432 = vmatprep.subr.mxu0 0.0
        %3433 = vmatpush1.msra.mxu0 0.0
        %3434 = vmatprep.subr.mxu0 0.0
        %3435 = vmatpush1.msra.mxu0 0.0
        %3436 = vmatprep.subr.mxu0 0.0
        %3437 = vmatpush1.msra.mxu0 0.0
        %3438 = vmatprep.subr.mxu0 0.0
        %3439 = vmatpush1.msra.mxu0 0.0
        %3440 = vmatprep.subr.mxu0 0.0
        %3441 = vmatpush1.msra.mxu0 0.0
        %3442 = vmatprep.subr.mxu0 0.0
        %3443 = vmatpush1.msra.mxu0 0.0
        %3444 = vmatprep.subr.mxu0 0.0
        %3445 = vmatpush1.msra.mxu0 0.0
        %3446 = vmatprep.subr.mxu0 0.0
        %3447 = vmatpush1.msra.mxu0 0.0
        %3448 = vmatprep.subr.mxu0 0.0
        %3449 = vmatpush1.msra.mxu0 0.0
        %3450 = vmatprep.subr.mxu0 0.0
        %3451 = vmatpush1.msra.mxu0 0.0
        %3452 = vmatprep.subr.mxu0 0.0
        %3453 = vmatpush1.msra.mxu0 0.0
        %3454 = vmatprep.subr.mxu0 0.0
        %3455 = vmatpush1.msra.mxu0 0.0
        %3456 = vmatprep.subr.mxu0 0.0
        %3457 = vmatpush1.msra.mxu0 0.0
        %3458 = vmatprep.subr.mxu0 0.0
        %3459 = vmatpush1.msra.mxu0 0.0
        %3460 = vmatprep.subr.mxu0 0.0
        %3461 = vmatpush1.msra.mxu0 0.0
        %3462 = vmatprep.subr.mxu0 0.0
        %3463 = vmatpush1.msra.mxu0 0.0
        %3464 = vmatprep.subr.mxu0 0.0
        %3465 = vmatpush1.msra.mxu0 0.0
        %3466 = vmatprep.subr.mxu0 0.0
        %3467 = vmatpush1.msra.mxu0 0.0
        %3468 = vmatprep.subr.mxu0 0.0
        %3469 = vmatpush1.msra.mxu0 0.0
        %3470 = vmatprep.subr.mxu0 0.0
        %3471 = vmatpush1.msra.mxu0 0.0
        %3472 = vmatprep.subr.mxu0 0.0
        %3473 = vmatpush1.msra.mxu0 0.0
        %3474 = vmatprep.subr.mxu0 0.0
        %3475 = vmatpush1.msra.mxu0 0.0
        %3476 = vmatprep.subr.mxu0 0.0
        %3477 = vmatpush1.msra.mxu0 0.0
        %3478 = vmatprep.subr.mxu0 0.0
        %3479 = vmatpush1.msra.mxu0 0.0
        %3480 = vmatprep.subr.mxu0 0.0
        %3481 = vmatpush1.msra.mxu0 0.0
        %3482 = vmatprep.subr.mxu0 0.0
        %3483 = vmatpush1.msra.mxu0 0.0
        %3484 = vmatprep.subr.mxu0 0.0
        %3485 = vmatpush1.msra.mxu0 0.0
        %3486 = vmatprep.mubr.f32.mxu0 0.0
        %3487 = vmatmul.mubr.f32.gmra.mrb[0].mxu0 %v586
        %v3488 = vpop.f32.mrb[0].mxu0
        %v3489 = vadd.f32 0.0, %v3488
        %v3490 = vpop.f32.mrb[0].mxu0
        %3491 = vmatprep.mubr.f32.mxu0 0.0
        %3492 = vmatmul.mubr.f32.gmra.mrb[0].mxu0 %v589
        %v3493 = vpop.f32.mrb[0].mxu0
        %v3494 = vadd.f32 0.0, %v3493
        %v3495 = vpop.f32.mrb[0].mxu0
        %3496 = vdwg.mxu0
        %v3498 = vsel %vm499, %v3414, 0
        %v3501 = vsel %vm499, %v3419, 0
        %3503 = vmatprep.subr.mxu0 0.0
        %3504 = vmatpush1.msra.mxu0 %v228
        %3505 = vmatprep.subr.mxu0 0.0
        %3506 = vmatpush1.msra.mxu0 %v229
        %3507 = vmatprep.subr.mxu0 0.0
        %3508 = vmatpush1.msra.mxu0 %v673
        %3509 = vmatprep.subr.mxu0 0.0
        %3510 = vmatpush1.msra.mxu0 0.0
        %3511 = vmatprep.subr.mxu0 0.0
        %3512 = vmatpush1.msra.mxu0 0.0
        %3513 = vmatprep.subr.mxu0 0.0
        %3514 = vmatpush1.msra.mxu0 0.0
        %3515 = vmatprep.subr.mxu0 0.0
        %3516 = vmatpush1.msra.mxu0 0.0
        %3517 = vmatprep.subr.mxu0 0.0
        %3518 = vmatpush1.msra.mxu0 0.0
        %3519 = vmatprep.subr.mxu0 0.0
        %3520 = vmatpush1.msra.mxu0 0.0
        %3521 = vmatprep.subr.mxu0 0.0
        %3522 = vmatpush1.msra.mxu0 0.0
        %3523 = vmatprep.subr.mxu0 0.0
        %3524 = vmatpush1.msra.mxu0 0.0
        %3525 = vmatprep.subr.mxu0 0.0
        %3526 = vmatpush1.msra.mxu0 0.0
        %3527 = vmatprep.subr.mxu0 0.0
        %3528 = vmatpush1.msra.mxu0 0.0
        %3529 = vmatprep.subr.mxu0 0.0
        %3530 = vmatpush1.msra.mxu0 0.0
        %3531 = vmatprep.subr.mxu0 0.0
        %3532 = vmatpush1.msra.mxu0 0.0
        %3533 = vmatprep.subr.mxu0 0.0
        %3534 = vmatpush1.msra.mxu0 0.0
        %3535 = vmatprep.subr.mxu0 0.0
        %3536 = vmatpush1.msra.mxu0 0.0
        %3537 = vmatprep.subr.mxu0 0.0
        %3538 = vmatpush1.msra.mxu0 0.0
        %3539 = vmatprep.subr.mxu0 0.0
        %3540 = vmatpush1.msra.mxu0 0.0
        %3541 = vmatprep.subr.mxu0 0.0
        %3542 = vmatpush1.msra.mxu0 0.0
        %3543 = vmatprep.subr.mxu0 0.0
        %3544 = vmatpush1.msra.mxu0 0.0
        %3545 = vmatprep.subr.mxu0 0.0
        %3546 = vmatpush1.msra.mxu0 0.0
        %3547 = vmatprep.subr.mxu0 0.0
        %3548 = vmatpush1.msra.mxu0 0.0
        %3549 = vmatprep.subr.mxu0 0.0
        %3550 = vmatpush1.msra.mxu0 0.0
        %3551 = vmatprep.subr.mxu0 0.0
        %3552 = vmatpush1.msra.mxu0 0.0
        %3553 = vmatprep.subr.mxu0 0.0
        %3554 = vmatpush1.msra.mxu0 0.0
        %3555 = vmatprep.subr.mxu0 0.0
        %3556 = vmatpush1.msra.mxu0 0.0
        %3557 = vmatprep.subr.mxu0 0.0
        %3558 = vmatpush1.msra.mxu0 0.0
        %3559 = vmatprep.subr.mxu0 0.0
        %3560 = vmatpush1.msra.mxu0 0.0
        %3561 = vmatprep.subr.mxu0 0.0
        %3562 = vmatpush1.msra.mxu0 0.0
        %3563 = vmatprep.subr.mxu0 0.0
        %3564 = vmatpush1.msra.mxu0 0.0
        %3565 = vmatprep.subr.mxu0 0.0
        %3566 = vmatpush1.msra.mxu0 0.0
        %3567 = vmatprep.mubr.f32.mxu0 0.0
        %3568 = vmatmul.mubr.f32.gmra.mrb[0].mxu0 %v3498
        %v3569 = vpop.f32.mrb[0].mxu0
        %v3570 = vadd.f32 0.0, %v3569
        %v3571 = vpop.f32.mrb[0].mxu0
        %3572 = vmatprep.mubr.f32.mxu0 0.0
        %3573 = vmatmul.mubr.f32.gmra.mrb[0].mxu0 %v3501
        %v3574 = vpop.f32.mrb[0].mxu0
        %v3575 = vadd.f32 0.0, %v3574
        %v3576 = vpop.f32.mrb[0].mxu0
        %3577 = vdwg.mxu0
        %3578 = vmatprep.subr.mxu0 0.0
        %3579 = vmatpush1.msra.mxu0 %v237
        %3580 = vmatprep.subr.mxu0 0.0
        %3581 = vmatpush1.msra.mxu0 %v238
        %3582 = vmatprep.subr.mxu0 0.0
        %3583 = vmatpush1.msra.mxu0 %v751
        %3584 = vmatprep.subr.mxu0 0.0
        %3585 = vmatpush1.msra.mxu0 0.0
        %3586 = vmatprep.subr.mxu0 0.0
        %3587 = vmatpush1.msra.mxu0 0.0
        %3588 = vmatprep.subr.mxu0 0.0
        %3589 = vmatpush1.msra.mxu0 0.0
        %3590 = vmatprep.subr.mxu0 0.0
        %3591 = vmatpush1.msra.mxu0 0.0
        %3592 = vmatprep.subr.mxu0 0.0
        %3593 = vmatpush1.msra.mxu0 0.0
        %3594 = vmatprep.subr.mxu0 0.0
        %3595 = vmatpush1.msra.mxu0 0.0
        %3596 = vmatprep.subr.mxu0 0.0
        %3597 = vmatpush1.msra.mxu0 0.0
        %3598 = vmatprep.subr.mxu0 0.0
        %3599 = vmatpush1.msra.mxu0 0.0
        %3600 = vmatprep.subr.mxu0 0.0
        %3601 = vmatpush1.msra.mxu0 0.0
        %3602 = vmatprep.subr.mxu0 0.0
        %3603 = vmatpush1.msra.mxu0 0.0
        %3604 = vmatprep.subr.mxu0 0.0
        %3605 = vmatpush1.msra.mxu0 0.0
        %3606 = vmatprep.subr.mxu0 0.0
        %3607 = vmatpush1.msra.mxu0 0.0
        %3608 = vmatprep.subr.mxu0 0.0
        %3609 = vmatpush1.msra.mxu0 0.0
        %3610 = vmatprep.subr.mxu0 0.0
        %3611 = vmatpush1.msra.mxu0 0.0
        %3612 = vmatprep.subr.mxu0 0.0
        %3613 = vmatpush1.msra.mxu0 0.0
        %3614 = vmatprep.subr.mxu0 0.0
        %3615 = vmatpush1.msra.mxu0 0.0
        %3616 = vmatprep.subr.mxu0 0.0
        %3617 = vmatpush1.msra.mxu0 0.0
        %3618 = vmatprep.subr.mxu0 0.0
        %3619 = vmatpush1.msra.mxu0 0.0
        %3620 = vmatprep.subr.mxu0 0.0
        %3621 = vmatpush1.msra.mxu0 0.0
        %3622 = vmatprep.subr.mxu0 0.0
        %3623 = vmatpush1.msra.mxu0 0.0
        %3624 = vmatprep.subr.mxu0 0.0
        %3625 = vmatpush1.msra.mxu0 0.0
        %3626 = vmatprep.subr.mxu0 0.0
        %3627 = vmatpush1.msra.mxu0 0.0
        %3628 = vmatprep.subr.mxu0 0.0
        %3629 = vmatpush1.msra.mxu0 0.0
        %3630 = vmatprep.subr.mxu0 0.0
        %3631 = vmatpush1.msra.mxu0 0.0
        %3632 = vmatprep.subr.mxu0 0.0
        %3633 = vmatpush1.msra.mxu0 0.0
        %3634 = vmatprep.subr.mxu0 0.0
        %3635 = vmatpush1.msra.mxu0 0.0
        %3636 = vmatprep.subr.mxu0 0.0
        %3637 = vmatpush1.msra.mxu0 0.0
        %3638 = vmatprep.subr.mxu0 0.0
        %3639 = vmatpush1.msra.mxu0 0.0
        %3640 = vmatprep.subr.mxu0 0.0
        %3641 = vmatpush1.msra.mxu0 0.0
        %3642 = vmatprep.mubr.f32.mxu0 0.0
        %3643 = vmatmul.mubr.f32.gmra.mrb[0].mxu0 %v3498
        %v3644 = vpop.f32.mrb[0].mxu0
        %v3645 = vadd.f32 0.0, %v3644
        %v3646 = vpop.f32.mrb[0].mxu0
        %3647 = vmatprep.mubr.f32.mxu0 0.0
        %3648 = vmatmul.mubr.f32.gmra.mrb[0].mxu0 %v3501
        %v3649 = vpop.f32.mrb[0].mxu0
        %v3650 = vadd.f32 0.0, %v3649
        %v3651 = vpop.f32.mrb[0].mxu0
        %3652 = vdwg.mxu0
        %v3653 = vmax.f32 %v3570, %v3645
        %v3654 = vmax.f32 %v3575, %v3650
        %v3656 = vsel %vm499, %v3489, 0
        %v3659 = vsel %vm499, %v3494, 0
        %3661 = vmatprep.subr.mxu0 0.0
        %3662 = vmatpush1.msra.mxu0 %v228
        %3663 = vmatprep.subr.mxu0 0.0
        %3664 = vmatpush1.msra.mxu0 %v229
        %3665 = vmatprep.subr.mxu0 0.0
        %3666 = vmatpush1.msra.mxu0 %v673
        %3667 = vmatprep.subr.mxu0 0.0
        %3668 = vmatpush1.msra.mxu0 0.0
        %3669 = vmatprep.subr.mxu0 0.0
        %3670 = vmatpush1.msra.mxu0 0.0
        %3671 = vmatprep.subr.mxu0 0.0
        %3672 = vmatpush1.msra.mxu0 0.0
        %3673 = vmatprep.subr.mxu0 0.0
        %3674 = vmatpush1.msra.mxu0 0.0
        %3675 = vmatprep.subr.mxu0 0.0
        %3676 = vmatpush1.msra.mxu0 0.0
        %3677 = vmatprep.subr.mxu0 0.0
        %3678 = vmatpush1.msra.mxu0 0.0
        %3679 = vmatprep.subr.mxu0 0.0
        %3680 = vmatpush1.msra.mxu0 0.0
        %3681 = vmatprep.subr.mxu0 0.0
        %3682 = vmatpush1.msra.mxu0 0.0
        %3683 = vmatprep.subr.mxu0 0.0
        %3684 = vmatpush1.msra.mxu0 0.0
        %3685 = vmatprep.subr.mxu0 0.0
        %3686 = vmatpush1.msra.mxu0 0.0
        %3687 = vmatprep.subr.mxu0 0.0
        %3688 = vmatpush1.msra.mxu0 0.0
        %3689 = vmatprep.subr.mxu0 0.0
        %3690 = vmatpush1.msra.mxu0 0.0
        %3691 = vmatprep.subr.mxu0 0.0
        %3692 = vmatpush1.msra.mxu0 0.0
        %3693 = vmatprep.subr.mxu0 0.0
        %3694 = vmatpush1.msra.mxu0 0.0
        %3695 = vmatprep.subr.mxu0 0.0
        %3696 = vmatpush1.msra.mxu0 0.0
        %3697 = vmatprep.subr.mxu0 0.0
        %3698 = vmatpush1.msra.mxu0 0.0
        %3699 = vmatprep.subr.mxu0 0.0
        %3700 = vmatpush1.msra.mxu0 0.0
        %3701 = vmatprep.subr.mxu0 0.0
        %3702 = vmatpush1.msra.mxu0 0.0
        %3703 = vmatprep.subr.mxu0 0.0
        %3704 = vmatpush1.msra.mxu0 0.0
        %3705 = vmatprep.subr.mxu0 0.0
        %3706 = vmatpush1.msra.mxu0 0.0
        %3707 = vmatprep.subr.mxu0 0.0
        %3708 = vmatpush1.msra.mxu0 0.0
        %3709 = vmatprep.subr.mxu0 0.0
        %3710 = vmatpush1.msra.mxu0 0.0
        %3711 = vmatprep.subr.mxu0 0.0
        %3712 = vmatpush1.msra.mxu0 0.0
        %3713 = vmatprep.subr.mxu0 0.0
        %3714 = vmatpush1.msra.mxu0 0.0
        %3715 = vmatprep.subr.mxu0 0.0
        %3716 = vmatpush1.msra.mxu0 0.0
        %3717 = vmatprep.subr.mxu0 0.0
        %3718 = vmatpush1.msra.mxu0 0.0
        %3719 = vmatprep.subr.mxu0 0.0
        %3720 = vmatpush1.msra.mxu0 0.0
        %3721 = vmatprep.subr.mxu0 0.0
        %3722 = vmatpush1.msra.mxu0 0.0
        %3723 = vmatprep.subr.mxu0 0.0
        %3724 = vmatpush1.msra.mxu0 0.0
        %3725 = vmatprep.mubr.f32.mxu0 0.0
        %3726 = vmatmul.mubr.f32.gmra.mrb[0].mxu0 %v3656
        %v3727 = vpop.f32.mrb[0].mxu0
        %v3728 = vadd.f32 0.0, %v3727
        %v3729 = vpop.f32.mrb[0].mxu0
        %3730 = vmatprep.mubr.f32.mxu0 0.0
        %3731 = vmatmul.mubr.f32.gmra.mrb[0].mxu0 %v3659
        %v3732 = vpop.f32.mrb[0].mxu0
        %v3733 = vadd.f32 0.0, %v3732
        %v3734 = vpop.f32.mrb[0].mxu0
        %3735 = vdwg.mxu0
        %v3736 = vmax.f32 %v3653, %v3728
        %v3737 = vmax.f32 %v3654, %v3733
        %3738 = vmatprep.subr.mxu0 0.0
        %3739 = vmatpush1.msra.mxu0 %v237
        %3740 = vmatprep.subr.mxu0 0.0
        %3741 = vmatpush1.msra.mxu0 %v238
        %3742 = vmatprep.subr.mxu0 0.0
        %3743 = vmatpush1.msra.mxu0 %v751
        %3744 = vmatprep.subr.mxu0 0.0
        %3745 = vmatpush1.msra.mxu0 0.0
        %3746 = vmatprep.subr.mxu0 0.0
        %3747 = vmatpush1.msra.mxu0 0.0
        %3748 = vmatprep.subr.mxu0 0.0
        %3749 = vmatpush1.msra.mxu0 0.0
        %3750 = vmatprep.subr.mxu0 0.0
        %3751 = vmatpush1.msra.mxu0 0.0
        %3752 = vmatprep.subr.mxu0 0.0
        %3753 = vmatpush1.msra.mxu0 0.0
        %3754 = vmatprep.subr.mxu0 0.0
        %3755 = vmatpush1.msra.mxu0 0.0
        %3756 = vmatprep.subr.mxu0 0.0
        %3757 = vmatpush1.msra.mxu0 0.0
        %3758 = vmatprep.subr.mxu0 0.0
        %3759 = vmatpush1.msra.mxu0 0.0
        %3760 = vmatprep.subr.mxu0 0.0
        %3761 = vmatpush1.msra.mxu0 0.0
        %3762 = vmatprep.subr.mxu0 0.0
        %3763 = vmatpush1.msra.mxu0 0.0
        %3764 = vmatprep.subr.mxu0 0.0
        %3765 = vmatpush1.msra.mxu0 0.0
        %3766 = vmatprep.subr.mxu0 0.0
        %3767 = vmatpush1.msra.mxu0 0.0
        %3768 = vmatprep.subr.mxu0 0.0
        %3769 = vmatpush1.msra.mxu0 0.0
        %3770 = vmatprep.subr.mxu0 0.0
        %3771 = vmatpush1.msra.mxu0 0.0
        %3772 = vmatprep.subr.mxu0 0.0
        %3773 = vmatpush1.msra.mxu0 0.0
        %3774 = vmatprep.subr.mxu0 0.0
        %3775 = vmatpush1.msra.mxu0 0.0
        %3776 = vmatprep.subr.mxu0 0.0
        %3777 = vmatpush1.msra.mxu0 0.0
        %3778 = vmatprep.subr.mxu0 0.0
        %3779 = vmatpush1.msra.mxu0 0.0
        %3780 = vmatprep.subr.mxu0 0.0
        %3781 = vmatpush1.msra.mxu0 0.0
        %3782 = vmatprep.subr.mxu0 0.0
        %3783 = vmatpush1.msra.mxu0 0.0
        %3784 = vmatprep.subr.mxu0 0.0
        %3785 = vmatpush1.msra.mxu0 0.0
        %3786 = vmatprep.subr.mxu0 0.0
        %3787 = vmatpush1.msra.mxu0 0.0
        %3788 = vmatprep.subr.mxu0 0.0
        %3789 = vmatpush1.msra.mxu0 0.0
        %3790 = vmatprep.subr.mxu0 0.0
        %3791 = vmatpush1.msra.mxu0 0.0
        %3792 = vmatprep.subr.mxu0 0.0
        %3793 = vmatpush1.msra.mxu0 0.0
        %3794 = vmatprep.subr.mxu0 0.0
        %3795 = vmatpush1.msra.mxu0 0.0
        %3796 = vmatprep.subr.mxu0 0.0
        %3797 = vmatpush1.msra.mxu0 0.0
        %3798 = vmatprep.subr.mxu0 0.0
        %3799 = vmatpush1.msra.mxu0 0.0
        %3800 = vmatprep.subr.mxu0 0.0
        %3801 = vmatpush1.msra.mxu0 0.0
        %3802 = vmatprep.mubr.f32.mxu0 0.0
        %3803 = vmatmul.mubr.f32.gmra.mrb[0].mxu0 %v3656
        %v3804 = vpop.f32.mrb[0].mxu0
        %v3805 = vadd.f32 0.0, %v3804
        %v3806 = vpop.f32.mrb[0].mxu0
        %3807 = vmatprep.mubr.f32.mxu0 0.0
        %3808 = vmatmul.mubr.f32.gmra.mrb[0].mxu0 %v3659
        %v3809 = vpop.f32.mrb[0].mxu0
        %v3810 = vadd.f32 0.0, %v3809
        %v3811 = vpop.f32.mrb[0].mxu0
        %3812 = vdwg.mxu0
        %v3813 = vmax.f32 %v3736, %v3805
        %v3814 = vmax.f32 %v3737, %v3810
        %s3815 = scalar_lea.vmem %s197, 64
        %3816 = vst.msk [vmem:[%s3815] sm:$0xff] %vm990, %v3813
        %3817 = vst.msk [vmem:[%s3815 + $0x8] sm:$0x1] %vm992, %v3814
        %s3818 = sld [smem:[#allocation2 + $0x50]]
        %v3819 = vstv %s3818
        %v3820 = vmul.f32 %v3819, %v240
        %v3821 = vmul.f32 %v3819, %v241
        %v3822 = vmul.f32 %v3819, %v242
        %v3823 = vadd.f32 %v3820, 0.0
        %v3824 = vadd.f32 %v3821, 0.0
        %v3825 = vadd.f32 %v3822, 0.0
        %s3826 = sld [smem:[#allocation2 + $0x51]]
        %v3827 = vstv %s3826
        %v3828 = vmul.f32 %v3827, %v240
        %v3829 = vmul.f32 %v3827, %v241
        %v3830 = vmul.f32 %v3827, %v242
        %3834 = vrot.lane.b32.xlu0 %v3828, 127
        %v3835 = vpop.permute.xlu0 %3834
        %3836 = vrot.lane.b32.xlu0 %v3829, 127
        %v3837 = vpop.permute.xlu0 %3836
        %3838 = vrot.lane.b32.xlu0 %v3830, 127
        %v3839 = vpop.permute.xlu0 %3838
        %v3843 = vadd.f32 %v3823, %v3835
        %v3844 = vadd.f32 %v3824, %v3837
        %v3845 = vadd.f32 %v3825, %v3839
        %s3846 = sld [smem:[#allocation2 + $0x52]]
        %v3847 = vstv %s3846
        %v3848 = vmul.f32 %v3847, %v243
        %v3849 = vmul.f32 %v3847, %v244
        %v3850 = vmul.f32 %v3847, %v245
        %v3851 = vadd.f32 %v3843, %v3848
        %v3852 = vadd.f32 %v3844, %v3849
        %v3853 = vadd.f32 %v3845, %v3850
        %s3854 = sld [smem:[#allocation2 + $0x53]]
        %v3855 = vstv %s3854
        %v3856 = vmul.f32 %v3855, %v243
        %v3857 = vmul.f32 %v3855, %v244
        %v3858 = vmul.f32 %v3855, %v245
        %3862 = vrot.lane.b32.xlu0 %v3856, 127
        %v3863 = vpop.permute.xlu0 %3862
        %3864 = vrot.lane.b32.xlu0 %v3857, 127
        %v3865 = vpop.permute.xlu0 %3864
        %3866 = vrot.lane.b32.xlu0 %v3858, 127
        %v3867 = vpop.permute.xlu0 %3866
        %v3871 = vadd.f32 %v3851, %v3863
        %v3872 = vadd.f32 %v3852, %v3865
        %v3873 = vadd.f32 %v3853, %v3867
        %s3874 = sld [smem:[#allocation2 + $0x54]]
        %v3875 = vstv %s3874
        %v3876 = vmul.f32 %v3875, %v247
        %v3877 = vmul.f32 %v3875, %v248
        %v3878 = vmul.f32 %v3875, %v249
        %v3879 = vadd.f32 %v3871, %v3876
        %v3880 = vadd.f32 %v3872, %v3877
        %v3881 = vadd.f32 %v3873, %v3878
        %s3882 = sld [smem:[#allocation2 + $0x55]]
        %v3883 = vstv %s3882
        %v3884 = vmul.f32 %v3883, %v247
        %v3885 = vmul.f32 %v3883, %v248
        %v3886 = vmul.f32 %v3883, %v249
        %3890 = vrot.lane.b32.xlu0 %v3884, 127
        %v3891 = vpop.permute.xlu0 %3890
        %3892 = vrot.lane.b32.xlu0 %v3885, 127
        %v3893 = vpop.permute.xlu0 %3892
        %3894 = vrot.lane.b32.xlu0 %v3886, 127
        %v3895 = vpop.permute.xlu0 %3894
        %v3899 = vadd.f32 %v3879, %v3891
        %v3900 = vadd.f32 %v3880, %v3893
        %v3901 = vadd.f32 %v3881, %v3895
        %s3902 = sld [smem:[#allocation2 + $0x56]]
        %v3903 = vstv %s3902
        %v3904 = vmul.f32 %v3903, %v250
        %v3905 = vmul.f32 %v3903, %v251
        %v3906 = vmul.f32 %v3903, %v252
        %v3907 = vadd.f32 %v3899, %v3904
        %v3908 = vadd.f32 %v3900, %v3905
        %v3909 = vadd.f32 %v3901, %v3906
        %s3910 = sld [smem:[#allocation2 + $0x57]]
        %v3911 = vstv %s3910
        %v3912 = vmul.f32 %v3911, %v250
        %v3913 = vmul.f32 %v3911, %v251
        %v3914 = vmul.f32 %v3911, %v252
        %3918 = vrot.lane.b32.xlu0 %v3912, 127
        %v3919 = vpop.permute.xlu0 %3918
        %3920 = vrot.lane.b32.xlu0 %v3913, 127
        %v3921 = vpop.permute.xlu0 %3920
        %3922 = vrot.lane.b32.xlu0 %v3914, 127
        %v3923 = vpop.permute.xlu0 %3922
        %v3927 = vadd.f32 %v3907, %v3919
        %v3928 = vadd.f32 %v3908, %v3921
        %v3929 = vadd.f32 %v3909, %v3923
        %s3930 = sld [smem:[#allocation2 + $0x58]]
        %v3931 = vstv %s3930
        %v3932 = vmul.f32 %v3931, %v254
        %v3933 = vmul.f32 %v3931, %v255
        %v3934 = vmul.f32 %v3931, %v256
        %v3935 = vadd.f32 %v3927, %v3932
        %v3936 = vadd.f32 %v3928, %v3933
        %v3937 = vadd.f32 %v3929, %v3934
        %s3938 = sld [smem:[#allocation2 + $0x59]]
        %v3939 = vstv %s3938
        %v3940 = vmul.f32 %v3939, %v254
        %v3941 = vmul.f32 %v3939, %v255
        %v3942 = vmul.f32 %v3939, %v256
        %3946 = vrot.lane.b32.xlu0 %v3940, 127
        %v3947 = vpop.permute.xlu0 %3946
        %3948 = vrot.lane.b32.xlu0 %v3941, 127
        %v3949 = vpop.permute.xlu0 %3948
        %3950 = vrot.lane.b32.xlu0 %v3942, 127
        %v3951 = vpop.permute.xlu0 %3950
        %v3955 = vadd.f32 %v3935, %v3947
        %v3956 = vadd.f32 %v3936, %v3949
        %v3957 = vadd.f32 %v3937, %v3951
        %s3958 = sld [smem:[#allocation2 + $0x5a]]
        %v3959 = vstv %s3958
        %v3960 = vmul.f32 %v3959, %v257
        %v3961 = vmul.f32 %v3959, %v258
        %v3962 = vmul.f32 %v3959, %v259
        %v3963 = vadd.f32 %v3955, %v3960
        %v3964 = vadd.f32 %v3956, %v3961
        %v3965 = vadd.f32 %v3957, %v3962
        %s3966 = sld [smem:[#allocation2 + $0x5b]]
        %v3967 = vstv %s3966
        %v3968 = vmul.f32 %v3967, %v257
        %v3969 = vmul.f32 %v3967, %v258
        %v3970 = vmul.f32 %v3967, %v259
        %3974 = vrot.lane.b32.xlu0 %v3968, 127
        %v3975 = vpop.permute.xlu0 %3974
        %3976 = vrot.lane.b32.xlu0 %v3969, 127
        %v3977 = vpop.permute.xlu0 %3976
        %3978 = vrot.lane.b32.xlu0 %v3970, 127
        %v3979 = vpop.permute.xlu0 %3978
        %v3983 = vadd.f32 %v3963, %v3975
        %v3984 = vadd.f32 %v3964, %v3977
        %v3985 = vadd.f32 %v3965, %v3979
        %s3986 = sld [smem:[#allocation2 + $0x5c]]
        %v3987 = vstv %s3986
        %v3988 = vmul.f32 %v3987, %v261
        %v3989 = vmul.f32 %v3987, %v262
        %v3990 = vmul.f32 %v3987, %v263
        %v3991 = vadd.f32 %v3983, %v3988
        %v3992 = vadd.f32 %v3984, %v3989
        %v3993 = vadd.f32 %v3985, %v3990
        %s3994 = sld [smem:[#allocation2 + $0x5d]]
        %v3995 = vstv %s3994
        %v3996 = vmul.f32 %v3995, %v261
        %v3997 = vmul.f32 %v3995, %v262
        %v3998 = vmul.f32 %v3995, %v263
        %4002 = vrot.lane.b32.xlu0 %v3996, 127
        %v4003 = vpop.permute.xlu0 %4002
        %4004 = vrot.lane.b32.xlu0 %v3997, 127
        %v4005 = vpop.permute.xlu0 %4004
        %4006 = vrot.lane.b32.xlu0 %v3998, 127
        %v4007 = vpop.permute.xlu0 %4006
        %v4011 = vadd.f32 %v3991, %v4003
        %v4012 = vadd.f32 %v3992, %v4005
        %v4013 = vadd.f32 %v3993, %v4007
        %s4014 = sld [smem:[#allocation2 + $0x5e]]
        %v4015 = vstv %s4014
        %v4016 = vmul.f32 %v4015, %v264
        %v4017 = vmul.f32 %v4015, %v265
        %v4018 = vmul.f32 %v4015, %v266
        %v4019 = vadd.f32 %v4011, %v4016
        %v4020 = vadd.f32 %v4012, %v4017
        %v4021 = vadd.f32 %v4013, %v4018
        %s4022 = sld [smem:[#allocation2 + $0x5f]]
        %v4023 = vstv %s4022
        %v4024 = vmul.f32 %v4023, %v264
        %v4025 = vmul.f32 %v4023, %v265
        %v4026 = vmul.f32 %v4023, %v266
        %4030 = vrot.lane.b32.xlu0 %v4024, 127
        %v4031 = vpop.permute.xlu0 %4030
        %4032 = vrot.lane.b32.xlu0 %v4025, 127
        %v4033 = vpop.permute.xlu0 %4032
        %4034 = vrot.lane.b32.xlu0 %v4026, 127
        %v4035 = vpop.permute.xlu0 %4034
        %v4039 = vadd.f32 %v4019, %v4031
        %v4040 = vadd.f32 %v4020, %v4033
        %v4041 = vadd.f32 %v4021, %v4035
        %s4042 = sld [smem:[#allocation4 + $0x5]]
        %v4043 = vstv %s4042
        %v4044 = vadd.f32 %v4039, %v4043
        %v4045 = vadd.f32 %v4040, %v4043
        %v4046 = vadd.f32 %v4041, %v4043
        %v4047 = vmax.f32 %v4044, 0.0
        %v4048 = vmax.f32 %v4045, 0.0
        %v4049 = vmax.f32 %v4046, 0.0
        %v4051 = vsel %vm506, %v4049, 0
        %4053 = vmatprep.subr.mxu0 0.0
        %4054 = vmatpush1.msra.mxu0 %v4047
        %4055 = vmatprep.subr.mxu0 0.0
        %4056 = vmatpush1.msra.mxu0 %v4048
        %4057 = vmatprep.subr.mxu0 0.0
        %4058 = vmatpush1.msra.mxu0 %v4051
        %4059 = vmatprep.subr.mxu0 0.0
        %4060 = vmatpush1.msra.mxu0 0.0
        %4061 = vmatprep.subr.mxu0 0.0
        %4062 = vmatpush1.msra.mxu0 0.0
        %4063 = vmatprep.subr.mxu0 0.0
        %4064 = vmatpush1.msra.mxu0 0.0
        %4065 = vmatprep.subr.mxu0 0.0
        %4066 = vmatpush1.msra.mxu0 0.0
        %4067 = vmatprep.subr.mxu0 0.0
        %4068 = vmatpush1.msra.mxu0 0.0
        %4069 = vmatprep.subr.mxu0 0.0
        %4070 = vmatpush1.msra.mxu0 0.0
        %4071 = vmatprep.subr.mxu0 0.0
        %4072 = vmatpush1.msra.mxu0 0.0
        %4073 = vmatprep.subr.mxu0 0.0
        %4074 = vmatpush1.msra.mxu0 0.0
        %4075 = vmatprep.subr.mxu0 0.0
        %4076 = vmatpush1.msra.mxu0 0.0
        %4077 = vmatprep.subr.mxu0 0.0
        %4078 = vmatpush1.msra.mxu0 0.0
        %4079 = vmatprep.subr.mxu0 0.0
        %4080 = vmatpush1.msra.mxu0 0.0
        %4081 = vmatprep.subr.mxu0 0.0
        %4082 = vmatpush1.msra.mxu0 0.0
        %4083 = vmatprep.subr.mxu0 0.0
        %4084 = vmatpush1.msra.mxu0 0.0
        %4085 = vmatprep.subr.mxu0 0.0
        %4086 = vmatpush1.msra.mxu0 0.0
        %4087 = vmatprep.subr.mxu0 0.0
        %4088 = vmatpush1.msra.mxu0 0.0
        %4089 = vmatprep.subr.mxu0 0.0
        %4090 = vmatpush1.msra.mxu0 0.0
        %4091 = vmatprep.subr.mxu0 0.0
        %4092 = vmatpush1.msra.mxu0 0.0
        %4093 = vmatprep.subr.mxu0 0.0
        %4094 = vmatpush1.msra.mxu0 0.0
        %4095 = vmatprep.subr.mxu0 0.0
        %4096 = vmatpush1.msra.mxu0 0.0
        %4097 = vmatprep.subr.mxu0 0.0
        %4098 = vmatpush1.msra.mxu0 0.0
        %4099 = vmatprep.subr.mxu0 0.0
        %4100 = vmatpush1.msra.mxu0 0.0
        %4101 = vmatprep.subr.mxu0 0.0
        %4102 = vmatpush1.msra.mxu0 0.0
        %4103 = vmatprep.subr.mxu0 0.0
        %4104 = vmatpush1.msra.mxu0 0.0
        %4105 = vmatprep.subr.mxu0 0.0
        %4106 = vmatpush1.msra.mxu0 0.0
        %4107 = vmatprep.subr.mxu0 0.0
        %4108 = vmatpush1.msra.mxu0 0.0
        %4109 = vmatprep.subr.mxu0 0.0
        %4110 = vmatpush1.msra.mxu0 0.0
        %4111 = vmatprep.subr.mxu0 0.0
        %4112 = vmatpush1.msra.mxu0 0.0
        %4113 = vmatprep.subr.mxu0 0.0
        %4114 = vmatpush1.msra.mxu0 0.0
        %4115 = vmatprep.subr.mxu0 0.0
        %4116 = vmatpush1.msra.mxu0 0.0
        %4117 = vmatprep.mubr.f32.mxu0 0.0
        %4118 = vmatmul.mubr.f32.gmra.mrb[0].mxu0 %v501
        %v4119 = vpop.f32.mrb[0].mxu0
        %v4120 = vadd.f32 0.0, %v4119
        %v4121 = vpop.f32.mrb[0].mxu0
        %4122 = vmatprep.mubr.f32.mxu0 0.0
        %4123 = vmatmul.mubr.f32.gmra.mrb[0].mxu0 %v504
        %v4124 = vpop.f32.mrb[0].mxu0
        %v4125 = vadd.f32 0.0, %v4124
        %v4126 = vpop.f32.mrb[0].mxu0
        %4127 = vdwg.mxu0
        %4128 = vmatprep.subr.mxu0 0.0
        %4129 = vmatpush1.msra.mxu0 %v4047
        %4130 = vmatprep.subr.mxu0 0.0
        %4131 = vmatpush1.msra.mxu0 %v4048
        %4132 = vmatprep.subr.mxu0 0.0
        %4133 = vmatpush1.msra.mxu0 %v4051
        %4134 = vmatprep.subr.mxu0 0.0
        %4135 = vmatpush1.msra.mxu0 0.0
        %4136 = vmatprep.subr.mxu0 0.0
        %4137 = vmatpush1.msra.mxu0 0.0
        %4138 = vmatprep.subr.mxu0 0.0
        %4139 = vmatpush1.msra.mxu0 0.0
        %4140 = vmatprep.subr.mxu0 0.0
        %4141 = vmatpush1.msra.mxu0 0.0
        %4142 = vmatprep.subr.mxu0 0.0
        %4143 = vmatpush1.msra.mxu0 0.0
        %4144 = vmatprep.subr.mxu0 0.0
        %4145 = vmatpush1.msra.mxu0 0.0
        %4146 = vmatprep.subr.mxu0 0.0
        %4147 = vmatpush1.msra.mxu0 0.0
        %4148 = vmatprep.subr.mxu0 0.0
        %4149 = vmatpush1.msra.mxu0 0.0
        %4150 = vmatprep.subr.mxu0 0.0
        %4151 = vmatpush1.msra.mxu0 0.0
        %4152 = vmatprep.subr.mxu0 0.0
        %4153 = vmatpush1.msra.mxu0 0.0
        %4154 = vmatprep.subr.mxu0 0.0
        %4155 = vmatpush1.msra.mxu0 0.0
        %4156 = vmatprep.subr.mxu0 0.0
        %4157 = vmatpush1.msra.mxu0 0.0
        %4158 = vmatprep.subr.mxu0 0.0
        %4159 = vmatpush1.msra.mxu0 0.0
        %4160 = vmatprep.subr.mxu0 0.0
        %4161 = vmatpush1.msra.mxu0 0.0
        %4162 = vmatprep.subr.mxu0 0.0
        %4163 = vmatpush1.msra.mxu0 0.0
        %4164 = vmatprep.subr.mxu0 0.0
        %4165 = vmatpush1.msra.mxu0 0.0
        %4166 = vmatprep.subr.mxu0 0.0
        %4167 = vmatpush1.msra.mxu0 0.0
        %4168 = vmatprep.subr.mxu0 0.0
        %4169 = vmatpush1.msra.mxu0 0.0
        %4170 = vmatprep.subr.mxu0 0.0
        %4171 = vmatpush1.msra.mxu0 0.0
        %4172 = vmatprep.subr.mxu0 0.0
        %4173 = vmatpush1.msra.mxu0 0.0
        %4174 = vmatprep.subr.mxu0 0.0
        %4175 = vmatpush1.msra.mxu0 0.0
        %4176 = vmatprep.subr.mxu0 0.0
        %4177 = vmatpush1.msra.mxu0 0.0
        %4178 = vmatprep.subr.mxu0 0.0
        %4179 = vmatpush1.msra.mxu0 0.0
        %4180 = vmatprep.subr.mxu0 0.0
        %4181 = vmatpush1.msra.mxu0 0.0
        %4182 = vmatprep.subr.mxu0 0.0
        %4183 = vmatpush1.msra.mxu0 0.0
        %4184 = vmatprep.subr.mxu0 0.0
        %4185 = vmatpush1.msra.mxu0 0.0
        %4186 = vmatprep.subr.mxu0 0.0
        %4187 = vmatpush1.msra.mxu0 0.0
        %4188 = vmatprep.subr.mxu0 0.0
        %4189 = vmatpush1.msra.mxu0 0.0
        %4190 = vmatprep.subr.mxu0 0.0
        %4191 = vmatpush1.msra.mxu0 0.0
        %4192 = vmatprep.mubr.f32.mxu0 0.0
        %4193 = vmatmul.mubr.f32.gmra.mrb[0].mxu0 %v586
        %v4194 = vpop.f32.mrb[0].mxu0
        %v4195 = vadd.f32 0.0, %v4194
        %v4196 = vpop.f32.mrb[0].mxu0
        %4197 = vmatprep.mubr.f32.mxu0 0.0
        %4198 = vmatmul.mubr.f32.gmra.mrb[0].mxu0 %v589
        %v4199 = vpop.f32.mrb[0].mxu0
        %v4200 = vadd.f32 0.0, %v4199
        %v4201 = vpop.f32.mrb[0].mxu0
        %4202 = vdwg.mxu0
        %v4204 = vsel %vm499, %v4120, 0
        %v4207 = vsel %vm499, %v4125, 0
        %4209 = vmatprep.subr.mxu0 0.0
        %4210 = vmatpush1.msra.mxu0 %v228
        %4211 = vmatprep.subr.mxu0 0.0
        %4212 = vmatpush1.msra.mxu0 %v229
        %4213 = vmatprep.subr.mxu0 0.0
        %4214 = vmatpush1.msra.mxu0 %v673
        %4215 = vmatprep.subr.mxu0 0.0
        %4216 = vmatpush1.msra.mxu0 0.0
        %4217 = vmatprep.subr.mxu0 0.0
        %4218 = vmatpush1.msra.mxu0 0.0
        %4219 = vmatprep.subr.mxu0 0.0
        %4220 = vmatpush1.msra.mxu0 0.0
        %4221 = vmatprep.subr.mxu0 0.0
        %4222 = vmatpush1.msra.mxu0 0.0
        %4223 = vmatprep.subr.mxu0 0.0
        %4224 = vmatpush1.msra.mxu0 0.0
        %4225 = vmatprep.subr.mxu0 0.0
        %4226 = vmatpush1.msra.mxu0 0.0
        %4227 = vmatprep.subr.mxu0 0.0
        %4228 = vmatpush1.msra.mxu0 0.0
        %4229 = vmatprep.subr.mxu0 0.0
        %4230 = vmatpush1.msra.mxu0 0.0
        %4231 = vmatprep.subr.mxu0 0.0
        %4232 = vmatpush1.msra.mxu0 0.0
        %4233 = vmatprep.subr.mxu0 0.0
        %4234 = vmatpush1.msra.mxu0 0.0
        %4235 = vmatprep.subr.mxu0 0.0
        %4236 = vmatpush1.msra.mxu0 0.0
        %4237 = vmatprep.subr.mxu0 0.0
        %4238 = vmatpush1.msra.mxu0 0.0
        %4239 = vmatprep.subr.mxu0 0.0
        %4240 = vmatpush1.msra.mxu0 0.0
        %4241 = vmatprep.subr.mxu0 0.0
        %4242 = vmatpush1.msra.mxu0 0.0
        %4243 = vmatprep.subr.mxu0 0.0
        %4244 = vmatpush1.msra.mxu0 0.0
        %4245 = vmatprep.subr.mxu0 0.0
        %4246 = vmatpush1.msra.mxu0 0.0
        %4247 = vmatprep.subr.mxu0 0.0
        %4248 = vmatpush1.msra.mxu0 0.0
        %4249 = vmatprep.subr.mxu0 0.0
        %4250 = vmatpush1.msra.mxu0 0.0
        %4251 = vmatprep.subr.mxu0 0.0
        %4252 = vmatpush1.msra.mxu0 0.0
        %4253 = vmatprep.subr.mxu0 0.0
        %4254 = vmatpush1.msra.mxu0 0.0
        %4255 = vmatprep.subr.mxu0 0.0
        %4256 = vmatpush1.msra.mxu0 0.0
        %4257 = vmatprep.subr.mxu0 0.0
        %4258 = vmatpush1.msra.mxu0 0.0
        %4259 = vmatprep.subr.mxu0 0.0
        %4260 = vmatpush1.msra.mxu0 0.0
        %4261 = vmatprep.subr.mxu0 0.0
        %4262 = vmatpush1.msra.mxu0 0.0
        %4263 = vmatprep.subr.mxu0 0.0
        %4264 = vmatpush1.msra.mxu0 0.0
        %4265 = vmatprep.subr.mxu0 0.0
        %4266 = vmatpush1.msra.mxu0 0.0
        %4267 = vmatprep.subr.mxu0 0.0
        %4268 = vmatpush1.msra.mxu0 0.0
        %4269 = vmatprep.subr.mxu0 0.0
        %4270 = vmatpush1.msra.mxu0 0.0
        %4271 = vmatprep.subr.mxu0 0.0
        %4272 = vmatpush1.msra.mxu0 0.0
        %4273 = vmatprep.mubr.f32.mxu0 0.0
        %4274 = vmatmul.mubr.f32.gmra.mrb[0].mxu0 %v4204
        %v4275 = vpop.f32.mrb[0].mxu0
        %v4276 = vadd.f32 0.0, %v4275
        %v4277 = vpop.f32.mrb[0].mxu0
        %4278 = vmatprep.mubr.f32.mxu0 0.0
        %4279 = vmatmul.mubr.f32.gmra.mrb[0].mxu0 %v4207
        %v4280 = vpop.f32.mrb[0].mxu0
        %v4281 = vadd.f32 0.0, %v4280
        %v4282 = vpop.f32.mrb[0].mxu0
        %4283 = vdwg.mxu0
        %4284 = vmatprep.subr.mxu0 0.0
        %4285 = vmatpush1.msra.mxu0 %v237
        %4286 = vmatprep.subr.mxu0 0.0
        %4287 = vmatpush1.msra.mxu0 %v238
        %4288 = vmatprep.subr.mxu0 0.0
        %4289 = vmatpush1.msra.mxu0 %v751
        %4290 = vmatprep.subr.mxu0 0.0
        %4291 = vmatpush1.msra.mxu0 0.0
        %4292 = vmatprep.subr.mxu0 0.0
        %4293 = vmatpush1.msra.mxu0 0.0
        %4294 = vmatprep.subr.mxu0 0.0
        %4295 = vmatpush1.msra.mxu0 0.0
        %4296 = vmatprep.subr.mxu0 0.0
        %4297 = vmatpush1.msra.mxu0 0.0
        %4298 = vmatprep.subr.mxu0 0.0
        %4299 = vmatpush1.msra.mxu0 0.0
        %4300 = vmatprep.subr.mxu0 0.0
        %4301 = vmatpush1.msra.mxu0 0.0
        %4302 = vmatprep.subr.mxu0 0.0
        %4303 = vmatpush1.msra.mxu0 0.0
        %4304 = vmatprep.subr.mxu0 0.0
        %4305 = vmatpush1.msra.mxu0 0.0
        %4306 = vmatprep.subr.mxu0 0.0
        %4307 = vmatpush1.msra.mxu0 0.0
        %4308 = vmatprep.subr.mxu0 0.0
        %4309 = vmatpush1.msra.mxu0 0.0
        %4310 = vmatprep.subr.mxu0 0.0
        %4311 = vmatpush1.msra.mxu0 0.0
        %4312 = vmatprep.subr.mxu0 0.0
        %4313 = vmatpush1.msra.mxu0 0.0
        %4314 = vmatprep.subr.mxu0 0.0
        %4315 = vmatpush1.msra.mxu0 0.0
        %4316 = vmatprep.subr.mxu0 0.0
        %4317 = vmatpush1.msra.mxu0 0.0
        %4318 = vmatprep.subr.mxu0 0.0
        %4319 = vmatpush1.msra.mxu0 0.0
        %4320 = vmatprep.subr.mxu0 0.0
        %4321 = vmatpush1.msra.mxu0 0.0
        %4322 = vmatprep.subr.mxu0 0.0
        %4323 = vmatpush1.msra.mxu0 0.0
        %4324 = vmatprep.subr.mxu0 0.0
        %4325 = vmatpush1.msra.mxu0 0.0
        %4326 = vmatprep.subr.mxu0 0.0
        %4327 = vmatpush1.msra.mxu0 0.0
        %4328 = vmatprep.subr.mxu0 0.0
        %4329 = vmatpush1.msra.mxu0 0.0
        %4330 = vmatprep.subr.mxu0 0.0
        %4331 = vmatpush1.msra.mxu0 0.0
        %4332 = vmatprep.subr.mxu0 0.0
        %4333 = vmatpush1.msra.mxu0 0.0
        %4334 = vmatprep.subr.mxu0 0.0
        %4335 = vmatpush1.msra.mxu0 0.0
        %4336 = vmatprep.subr.mxu0 0.0
        %4337 = vmatpush1.msra.mxu0 0.0
        %4338 = vmatprep.subr.mxu0 0.0
        %4339 = vmatpush1.msra.mxu0 0.0
        %4340 = vmatprep.subr.mxu0 0.0
        %4341 = vmatpush1.msra.mxu0 0.0
        %4342 = vmatprep.subr.mxu0 0.0
        %4343 = vmatpush1.msra.mxu0 0.0
        %4344 = vmatprep.subr.mxu0 0.0
        %4345 = vmatpush1.msra.mxu0 0.0
        %4346 = vmatprep.subr.mxu0 0.0
        %4347 = vmatpush1.msra.mxu0 0.0
        %4348 = vmatprep.mubr.f32.mxu0 0.0
        %4349 = vmatmul.mubr.f32.gmra.mrb[0].mxu0 %v4204
        %v4350 = vpop.f32.mrb[0].mxu0
        %v4351 = vadd.f32 0.0, %v4350
        %v4352 = vpop.f32.mrb[0].mxu0
        %4353 = vmatprep.mubr.f32.mxu0 0.0
        %4354 = vmatmul.mubr.f32.gmra.mrb[0].mxu0 %v4207
        %v4355 = vpop.f32.mrb[0].mxu0
        %v4356 = vadd.f32 0.0, %v4355
        %v4357 = vpop.f32.mrb[0].mxu0
        %4358 = vdwg.mxu0
        %v4359 = vmax.f32 %v4276, %v4351
        %v4360 = vmax.f32 %v4281, %v4356
        %v4362 = vsel %vm499, %v4195, 0
        %v4365 = vsel %vm499, %v4200, 0
        %4367 = vmatprep.subr.mxu0 0.0
        %4368 = vmatpush1.msra.mxu0 %v228
        %4369 = vmatprep.subr.mxu0 0.0
        %4370 = vmatpush1.msra.mxu0 %v229
        %4371 = vmatprep.subr.mxu0 0.0
        %4372 = vmatpush1.msra.mxu0 %v673
        %4373 = vmatprep.subr.mxu0 0.0
        %4374 = vmatpush1.msra.mxu0 0.0
        %4375 = vmatprep.subr.mxu0 0.0
        %4376 = vmatpush1.msra.mxu0 0.0
        %4377 = vmatprep.subr.mxu0 0.0
        %4378 = vmatpush1.msra.mxu0 0.0
        %4379 = vmatprep.subr.mxu0 0.0
        %4380 = vmatpush1.msra.mxu0 0.0
        %4381 = vmatprep.subr.mxu0 0.0
        %4382 = vmatpush1.msra.mxu0 0.0
        %4383 = vmatprep.subr.mxu0 0.0
        %4384 = vmatpush1.msra.mxu0 0.0
        %4385 = vmatprep.subr.mxu0 0.0
        %4386 = vmatpush1.msra.mxu0 0.0
        %4387 = vmatprep.subr.mxu0 0.0
        %4388 = vmatpush1.msra.mxu0 0.0
        %4389 = vmatprep.subr.mxu0 0.0
        %4390 = vmatpush1.msra.mxu0 0.0
        %4391 = vmatprep.subr.mxu0 0.0
        %4392 = vmatpush1.msra.mxu0 0.0
        %4393 = vmatprep.subr.mxu0 0.0
        %4394 = vmatpush1.msra.mxu0 0.0
        %4395 = vmatprep.subr.mxu0 0.0
        %4396 = vmatpush1.msra.mxu0 0.0
        %4397 = vmatprep.subr.mxu0 0.0
        %4398 = vmatpush1.msra.mxu0 0.0
        %4399 = vmatprep.subr.mxu0 0.0
        %4400 = vmatpush1.msra.mxu0 0.0
        %4401 = vmatprep.subr.mxu0 0.0
        %4402 = vmatpush1.msra.mxu0 0.0
        %4403 = vmatprep.subr.mxu0 0.0
        %4404 = vmatpush1.msra.mxu0 0.0
        %4405 = vmatprep.subr.mxu0 0.0
        %4406 = vmatpush1.msra.mxu0 0.0
        %4407 = vmatprep.subr.mxu0 0.0
        %4408 = vmatpush1.msra.mxu0 0.0
        %4409 = vmatprep.subr.mxu0 0.0
        %4410 = vmatpush1.msra.mxu0 0.0
        %4411 = vmatprep.subr.mxu0 0.0
        %4412 = vmatpush1.msra.mxu0 0.0
        %4413 = vmatprep.subr.mxu0 0.0
        %4414 = vmatpush1.msra.mxu0 0.0
        %4415 = vmatprep.subr.mxu0 0.0
        %4416 = vmatpush1.msra.mxu0 0.0
        %4417 = vmatprep.subr.mxu0 0.0
        %4418 = vmatpush1.msra.mxu0 0.0
        %4419 = vmatprep.subr.mxu0 0.0
        %4420 = vmatpush1.msra.mxu0 0.0
        %4421 = vmatprep.subr.mxu0 0.0
        %4422 = vmatpush1.msra.mxu0 0.0
        %4423 = vmatprep.subr.mxu0 0.0
        %4424 = vmatpush1.msra.mxu0 0.0
        %4425 = vmatprep.subr.mxu0 0.0
        %4426 = vmatpush1.msra.mxu0 0.0
        %4427 = vmatprep.subr.mxu0 0.0
        %4428 = vmatpush1.msra.mxu0 0.0
        %4429 = vmatprep.subr.mxu0 0.0
        %4430 = vmatpush1.msra.mxu0 0.0
        %4431 = vmatprep.mubr.f32.mxu0 0.0
        %4432 = vmatmul.mubr.f32.gmra.mrb[0].mxu0 %v4362
        %v4433 = vpop.f32.mrb[0].mxu0
        %v4434 = vadd.f32 0.0, %v4433
        %v4435 = vpop.f32.mrb[0].mxu0
        %4436 = vmatprep.mubr.f32.mxu0 0.0
        %4437 = vmatmul.mubr.f32.gmra.mrb[0].mxu0 %v4365
        %v4438 = vpop.f32.mrb[0].mxu0
        %v4439 = vadd.f32 0.0, %v4438
        %v4440 = vpop.f32.mrb[0].mxu0
        %4441 = vdwg.mxu0
        %v4442 = vmax.f32 %v4359, %v4434
        %v4443 = vmax.f32 %v4360, %v4439
        %4444 = vmatprep.subr.mxu0 0.0
        %4445 = vmatpush1.msra.mxu0 %v237
        %4446 = vmatprep.subr.mxu0 0.0
        %4447 = vmatpush1.msra.mxu0 %v238
        %4448 = vmatprep.subr.mxu0 0.0
        %4449 = vmatpush1.msra.mxu0 %v751
        %4450 = vmatprep.subr.mxu0 0.0
        %4451 = vmatpush1.msra.mxu0 0.0
        %4452 = vmatprep.subr.mxu0 0.0
        %4453 = vmatpush1.msra.mxu0 0.0
        %4454 = vmatprep.subr.mxu0 0.0
        %4455 = vmatpush1.msra.mxu0 0.0
        %4456 = vmatprep.subr.mxu0 0.0
        %4457 = vmatpush1.msra.mxu0 0.0
        %4458 = vmatprep.subr.mxu0 0.0
        %4459 = vmatpush1.msra.mxu0 0.0
        %4460 = vmatprep.subr.mxu0 0.0
        %4461 = vmatpush1.msra.mxu0 0.0
        %4462 = vmatprep.subr.mxu0 0.0
        %4463 = vmatpush1.msra.mxu0 0.0
        %4464 = vmatprep.subr.mxu0 0.0
        %4465 = vmatpush1.msra.mxu0 0.0
        %4466 = vmatprep.subr.mxu0 0.0
        %4467 = vmatpush1.msra.mxu0 0.0
        %4468 = vmatprep.subr.mxu0 0.0
        %4469 = vmatpush1.msra.mxu0 0.0
        %4470 = vmatprep.subr.mxu0 0.0
        %4471 = vmatpush1.msra.mxu0 0.0
        %4472 = vmatprep.subr.mxu0 0.0
        %4473 = vmatpush1.msra.mxu0 0.0
        %4474 = vmatprep.subr.mxu0 0.0
        %4475 = vmatpush1.msra.mxu0 0.0
        %4476 = vmatprep.subr.mxu0 0.0
        %4477 = vmatpush1.msra.mxu0 0.0
        %4478 = vmatprep.subr.mxu0 0.0
        %4479 = vmatpush1.msra.mxu0 0.0
        %4480 = vmatprep.subr.mxu0 0.0
        %4481 = vmatpush1.msra.mxu0 0.0
        %4482 = vmatprep.subr.mxu0 0.0
        %4483 = vmatpush1.msra.mxu0 0.0
        %4484 = vmatprep.subr.mxu0 0.0
        %4485 = vmatpush1.msra.mxu0 0.0
        %4486 = vmatprep.subr.mxu0 0.0
        %4487 = vmatpush1.msra.mxu0 0.0
        %4488 = vmatprep.subr.mxu0 0.0
        %4489 = vmatpush1.msra.mxu0 0.0
        %4490 = vmatprep.subr.mxu0 0.0
        %4491 = vmatpush1.msra.mxu0 0.0
        %4492 = vmatprep.subr.mxu0 0.0
        %4493 = vmatpush1.msra.mxu0 0.0
        %4494 = vmatprep.subr.mxu0 0.0
        %4495 = vmatpush1.msra.mxu0 0.0
        %4496 = vmatprep.subr.mxu0 0.0
        %4497 = vmatpush1.msra.mxu0 0.0
        %4498 = vmatprep.subr.mxu0 0.0
        %4499 = vmatpush1.msra.mxu0 0.0
        %4500 = vmatprep.subr.mxu0 0.0
        %4501 = vmatpush1.msra.mxu0 0.0
        %4502 = vmatprep.subr.mxu0 0.0
        %4503 = vmatpush1.msra.mxu0 0.0
        %4504 = vmatprep.subr.mxu0 0.0
        %4505 = vmatpush1.msra.mxu0 0.0
        %4506 = vmatprep.subr.mxu0 0.0
        %4507 = vmatpush1.msra.mxu0 0.0
        %4508 = vmatprep.mubr.f32.mxu0 0.0
        %4509 = vmatmul.mubr.f32.gmra.mrb[0].mxu0 %v4362
        %v4510 = vpop.f32.mrb[0].mxu0
        %v4511 = vadd.f32 0.0, %v4510
        %v4512 = vpop.f32.mrb[0].mxu0
        %4513 = vmatprep.mubr.f32.mxu0 0.0
        %4514 = vmatmul.mubr.f32.gmra.mrb[0].mxu0 %v4365
        %v4515 = vpop.f32.mrb[0].mxu0
        %v4516 = vadd.f32 0.0, %v4515
        %v4517 = vpop.f32.mrb[0].mxu0
        %4518 = vdwg.mxu0
        %v4519 = vmax.f32 %v4442, %v4511
        %v4520 = vmax.f32 %v4443, %v4516
        %s4521 = scalar_lea.vmem %s197, 80
        %4522 = vst.msk [vmem:[%s4521] sm:$0xff] %vm990, %v4519
        %4523 = vst.msk [vmem:[%s4521 + $0x8] sm:$0x1] %vm992, %v4520
        %s4524 = sld [smem:[#allocation2 + $0x60]]
        %v4525 = vstv %s4524
        %v4526 = vmul.f32 %v4525, %v240
        %v4527 = vmul.f32 %v4525, %v241
        %v4528 = vmul.f32 %v4525, %v242
        %v4529 = vadd.f32 %v4526, 0.0
        %v4530 = vadd.f32 %v4527, 0.0
        %v4531 = vadd.f32 %v4528, 0.0
        %s4532 = sld [smem:[#allocation2 + $0x61]]
        %v4533 = vstv %s4532
        %v4534 = vmul.f32 %v4533, %v240
        %v4535 = vmul.f32 %v4533, %v241
        %v4536 = vmul.f32 %v4533, %v242
        %4540 = vrot.lane.b32.xlu0 %v4534, 127
        %v4541 = vpop.permute.xlu0 %4540
        %4542 = vrot.lane.b32.xlu0 %v4535, 127
        %v4543 = vpop.permute.xlu0 %4542
        %4544 = vrot.lane.b32.xlu0 %v4536, 127
        %v4545 = vpop.permute.xlu0 %4544
        %v4549 = vadd.f32 %v4529, %v4541
        %v4550 = vadd.f32 %v4530, %v4543
        %v4551 = vadd.f32 %v4531, %v4545
        %s4552 = sld [smem:[#allocation2 + $0x62]]
        %v4553 = vstv %s4552
        %v4554 = vmul.f32 %v4553, %v243
        %v4555 = vmul.f32 %v4553, %v244
        %v4556 = vmul.f32 %v4553, %v245
        %v4557 = vadd.f32 %v4549, %v4554
        %v4558 = vadd.f32 %v4550, %v4555
        %v4559 = vadd.f32 %v4551, %v4556
        %s4560 = sld [smem:[#allocation2 + $0x63]]
        %v4561 = vstv %s4560
        %v4562 = vmul.f32 %v4561, %v243
        %v4563 = vmul.f32 %v4561, %v244
        %v4564 = vmul.f32 %v4561, %v245
        %4568 = vrot.lane.b32.xlu0 %v4562, 127
        %v4569 = vpop.permute.xlu0 %4568
        %4570 = vrot.lane.b32.xlu0 %v4563, 127
        %v4571 = vpop.permute.xlu0 %4570
        %4572 = vrot.lane.b32.xlu0 %v4564, 127
        %v4573 = vpop.permute.xlu0 %4572
        %v4577 = vadd.f32 %v4557, %v4569
        %v4578 = vadd.f32 %v4558, %v4571
        %v4579 = vadd.f32 %v4559, %v4573
        %s4580 = sld [smem:[#allocation2 + $0x64]]
        %v4581 = vstv %s4580
        %v4582 = vmul.f32 %v4581, %v247
        %v4583 = vmul.f32 %v4581, %v248
        %v4584 = vmul.f32 %v4581, %v249
        %v4585 = vadd.f32 %v4577, %v4582
        %v4586 = vadd.f32 %v4578, %v4583
        %v4587 = vadd.f32 %v4579, %v4584
        %s4588 = sld [smem:[#allocation2 + $0x65]]
        %v4589 = vstv %s4588
        %v4590 = vmul.f32 %v4589, %v247
        %v4591 = vmul.f32 %v4589, %v248
        %v4592 = vmul.f32 %v4589, %v249
        %4596 = vrot.lane.b32.xlu0 %v4590, 127
        %v4597 = vpop.permute.xlu0 %4596
        %4598 = vrot.lane.b32.xlu0 %v4591, 127
        %v4599 = vpop.permute.xlu0 %4598
        %4600 = vrot.lane.b32.xlu0 %v4592, 127
        %v4601 = vpop.permute.xlu0 %4600
        %v4605 = vadd.f32 %v4585, %v4597
        %v4606 = vadd.f32 %v4586, %v4599
        %v4607 = vadd.f32 %v4587, %v4601
        %s4608 = sld [smem:[#allocation2 + $0x66]]
        %v4609 = vstv %s4608
        %v4610 = vmul.f32 %v4609, %v250
        %v4611 = vmul.f32 %v4609, %v251
        %v4612 = vmul.f32 %v4609, %v252
        %v4613 = vadd.f32 %v4605, %v4610
        %v4614 = vadd.f32 %v4606, %v4611
        %v4615 = vadd.f32 %v4607, %v4612
        %s4616 = sld [smem:[#allocation2 + $0x67]]
        %v4617 = vstv %s4616
        %v4618 = vmul.f32 %v4617, %v250
        %v4619 = vmul.f32 %v4617, %v251
        %v4620 = vmul.f32 %v4617, %v252
        %4624 = vrot.lane.b32.xlu0 %v4618, 127
        %v4625 = vpop.permute.xlu0 %4624
        %4626 = vrot.lane.b32.xlu0 %v4619, 127
        %v4627 = vpop.permute.xlu0 %4626
        %4628 = vrot.lane.b32.xlu0 %v4620, 127
        %v4629 = vpop.permute.xlu0 %4628
        %v4633 = vadd.f32 %v4613, %v4625
        %v4634 = vadd.f32 %v4614, %v4627
        %v4635 = vadd.f32 %v4615, %v4629
        %s4636 = sld [smem:[#allocation2 + $0x68]]
        %v4637 = vstv %s4636
        %v4638 = vmul.f32 %v4637, %v254
        %v4639 = vmul.f32 %v4637, %v255
        %v4640 = vmul.f32 %v4637, %v256
        %v4641 = vadd.f32 %v4633, %v4638
        %v4642 = vadd.f32 %v4634, %v4639
        %v4643 = vadd.f32 %v4635, %v4640
        %s4644 = sld [smem:[#allocation2 + $0x69]]
        %v4645 = vstv %s4644
        %v4646 = vmul.f32 %v4645, %v254
        %v4647 = vmul.f32 %v4645, %v255
        %v4648 = vmul.f32 %v4645, %v256
        %4652 = vrot.lane.b32.xlu0 %v4646, 127
        %v4653 = vpop.permute.xlu0 %4652
        %4654 = vrot.lane.b32.xlu0 %v4647, 127
        %v4655 = vpop.permute.xlu0 %4654
        %4656 = vrot.lane.b32.xlu0 %v4648, 127
        %v4657 = vpop.permute.xlu0 %4656
        %v4661 = vadd.f32 %v4641, %v4653
        %v4662 = vadd.f32 %v4642, %v4655
        %v4663 = vadd.f32 %v4643, %v4657
        %s4664 = sld [smem:[#allocation2 + $0x6a]]
        %v4665 = vstv %s4664
        %v4666 = vmul.f32 %v4665, %v257
        %v4667 = vmul.f32 %v4665, %v258
        %v4668 = vmul.f32 %v4665, %v259
        %v4669 = vadd.f32 %v4661, %v4666
        %v4670 = vadd.f32 %v4662, %v4667
        %v4671 = vadd.f32 %v4663, %v4668
        %s4672 = sld [smem:[#allocation2 + $0x6b]]
        %v4673 = vstv %s4672
        %v4674 = vmul.f32 %v4673, %v257
        %v4675 = vmul.f32 %v4673, %v258
        %v4676 = vmul.f32 %v4673, %v259
        %4680 = vrot.lane.b32.xlu0 %v4674, 127
        %v4681 = vpop.permute.xlu0 %4680
        %4682 = vrot.lane.b32.xlu0 %v4675, 127
        %v4683 = vpop.permute.xlu0 %4682
        %4684 = vrot.lane.b32.xlu0 %v4676, 127
        %v4685 = vpop.permute.xlu0 %4684
        %v4689 = vadd.f32 %v4669, %v4681
        %v4690 = vadd.f32 %v4670, %v4683
        %v4691 = vadd.f32 %v4671, %v4685
        %s4692 = sld [smem:[#allocation2 + $0x6c]]
        %v4693 = vstv %s4692
        %v4694 = vmul.f32 %v4693, %v261
        %v4695 = vmul.f32 %v4693, %v262
        %v4696 = vmul.f32 %v4693, %v263
        %v4697 = vadd.f32 %v4689, %v4694
        %v4698 = vadd.f32 %v4690, %v4695
        %v4699 = vadd.f32 %v4691, %v4696
        %s4700 = sld [smem:[#allocation2 + $0x6d]]
        %v4701 = vstv %s4700
        %v4702 = vmul.f32 %v4701, %v261
        %v4703 = vmul.f32 %v4701, %v262
        %v4704 = vmul.f32 %v4701, %v263
        %4708 = vrot.lane.b32.xlu0 %v4702, 127
        %v4709 = vpop.permute.xlu0 %4708
        %4710 = vrot.lane.b32.xlu0 %v4703, 127
        %v4711 = vpop.permute.xlu0 %4710
        %4712 = vrot.lane.b32.xlu0 %v4704, 127
        %v4713 = vpop.permute.xlu0 %4712
        %v4717 = vadd.f32 %v4697, %v4709
        %v4718 = vadd.f32 %v4698, %v4711
        %v4719 = vadd.f32 %v4699, %v4713
        %s4720 = sld [smem:[#allocation2 + $0x6e]]
        %v4721 = vstv %s4720
        %v4722 = vmul.f32 %v4721, %v264
        %v4723 = vmul.f32 %v4721, %v265
        %v4724 = vmul.f32 %v4721, %v266
        %v4725 = vadd.f32 %v4717, %v4722
        %v4726 = vadd.f32 %v4718, %v4723
        %v4727 = vadd.f32 %v4719, %v4724
        %s4728 = sld [smem:[#allocation2 + $0x6f]]
        %v4729 = vstv %s4728
        %v4730 = vmul.f32 %v4729, %v264
        %v4731 = vmul.f32 %v4729, %v265
        %v4732 = vmul.f32 %v4729, %v266
        %4736 = vrot.lane.b32.xlu0 %v4730, 127
        %v4737 = vpop.permute.xlu0 %4736
        %4738 = vrot.lane.b32.xlu0 %v4731, 127
        %v4739 = vpop.permute.xlu0 %4738
        %4740 = vrot.lane.b32.xlu0 %v4732, 127
        %v4741 = vpop.permute.xlu0 %4740
        %v4745 = vadd.f32 %v4725, %v4737
        %v4746 = vadd.f32 %v4726, %v4739
        %v4747 = vadd.f32 %v4727, %v4741
        %s4748 = sld [smem:[#allocation4 + $0x6]]
        %v4749 = vstv %s4748
        %v4750 = vadd.f32 %v4745, %v4749
        %v4751 = vadd.f32 %v4746, %v4749
        %v4752 = vadd.f32 %v4747, %v4749
        %v4753 = vmax.f32 %v4750, 0.0
        %v4754 = vmax.f32 %v4751, 0.0
        %v4755 = vmax.f32 %v4752, 0.0
        %v4757 = vsel %vm506, %v4755, 0
        %4759 = vmatprep.subr.mxu0 0.0
        %4760 = vmatpush1.msra.mxu0 %v4753
        %4761 = vmatprep.subr.mxu0 0.0
        %4762 = vmatpush1.msra.mxu0 %v4754
        %4763 = vmatprep.subr.mxu0 0.0
        %4764 = vmatpush1.msra.mxu0 %v4757
        %4765 = vmatprep.subr.mxu0 0.0
        %4766 = vmatpush1.msra.mxu0 0.0
        %4767 = vmatprep.subr.mxu0 0.0
        %4768 = vmatpush1.msra.mxu0 0.0
        %4769 = vmatprep.subr.mxu0 0.0
        %4770 = vmatpush1.msra.mxu0 0.0
        %4771 = vmatprep.subr.mxu0 0.0
        %4772 = vmatpush1.msra.mxu0 0.0
        %4773 = vmatprep.subr.mxu0 0.0
        %4774 = vmatpush1.msra.mxu0 0.0
        %4775 = vmatprep.subr.mxu0 0.0
        %4776 = vmatpush1.msra.mxu0 0.0
        %4777 = vmatprep.subr.mxu0 0.0
        %4778 = vmatpush1.msra.mxu0 0.0
        %4779 = vmatprep.subr.mxu0 0.0
        %4780 = vmatpush1.msra.mxu0 0.0
        %4781 = vmatprep.subr.mxu0 0.0
        %4782 = vmatpush1.msra.mxu0 0.0
        %4783 = vmatprep.subr.mxu0 0.0
        %4784 = vmatpush1.msra.mxu0 0.0
        %4785 = vmatprep.subr.mxu0 0.0
        %4786 = vmatpush1.msra.mxu0 0.0
        %4787 = vmatprep.subr.mxu0 0.0
        %4788 = vmatpush1.msra.mxu0 0.0
        %4789 = vmatprep.subr.mxu0 0.0
        %4790 = vmatpush1.msra.mxu0 0.0
        %4791 = vmatprep.subr.mxu0 0.0
        %4792 = vmatpush1.msra.mxu0 0.0
        %4793 = vmatprep.subr.mxu0 0.0
        %4794 = vmatpush1.msra.mxu0 0.0
        %4795 = vmatprep.subr.mxu0 0.0
        %4796 = vmatpush1.msra.mxu0 0.0
        %4797 = vmatprep.subr.mxu0 0.0
        %4798 = vmatpush1.msra.mxu0 0.0
        %4799 = vmatprep.subr.mxu0 0.0
        %4800 = vmatpush1.msra.mxu0 0.0
        %4801 = vmatprep.subr.mxu0 0.0
        %4802 = vmatpush1.msra.mxu0 0.0
        %4803 = vmatprep.subr.mxu0 0.0
        %4804 = vmatpush1.msra.mxu0 0.0
        %4805 = vmatprep.subr.mxu0 0.0
        %4806 = vmatpush1.msra.mxu0 0.0
        %4807 = vmatprep.subr.mxu0 0.0
        %4808 = vmatpush1.msra.mxu0 0.0
        %4809 = vmatprep.subr.mxu0 0.0
        %4810 = vmatpush1.msra.mxu0 0.0
        %4811 = vmatprep.subr.mxu0 0.0
        %4812 = vmatpush1.msra.mxu0 0.0
        %4813 = vmatprep.subr.mxu0 0.0
        %4814 = vmatpush1.msra.mxu0 0.0
        %4815 = vmatprep.subr.mxu0 0.0
        %4816 = vmatpush1.msra.mxu0 0.0
        %4817 = vmatprep.subr.mxu0 0.0
        %4818 = vmatpush1.msra.mxu0 0.0
        %4819 = vmatprep.subr.mxu0 0.0
        %4820 = vmatpush1.msra.mxu0 0.0
        %4821 = vmatprep.subr.mxu0 0.0
        %4822 = vmatpush1.msra.mxu0 0.0
        %4823 = vmatprep.mubr.f32.mxu0 0.0
        %4824 = vmatmul.mubr.f32.gmra.mrb[0].mxu0 %v501
        %v4825 = vpop.f32.mrb[0].mxu0
        %v4826 = vadd.f32 0.0, %v4825
        %v4827 = vpop.f32.mrb[0].mxu0
        %4828 = vmatprep.mubr.f32.mxu0 0.0
        %4829 = vmatmul.mubr.f32.gmra.mrb[0].mxu0 %v504
        %v4830 = vpop.f32.mrb[0].mxu0
        %v4831 = vadd.f32 0.0, %v4830
        %v4832 = vpop.f32.mrb[0].mxu0
        %4833 = vdwg.mxu0
        %4834 = vmatprep.subr.mxu0 0.0
        %4835 = vmatpush1.msra.mxu0 %v4753
        %4836 = vmatprep.subr.mxu0 0.0
        %4837 = vmatpush1.msra.mxu0 %v4754
        %4838 = vmatprep.subr.mxu0 0.0
        %4839 = vmatpush1.msra.mxu0 %v4757
        %4840 = vmatprep.subr.mxu0 0.0
        %4841 = vmatpush1.msra.mxu0 0.0
        %4842 = vmatprep.subr.mxu0 0.0
        %4843 = vmatpush1.msra.mxu0 0.0
        %4844 = vmatprep.subr.mxu0 0.0
        %4845 = vmatpush1.msra.mxu0 0.0
        %4846 = vmatprep.subr.mxu0 0.0
        %4847 = vmatpush1.msra.mxu0 0.0
        %4848 = vmatprep.subr.mxu0 0.0
        %4849 = vmatpush1.msra.mxu0 0.0
        %4850 = vmatprep.subr.mxu0 0.0
        %4851 = vmatpush1.msra.mxu0 0.0
        %4852 = vmatprep.subr.mxu0 0.0
        %4853 = vmatpush1.msra.mxu0 0.0
        %4854 = vmatprep.subr.mxu0 0.0
        %4855 = vmatpush1.msra.mxu0 0.0
        %4856 = vmatprep.subr.mxu0 0.0
        %4857 = vmatpush1.msra.mxu0 0.0
        %4858 = vmatprep.subr.mxu0 0.0
        %4859 = vmatpush1.msra.mxu0 0.0
        %4860 = vmatprep.subr.mxu0 0.0
        %4861 = vmatpush1.msra.mxu0 0.0
        %4862 = vmatprep.subr.mxu0 0.0
        %4863 = vmatpush1.msra.mxu0 0.0
        %4864 = vmatprep.subr.mxu0 0.0
        %4865 = vmatpush1.msra.mxu0 0.0
        %4866 = vmatprep.subr.mxu0 0.0
        %4867 = vmatpush1.msra.mxu0 0.0
        %4868 = vmatprep.subr.mxu0 0.0
        %4869 = vmatpush1.msra.mxu0 0.0
        %4870 = vmatprep.subr.mxu0 0.0
        %4871 = vmatpush1.msra.mxu0 0.0
        %4872 = vmatprep.subr.mxu0 0.0
        %4873 = vmatpush1.msra.mxu0 0.0
        %4874 = vmatprep.subr.mxu0 0.0
        %4875 = vmatpush1.msra.mxu0 0.0
        %4876 = vmatprep.subr.mxu0 0.0
        %4877 = vmatpush1.msra.mxu0 0.0
        %4878 = vmatprep.subr.mxu0 0.0
        %4879 = vmatpush1.msra.mxu0 0.0
        %4880 = vmatprep.subr.mxu0 0.0
        %4881 = vmatpush1.msra.mxu0 0.0
        %4882 = vmatprep.subr.mxu0 0.0
        %4883 = vmatpush1.msra.mxu0 0.0
        %4884 = vmatprep.subr.mxu0 0.0
        %4885 = vmatpush1.msra.mxu0 0.0
        %4886 = vmatprep.subr.mxu0 0.0
        %4887 = vmatpush1.msra.mxu0 0.0
        %4888 = vmatprep.subr.mxu0 0.0
        %4889 = vmatpush1.msra.mxu0 0.0
        %4890 = vmatprep.subr.mxu0 0.0
        %4891 = vmatpush1.msra.mxu0 0.0
        %4892 = vmatprep.subr.mxu0 0.0
        %4893 = vmatpush1.msra.mxu0 0.0
        %4894 = vmatprep.subr.mxu0 0.0
        %4895 = vmatpush1.msra.mxu0 0.0
        %4896 = vmatprep.subr.mxu0 0.0
        %4897 = vmatpush1.msra.mxu0 0.0
        %4898 = vmatprep.mubr.f32.mxu0 0.0
        %4899 = vmatmul.mubr.f32.gmra.mrb[0].mxu0 %v586
        %v4900 = vpop.f32.mrb[0].mxu0
        %v4901 = vadd.f32 0.0, %v4900
        %v4902 = vpop.f32.mrb[0].mxu0
        %4903 = vmatprep.mubr.f32.mxu0 0.0
        %4904 = vmatmul.mubr.f32.gmra.mrb[0].mxu0 %v589
        %v4905 = vpop.f32.mrb[0].mxu0
        %v4906 = vadd.f32 0.0, %v4905
        %v4907 = vpop.f32.mrb[0].mxu0
        %4908 = vdwg.mxu0
        %v4910 = vsel %vm499, %v4826, 0
        %v4913 = vsel %vm499, %v4831, 0
        %4915 = vmatprep.subr.mxu0 0.0
        %4916 = vmatpush1.msra.mxu0 %v228
        %4917 = vmatprep.subr.mxu0 0.0
        %4918 = vmatpush1.msra.mxu0 %v229
        %4919 = vmatprep.subr.mxu0 0.0
        %4920 = vmatpush1.msra.mxu0 %v673
        %4921 = vmatprep.subr.mxu0 0.0
        %4922 = vmatpush1.msra.mxu0 0.0
        %4923 = vmatprep.subr.mxu0 0.0
        %4924 = vmatpush1.msra.mxu0 0.0
        %4925 = vmatprep.subr.mxu0 0.0
        %4926 = vmatpush1.msra.mxu0 0.0
        %4927 = vmatprep.subr.mxu0 0.0
        %4928 = vmatpush1.msra.mxu0 0.0
        %4929 = vmatprep.subr.mxu0 0.0
        %4930 = vmatpush1.msra.mxu0 0.0
        %4931 = vmatprep.subr.mxu0 0.0
        %4932 = vmatpush1.msra.mxu0 0.0
        %4933 = vmatprep.subr.mxu0 0.0
        %4934 = vmatpush1.msra.mxu0 0.0
        %4935 = vmatprep.subr.mxu0 0.0
        %4936 = vmatpush1.msra.mxu0 0.0
        %4937 = vmatprep.subr.mxu0 0.0
        %4938 = vmatpush1.msra.mxu0 0.0
        %4939 = vmatprep.subr.mxu0 0.0
        %4940 = vmatpush1.msra.mxu0 0.0
        %4941 = vmatprep.subr.mxu0 0.0
        %4942 = vmatpush1.msra.mxu0 0.0
        %4943 = vmatprep.subr.mxu0 0.0
        %4944 = vmatpush1.msra.mxu0 0.0
        %4945 = vmatprep.subr.mxu0 0.0
        %4946 = vmatpush1.msra.mxu0 0.0
        %4947 = vmatprep.subr.mxu0 0.0
        %4948 = vmatpush1.msra.mxu0 0.0
        %4949 = vmatprep.subr.mxu0 0.0
        %4950 = vmatpush1.msra.mxu0 0.0
        %4951 = vmatprep.subr.mxu0 0.0
        %4952 = vmatpush1.msra.mxu0 0.0
        %4953 = vmatprep.subr.mxu0 0.0
        %4954 = vmatpush1.msra.mxu0 0.0
        %4955 = vmatprep.subr.mxu0 0.0
        %4956 = vmatpush1.msra.mxu0 0.0
        %4957 = vmatprep.subr.mxu0 0.0
        %4958 = vmatpush1.msra.mxu0 0.0
        %4959 = vmatprep.subr.mxu0 0.0
        %4960 = vmatpush1.msra.mxu0 0.0
        %4961 = vmatprep.subr.mxu0 0.0
        %4962 = vmatpush1.msra.mxu0 0.0
        %4963 = vmatprep.subr.mxu0 0.0
        %4964 = vmatpush1.msra.mxu0 0.0
        %4965 = vmatprep.subr.mxu0 0.0
        %4966 = vmatpush1.msra.mxu0 0.0
        %4967 = vmatprep.subr.mxu0 0.0
        %4968 = vmatpush1.msra.mxu0 0.0
        %4969 = vmatprep.subr.mxu0 0.0
        %4970 = vmatpush1.msra.mxu0 0.0
        %4971 = vmatprep.subr.mxu0 0.0
        %4972 = vmatpush1.msra.mxu0 0.0
        %4973 = vmatprep.subr.mxu0 0.0
        %4974 = vmatpush1.msra.mxu0 0.0
        %4975 = vmatprep.subr.mxu0 0.0
        %4976 = vmatpush1.msra.mxu0 0.0
        %4977 = vmatprep.subr.mxu0 0.0
        %4978 = vmatpush1.msra.mxu0 0.0
        %4979 = vmatprep.mubr.f32.mxu0 0.0
        %4980 = vmatmul.mubr.f32.gmra.mrb[0].mxu0 %v4910
        %v4981 = vpop.f32.mrb[0].mxu0
        %v4982 = vadd.f32 0.0, %v4981
        %v4983 = vpop.f32.mrb[0].mxu0
        %4984 = vmatprep.mubr.f32.mxu0 0.0
        %4985 = vmatmul.mubr.f32.gmra.mrb[0].mxu0 %v4913
        %v4986 = vpop.f32.mrb[0].mxu0
        %v4987 = vadd.f32 0.0, %v4986
        %v4988 = vpop.f32.mrb[0].mxu0
        %4989 = vdwg.mxu0
        %4990 = vmatprep.subr.mxu0 0.0
        %4991 = vmatpush1.msra.mxu0 %v237
        %4992 = vmatprep.subr.mxu0 0.0
        %4993 = vmatpush1.msra.mxu0 %v238
        %4994 = vmatprep.subr.mxu0 0.0
        %4995 = vmatpush1.msra.mxu0 %v751
        %4996 = vmatprep.subr.mxu0 0.0
        %4997 = vmatpush1.msra.mxu0 0.0
        %4998 = vmatprep.subr.mxu0 0.0
        %4999 = vmatpush1.msra.mxu0 0.0
        %5000 = vmatprep.subr.mxu0 0.0
        %5001 = vmatpush1.msra.mxu0 0.0
        %5002 = vmatprep.subr.mxu0 0.0
        %5003 = vmatpush1.msra.mxu0 0.0
        %5004 = vmatprep.subr.mxu0 0.0
        %5005 = vmatpush1.msra.mxu0 0.0
        %5006 = vmatprep.subr.mxu0 0.0
        %5007 = vmatpush1.msra.mxu0 0.0
        %5008 = vmatprep.subr.mxu0 0.0
        %5009 = vmatpush1.msra.mxu0 0.0
        %5010 = vmatprep.subr.mxu0 0.0
        %5011 = vmatpush1.msra.mxu0 0.0
        %5012 = vmatprep.subr.mxu0 0.0
        %5013 = vmatpush1.msra.mxu0 0.0
        %5014 = vmatprep.subr.mxu0 0.0
        %5015 = vmatpush1.msra.mxu0 0.0
        %5016 = vmatprep.subr.mxu0 0.0
        %5017 = vmatpush1.msra.mxu0 0.0
        %5018 = vmatprep.subr.mxu0 0.0
        %5019 = vmatpush1.msra.mxu0 0.0
        %5020 = vmatprep.subr.mxu0 0.0
        %5021 = vmatpush1.msra.mxu0 0.0
        %5022 = vmatprep.subr.mxu0 0.0
        %5023 = vmatpush1.msra.mxu0 0.0
        %5024 = vmatprep.subr.mxu0 0.0
        %5025 = vmatpush1.msra.mxu0 0.0
        %5026 = vmatprep.subr.mxu0 0.0
        %5027 = vmatpush1.msra.mxu0 0.0
        %5028 = vmatprep.subr.mxu0 0.0
        %5029 = vmatpush1.msra.mxu0 0.0
        %5030 = vmatprep.subr.mxu0 0.0
        %5031 = vmatpush1.msra.mxu0 0.0
        %5032 = vmatprep.subr.mxu0 0.0
        %5033 = vmatpush1.msra.mxu0 0.0
        %5034 = vmatprep.subr.mxu0 0.0
        %5035 = vmatpush1.msra.mxu0 0.0
        %5036 = vmatprep.subr.mxu0 0.0
        %5037 = vmatpush1.msra.mxu0 0.0
        %5038 = vmatprep.subr.mxu0 0.0
        %5039 = vmatpush1.msra.mxu0 0.0
        %5040 = vmatprep.subr.mxu0 0.0
        %5041 = vmatpush1.msra.mxu0 0.0
        %5042 = vmatprep.subr.mxu0 0.0
        %5043 = vmatpush1.msra.mxu0 0.0
        %5044 = vmatprep.subr.mxu0 0.0
        %5045 = vmatpush1.msra.mxu0 0.0
        %5046 = vmatprep.subr.mxu0 0.0
        %5047 = vmatpush1.msra.mxu0 0.0
        %5048 = vmatprep.subr.mxu0 0.0
        %5049 = vmatpush1.msra.mxu0 0.0
        %5050 = vmatprep.subr.mxu0 0.0
        %5051 = vmatpush1.msra.mxu0 0.0
        %5052 = vmatprep.subr.mxu0 0.0
        %5053 = vmatpush1.msra.mxu0 0.0
        %5054 = vmatprep.mubr.f32.mxu0 0.0
        %5055 = vmatmul.mubr.f32.gmra.mrb[0].mxu0 %v4910
        %v5056 = vpop.f32.mrb[0].mxu0
        %v5057 = vadd.f32 0.0, %v5056
        %v5058 = vpop.f32.mrb[0].mxu0
        %5059 = vmatprep.mubr.f32.mxu0 0.0
        %5060 = vmatmul.mubr.f32.gmra.mrb[0].mxu0 %v4913
        %v5061 = vpop.f32.mrb[0].mxu0
        %v5062 = vadd.f32 0.0, %v5061
        %v5063 = vpop.f32.mrb[0].mxu0
        %5064 = vdwg.mxu0
        %v5065 = vmax.f32 %v4982, %v5057
        %v5066 = vmax.f32 %v4987, %v5062
        %v5068 = vsel %vm499, %v4901, 0
        %v5071 = vsel %vm499, %v4906, 0
        %5073 = vmatprep.subr.mxu0 0.0
        %5074 = vmatpush1.msra.mxu0 %v228
        %5075 = vmatprep.subr.mxu0 0.0
        %5076 = vmatpush1.msra.mxu0 %v229
        %5077 = vmatprep.subr.mxu0 0.0
        %5078 = vmatpush1.msra.mxu0 %v673
        %5079 = vmatprep.subr.mxu0 0.0
        %5080 = vmatpush1.msra.mxu0 0.0
        %5081 = vmatprep.subr.mxu0 0.0
        %5082 = vmatpush1.msra.mxu0 0.0
        %5083 = vmatprep.subr.mxu0 0.0
        %5084 = vmatpush1.msra.mxu0 0.0
        %5085 = vmatprep.subr.mxu0 0.0
        %5086 = vmatpush1.msra.mxu0 0.0
        %5087 = vmatprep.subr.mxu0 0.0
        %5088 = vmatpush1.msra.mxu0 0.0
        %5089 = vmatprep.subr.mxu0 0.0
        %5090 = vmatpush1.msra.mxu0 0.0
        %5091 = vmatprep.subr.mxu0 0.0
        %5092 = vmatpush1.msra.mxu0 0.0
        %5093 = vmatprep.subr.mxu0 0.0
        %5094 = vmatpush1.msra.mxu0 0.0
        %5095 = vmatprep.subr.mxu0 0.0
        %5096 = vmatpush1.msra.mxu0 0.0
        %5097 = vmatprep.subr.mxu0 0.0
        %5098 = vmatpush1.msra.mxu0 0.0
        %5099 = vmatprep.subr.mxu0 0.0
        %5100 = vmatpush1.msra.mxu0 0.0
        %5101 = vmatprep.subr.mxu0 0.0
        %5102 = vmatpush1.msra.mxu0 0.0
        %5103 = vmatprep.subr.mxu0 0.0
        %5104 = vmatpush1.msra.mxu0 0.0
        %5105 = vmatprep.subr.mxu0 0.0
        %5106 = vmatpush1.msra.mxu0 0.0
        %5107 = vmatprep.subr.mxu0 0.0
        %5108 = vmatpush1.msra.mxu0 0.0
        %5109 = vmatprep.subr.mxu0 0.0
        %5110 = vmatpush1.msra.mxu0 0.0
        %5111 = vmatprep.subr.mxu0 0.0
        %5112 = vmatpush1.msra.mxu0 0.0
        %5113 = vmatprep.subr.mxu0 0.0
        %5114 = vmatpush1.msra.mxu0 0.0
        %5115 = vmatprep.subr.mxu0 0.0
        %5116 = vmatpush1.msra.mxu0 0.0
        %5117 = vmatprep.subr.mxu0 0.0
        %5118 = vmatpush1.msra.mxu0 0.0
        %5119 = vmatprep.subr.mxu0 0.0
        %5120 = vmatpush1.msra.mxu0 0.0
        %5121 = vmatprep.subr.mxu0 0.0
        %5122 = vmatpush1.msra.mxu0 0.0
        %5123 = vmatprep.subr.mxu0 0.0
        %5124 = vmatpush1.msra.mxu0 0.0
        %5125 = vmatprep.subr.mxu0 0.0
        %5126 = vmatpush1.msra.mxu0 0.0
        %5127 = vmatprep.subr.mxu0 0.0
        %5128 = vmatpush1.msra.mxu0 0.0
        %5129 = vmatprep.subr.mxu0 0.0
        %5130 = vmatpush1.msra.mxu0 0.0
        %5131 = vmatprep.subr.mxu0 0.0
        %5132 = vmatpush1.msra.mxu0 0.0
        %5133 = vmatprep.subr.mxu0 0.0
        %5134 = vmatpush1.msra.mxu0 0.0
        %5135 = vmatprep.subr.mxu0 0.0
        %5136 = vmatpush1.msra.mxu0 0.0
        %5137 = vmatprep.mubr.f32.mxu0 0.0
        %5138 = vmatmul.mubr.f32.gmra.mrb[0].mxu0 %v5068
        %v5139 = vpop.f32.mrb[0].mxu0
        %v5140 = vadd.f32 0.0, %v5139
        %v5141 = vpop.f32.mrb[0].mxu0
        %5142 = vmatprep.mubr.f32.mxu0 0.0
        %5143 = vmatmul.mubr.f32.gmra.mrb[0].mxu0 %v5071
        %v5144 = vpop.f32.mrb[0].mxu0
        %v5145 = vadd.f32 0.0, %v5144
        %v5146 = vpop.f32.mrb[0].mxu0
        %5147 = vdwg.mxu0
        %v5148 = vmax.f32 %v5065, %v5140
        %v5149 = vmax.f32 %v5066, %v5145
        %5150 = vmatprep.subr.mxu0 0.0
        %5151 = vmatpush1.msra.mxu0 %v237
        %5152 = vmatprep.subr.mxu0 0.0
        %5153 = vmatpush1.msra.mxu0 %v238
        %5154 = vmatprep.subr.mxu0 0.0
        %5155 = vmatpush1.msra.mxu0 %v751
        %5156 = vmatprep.subr.mxu0 0.0
        %5157 = vmatpush1.msra.mxu0 0.0
        %5158 = vmatprep.subr.mxu0 0.0
        %5159 = vmatpush1.msra.mxu0 0.0
        %5160 = vmatprep.subr.mxu0 0.0
        %5161 = vmatpush1.msra.mxu0 0.0
        %5162 = vmatprep.subr.mxu0 0.0
        %5163 = vmatpush1.msra.mxu0 0.0
        %5164 = vmatprep.subr.mxu0 0.0
        %5165 = vmatpush1.msra.mxu0 0.0
        %5166 = vmatprep.subr.mxu0 0.0
        %5167 = vmatpush1.msra.mxu0 0.0
        %5168 = vmatprep.subr.mxu0 0.0
        %5169 = vmatpush1.msra.mxu0 0.0
        %5170 = vmatprep.subr.mxu0 0.0
        %5171 = vmatpush1.msra.mxu0 0.0
        %5172 = vmatprep.subr.mxu0 0.0
        %5173 = vmatpush1.msra.mxu0 0.0
        %5174 = vmatprep.subr.mxu0 0.0
        %5175 = vmatpush1.msra.mxu0 0.0
        %5176 = vmatprep.subr.mxu0 0.0
        %5177 = vmatpush1.msra.mxu0 0.0
        %5178 = vmatprep.subr.mxu0 0.0
        %5179 = vmatpush1.msra.mxu0 0.0
        %5180 = vmatprep.subr.mxu0 0.0
        %5181 = vmatpush1.msra.mxu0 0.0
        %5182 = vmatprep.subr.mxu0 0.0
        %5183 = vmatpush1.msra.mxu0 0.0
        %5184 = vmatprep.subr.mxu0 0.0
        %5185 = vmatpush1.msra.mxu0 0.0
        %5186 = vmatprep.subr.mxu0 0.0
        %5187 = vmatpush1.msra.mxu0 0.0
        %5188 = vmatprep.subr.mxu0 0.0
        %5189 = vmatpush1.msra.mxu0 0.0
        %5190 = vmatprep.subr.mxu0 0.0
        %5191 = vmatpush1.msra.mxu0 0.0
        %5192 = vmatprep.subr.mxu0 0.0
        %5193 = vmatpush1.msra.mxu0 0.0
        %5194 = vmatprep.subr.mxu0 0.0
        %5195 = vmatpush1.msra.mxu0 0.0
        %5196 = vmatprep.subr.mxu0 0.0
        %5197 = vmatpush1.msra.mxu0 0.0
        %5198 = vmatprep.subr.mxu0 0.0
        %5199 = vmatpush1.msra.mxu0 0.0
        %5200 = vmatprep.subr.mxu0 0.0
        %5201 = vmatpush1.msra.mxu0 0.0
        %5202 = vmatprep.subr.mxu0 0.0
        %5203 = vmatpush1.msra.mxu0 0.0
        %5204 = vmatprep.subr.mxu0 0.0
        %5205 = vmatpush1.msra.mxu0 0.0
        %5206 = vmatprep.subr.mxu0 0.0
        %5207 = vmatpush1.msra.mxu0 0.0
        %5208 = vmatprep.subr.mxu0 0.0
        %5209 = vmatpush1.msra.mxu0 0.0
        %5210 = vmatprep.subr.mxu0 0.0
        %5211 = vmatpush1.msra.mxu0 0.0
        %5212 = vmatprep.subr.mxu0 0.0
        %5213 = vmatpush1.msra.mxu0 0.0
        %5214 = vmatprep.mubr.f32.mxu0 0.0
        %5215 = vmatmul.mubr.f32.gmra.mrb[0].mxu0 %v5068
        %v5216 = vpop.f32.mrb[0].mxu0
        %v5217 = vadd.f32 0.0, %v5216
        %v5218 = vpop.f32.mrb[0].mxu0
        %5219 = vmatprep.mubr.f32.mxu0 0.0
        %5220 = vmatmul.mubr.f32.gmra.mrb[0].mxu0 %v5071
        %v5221 = vpop.f32.mrb[0].mxu0
        %v5222 = vadd.f32 0.0, %v5221
        %v5223 = vpop.f32.mrb[0].mxu0
        %5224 = vdwg.mxu0
        %v5225 = vmax.f32 %v5148, %v5217
        %v5226 = vmax.f32 %v5149, %v5222
        %s5227 = scalar_lea.vmem %s197, 96
        %5228 = vst.msk [vmem:[%s5227] sm:$0xff] %vm990, %v5225
        %5229 = vst.msk [vmem:[%s5227 + $0x8] sm:$0x1] %vm992, %v5226
        %s5230 = sld [smem:[#allocation2 + $0x70]]
        %v5231 = vstv %s5230
        %v5232 = vmul.f32 %v5231, %v240
        %v5233 = vmul.f32 %v5231, %v241
        %v5234 = vmul.f32 %v5231, %v242
        %v5235 = vadd.f32 %v5232, 0.0
        %v5236 = vadd.f32 %v5233, 0.0
        %v5237 = vadd.f32 %v5234, 0.0
        %s5238 = sld [smem:[#allocation2 + $0x71]]
        %v5239 = vstv %s5238
        %v5240 = vmul.f32 %v5239, %v240
        %v5241 = vmul.f32 %v5239, %v241
        %v5242 = vmul.f32 %v5239, %v242
        %5246 = vrot.lane.b32.xlu0 %v5240, 127
        %v5247 = vpop.permute.xlu0 %5246
        %5248 = vrot.lane.b32.xlu0 %v5241, 127
        %v5249 = vpop.permute.xlu0 %5248
        %5250 = vrot.lane.b32.xlu0 %v5242, 127
        %v5251 = vpop.permute.xlu0 %5250
        %v5255 = vadd.f32 %v5235, %v5247
        %v5256 = vadd.f32 %v5236, %v5249
        %v5257 = vadd.f32 %v5237, %v5251
        %s5258 = sld [smem:[#allocation2 + $0x72]]
        %v5259 = vstv %s5258
        %v5260 = vmul.f32 %v5259, %v243
        %v5261 = vmul.f32 %v5259, %v244
        %v5262 = vmul.f32 %v5259, %v245
        %v5263 = vadd.f32 %v5255, %v5260
        %v5264 = vadd.f32 %v5256, %v5261
        %v5265 = vadd.f32 %v5257, %v5262
        %s5266 = sld [smem:[#allocation2 + $0x73]]
        %v5267 = vstv %s5266
        %v5268 = vmul.f32 %v5267, %v243
        %v5269 = vmul.f32 %v5267, %v244
        %v5270 = vmul.f32 %v5267, %v245
        %5274 = vrot.lane.b32.xlu0 %v5268, 127
        %v5275 = vpop.permute.xlu0 %5274
        %5276 = vrot.lane.b32.xlu0 %v5269, 127
        %v5277 = vpop.permute.xlu0 %5276
        %5278 = vrot.lane.b32.xlu0 %v5270, 127
        %v5279 = vpop.permute.xlu0 %5278
        %v5283 = vadd.f32 %v5263, %v5275
        %v5284 = vadd.f32 %v5264, %v5277
        %v5285 = vadd.f32 %v5265, %v5279
        %s5286 = sld [smem:[#allocation2 + $0x74]]
        %v5287 = vstv %s5286
        %v5288 = vmul.f32 %v5287, %v247
        %v5289 = vmul.f32 %v5287, %v248
        %v5290 = vmul.f32 %v5287, %v249
        %v5291 = vadd.f32 %v5283, %v5288
        %v5292 = vadd.f32 %v5284, %v5289
        %v5293 = vadd.f32 %v5285, %v5290
        %s5294 = sld [smem:[#allocation2 + $0x75]]
        %v5295 = vstv %s5294
        %v5296 = vmul.f32 %v5295, %v247
        %v5297 = vmul.f32 %v5295, %v248
        %v5298 = vmul.f32 %v5295, %v249
        %5302 = vrot.lane.b32.xlu0 %v5296, 127
        %v5303 = vpop.permute.xlu0 %5302
        %5304 = vrot.lane.b32.xlu0 %v5297, 127
        %v5305 = vpop.permute.xlu0 %5304
        %5306 = vrot.lane.b32.xlu0 %v5298, 127
        %v5307 = vpop.permute.xlu0 %5306
        %v5311 = vadd.f32 %v5291, %v5303
        %v5312 = vadd.f32 %v5292, %v5305
        %v5313 = vadd.f32 %v5293, %v5307
        %s5314 = sld [smem:[#allocation2 + $0x76]]
        %v5315 = vstv %s5314
        %v5316 = vmul.f32 %v5315, %v250
        %v5317 = vmul.f32 %v5315, %v251
        %v5318 = vmul.f32 %v5315, %v252
        %v5319 = vadd.f32 %v5311, %v5316
        %v5320 = vadd.f32 %v5312, %v5317
        %v5321 = vadd.f32 %v5313, %v5318
        %s5322 = sld [smem:[#allocation2 + $0x77]]
        %v5323 = vstv %s5322
        %v5324 = vmul.f32 %v5323, %v250
        %v5325 = vmul.f32 %v5323, %v251
        %v5326 = vmul.f32 %v5323, %v252
        %5330 = vrot.lane.b32.xlu0 %v5324, 127
        %v5331 = vpop.permute.xlu0 %5330
        %5332 = vrot.lane.b32.xlu0 %v5325, 127
        %v5333 = vpop.permute.xlu0 %5332
        %5334 = vrot.lane.b32.xlu0 %v5326, 127
        %v5335 = vpop.permute.xlu0 %5334
        %v5339 = vadd.f32 %v5319, %v5331
        %v5340 = vadd.f32 %v5320, %v5333
        %v5341 = vadd.f32 %v5321, %v5335
        %s5342 = sld [smem:[#allocation2 + $0x78]]
        %v5343 = vstv %s5342
        %v5344 = vmul.f32 %v5343, %v254
        %v5345 = vmul.f32 %v5343, %v255
        %v5346 = vmul.f32 %v5343, %v256
        %v5347 = vadd.f32 %v5339, %v5344
        %v5348 = vadd.f32 %v5340, %v5345
        %v5349 = vadd.f32 %v5341, %v5346
        %s5350 = sld [smem:[#allocation2 + $0x79]]
        %v5351 = vstv %s5350
        %v5352 = vmul.f32 %v5351, %v254
        %v5353 = vmul.f32 %v5351, %v255
        %v5354 = vmul.f32 %v5351, %v256
        %5358 = vrot.lane.b32.xlu0 %v5352, 127
        %v5359 = vpop.permute.xlu0 %5358
        %5360 = vrot.lane.b32.xlu0 %v5353, 127
        %v5361 = vpop.permute.xlu0 %5360
        %5362 = vrot.lane.b32.xlu0 %v5354, 127
        %v5363 = vpop.permute.xlu0 %5362
        %v5367 = vadd.f32 %v5347, %v5359
        %v5368 = vadd.f32 %v5348, %v5361
        %v5369 = vadd.f32 %v5349, %v5363
        %s5370 = sld [smem:[#allocation2 + $0x7a]]
        %v5371 = vstv %s5370
        %v5372 = vmul.f32 %v5371, %v257
        %v5373 = vmul.f32 %v5371, %v258
        %v5374 = vmul.f32 %v5371, %v259
        %v5375 = vadd.f32 %v5367, %v5372
        %v5376 = vadd.f32 %v5368, %v5373
        %v5377 = vadd.f32 %v5369, %v5374
        %s5378 = sld [smem:[#allocation2 + $0x7b]]
        %v5379 = vstv %s5378
        %v5380 = vmul.f32 %v5379, %v257
        %v5381 = vmul.f32 %v5379, %v258
        %v5382 = vmul.f32 %v5379, %v259
        %5386 = vrot.lane.b32.xlu0 %v5380, 127
        %v5387 = vpop.permute.xlu0 %5386
        %5388 = vrot.lane.b32.xlu0 %v5381, 127
        %v5389 = vpop.permute.xlu0 %5388
        %5390 = vrot.lane.b32.xlu0 %v5382, 127
        %v5391 = vpop.permute.xlu0 %5390
        %v5395 = vadd.f32 %v5375, %v5387
        %v5396 = vadd.f32 %v5376, %v5389
        %v5397 = vadd.f32 %v5377, %v5391
        %s5398 = sld [smem:[#allocation2 + $0x7c]]
        %v5399 = vstv %s5398
        %v5400 = vmul.f32 %v5399, %v261
        %v5401 = vmul.f32 %v5399, %v262
        %v5402 = vmul.f32 %v5399, %v263
        %v5403 = vadd.f32 %v5395, %v5400
        %v5404 = vadd.f32 %v5396, %v5401
        %v5405 = vadd.f32 %v5397, %v5402
        %s5406 = sld [smem:[#allocation2 + $0x7d]]
        %v5407 = vstv %s5406
        %v5408 = vmul.f32 %v5407, %v261
        %v5409 = vmul.f32 %v5407, %v262
        %v5410 = vmul.f32 %v5407, %v263
        %5414 = vrot.lane.b32.xlu0 %v5408, 127
        %v5415 = vpop.permute.xlu0 %5414
        %5416 = vrot.lane.b32.xlu0 %v5409, 127
        %v5417 = vpop.permute.xlu0 %5416
        %5418 = vrot.lane.b32.xlu0 %v5410, 127
        %v5419 = vpop.permute.xlu0 %5418
        %v5423 = vadd.f32 %v5403, %v5415
        %v5424 = vadd.f32 %v5404, %v5417
        %v5425 = vadd.f32 %v5405, %v5419
        %s5426 = sld [smem:[#allocation2 + $0x7e]]
        %v5427 = vstv %s5426
        %v5428 = vmul.f32 %v5427, %v264
        %v5429 = vmul.f32 %v5427, %v265
        %v5430 = vmul.f32 %v5427, %v266
        %v5431 = vadd.f32 %v5423, %v5428
        %v5432 = vadd.f32 %v5424, %v5429
        %v5433 = vadd.f32 %v5425, %v5430
        %s5434 = sld [smem:[#allocation2 + $0x7f]]
        %v5435 = vstv %s5434
        %v5436 = vmul.f32 %v5435, %v264
        %v5437 = vmul.f32 %v5435, %v265
        %v5438 = vmul.f32 %v5435, %v266
        %5442 = vrot.lane.b32.xlu0 %v5436, 127
        %v5443 = vpop.permute.xlu0 %5442
        %5444 = vrot.lane.b32.xlu0 %v5437, 127
        %v5445 = vpop.permute.xlu0 %5444
        %5446 = vrot.lane.b32.xlu0 %v5438, 127
        %v5447 = vpop.permute.xlu0 %5446
        %v5451 = vadd.f32 %v5431, %v5443
        %v5452 = vadd.f32 %v5432, %v5445
        %v5453 = vadd.f32 %v5433, %v5447
        %s5454 = sld [smem:[#allocation4 + $0x7]]
        %v5455 = vstv %s5454
        %v5456 = vadd.f32 %v5451, %v5455
        %v5457 = vadd.f32 %v5452, %v5455
        %v5458 = vadd.f32 %v5453, %v5455
        %v5459 = vmax.f32 %v5456, 0.0
        %v5460 = vmax.f32 %v5457, 0.0
        %v5461 = vmax.f32 %v5458, 0.0
        %v5463 = vsel %vm506, %v5461, 0
        %5465 = vmatprep.subr.mxu0 0.0
        %5466 = vmatpush1.msra.mxu0 %v5459
        %5467 = vmatprep.subr.mxu0 0.0
        %5468 = vmatpush1.msra.mxu0 %v5460
        %5469 = vmatprep.subr.mxu0 0.0
        %5470 = vmatpush1.msra.mxu0 %v5463
        %5471 = vmatprep.subr.mxu0 0.0
        %5472 = vmatpush1.msra.mxu0 0.0
        %5473 = vmatprep.subr.mxu0 0.0
        %5474 = vmatpush1.msra.mxu0 0.0
        %5475 = vmatprep.subr.mxu0 0.0
        %5476 = vmatpush1.msra.mxu0 0.0
        %5477 = vmatprep.subr.mxu0 0.0
        %5478 = vmatpush1.msra.mxu0 0.0
        %5479 = vmatprep.subr.mxu0 0.0
        %5480 = vmatpush1.msra.mxu0 0.0
        %5481 = vmatprep.subr.mxu0 0.0
        %5482 = vmatpush1.msra.mxu0 0.0
        %5483 = vmatprep.subr.mxu0 0.0
        %5484 = vmatpush1.msra.mxu0 0.0
        %5485 = vmatprep.subr.mxu0 0.0
        %5486 = vmatpush1.msra.mxu0 0.0
        %5487 = vmatprep.subr.mxu0 0.0
        %5488 = vmatpush1.msra.mxu0 0.0
        %5489 = vmatprep.subr.mxu0 0.0
        %5490 = vmatpush1.msra.mxu0 0.0
        %5491 = vmatprep.subr.mxu0 0.0
        %5492 = vmatpush1.msra.mxu0 0.0
        %5493 = vmatprep.subr.mxu0 0.0
        %5494 = vmatpush1.msra.mxu0 0.0
        %5495 = vmatprep.subr.mxu0 0.0
        %5496 = vmatpush1.msra.mxu0 0.0
        %5497 = vmatprep.subr.mxu0 0.0
        %5498 = vmatpush1.msra.mxu0 0.0
        %5499 = vmatprep.subr.mxu0 0.0
        %5500 = vmatpush1.msra.mxu0 0.0
        %5501 = vmatprep.subr.mxu0 0.0
        %5502 = vmatpush1.msra.mxu0 0.0
        %5503 = vmatprep.subr.mxu0 0.0
        %5504 = vmatpush1.msra.mxu0 0.0
        %5505 = vmatprep.subr.mxu0 0.0
        %5506 = vmatpush1.msra.mxu0 0.0
        %5507 = vmatprep.subr.mxu0 0.0
        %5508 = vmatpush1.msra.mxu0 0.0
        %5509 = vmatprep.subr.mxu0 0.0
        %5510 = vmatpush1.msra.mxu0 0.0
        %5511 = vmatprep.subr.mxu0 0.0
        %5512 = vmatpush1.msra.mxu0 0.0
        %5513 = vmatprep.subr.mxu0 0.0
        %5514 = vmatpush1.msra.mxu0 0.0
        %5515 = vmatprep.subr.mxu0 0.0
        %5516 = vmatpush1.msra.mxu0 0.0
        %5517 = vmatprep.subr.mxu0 0.0
        %5518 = vmatpush1.msra.mxu0 0.0
        %5519 = vmatprep.subr.mxu0 0.0
        %5520 = vmatpush1.msra.mxu0 0.0
        %5521 = vmatprep.subr.mxu0 0.0
        %5522 = vmatpush1.msra.mxu0 0.0
        %5523 = vmatprep.subr.mxu0 0.0
        %5524 = vmatpush1.msra.mxu0 0.0
        %5525 = vmatprep.subr.mxu0 0.0
        %5526 = vmatpush1.msra.mxu0 0.0
        %5527 = vmatprep.subr.mxu0 0.0
        %5528 = vmatpush1.msra.mxu0 0.0
        %5529 = vmatprep.mubr.f32.mxu0 0.0
        %5530 = vmatmul.mubr.f32.gmra.mrb[0].mxu0 %v501
        %v5531 = vpop.f32.mrb[0].mxu0
        %v5532 = vadd.f32 0.0, %v5531
        %v5533 = vpop.f32.mrb[0].mxu0
        %5534 = vmatprep.mubr.f32.mxu0 0.0
        %5535 = vmatmul.mubr.f32.gmra.mrb[0].mxu0 %v504
        %v5536 = vpop.f32.mrb[0].mxu0
        %v5537 = vadd.f32 0.0, %v5536
        %v5538 = vpop.f32.mrb[0].mxu0
        %5539 = vdwg.mxu0
        %5540 = vmatprep.subr.mxu0 0.0
        %5541 = vmatpush1.msra.mxu0 %v5459
        %5542 = vmatprep.subr.mxu0 0.0
        %5543 = vmatpush1.msra.mxu0 %v5460
        %5544 = vmatprep.subr.mxu0 0.0
        %5545 = vmatpush1.msra.mxu0 %v5463
        %5546 = vmatprep.subr.mxu0 0.0
        %5547 = vmatpush1.msra.mxu0 0.0
        %5548 = vmatprep.subr.mxu0 0.0
        %5549 = vmatpush1.msra.mxu0 0.0
        %5550 = vmatprep.subr.mxu0 0.0
        %5551 = vmatpush1.msra.mxu0 0.0
        %5552 = vmatprep.subr.mxu0 0.0
        %5553 = vmatpush1.msra.mxu0 0.0
        %5554 = vmatprep.subr.mxu0 0.0
        %5555 = vmatpush1.msra.mxu0 0.0
        %5556 = vmatprep.subr.mxu0 0.0
        %5557 = vmatpush1.msra.mxu0 0.0
        %5558 = vmatprep.subr.mxu0 0.0
        %5559 = vmatpush1.msra.mxu0 0.0
        %5560 = vmatprep.subr.mxu0 0.0
        %5561 = vmatpush1.msra.mxu0 0.0
        %5562 = vmatprep.subr.mxu0 0.0
        %5563 = vmatpush1.msra.mxu0 0.0
        %5564 = vmatprep.subr.mxu0 0.0
        %5565 = vmatpush1.msra.mxu0 0.0
        %5566 = vmatprep.subr.mxu0 0.0
        %5567 = vmatpush1.msra.mxu0 0.0
        %5568 = vmatprep.subr.mxu0 0.0
        %5569 = vmatpush1.msra.mxu0 0.0
        %5570 = vmatprep.subr.mxu0 0.0
        %5571 = vmatpush1.msra.mxu0 0.0
        %5572 = vmatprep.subr.mxu0 0.0
        %5573 = vmatpush1.msra.mxu0 0.0
        %5574 = vmatprep.subr.mxu0 0.0
        %5575 = vmatpush1.msra.mxu0 0.0
        %5576 = vmatprep.subr.mxu0 0.0
        %5577 = vmatpush1.msra.mxu0 0.0
        %5578 = vmatprep.subr.mxu0 0.0
        %5579 = vmatpush1.msra.mxu0 0.0
        %5580 = vmatprep.subr.mxu0 0.0
        %5581 = vmatpush1.msra.mxu0 0.0
        %5582 = vmatprep.subr.mxu0 0.0
        %5583 = vmatpush1.msra.mxu0 0.0
        %5584 = vmatprep.subr.mxu0 0.0
        %5585 = vmatpush1.msra.mxu0 0.0
        %5586 = vmatprep.subr.mxu0 0.0
        %5587 = vmatpush1.msra.mxu0 0.0
        %5588 = vmatprep.subr.mxu0 0.0
        %5589 = vmatpush1.msra.mxu0 0.0
        %5590 = vmatprep.subr.mxu0 0.0
        %5591 = vmatpush1.msra.mxu0 0.0
        %5592 = vmatprep.subr.mxu0 0.0
        %5593 = vmatpush1.msra.mxu0 0.0
        %5594 = vmatprep.subr.mxu0 0.0
        %5595 = vmatpush1.msra.mxu0 0.0
        %5596 = vmatprep.subr.mxu0 0.0
        %5597 = vmatpush1.msra.mxu0 0.0
        %5598 = vmatprep.subr.mxu0 0.0
        %5599 = vmatpush1.msra.mxu0 0.0
        %5600 = vmatprep.subr.mxu0 0.0
        %5601 = vmatpush1.msra.mxu0 0.0
        %5602 = vmatprep.subr.mxu0 0.0
        %5603 = vmatpush1.msra.mxu0 0.0
        %5604 = vmatprep.mubr.f32.mxu0 0.0
        %5605 = vmatmul.mubr.f32.gmra.mrb[0].mxu0 %v586
        %v5606 = vpop.f32.mrb[0].mxu0
        %v5607 = vadd.f32 0.0, %v5606
        %v5608 = vpop.f32.mrb[0].mxu0
        %5609 = vmatprep.mubr.f32.mxu0 0.0
        %5610 = vmatmul.mubr.f32.gmra.mrb[0].mxu0 %v589
        %v5611 = vpop.f32.mrb[0].mxu0
        %v5612 = vadd.f32 0.0, %v5611
        %v5613 = vpop.f32.mrb[0].mxu0
        %5614 = vdwg.mxu0
        %v5616 = vsel %vm499, %v5532, 0
        %v5619 = vsel %vm499, %v5537, 0
        %5621 = vmatprep.subr.mxu0 0.0
        %5622 = vmatpush1.msra.mxu0 %v228
        %5623 = vmatprep.subr.mxu0 0.0
        %5624 = vmatpush1.msra.mxu0 %v229
        %5625 = vmatprep.subr.mxu0 0.0
        %5626 = vmatpush1.msra.mxu0 %v673
        %5627 = vmatprep.subr.mxu0 0.0
        %5628 = vmatpush1.msra.mxu0 0.0
        %5629 = vmatprep.subr.mxu0 0.0
        %5630 = vmatpush1.msra.mxu0 0.0
        %5631 = vmatprep.subr.mxu0 0.0
        %5632 = vmatpush1.msra.mxu0 0.0
        %5633 = vmatprep.subr.mxu0 0.0
        %5634 = vmatpush1.msra.mxu0 0.0
        %5635 = vmatprep.subr.mxu0 0.0
        %5636 = vmatpush1.msra.mxu0 0.0
        %5637 = vmatprep.subr.mxu0 0.0
        %5638 = vmatpush1.msra.mxu0 0.0
        %5639 = vmatprep.subr.mxu0 0.0
        %5640 = vmatpush1.msra.mxu0 0.0
        %5641 = vmatprep.subr.mxu0 0.0
        %5642 = vmatpush1.msra.mxu0 0.0
        %5643 = vmatprep.subr.mxu0 0.0
        %5644 = vmatpush1.msra.mxu0 0.0
        %5645 = vmatprep.subr.mxu0 0.0
        %5646 = vmatpush1.msra.mxu0 0.0
        %5647 = vmatprep.subr.mxu0 0.0
        %5648 = vmatpush1.msra.mxu0 0.0
        %5649 = vmatprep.subr.mxu0 0.0
        %5650 = vmatpush1.msra.mxu0 0.0
        %5651 = vmatprep.subr.mxu0 0.0
        %5652 = vmatpush1.msra.mxu0 0.0
        %5653 = vmatprep.subr.mxu0 0.0
        %5654 = vmatpush1.msra.mxu0 0.0
        %5655 = vmatprep.subr.mxu0 0.0
        %5656 = vmatpush1.msra.mxu0 0.0
        %5657 = vmatprep.subr.mxu0 0.0
        %5658 = vmatpush1.msra.mxu0 0.0
        %5659 = vmatprep.subr.mxu0 0.0
        %5660 = vmatpush1.msra.mxu0 0.0
        %5661 = vmatprep.subr.mxu0 0.0
        %5662 = vmatpush1.msra.mxu0 0.0
        %5663 = vmatprep.subr.mxu0 0.0
        %5664 = vmatpush1.msra.mxu0 0.0
        %5665 = vmatprep.subr.mxu0 0.0
        %5666 = vmatpush1.msra.mxu0 0.0
        %5667 = vmatprep.subr.mxu0 0.0
        %5668 = vmatpush1.msra.mxu0 0.0
        %5669 = vmatprep.subr.mxu0 0.0
        %5670 = vmatpush1.msra.mxu0 0.0
        %5671 = vmatprep.subr.mxu0 0.0
        %5672 = vmatpush1.msra.mxu0 0.0
        %5673 = vmatprep.subr.mxu0 0.0
        %5674 = vmatpush1.msra.mxu0 0.0
        %5675 = vmatprep.subr.mxu0 0.0
        %5676 = vmatpush1.msra.mxu0 0.0
        %5677 = vmatprep.subr.mxu0 0.0
        %5678 = vmatpush1.msra.mxu0 0.0
        %5679 = vmatprep.subr.mxu0 0.0
        %5680 = vmatpush1.msra.mxu0 0.0
        %5681 = vmatprep.subr.mxu0 0.0
        %5682 = vmatpush1.msra.mxu0 0.0
        %5683 = vmatprep.subr.mxu0 0.0
        %5684 = vmatpush1.msra.mxu0 0.0
        %5685 = vmatprep.mubr.f32.mxu0 0.0
        %5686 = vmatmul.mubr.f32.gmra.mrb[0].mxu0 %v5616
        %v5687 = vpop.f32.mrb[0].mxu0
        %v5688 = vadd.f32 0.0, %v5687
        %v5689 = vpop.f32.mrb[0].mxu0
        %5690 = vmatprep.mubr.f32.mxu0 0.0
        %5691 = vmatmul.mubr.f32.gmra.mrb[0].mxu0 %v5619
        %v5692 = vpop.f32.mrb[0].mxu0
        %v5693 = vadd.f32 0.0, %v5692
        %v5694 = vpop.f32.mrb[0].mxu0
        %5695 = vdwg.mxu0
        %5696 = vmatprep.subr.mxu0 0.0
        %5697 = vmatpush1.msra.mxu0 %v237
        %5698 = vmatprep.subr.mxu0 0.0
        %5699 = vmatpush1.msra.mxu0 %v238
        %5700 = vmatprep.subr.mxu0 0.0
        %5701 = vmatpush1.msra.mxu0 %v751
        %5702 = vmatprep.subr.mxu0 0.0
        %5703 = vmatpush1.msra.mxu0 0.0
        %5704 = vmatprep.subr.mxu0 0.0
        %5705 = vmatpush1.msra.mxu0 0.0
        %5706 = vmatprep.subr.mxu0 0.0
        %5707 = vmatpush1.msra.mxu0 0.0
        %5708 = vmatprep.subr.mxu0 0.0
        %5709 = vmatpush1.msra.mxu0 0.0
        %5710 = vmatprep.subr.mxu0 0.0
        %5711 = vmatpush1.msra.mxu0 0.0
        %5712 = vmatprep.subr.mxu0 0.0
        %5713 = vmatpush1.msra.mxu0 0.0
        %5714 = vmatprep.subr.mxu0 0.0
        %5715 = vmatpush1.msra.mxu0 0.0
        %5716 = vmatprep.subr.mxu0 0.0
        %5717 = vmatpush1.msra.mxu0 0.0
        %5718 = vmatprep.subr.mxu0 0.0
        %5719 = vmatpush1.msra.mxu0 0.0
        %5720 = vmatprep.subr.mxu0 0.0
        %5721 = vmatpush1.msra.mxu0 0.0
        %5722 = vmatprep.subr.mxu0 0.0
        %5723 = vmatpush1.msra.mxu0 0.0
        %5724 = vmatprep.subr.mxu0 0.0
        %5725 = vmatpush1.msra.mxu0 0.0
        %5726 = vmatprep.subr.mxu0 0.0
        %5727 = vmatpush1.msra.mxu0 0.0
        %5728 = vmatprep.subr.mxu0 0.0
        %5729 = vmatpush1.msra.mxu0 0.0
        %5730 = vmatprep.subr.mxu0 0.0
        %5731 = vmatpush1.msra.mxu0 0.0
        %5732 = vmatprep.subr.mxu0 0.0
        %5733 = vmatpush1.msra.mxu0 0.0
        %5734 = vmatprep.subr.mxu0 0.0
        %5735 = vmatpush1.msra.mxu0 0.0
        %5736 = vmatprep.subr.mxu0 0.0
        %5737 = vmatpush1.msra.mxu0 0.0
        %5738 = vmatprep.subr.mxu0 0.0
        %5739 = vmatpush1.msra.mxu0 0.0
        %5740 = vmatprep.subr.mxu0 0.0
        %5741 = vmatpush1.msra.mxu0 0.0
        %5742 = vmatprep.subr.mxu0 0.0
        %5743 = vmatpush1.msra.mxu0 0.0
        %5744 = vmatprep.subr.mxu0 0.0
        %5745 = vmatpush1.msra.mxu0 0.0
        %5746 = vmatprep.subr.mxu0 0.0
        %5747 = vmatpush1.msra.mxu0 0.0
        %5748 = vmatprep.subr.mxu0 0.0
        %5749 = vmatpush1.msra.mxu0 0.0
        %5750 = vmatprep.subr.mxu0 0.0
        %5751 = vmatpush1.msra.mxu0 0.0
        %5752 = vmatprep.subr.mxu0 0.0
        %5753 = vmatpush1.msra.mxu0 0.0
        %5754 = vmatprep.subr.mxu0 0.0
        %5755 = vmatpush1.msra.mxu0 0.0
        %5756 = vmatprep.subr.mxu0 0.0
        %5757 = vmatpush1.msra.mxu0 0.0
        %5758 = vmatprep.subr.mxu0 0.0
        %5759 = vmatpush1.msra.mxu0 0.0
        %5760 = vmatprep.mubr.f32.mxu0 0.0
        %5761 = vmatmul.mubr.f32.gmra.mrb[0].mxu0 %v5616
        %v5762 = vpop.f32.mrb[0].mxu0
        %v5763 = vadd.f32 0.0, %v5762
        %v5764 = vpop.f32.mrb[0].mxu0
        %5765 = vmatprep.mubr.f32.mxu0 0.0
        %5766 = vmatmul.mubr.f32.gmra.mrb[0].mxu0 %v5619
        %v5767 = vpop.f32.mrb[0].mxu0
        %v5768 = vadd.f32 0.0, %v5767
        %v5769 = vpop.f32.mrb[0].mxu0
        %5770 = vdwg.mxu0
        %v5771 = vmax.f32 %v5688, %v5763
        %v5772 = vmax.f32 %v5693, %v5768
        %v5774 = vsel %vm499, %v5607, 0
        %v5777 = vsel %vm499, %v5612, 0
        %5779 = vmatprep.subr.mxu0 0.0
        %5780 = vmatpush1.msra.mxu0 %v228
        %5781 = vmatprep.subr.mxu0 0.0
        %5782 = vmatpush1.msra.mxu0 %v229
        %5783 = vmatprep.subr.mxu0 0.0
        %5784 = vmatpush1.msra.mxu0 %v673
        %5785 = vmatprep.subr.mxu0 0.0
        %5786 = vmatpush1.msra.mxu0 0.0
        %5787 = vmatprep.subr.mxu0 0.0
        %5788 = vmatpush1.msra.mxu0 0.0
        %5789 = vmatprep.subr.mxu0 0.0
        %5790 = vmatpush1.msra.mxu0 0.0
        %5791 = vmatprep.subr.mxu0 0.0
        %5792 = vmatpush1.msra.mxu0 0.0
        %5793 = vmatprep.subr.mxu0 0.0
        %5794 = vmatpush1.msra.mxu0 0.0
        %5795 = vmatprep.subr.mxu0 0.0
        %5796 = vmatpush1.msra.mxu0 0.0
        %5797 = vmatprep.subr.mxu0 0.0
        %5798 = vmatpush1.msra.mxu0 0.0
        %5799 = vmatprep.subr.mxu0 0.0
        %5800 = vmatpush1.msra.mxu0 0.0
        %5801 = vmatprep.subr.mxu0 0.0
        %5802 = vmatpush1.msra.mxu0 0.0
        %5803 = vmatprep.subr.mxu0 0.0
        %5804 = vmatpush1.msra.mxu0 0.0
        %5805 = vmatprep.subr.mxu0 0.0
        %5806 = vmatpush1.msra.mxu0 0.0
        %5807 = vmatprep.subr.mxu0 0.0
        %5808 = vmatpush1.msra.mxu0 0.0
        %5809 = vmatprep.subr.mxu0 0.0
        %5810 = vmatpush1.msra.mxu0 0.0
        %5811 = vmatprep.subr.mxu0 0.0
        %5812 = vmatpush1.msra.mxu0 0.0
        %5813 = vmatprep.subr.mxu0 0.0
        %5814 = vmatpush1.msra.mxu0 0.0
        %5815 = vmatprep.subr.mxu0 0.0
        %5816 = vmatpush1.msra.mxu0 0.0
        %5817 = vmatprep.subr.mxu0 0.0
        %5818 = vmatpush1.msra.mxu0 0.0
        %5819 = vmatprep.subr.mxu0 0.0
        %5820 = vmatpush1.msra.mxu0 0.0
        %5821 = vmatprep.subr.mxu0 0.0
        %5822 = vmatpush1.msra.mxu0 0.0
        %5823 = vmatprep.subr.mxu0 0.0
        %5824 = vmatpush1.msra.mxu0 0.0
        %5825 = vmatprep.subr.mxu0 0.0
        %5826 = vmatpush1.msra.mxu0 0.0
        %5827 = vmatprep.subr.mxu0 0.0
        %5828 = vmatpush1.msra.mxu0 0.0
        %5829 = vmatprep.subr.mxu0 0.0
        %5830 = vmatpush1.msra.mxu0 0.0
        %5831 = vmatprep.subr.mxu0 0.0
        %5832 = vmatpush1.msra.mxu0 0.0
        %5833 = vmatprep.subr.mxu0 0.0
        %5834 = vmatpush1.msra.mxu0 0.0
        %5835 = vmatprep.subr.mxu0 0.0
        %5836 = vmatpush1.msra.mxu0 0.0
        %5837 = vmatprep.subr.mxu0 0.0
        %5838 = vmatpush1.msra.mxu0 0.0
        %5839 = vmatprep.subr.mxu0 0.0
        %5840 = vmatpush1.msra.mxu0 0.0
        %5841 = vmatprep.subr.mxu0 0.0
        %5842 = vmatpush1.msra.mxu0 0.0
        %5843 = vmatprep.mubr.f32.mxu0 0.0
        %5844 = vmatmul.mubr.f32.gmra.mrb[0].mxu0 %v5774
        %v5845 = vpop.f32.mrb[0].mxu0
        %v5846 = vadd.f32 0.0, %v5845
        %v5847 = vpop.f32.mrb[0].mxu0
        %5848 = vmatprep.mubr.f32.mxu0 0.0
        %5849 = vmatmul.mubr.f32.gmra.mrb[0].mxu0 %v5777
        %v5850 = vpop.f32.mrb[0].mxu0
        %v5851 = vadd.f32 0.0, %v5850
        %v5852 = vpop.f32.mrb[0].mxu0
        %5853 = vdwg.mxu0
        %v5854 = vmax.f32 %v5771, %v5846
        %v5855 = vmax.f32 %v5772, %v5851
        %5856 = vmatprep.subr.mxu0 0.0
        %5857 = vmatpush1.msra.mxu0 %v237
        %5858 = vmatprep.subr.mxu0 0.0
        %5859 = vmatpush1.msra.mxu0 %v238
        %5860 = vmatprep.subr.mxu0 0.0
        %5861 = vmatpush1.msra.mxu0 %v751
        %5862 = vmatprep.subr.mxu0 0.0
        %5863 = vmatpush1.msra.mxu0 0.0
        %5864 = vmatprep.subr.mxu0 0.0
        %5865 = vmatpush1.msra.mxu0 0.0
        %5866 = vmatprep.subr.mxu0 0.0
        %5867 = vmatpush1.msra.mxu0 0.0
        %5868 = vmatprep.subr.mxu0 0.0
        %5869 = vmatpush1.msra.mxu0 0.0
        %5870 = vmatprep.subr.mxu0 0.0
        %5871 = vmatpush1.msra.mxu0 0.0
        %5872 = vmatprep.subr.mxu0 0.0
        %5873 = vmatpush1.msra.mxu0 0.0
        %5874 = vmatprep.subr.mxu0 0.0
        %5875 = vmatpush1.msra.mxu0 0.0
        %5876 = vmatprep.subr.mxu0 0.0
        %5877 = vmatpush1.msra.mxu0 0.0
        %5878 = vmatprep.subr.mxu0 0.0
        %5879 = vmatpush1.msra.mxu0 0.0
        %5880 = vmatprep.subr.mxu0 0.0
        %5881 = vmatpush1.msra.mxu0 0.0
        %5882 = vmatprep.subr.mxu0 0.0
        %5883 = vmatpush1.msra.mxu0 0.0
        %5884 = vmatprep.subr.mxu0 0.0
        %5885 = vmatpush1.msra.mxu0 0.0
        %5886 = vmatprep.subr.mxu0 0.0
        %5887 = vmatpush1.msra.mxu0 0.0
        %5888 = vmatprep.subr.mxu0 0.0
        %5889 = vmatpush1.msra.mxu0 0.0
        %5890 = vmatprep.subr.mxu0 0.0
        %5891 = vmatpush1.msra.mxu0 0.0
        %5892 = vmatprep.subr.mxu0 0.0
        %5893 = vmatpush1.msra.mxu0 0.0
        %5894 = vmatprep.subr.mxu0 0.0
        %5895 = vmatpush1.msra.mxu0 0.0
        %5896 = vmatprep.subr.mxu0 0.0
        %5897 = vmatpush1.msra.mxu0 0.0
        %5898 = vmatprep.subr.mxu0 0.0
        %5899 = vmatpush1.msra.mxu0 0.0
        %5900 = vmatprep.subr.mxu0 0.0
        %5901 = vmatpush1.msra.mxu0 0.0
        %5902 = vmatprep.subr.mxu0 0.0
        %5903 = vmatpush1.msra.mxu0 0.0
        %5904 = vmatprep.subr.mxu0 0.0
        %5905 = vmatpush1.msra.mxu0 0.0
        %5906 = vmatprep.subr.mxu0 0.0
        %5907 = vmatpush1.msra.mxu0 0.0
        %5908 = vmatprep.subr.mxu0 0.0
        %5909 = vmatpush1.msra.mxu0 0.0
        %5910 = vmatprep.subr.mxu0 0.0
        %5911 = vmatpush1.msra.mxu0 0.0
        %5912 = vmatprep.subr.mxu0 0.0
        %5913 = vmatpush1.msra.mxu0 0.0
        %5914 = vmatprep.subr.mxu0 0.0
        %5915 = vmatpush1.msra.mxu0 0.0
        %5916 = vmatprep.subr.mxu0 0.0
        %5917 = vmatpush1.msra.mxu0 0.0
        %5918 = vmatprep.subr.mxu0 0.0
        %5919 = vmatpush1.msra.mxu0 0.0
        %5920 = vmatprep.mubr.f32.mxu0 0.0
        %5921 = vmatmul.mubr.f32.gmra.mrb[0].mxu0 %v5774
        %v5922 = vpop.f32.mrb[0].mxu0
        %v5923 = vadd.f32 0.0, %v5922
        %v5924 = vpop.f32.mrb[0].mxu0
        %5925 = vmatprep.mubr.f32.mxu0 0.0
        %5926 = vmatmul.mubr.f32.gmra.mrb[0].mxu0 %v5777
        %v5927 = vpop.f32.mrb[0].mxu0
        %v5928 = vadd.f32 0.0, %v5927
        %v5929 = vpop.f32.mrb[0].mxu0
        %5930 = vdwg.mxu0
        %v5931 = vmax.f32 %v5854, %v5923
        %v5932 = vmax.f32 %v5855, %v5928
        %s5933 = scalar_lea.vmem %s197, 112
        %5934 = vst.msk [vmem:[%s5933] sm:$0xff] %vm990, %v5931
        %5935 = vst.msk [vmem:[%s5933 + $0x8] sm:$0x1] %vm992, %v5932
        %p5936 = scmp.lt.s32.totalorder %s16, 1
        %s5937 = scalar_select %p5936, %s16, 1
        %s5938 = smul.addr %s5937, 16
        %s5939 = smul.addr %s5938, 8
        %s5940 = scalar_lea.vmem %s3, %s5939
        // Predicated region
        $region41: #{fc1_forward.1} parent=31 // pred_check
          %p5941 = pneg %p102
        $region42: #{fc1_forward.1} parent=31 // pred_check_branch
          %5943 = sbr.rel (%p5941) target = $region44
        $region43: #{fc1_forward.1} parent=31 // pred_region
          _
        $region44: #{fc1_forward.1} parent=31 // pred_fallthru
          _
      $region32: #{fc1_forward.1} parent=5 // pred_fallthru
        _
      %p5944 = scmp.le.s32.totalorder 2, %s11
      // Predicated region
      $region45: #{fc1_forward.1} parent=5 // pred_check
        %p5945 = pneg %p5944
      $region46: #{fc1_forward.1} parent=5 // pred_check_branch
        %5947 = sbr.rel (%p5945) target = $region48
      $region47: #{fc1_forward.1} parent=5 // pred_region
        %s5948 = ssub.s32 %s11, 2
        // Predicated region
        $region49: #{fc1_forward.1} parent=47 // pred_check
          %p5949 = pneg %p108
        $region50: #{fc1_forward.1} parent=47 // pred_check_branch
          %5951 = sbr.rel (%p5949) target = $region52
        $region51: #{fc1_forward.1} parent=47 // pred_region
          %p5952 = scmp.lt.s32.totalorder %s17, 1
          %s5953 = scalar_select %p5952, %s17, 1
          %s5954 = smul.addr %s5953, 16
          %s5955 = smul.addr %s5954, 8
          %s5956 = scalar_lea.vmem %s3, %s5955
        $region52: #{fc1_forward.1} parent=47 // pred_fallthru
          _
      $region48: #{fc1_forward.1} parent=5 // pred_fallthru
        _
    $region6: #{fc1_forward.1} parent=1 // loop_footer
      %s15 = sadd.s32 1, %s11
    $region7: #{fc1_forward.1} parent=1 // loop_footer_branch
      %10 = sbr.rel target = $region3
    $region8: #{fc1_forward.1} parent=1 // loop_exit
      _
    %5957 = vsyncpa [#allocation3], 1
    %s5958 = scalar_lea.sflag [#allocation3], 1
    %5959 = vsyncpa %s5958, 1
    %5960 = vsyncpa [#allocation5], 1

</llo_original>
